<compile_context>
chip_gen: v7x
topology: tpu7x:2x2x1
jax: 0.10.0
libtpu: 0.0.40
codegen_flags: <defaults>
</compile_context>

<pallas_src>
import functools

import jax
import jax.numpy as jnp
import numpy as np
from jax.experimental import pallas as pl
from jax.experimental.pallas import tpu as pltpu

TIME_BLOCK = 8      # time steps per grid step (unrolled inside the kernel)
_LANE = 128
_SUBLANE = 8


def _round_up(x, m):
    return ((x + m - 1) // m) * m


def _make_fused_gru_kernel(num_layers, time_block, seq_len, padded_len, hidden_p):
    """Builds the fused multi-layer GRU kernel (one time-block per grid step)."""
    L = num_layers
    H = hidden_p
    mask_tail = padded_len != seq_len   # only emit the tail mask when T was padded

    def kernel(*args):
        gi0_ref = args[0]                       # (Tc, B, 3H) layer-0 gi (+ biases)
        pos = 1
        w_hh = args[pos:pos + L]; pos += L      # each (H, 3H) bf16
        b_hn = args[pos:pos + L]; pos += L      # each (1, H)  f32 (n-gate hidden bias)
        w_ih = args[pos:pos + L - 1]; pos += L - 1   # each (H, 3H) bf16 (layers >= 1)
        b_cb = args[pos:pos + L - 1]; pos += L - 1   # each (1, 3H) f32  (layers >= 1)
        hidden_ref = args[pos]; pos += 1        # (L, B, H) output (resident)
        h_state = args[pos]                     # (L, B, H) f32 scratch, persists

        tb = pl.program_id(0)

        @pl.when(tb == 0)
        def _init():
            h_state[...] = jnp.zeros_like(h_state)

        # Load small bias vectors once per grid step (outside the unrolled loop).
        b_hn_v = [ref[...] for ref in b_hn]
        b_cb_v = [ref[...] for ref in b_cb]

        def step(s, carry):
            gi = gi0_ref[s]                     # (B, 3H) f32, layer-0 gi (+ biases)
            layer_in = None
            for l in range(L):                  # static layer loop
                h = h_state[l]                  # (B, H) f32
                if l > 0:
                    gi = jnp.dot(layer_in.astype(jnp.bfloat16), w_ih[l - 1][...],
                                 preferred_element_type=jnp.float32) + b_cb_v[l - 1]
                gh = jnp.dot(h.astype(jnp.bfloat16), w_hh[l][...],
                             preferred_element_type=jnp.float32)
                r = jax.nn.sigmoid(gi[:, 0:H] + gh[:, 0:H])
                z = jax.nn.sigmoid(gi[:, H:2 * H] + gh[:, H:2 * H])
                n = jnp.tanh(gi[:, 2 * H:3 * H] + r * (gh[:, 2 * H:3 * H] + b_hn_v[l]))
                h_new = (1.0 - z) * n + z * h
                if mask_tail:
                    valid = (tb * time_block + s) < seq_len
                    h_new = jnp.where(valid, h_new, h)
                h_state[l] = h_new
                layer_in = h_new
            return carry

        jax.lax.fori_loop(0, time_block, step, 0, unroll=True)

        @pl.when(tb == pl.num_programs(0) - 1)
        def _finalize():
            hidden_ref[...] = h_state[...].astype(hidden_ref.dtype)

    return kernel


def _fused_gru_call(gi0, w_hh_list, b_hn_list, w_ih_list, b_cb_list,
                    seq_len, time_block):
    T_p, B_p, threeH = gi0.shape
    H_p = threeH // 3
    L = len(w_hh_list)
    grid = (T_p // time_block,)

    in_specs = [pl.BlockSpec((time_block, B_p, threeH), lambda t: (t, 0, 0))]
    in_specs += [pl.BlockSpec((H_p, threeH), lambda t: (0, 0)) for _ in range(L)]
    in_specs += [pl.BlockSpec((1, H_p), lambda t: (0, 0)) for _ in range(L)]
    in_specs += [pl.BlockSpec((H_p, threeH), lambda t: (0, 0)) for _ in range(L - 1)]
    in_specs += [pl.BlockSpec((1, threeH), lambda t: (0, 0)) for _ in range(L - 1)]

    kernel = _make_fused_gru_kernel(L, time_block, seq_len, T_p, H_p)

    return pl.pallas_call(
        kernel,
        out_shape=jax.ShapeDtypeStruct((L, B_p, H_p), jnp.float32),
        grid_spec=pltpu.PrefetchScalarGridSpec(
            num_scalar_prefetch=0,
            grid=grid,
            in_specs=in_specs,
            out_specs=pl.BlockSpec((L, B_p, H_p), lambda t: (0, 0, 0)),
            scratch_shapes=[pltpu.VMEM((L, B_p, H_p), jnp.float32)],
        ),
        compiler_params=pltpu.CompilerParams(
            # time recurrence must run sequentially
            dimension_semantics=("arbitrary",),
            # headroom for resident weights at larger H (stays < v7x 64 MiB phys)
            vmem_limit_bytes=48 * 1024 * 1024,
        ),
    )(gi0, *w_hh_list, *b_hn_list, *w_ih_list, *b_cb_list)


@jax.jit
def _encoder_gru_forward_jit(x, flat_params):
    T, B, _ = x.shape
    L = len(flat_params) // 4
    params = [flat_params[4 * l: 4 * l + 4] for l in range(L)]
    H = params[0][1].shape[0]              # w_hh: (H, 3, H)

    H_p = _round_up(H, _LANE)
    B_p = _round_up(B, _SUBLANE)
    T_p = _round_up(T, TIME_BLOCK)

    def pad_gates(a):                       # pad the per-gate hidden dim H -> H_p
        pads = [(0, 0)] * (a.ndim - 1) + [(0, H_p - H)]
        return jnp.pad(a, pads)

    def pad_b(b):                           # (3, H) -> (3*H_p,)
        return pad_gates(b).reshape(3 * H_p)

    def fold_rz(b_ih_p, b_hh_p):            # fold b_hh's r/z parts into the gi bias
        return b_ih_p + jnp.concatenate(
            [b_hh_p[:2 * H_p], jnp.zeros((H_p,), b_hh_p.dtype)])

    # ---- layer 0: hoisted input projection (one big lane-dense matmul) ----
    w_ih0, _, b_ih0, b_hh0 = params[0]
    w_ih0_p = pad_gates(w_ih0).reshape(w_ih0.shape[0], 3 * H_p)       # (I, 3H_p)
    b_hh0_p = pad_b(b_hh0)
    b0 = fold_rz(pad_b(b_ih0), b_hh0_p)
    x_p = jnp.pad(x, ((0, T_p - T), (0, B_p - B), (0, 0)))
    gi0 = jnp.einsum("tbi,ij->tbj", x_p, w_ih0_p) + b0                # (T_p,B_p,3H_p)

    # ---- per-layer recurrent weights ----
    w_hh_list, b_hn_list, w_ih_list, b_cb_list = [], [], [], []
    for l in range(L):
        w_ih, w_hh, b_ih, b_hh = params[l]
        w_hh_p = jnp.pad(pad_gates(w_hh), ((0, H_p - H), (0, 0), (0, 0)))
        w_hh_list.append(w_hh_p.reshape(H_p, 3 * H_p).astype(jnp.bfloat16))
        b_hh_p = pad_b(b_hh)
        b_hn_list.append(b_hh_p[2 * H_p:].reshape(1, H_p))
        if l > 0:
            w_ih_p = jnp.pad(pad_gates(w_ih), ((0, H_p - H), (0, 0), (0, 0)))
            w_ih_list.append(w_ih_p.reshape(H_p, 3 * H_p).astype(jnp.bfloat16))
            b_cb_list.append(fold_rz(pad_b(b_ih), b_hh_p).reshape(1, 3 * H_p))

    hidden = _fused_gru_call(gi0, w_hh_list, b_hn_list, w_ih_list, b_cb_list,
                             seq_len=T, time_block=TIME_BLOCK)
    return hidden[:, :B, :H]


def encoder_gru_forward(x, params):
    flat = tuple(a for p in params for a in p)
    return _encoder_gru_forward_jit(x, flat)


def init_gru_params(key, input_size, hidden_size, num_layers, dtype=jnp.float32):
    """PyTorch-style init U(-1/sqrt(H), 1/sqrt(H)); weights stored pre-transposed
    as (in_dim, 3, H) / (H, 3, H) with gate order (r, z, n)."""
    bound = 1.0 / float(np.sqrt(hidden_size))
    params = []
    for layer in range(num_layers):
        in_dim = input_size if layer == 0 else hidden_size
        key, k1, k2, k3, k4 = jax.random.split(key, 5)
        w_ih = jax.random.uniform(k1, (in_dim, 3, hidden_size), dtype, -bound, bound)
        w_hh = jax.random.uniform(k2, (hidden_size, 3, hidden_size), dtype, -bound, bound)
        b_ih = jax.random.uniform(k3, (3, hidden_size), dtype, -bound, bound)
        b_hh = jax.random.uniform(k4, (3, hidden_size), dtype, -bound, bound)
        params.append((w_ih, w_hh, b_ih, b_hh))
    return params


def gru_reference(x, params):
    """Pure-JAX f32 reference matching torch.nn.GRU eval forward semantics."""
    T, B, _ = x.shape
    layer_in = x
    finals = []
    for (w_ih, w_hh, b_ih, b_hh) in params:
        in_dim, _, H = w_ih.shape
        Wi = w_ih.reshape(in_dim, 3 * H)
        Wh = w_hh.reshape(H, 3 * H)
        bi = b_ih.reshape(3 * H)
        bh = b_hh.reshape(3 * H)
        h = jnp.zeros((B, H), jnp.float32)
        outs = []
        for t in range(T):
            gi = layer_in[t] @ Wi + bi
            gh = h @ Wh + bh
            r = jax.nn.sigmoid(gi[:, :H] + gh[:, :H])
            z = jax.nn.sigmoid(gi[:, H:2 * H] + gh[:, H:2 * H])
            n = jnp.tanh(gi[:, 2 * H:] + r * gh[:, 2 * H:])
            h = (1.0 - z) * n + z * h
            outs.append(h)
        layer_in = jnp.stack(outs, 0)
        finals.append(h)
    return jnp.stack(finals, 0)


if __name__ == "__main__":
    input_size = 16
    hidden_size = 32
    num_layers = 2
    seq_len = 8
    batch = 4

    key = jax.random.PRNGKey(0)
    key, xk = jax.random.split(key)
    x = jax.random.normal(xk, (seq_len, batch, input_size), jnp.float32)
    params = init_gru_params(key, input_size, hidden_size, num_layers)

    hidden = encoder_gru_forward(x, params)
    hidden = jax.block_until_ready(hidden)
    assert hidden.shape == (num_layers, batch, hidden_size), hidden.shape
    assert bool(jnp.all(jnp.isfinite(hidden)))

    ref = gru_reference(x, params)
    err = float(jnp.max(jnp.abs(hidden - ref)))
    assert err < 2e-2, f"max abs err vs reference: {err}"

    print("KERNEL_OK")
</pallas_src>

<mosaic_0001>
module attributes {stable_mosaic.version = 11 : i64} {
  func.func @kernel(%arg0: i32, %arg1: memref<8x8x384xf32, #tpu.memory_space<vmem>>, %arg2: memref<128x384xbf16, #tpu.memory_space<vmem>>, %arg3: memref<128x384xbf16, #tpu.memory_space<vmem>>, %arg4: memref<1x128xf32, #tpu.memory_space<vmem>>, %arg5: memref<1x128xf32, #tpu.memory_space<vmem>>, %arg6: memref<128x384xbf16, #tpu.memory_space<vmem>>, %arg7: memref<1x384xf32, #tpu.memory_space<vmem>>, %arg8: memref<2x8x128xf32, #tpu.memory_space<vmem>>, %arg9: memref<2x8x128xf32, #tpu.memory_space<vmem>>) attributes {dimension_semantics = [#tpu.dimension_semantics<arbitrary>], iteration_bounds = array<i64: 1>, scalar_prefetch = 0 : i64, scratch_operands = 1 : i64, tpu.core_type = #tpu.core_type<tc>, window_params = [{transform_indices = @transform_0, window_bounds = array<i64: 8, 8, 384>}, {pipeline_mode = #tpu.pipeline_mode<synchronous>, transform_indices = @transform_1, window_bounds = array<i64: 128, 384>}, {pipeline_mode = #tpu.pipeline_mode<synchronous>, transform_indices = @transform_2, window_bounds = array<i64: 128, 384>}, {pipeline_mode = #tpu.pipeline_mode<synchronous>, transform_indices = @transform_3, window_bounds = array<i64: 1, 128>}, {pipeline_mode = #tpu.pipeline_mode<synchronous>, transform_indices = @transform_4, window_bounds = array<i64: 1, 128>}, {pipeline_mode = #tpu.pipeline_mode<synchronous>, transform_indices = @transform_5, window_bounds = array<i64: 128, 384>}, {pipeline_mode = #tpu.pipeline_mode<synchronous>, transform_indices = @transform_6, window_bounds = array<i64: 1, 384>}, {pipeline_mode = #tpu.pipeline_mode<synchronous>, transform_indices = @transform_7, window_bounds = array<i64: 2, 8, 128>}]} {
    %c0_i32 = arith.constant 0 : i32
    %0 = arith.cmpi eq, %arg0, %c0_i32 : i32
    %1 = arith.extui %0 : i1 to i32
    %c0_i32_0 = arith.constant 0 : i32
    %2 = arith.cmpi ne, %1, %c0_i32_0 : i32
    scf.if %2 {
      %cst_239 = arith.constant 0.000000e+00 : f32
      %649 = vector.broadcast %cst_239 : f32 to vector<2x8x128xf32>
      %c0_240 = arith.constant 0 : index
      %c0_241 = arith.constant 0 : index
      %c0_242 = arith.constant 0 : index
      %650 = vector.load %arg9[%c0_240, %c0_241, %c0_242] : memref<2x8x128xf32, #tpu.memory_space<vmem>>, vector<2x8x128xf32>
      tpu.vector_store %arg9[%c0_240, %c0_241, %c0_242], %649 {strides = array<i32>} : memref<2x8x128xf32, #tpu.memory_space<vmem>>, vector<2x8x128xf32>,
    } else {
    }
    %c0 = arith.constant 0 : index
    %c0_1 = arith.constant 0 : index
    %3 = vector.load %arg4[%c0, %c0_1] : memref<1x128xf32, #tpu.memory_space<vmem>>, vector<1x128xf32>
    %c0_2 = arith.constant 0 : index
    %c0_3 = arith.constant 0 : index
    %4 = vector.load %arg5[%c0_2, %c0_3] : memref<1x128xf32, #tpu.memory_space<vmem>>, vector<1x128xf32>
    %c0_4 = arith.constant 0 : index
    %c0_5 = arith.constant 0 : index
    %5 = vector.load %arg7[%c0_4, %c0_5] : memref<1x384xf32, #tpu.memory_space<vmem>>, vector<1x384xf32>
    %c0_i32_6 = arith.constant 0 : i32
    %6 = arith.index_cast %c0_i32_6 : i32 to index
    %c0_7 = arith.constant 0 : index
    %c0_8 = arith.constant 0 : index
    %7 = vector.load %arg1[%6, %c0_7, %c0_8] : memref<8x8x384xf32, #tpu.memory_space<vmem>>, vector<1x8x384xf32>
    %8 = vector.shape_cast %7 : vector<1x8x384xf32> to vector<8x384xf32>
    %c0_9 = arith.constant 0 : index
    %c0_10 = arith.constant 0 : index
    %c0_11 = arith.constant 0 : index
    %9 = vector.load %arg9[%c0_9, %c0_10, %c0_11] : memref<2x8x128xf32, #tpu.memory_space<vmem>>, vector<1x8x128xf32>
    %10 = vector.shape_cast %9 : vector<1x8x128xf32> to vector<8x128xf32>
    %11 = arith.truncf %10 : vector<8x128xf32> to vector<8x128xbf16>
    %c0_12 = arith.constant 0 : index
    %c0_13 = arith.constant 0 : index
    %12 = vector.load %arg2[%c0_12, %c0_13] : memref<128x384xbf16, #tpu.memory_space<vmem>>, vector<128x384xbf16>
    %cst = arith.constant dense<0.000000e+00> : vector<8x384xf32>
    %13 = tpu.matmul %11, %12, %cst {dimension_numbers = #tpu.dot_dimension_numbers<[1], [0], [0], [1], [0, 0, 1, 1], [], []>} : vector<8x128xbf16>, vector<128x384xbf16>, vector<8x384xf32> -> vector<8x384xf32>
    %14 = vector.extract_strided_slice %8 {offsets = [0, 0], sizes = [8, 128], strides = [1, 1]} : vector<8x384xf32> to vector<8x128xf32>
    %15 = vector.extract_strided_slice %13 {offsets = [0, 0], sizes = [8, 128], strides = [1, 1]} : vector<8x384xf32> to vector<8x128xf32>
    %16 = arith.addf %14, %15 : vector<8x128xf32>
    %17 = arith.negf %16 : vector<8x128xf32>
    %18 = math.exp %17 : vector<8x128xf32>
    %cst_14 = arith.constant 1.000000e+00 : f32
    %19 = vector.broadcast %cst_14 : f32 to vector<8x128xf32>
    %20 = arith.addf %19, %18 : vector<8x128xf32>
    %21 = arith.divf %19, %20 : vector<8x128xf32>
    %22 = vector.extract_strided_slice %8 {offsets = [0, 128], sizes = [8, 128], strides = [1, 1]} : vector<8x384xf32> to vector<8x128xf32>
    %23 = vector.extract_strided_slice %13 {offsets = [0, 128], sizes = [8, 128], strides = [1, 1]} : vector<8x384xf32> to vector<8x128xf32>
    %24 = arith.addf %22, %23 : vector<8x128xf32>
    %25 = arith.negf %24 : vector<8x128xf32>
    %26 = math.exp %25 : vector<8x128xf32>
    %cst_15 = arith.constant 1.000000e+00 : f32
    %27 = vector.broadcast %cst_15 : f32 to vector<8x128xf32>
    %28 = arith.addf %27, %26 : vector<8x128xf32>
    %29 = arith.divf %27, %28 : vector<8x128xf32>
    %30 = vector.extract_strided_slice %8 {offsets = [0, 256], sizes = [8, 128], strides = [1, 1]} : vector<8x384xf32> to vector<8x128xf32>
    %31 = vector.extract_strided_slice %13 {offsets = [0, 256], sizes = [8, 128], strides = [1, 1]} : vector<8x384xf32> to vector<8x128xf32>
    %32 = vector.broadcast %3 : vector<1x128xf32> to vector<8x128xf32>
    %33 = arith.addf %31, %32 : vector<8x128xf32>
    %34 = arith.mulf %21, %33 : vector<8x128xf32>
    %35 = arith.addf %30, %34 : vector<8x128xf32>
    %36 = math.tanh %35 : vector<8x128xf32>
    %cst_16 = arith.constant 1.000000e+00 : f32
    %37 = vector.broadcast %cst_16 : f32 to vector<8x128xf32>
    %38 = arith.subf %37, %29 : vector<8x128xf32>
    %39 = arith.mulf %38, %36 : vector<8x128xf32>
    %40 = arith.mulf %29, %10 : vector<8x128xf32>
    %41 = arith.addf %39, %40 : vector<8x128xf32>
    %c0_17 = arith.constant 0 : index
    %c0_18 = arith.constant 0 : index
    %c0_19 = arith.constant 0 : index
    %42 = vector.load %arg9[%c0_17, %c0_18, %c0_19] : memref<2x8x128xf32, #tpu.memory_space<vmem>>, vector<1x8x128xf32>
    %43 = vector.shape_cast %42 : vector<1x8x128xf32> to vector<8x128xf32>
    %44 = vector.shape_cast %41 : vector<8x128xf32> to vector<1x8x128xf32>
    tpu.vector_store %arg9[%c0_17, %c0_18, %c0_19], %44 {strides = array<i32>} : memref<2x8x128xf32, #tpu.memory_space<vmem>>, vector<1x8x128xf32>,
    %c1 = arith.constant 1 : index
    %c0_20 = arith.constant 0 : index
    %c0_21 = arith.constant 0 : index
    %45 = vector.load %arg9[%c1, %c0_20, %c0_21] : memref<2x8x128xf32, #tpu.memory_space<vmem>>, vector<1x8x128xf32>
    %46 = vector.shape_cast %45 : vector<1x8x128xf32> to vector<8x128xf32>
    %47 = arith.truncf %41 : vector<8x128xf32> to vector<8x128xbf16>
    %c0_22 = arith.constant 0 : index
    %c0_23 = arith.constant 0 : index
    %48 = vector.load %arg6[%c0_22, %c0_23] : memref<128x384xbf16, #tpu.memory_space<vmem>>, vector<128x384xbf16>
    %cst_24 = arith.constant dense<0.000000e+00> : vector<8x384xf32>
    %49 = tpu.matmul %47, %48, %cst_24 {dimension_numbers = #tpu.dot_dimension_numbers<[1], [0], [0], [1], [0, 0, 1, 1], [], []>} : vector<8x128xbf16>, vector<128x384xbf16>, vector<8x384xf32> -> vector<8x384xf32>
    %50 = vector.broadcast %5 : vector<1x384xf32> to vector<8x384xf32>
    %51 = arith.addf %49, %50 : vector<8x384xf32>
    %52 = arith.truncf %46 : vector<8x128xf32> to vector<8x128xbf16>
    %c0_25 = arith.constant 0 : index
    %c0_26 = arith.constant 0 : index
    %53 = vector.load %arg3[%c0_25, %c0_26] : memref<128x384xbf16, #tpu.memory_space<vmem>>, vector<128x384xbf16>
    %cst_27 = arith.constant dense<0.000000e+00> : vector<8x384xf32>
    %54 = tpu.matmul %52, %53, %cst_27 {dimension_numbers = #tpu.dot_dimension_numbers<[1], [0], [0], [1], [0, 0, 1, 1], [], []>} : vector<8x128xbf16>, vector<128x384xbf16>, vector<8x384xf32> -> vector<8x384xf32>
    %55 = vector.extract_strided_slice %51 {offsets = [0, 0], sizes = [8, 128], strides = [1, 1]} : vector<8x384xf32> to vector<8x128xf32>
    %56 = vector.extract_strided_slice %54 {offsets = [0, 0], sizes = [8, 128], strides = [1, 1]} : vector<8x384xf32> to vector<8x128xf32>
    %57 = arith.addf %55, %56 : vector<8x128xf32>
    %58 = arith.negf %57 : vector<8x128xf32>
    %59 = math.exp %58 : vector<8x128xf32>
    %cst_28 = arith.constant 1.000000e+00 : f32
    %60 = vector.broadcast %cst_28 : f32 to vector<8x128xf32>
    %61 = arith.addf %60, %59 : vector<8x128xf32>
    %62 = arith.divf %60, %61 : vector<8x128xf32>
    %63 = vector.extract_strided_slice %51 {offsets = [0, 128], sizes = [8, 128], strides = [1, 1]} : vector<8x384xf32> to vector<8x128xf32>
    %64 = vector.extract_strided_slice %54 {offsets = [0, 128], sizes = [8, 128], strides = [1, 1]} : vector<8x384xf32> to vector<8x128xf32>
    %65 = arith.addf %63, %64 : vector<8x128xf32>
    %66 = arith.negf %65 : vector<8x128xf32>
    %67 = math.exp %66 : vector<8x128xf32>
    %cst_29 = arith.constant 1.000000e+00 : f32
    %68 = vector.broadcast %cst_29 : f32 to vector<8x128xf32>
    %69 = arith.addf %68, %67 : vector<8x128xf32>
    %70 = arith.divf %68, %69 : vector<8x128xf32>
    %71 = vector.extract_strided_slice %51 {offsets = [0, 256], sizes = [8, 128], strides = [1, 1]} : vector<8x384xf32> to vector<8x128xf32>
    %72 = vector.extract_strided_slice %54 {offsets = [0, 256], sizes = [8, 128], strides = [1, 1]} : vector<8x384xf32> to vector<8x128xf32>
    %73 = vector.broadcast %4 : vector<1x128xf32> to vector<8x128xf32>
    %74 = arith.addf %72, %73 : vector<8x128xf32>
    %75 = arith.mulf %62, %74 : vector<8x128xf32>
    %76 = arith.addf %71, %75 : vector<8x128xf32>
    %77 = math.tanh %76 : vector<8x128xf32>
    %cst_30 = arith.constant 1.000000e+00 : f32
    %78 = vector.broadcast %cst_30 : f32 to vector<8x128xf32>
    %79 = arith.subf %78, %70 : vector<8x128xf32>
    %80 = arith.mulf %79, %77 : vector<8x128xf32>
    %81 = arith.mulf %70, %46 : vector<8x128xf32>
    %82 = arith.addf %80, %81 : vector<8x128xf32>
    %c1_31 = arith.constant 1 : index
    %c0_32 = arith.constant 0 : index
    %c0_33 = arith.constant 0 : index
    %83 = vector.load %arg9[%c1_31, %c0_32, %c0_33] : memref<2x8x128xf32, #tpu.memory_space<vmem>>, vector<1x8x128xf32>
    %84 = vector.shape_cast %83 : vector<1x8x128xf32> to vector<8x128xf32>
    %85 = vector.shape_cast %82 : vector<8x128xf32> to vector<1x8x128xf32>
    tpu.vector_store %arg9[%c1_31, %c0_32, %c0_33], %85 {strides = array<i32>} : memref<2x8x128xf32, #tpu.memory_space<vmem>>, vector<1x8x128xf32>,
    %c1_i32 = arith.constant 1 : i32
    %86 = arith.index_cast %c1_i32 : i32 to index
    %c0_34 = arith.constant 0 : index
    %c0_35 = arith.constant 0 : index
    %87 = vector.load %arg1[%86, %c0_34, %c0_35] : memref<8x8x384xf32, #tpu.memory_space<vmem>>, vector<1x8x384xf32>
    %88 = vector.shape_cast %87 : vector<1x8x384xf32> to vector<8x384xf32>
    %c0_36 = arith.constant 0 : index
    %c0_37 = arith.constant 0 : index
    %c0_38 = arith.constant 0 : index
    %89 = vector.load %arg9[%c0_36, %c0_37, %c0_38] : memref<2x8x128xf32, #tpu.memory_space<vmem>>, vector<1x8x128xf32>
    %90 = vector.shape_cast %89 : vector<1x8x128xf32> to vector<8x128xf32>
    %91 = arith.truncf %90 : vector<8x128xf32> to vector<8x128xbf16>
    %c0_39 = arith.constant 0 : index
    %c0_40 = arith.constant 0 : index
    %92 = vector.load %arg2[%c0_39, %c0_40] : memref<128x384xbf16, #tpu.memory_space<vmem>>, vector<128x384xbf16>
    %cst_41 = arith.constant dense<0.000000e+00> : vector<8x384xf32>
    %93 = tpu.matmul %91, %92, %cst_41 {dimension_numbers = #tpu.dot_dimension_numbers<[1], [0], [0], [1], [0, 0, 1, 1], [], []>} : vector<8x128xbf16>, vector<128x384xbf16>, vector<8x384xf32> -> vector<8x384xf32>
    %94 = vector.extract_strided_slice %88 {offsets = [0, 0], sizes = [8, 128], strides = [1, 1]} : vector<8x384xf32> to vector<8x128xf32>
    %95 = vector.extract_strided_slice %93 {offsets = [0, 0], sizes = [8, 128], strides = [1, 1]} : vector<8x384xf32> to vector<8x128xf32>
    %96 = arith.addf %94, %95 : vector<8x128xf32>
    %97 = arith.negf %96 : vector<8x128xf32>
    %98 = math.exp %97 : vector<8x128xf32>
    %cst_42 = arith.constant 1.000000e+00 : f32
    %99 = vector.broadcast %cst_42 : f32 to vector<8x128xf32>
    %100 = arith.addf %99, %98 : vector<8x128xf32>
    %101 = arith.divf %99, %100 : vector<8x128xf32>
    %102 = vector.extract_strided_slice %88 {offsets = [0, 128], sizes = [8, 128], strides = [1, 1]} : vector<8x384xf32> to vector<8x128xf32>
    %103 = vector.extract_strided_slice %93 {offsets = [0, 128], sizes = [8, 128], strides = [1, 1]} : vector<8x384xf32> to vector<8x128xf32>
    %104 = arith.addf %102, %103 : vector<8x128xf32>
    %105 = arith.negf %104 : vector<8x128xf32>
    %106 = math.exp %105 : vector<8x128xf32>
    %cst_43 = arith.constant 1.000000e+00 : f32
    %107 = vector.broadcast %cst_43 : f32 to vector<8x128xf32>
    %108 = arith.addf %107, %106 : vector<8x128xf32>
    %109 = arith.divf %107, %108 : vector<8x128xf32>
    %110 = vector.extract_strided_slice %88 {offsets = [0, 256], sizes = [8, 128], strides = [1, 1]} : vector<8x384xf32> to vector<8x128xf32>
    %111 = vector.extract_strided_slice %93 {offsets = [0, 256], sizes = [8, 128], strides = [1, 1]} : vector<8x384xf32> to vector<8x128xf32>
    %112 = vector.broadcast %3 : vector<1x128xf32> to vector<8x128xf32>
    %113 = arith.addf %111, %112 : vector<8x128xf32>
    %114 = arith.mulf %101, %113 : vector<8x128xf32>
    %115 = arith.addf %110, %114 : vector<8x128xf32>
    %116 = math.tanh %115 : vector<8x128xf32>
    %cst_44 = arith.constant 1.000000e+00 : f32
    %117 = vector.broadcast %cst_44 : f32 to vector<8x128xf32>
    %118 = arith.subf %117, %109 : vector<8x128xf32>
    %119 = arith.mulf %118, %116 : vector<8x128xf32>
    %120 = arith.mulf %109, %90 : vector<8x128xf32>
    %121 = arith.addf %119, %120 : vector<8x128xf32>
    %c0_45 = arith.constant 0 : index
    %c0_46 = arith.constant 0 : index
    %c0_47 = arith.constant 0 : index
    %122 = vector.load %arg9[%c0_45, %c0_46, %c0_47] : memref<2x8x128xf32, #tpu.memory_space<vmem>>, vector<1x8x128xf32>
    %123 = vector.shape_cast %122 : vector<1x8x128xf32> to vector<8x128xf32>
    %124 = vector.shape_cast %121 : vector<8x128xf32> to vector<1x8x128xf32>
    tpu.vector_store %arg9[%c0_45, %c0_46, %c0_47], %124 {strides = array<i32>} : memref<2x8x128xf32, #tpu.memory_space<vmem>>, vector<1x8x128xf32>,
    %c1_48 = arith.constant 1 : index
    %c0_49 = arith.constant 0 : index
    %c0_50 = arith.constant 0 : index
    %125 = vector.load %arg9[%c1_48, %c0_49, %c0_50] : memref<2x8x128xf32, #tpu.memory_space<vmem>>, vector<1x8x128xf32>
    %126 = vector.shape_cast %125 : vector<1x8x128xf32> to vector<8x128xf32>
    %127 = arith.truncf %121 : vector<8x128xf32> to vector<8x128xbf16>
    %c0_51 = arith.constant 0 : index
    %c0_52 = arith.constant 0 : index
    %128 = vector.load %arg6[%c0_51, %c0_52] : memref<128x384xbf16, #tpu.memory_space<vmem>>, vector<128x384xbf16>
    %cst_53 = arith.constant dense<0.000000e+00> : vector<8x384xf32>
    %129 = tpu.matmul %127, %128, %cst_53 {dimension_numbers = #tpu.dot_dimension_numbers<[1], [0], [0], [1], [0, 0, 1, 1], [], []>} : vector<8x128xbf16>, vector<128x384xbf16>, vector<8x384xf32> -> vector<8x384xf32>
    %130 = vector.broadcast %5 : vector<1x384xf32> to vector<8x384xf32>
    %131 = arith.addf %129, %130 : vector<8x384xf32>
    %132 = arith.truncf %126 : vector<8x128xf32> to vector<8x128xbf16>
    %c0_54 = arith.constant 0 : index
    %c0_55 = arith.constant 0 : index
    %133 = vector.load %arg3[%c0_54, %c0_55] : memref<128x384xbf16, #tpu.memory_space<vmem>>, vector<128x384xbf16>
    %cst_56 = arith.constant dense<0.000000e+00> : vector<8x384xf32>
    %134 = tpu.matmul %132, %133, %cst_56 {dimension_numbers = #tpu.dot_dimension_numbers<[1], [0], [0], [1], [0, 0, 1, 1], [], []>} : vector<8x128xbf16>, vector<128x384xbf16>, vector<8x384xf32> -> vector<8x384xf32>
    %135 = vector.extract_strided_slice %131 {offsets = [0, 0], sizes = [8, 128], strides = [1, 1]} : vector<8x384xf32> to vector<8x128xf32>
    %136 = vector.extract_strided_slice %134 {offsets = [0, 0], sizes = [8, 128], strides = [1, 1]} : vector<8x384xf32> to vector<8x128xf32>
    %137 = arith.addf %135, %136 : vector<8x128xf32>
    %138 = arith.negf %137 : vector<8x128xf32>
    %139 = math.exp %138 : vector<8x128xf32>
    %cst_57 = arith.constant 1.000000e+00 : f32
    %140 = vector.broadcast %cst_57 : f32 to vector<8x128xf32>
    %141 = arith.addf %140, %139 : vector<8x128xf32>
    %142 = arith.divf %140, %141 : vector<8x128xf32>
    %143 = vector.extract_strided_slice %131 {offsets = [0, 128], sizes = [8, 128], strides = [1, 1]} : vector<8x384xf32> to vector<8x128xf32>
    %144 = vector.extract_strided_slice %134 {offsets = [0, 128], sizes = [8, 128], strides = [1, 1]} : vector<8x384xf32> to vector<8x128xf32>
    %145 = arith.addf %143, %144 : vector<8x128xf32>
    %146 = arith.negf %145 : vector<8x128xf32>
    %147 = math.exp %146 : vector<8x128xf32>
    %cst_58 = arith.constant 1.000000e+00 : f32
    %148 = vector.broadcast %cst_58 : f32 to vector<8x128xf32>
    %149 = arith.addf %148, %147 : vector<8x128xf32>
    %150 = arith.divf %148, %149 : vector<8x128xf32>
    %151 = vector.extract_strided_slice %131 {offsets = [0, 256], sizes = [8, 128], strides = [1, 1]} : vector<8x384xf32> to vector<8x128xf32>
    %152 = vector.extract_strided_slice %134 {offsets = [0, 256], sizes = [8, 128], strides = [1, 1]} : vector<8x384xf32> to vector<8x128xf32>
    %153 = vector.broadcast %4 : vector<1x128xf32> to vector<8x128xf32>
    %154 = arith.addf %152, %153 : vector<8x128xf32>
    %155 = arith.mulf %142, %154 : vector<8x128xf32>
    %156 = arith.addf %151, %155 : vector<8x128xf32>
    %157 = math.tanh %156 : vector<8x128xf32>
    %cst_59 = arith.constant 1.000000e+00 : f32
    %158 = vector.broadcast %cst_59 : f32 to vector<8x128xf32>
    %159 = arith.subf %158, %150 : vector<8x128xf32>
    %160 = arith.mulf %159, %157 : vector<8x128xf32>
    %161 = arith.mulf %150, %126 : vector<8x128xf32>
    %162 = arith.addf %160, %161 : vector<8x128xf32>
    %c1_60 = arith.constant 1 : index
    %c0_61 = arith.constant 0 : index
    %c0_62 = arith.constant 0 : index
    %163 = vector.load %arg9[%c1_60, %c0_61, %c0_62] : memref<2x8x128xf32, #tpu.memory_space<vmem>>, vector<1x8x128xf32>
    %164 = vector.shape_cast %163 : vector<1x8x128xf32> to vector<8x128xf32>
    %165 = vector.shape_cast %162 : vector<8x128xf32> to vector<1x8x128xf32>
    tpu.vector_store %arg9[%c1_60, %c0_61, %c0_62], %165 {strides = array<i32>} : memref<2x8x128xf32, #tpu.memory_space<vmem>>, vector<1x8x128xf32>,
    %c2_i32 = arith.constant 2 : i32
    %166 = arith.index_cast %c2_i32 : i32 to index
    %c0_63 = arith.constant 0 : index
    %c0_64 = arith.constant 0 : index
    %167 = vector.load %arg1[%166, %c0_63, %c0_64] : memref<8x8x384xf32, #tpu.memory_space<vmem>>, vector<1x8x384xf32>
    %168 = vector.shape_cast %167 : vector<1x8x384xf32> to vector<8x384xf32>
    %c0_65 = arith.constant 0 : index
    %c0_66 = arith.constant 0 : index
    %c0_67 = arith.constant 0 : index
    %169 = vector.load %arg9[%c0_65, %c0_66, %c0_67] : memref<2x8x128xf32, #tpu.memory_space<vmem>>, vector<1x8x128xf32>
    %170 = vector.shape_cast %169 : vector<1x8x128xf32> to vector<8x128xf32>
    %171 = arith.truncf %170 : vector<8x128xf32> to vector<8x128xbf16>
    %c0_68 = arith.constant 0 : index
    %c0_69 = arith.constant 0 : index
    %172 = vector.load %arg2[%c0_68, %c0_69] : memref<128x384xbf16, #tpu.memory_space<vmem>>, vector<128x384xbf16>
    %cst_70 = arith.constant dense<0.000000e+00> : vector<8x384xf32>
    %173 = tpu.matmul %171, %172, %cst_70 {dimension_numbers = #tpu.dot_dimension_numbers<[1], [0], [0], [1], [0, 0, 1, 1], [], []>} : vector<8x128xbf16>, vector<128x384xbf16>, vector<8x384xf32> -> vector<8x384xf32>
    %174 = vector.extract_strided_slice %168 {offsets = [0, 0], sizes = [8, 128], strides = [1, 1]} : vector<8x384xf32> to vector<8x128xf32>
    %175 = vector.extract_strided_slice %173 {offsets = [0, 0], sizes = [8, 128], strides = [1, 1]} : vector<8x384xf32> to vector<8x128xf32>
    %176 = arith.addf %174, %175 : vector<8x128xf32>
    %177 = arith.negf %176 : vector<8x128xf32>
    %178 = math.exp %177 : vector<8x128xf32>
    %cst_71 = arith.constant 1.000000e+00 : f32
    %179 = vector.broadcast %cst_71 : f32 to vector<8x128xf32>
    %180 = arith.addf %179, %178 : vector<8x128xf32>
    %181 = arith.divf %179, %180 : vector<8x128xf32>
    %182 = vector.extract_strided_slice %168 {offsets = [0, 128], sizes = [8, 128], strides = [1, 1]} : vector<8x384xf32> to vector<8x128xf32>
    %183 = vector.extract_strided_slice %173 {offsets = [0, 128], sizes = [8, 128], strides = [1, 1]} : vector<8x384xf32> to vector<8x128xf32>
    %184 = arith.addf %182, %183 : vector<8x128xf32>
    %185 = arith.negf %184 : vector<8x128xf32>
    %186 = math.exp %185 : vector<8x128xf32>
    %cst_72 = arith.constant 1.000000e+00 : f32
    %187 = vector.broadcast %cst_72 : f32 to vector<8x128xf32>
    %188 = arith.addf %187, %186 : vector<8x128xf32>
    %189 = arith.divf %187, %188 : vector<8x128xf32>
    %190 = vector.extract_strided_slice %168 {offsets = [0, 256], sizes = [8, 128], strides = [1, 1]} : vector<8x384xf32> to vector<8x128xf32>
    %191 = vector.extract_strided_slice %173 {offsets = [0, 256], sizes = [8, 128], strides = [1, 1]} : vector<8x384xf32> to vector<8x128xf32>
    %192 = vector.broadcast %3 : vector<1x128xf32> to vector<8x128xf32>
    %193 = arith.addf %191, %192 : vector<8x128xf32>
    %194 = arith.mulf %181, %193 : vector<8x128xf32>
    %195 = arith.addf %190, %194 : vector<8x128xf32>
    %196 = math.tanh %195 : vector<8x128xf32>
    %cst_73 = arith.constant 1.000000e+00 : f32
    %197 = vector.broadcast %cst_73 : f32 to vector<8x128xf32>
    %198 = arith.subf %197, %189 : vector<8x128xf32>
    %199 = arith.mulf %198, %196 : vector<8x128xf32>
    %200 = arith.mulf %189, %170 : vector<8x128xf32>
    %201 = arith.addf %199, %200 : vector<8x128xf32>
    %c0_74 = arith.constant 0 : index
    %c0_75 = arith.constant 0 : index
    %c0_76 = arith.constant 0 : index
    %202 = vector.load %arg9[%c0_74, %c0_75, %c0_76] : memref<2x8x128xf32, #tpu.memory_space<vmem>>, vector<1x8x128xf32>
    %203 = vector.shape_cast %202 : vector<1x8x128xf32> to vector<8x128xf32>
    %204 = vector.shape_cast %201 : vector<8x128xf32> to vector<1x8x128xf32>
    tpu.vector_store %arg9[%c0_74, %c0_75, %c0_76], %204 {strides = array<i32>} : memref<2x8x128xf32, #tpu.memory_space<vmem>>, vector<1x8x128xf32>,
    %c1_77 = arith.constant 1 : index
    %c0_78 = arith.constant 0 : index
    %c0_79 = arith.constant 0 : index
    %205 = vector.load %arg9[%c1_77, %c0_78, %c0_79] : memref<2x8x128xf32, #tpu.memory_space<vmem>>, vector<1x8x128xf32>
    %206 = vector.shape_cast %205 : vector<1x8x128xf32> to vector<8x128xf32>
    %207 = arith.truncf %201 : vector<8x128xf32> to vector<8x128xbf16>
    %c0_80 = arith.constant 0 : index
    %c0_81 = arith.constant 0 : index
    %208 = vector.load %arg6[%c0_80, %c0_81] : memref<128x384xbf16, #tpu.memory_space<vmem>>, vector<128x384xbf16>
    %cst_82 = arith.constant dense<0.000000e+00> : vector<8x384xf32>
    %209 = tpu.matmul %207, %208, %cst_82 {dimension_numbers = #tpu.dot_dimension_numbers<[1], [0], [0], [1], [0, 0, 1, 1], [], []>} : vector<8x128xbf16>, vector<128x384xbf16>, vector<8x384xf32> -> vector<8x384xf32>
    %210 = vector.broadcast %5 : vector<1x384xf32> to vector<8x384xf32>
    %211 = arith.addf %209, %210 : vector<8x384xf32>
    %212 = arith.truncf %206 : vector<8x128xf32> to vector<8x128xbf16>
    %c0_83 = arith.constant 0 : index
    %c0_84 = arith.constant 0 : index
    %213 = vector.load %arg3[%c0_83, %c0_84] : memref<128x384xbf16, #tpu.memory_space<vmem>>, vector<128x384xbf16>
    %cst_85 = arith.constant dense<0.000000e+00> : vector<8x384xf32>
    %214 = tpu.matmul %212, %213, %cst_85 {dimension_numbers = #tpu.dot_dimension_numbers<[1], [0], [0], [1], [0, 0, 1, 1], [], []>} : vector<8x128xbf16>, vector<128x384xbf16>, vector<8x384xf32> -> vector<8x384xf32>
    %215 = vector.extract_strided_slice %211 {offsets = [0, 0], sizes = [8, 128], strides = [1, 1]} : vector<8x384xf32> to vector<8x128xf32>
    %216 = vector.extract_strided_slice %214 {offsets = [0, 0], sizes = [8, 128], strides = [1, 1]} : vector<8x384xf32> to vector<8x128xf32>
    %217 = arith.addf %215, %216 : vector<8x128xf32>
    %218 = arith.negf %217 : vector<8x128xf32>
    %219 = math.exp %218 : vector<8x128xf32>
    %cst_86 = arith.constant 1.000000e+00 : f32
    %220 = vector.broadcast %cst_86 : f32 to vector<8x128xf32>
    %221 = arith.addf %220, %219 : vector<8x128xf32>
    %222 = arith.divf %220, %221 : vector<8x128xf32>
    %223 = vector.extract_strided_slice %211 {offsets = [0, 128], sizes = [8, 128], strides = [1, 1]} : vector<8x384xf32> to vector<8x128xf32>
    %224 = vector.extract_strided_slice %214 {offsets = [0, 128], sizes = [8, 128], strides = [1, 1]} : vector<8x384xf32> to vector<8x128xf32>
    %225 = arith.addf %223, %224 : vector<8x128xf32>
    %226 = arith.negf %225 : vector<8x128xf32>
    %227 = math.exp %226 : vector<8x128xf32>
    %cst_87 = arith.constant 1.000000e+00 : f32
    %228 = vector.broadcast %cst_87 : f32 to vector<8x128xf32>
    %229 = arith.addf %228, %227 : vector<8x128xf32>
    %230 = arith.divf %228, %229 : vector<8x128xf32>
    %231 = vector.extract_strided_slice %211 {offsets = [0, 256], sizes = [8, 128], strides = [1, 1]} : vector<8x384xf32> to vector<8x128xf32>
    %232 = vector.extract_strided_slice %214 {offsets = [0, 256], sizes = [8, 128], strides = [1, 1]} : vector<8x384xf32> to vector<8x128xf32>
    %233 = vector.broadcast %4 : vector<1x128xf32> to vector<8x128xf32>
    %234 = arith.addf %232, %233 : vector<8x128xf32>
    %235 = arith.mulf %222, %234 : vector<8x128xf32>
    %236 = arith.addf %231, %235 : vector<8x128xf32>
    %237 = math.tanh %236 : vector<8x128xf32>
    %cst_88 = arith.constant 1.000000e+00 : f32
    %238 = vector.broadcast %cst_88 : f32 to vector<8x128xf32>
    %239 = arith.subf %238, %230 : vector<8x128xf32>
    %240 = arith.mulf %239, %237 : vector<8x128xf32>
    %241 = arith.mulf %230, %206 : vector<8x128xf32>
    %242 = arith.addf %240, %241 : vector<8x128xf32>
    %c1_89 = arith.constant 1 : index
    %c0_90 = arith.constant 0 : index
    %c0_91 = arith.constant 0 : index
    %243 = vector.load %arg9[%c1_89, %c0_90, %c0_91] : memref<2x8x128xf32, #tpu.memory_space<vmem>>, vector<1x8x128xf32>
    %244 = vector.shape_cast %243 : vector<1x8x128xf32> to vector<8x128xf32>
    %245 = vector.shape_cast %242 : vector<8x128xf32> to vector<1x8x128xf32>
    tpu.vector_store %arg9[%c1_89, %c0_90, %c0_91], %245 {strides = array<i32>} : memref<2x8x128xf32, #tpu.memory_space<vmem>>, vector<1x8x128xf32>,
    %c3_i32 = arith.constant 3 : i32
    %246 = arith.index_cast %c3_i32 : i32 to index
    %c0_92 = arith.constant 0 : index
    %c0_93 = arith.constant 0 : index
    %247 = vector.load %arg1[%246, %c0_92, %c0_93] : memref<8x8x384xf32, #tpu.memory_space<vmem>>, vector<1x8x384xf32>
    %248 = vector.shape_cast %247 : vector<1x8x384xf32> to vector<8x384xf32>
    %c0_94 = arith.constant 0 : index
    %c0_95 = arith.constant 0 : index
    %c0_96 = arith.constant 0 : index
    %249 = vector.load %arg9[%c0_94, %c0_95, %c0_96] : memref<2x8x128xf32, #tpu.memory_space<vmem>>, vector<1x8x128xf32>
    %250 = vector.shape_cast %249 : vector<1x8x128xf32> to vector<8x128xf32>
    %251 = arith.truncf %250 : vector<8x128xf32> to vector<8x128xbf16>
    %c0_97 = arith.constant 0 : index
    %c0_98 = arith.constant 0 : index
    %252 = vector.load %arg2[%c0_97, %c0_98] : memref<128x384xbf16, #tpu.memory_space<vmem>>, vector<128x384xbf16>
    %cst_99 = arith.constant dense<0.000000e+00> : vector<8x384xf32>
    %253 = tpu.matmul %251, %252, %cst_99 {dimension_numbers = #tpu.dot_dimension_numbers<[1], [0], [0], [1], [0, 0, 1, 1], [], []>} : vector<8x128xbf16>, vector<128x384xbf16>, vector<8x384xf32> -> vector<8x384xf32>
    %254 = vector.extract_strided_slice %248 {offsets = [0, 0], sizes = [8, 128], strides = [1, 1]} : vector<8x384xf32> to vector<8x128xf32>
    %255 = vector.extract_strided_slice %253 {offsets = [0, 0], sizes = [8, 128], strides = [1, 1]} : vector<8x384xf32> to vector<8x128xf32>
    %256 = arith.addf %254, %255 : vector<8x128xf32>
    %257 = arith.negf %256 : vector<8x128xf32>
    %258 = math.exp %257 : vector<8x128xf32>
    %cst_100 = arith.constant 1.000000e+00 : f32
    %259 = vector.broadcast %cst_100 : f32 to vector<8x128xf32>
    %260 = arith.addf %259, %258 : vector<8x128xf32>
    %261 = arith.divf %259, %260 : vector<8x128xf32>
    %262 = vector.extract_strided_slice %248 {offsets = [0, 128], sizes = [8, 128], strides = [1, 1]} : vector<8x384xf32> to vector<8x128xf32>
    %263 = vector.extract_strided_slice %253 {offsets = [0, 128], sizes = [8, 128], strides = [1, 1]} : vector<8x384xf32> to vector<8x128xf32>
    %264 = arith.addf %262, %263 : vector<8x128xf32>
    %265 = arith.negf %264 : vector<8x128xf32>
    %266 = math.exp %265 : vector<8x128xf32>
    %cst_101 = arith.constant 1.000000e+00 : f32
    %267 = vector.broadcast %cst_101 : f32 to vector<8x128xf32>
    %268 = arith.addf %267, %266 : vector<8x128xf32>
    %269 = arith.divf %267, %268 : vector<8x128xf32>
    %270 = vector.extract_strided_slice %248 {offsets = [0, 256], sizes = [8, 128], strides = [1, 1]} : vector<8x384xf32> to vector<8x128xf32>
    %271 = vector.extract_strided_slice %253 {offsets = [0, 256], sizes = [8, 128], strides = [1, 1]} : vector<8x384xf32> to vector<8x128xf32>
    %272 = vector.broadcast %3 : vector<1x128xf32> to vector<8x128xf32>
    %273 = arith.addf %271, %272 : vector<8x128xf32>
    %274 = arith.mulf %261, %273 : vector<8x128xf32>
    %275 = arith.addf %270, %274 : vector<8x128xf32>
    %276 = math.tanh %275 : vector<8x128xf32>
    %cst_102 = arith.constant 1.000000e+00 : f32
    %277 = vector.broadcast %cst_102 : f32 to vector<8x128xf32>
    %278 = arith.subf %277, %269 : vector<8x128xf32>
    %279 = arith.mulf %278, %276 : vector<8x128xf32>
    %280 = arith.mulf %269, %250 : vector<8x128xf32>
    %281 = arith.addf %279, %280 : vector<8x128xf32>
    %c0_103 = arith.constant 0 : index
    %c0_104 = arith.constant 0 : index
    %c0_105 = arith.constant 0 : index
    %282 = vector.load %arg9[%c0_103, %c0_104, %c0_105] : memref<2x8x128xf32, #tpu.memory_space<vmem>>, vector<1x8x128xf32>
    %283 = vector.shape_cast %282 : vector<1x8x128xf32> to vector<8x128xf32>
    %284 = vector.shape_cast %281 : vector<8x128xf32> to vector<1x8x128xf32>
    tpu.vector_store %arg9[%c0_103, %c0_104, %c0_105], %284 {strides = array<i32>} : memref<2x8x128xf32, #tpu.memory_space<vmem>>, vector<1x8x128xf32>,
    %c1_106 = arith.constant 1 : index
    %c0_107 = arith.constant 0 : index
    %c0_108 = arith.constant 0 : index
    %285 = vector.load %arg9[%c1_106, %c0_107, %c0_108] : memref<2x8x128xf32, #tpu.memory_space<vmem>>, vector<1x8x128xf32>
    %286 = vector.shape_cast %285 : vector<1x8x128xf32> to vector<8x128xf32>
    %287 = arith.truncf %281 : vector<8x128xf32> to vector<8x128xbf16>
    %c0_109 = arith.constant 0 : index
    %c0_110 = arith.constant 0 : index
    %288 = vector.load %arg6[%c0_109, %c0_110] : memref<128x384xbf16, #tpu.memory_space<vmem>>, vector<128x384xbf16>
    %cst_111 = arith.constant dense<0.000000e+00> : vector<8x384xf32>
    %289 = tpu.matmul %287, %288, %cst_111 {dimension_numbers = #tpu.dot_dimension_numbers<[1], [0], [0], [1], [0, 0, 1, 1], [], []>} : vector<8x128xbf16>, vector<128x384xbf16>, vector<8x384xf32> -> vector<8x384xf32>
    %290 = vector.broadcast %5 : vector<1x384xf32> to vector<8x384xf32>
    %291 = arith.addf %289, %290 : vector<8x384xf32>
    %292 = arith.truncf %286 : vector<8x128xf32> to vector<8x128xbf16>
    %c0_112 = arith.constant 0 : index
    %c0_113 = arith.constant 0 : index
    %293 = vector.load %arg3[%c0_112, %c0_113] : memref<128x384xbf16, #tpu.memory_space<vmem>>, vector<128x384xbf16>
    %cst_114 = arith.constant dense<0.000000e+00> : vector<8x384xf32>
    %294 = tpu.matmul %292, %293, %cst_114 {dimension_numbers = #tpu.dot_dimension_numbers<[1], [0], [0], [1], [0, 0, 1, 1], [], []>} : vector<8x128xbf16>, vector<128x384xbf16>, vector<8x384xf32> -> vector<8x384xf32>
    %295 = vector.extract_strided_slice %291 {offsets = [0, 0], sizes = [8, 128], strides = [1, 1]} : vector<8x384xf32> to vector<8x128xf32>
    %296 = vector.extract_strided_slice %294 {offsets = [0, 0], sizes = [8, 128], strides = [1, 1]} : vector<8x384xf32> to vector<8x128xf32>
    %297 = arith.addf %295, %296 : vector<8x128xf32>
    %298 = arith.negf %297 : vector<8x128xf32>
    %299 = math.exp %298 : vector<8x128xf32>
    %cst_115 = arith.constant 1.000000e+00 : f32
    %300 = vector.broadcast %cst_115 : f32 to vector<8x128xf32>
    %301 = arith.addf %300, %299 : vector<8x128xf32>
    %302 = arith.divf %300, %301 : vector<8x128xf32>
    %303 = vector.extract_strided_slice %291 {offsets = [0, 128], sizes = [8, 128], strides = [1, 1]} : vector<8x384xf32> to vector<8x128xf32>
    %304 = vector.extract_strided_slice %294 {offsets = [0, 128], sizes = [8, 128], strides = [1, 1]} : vector<8x384xf32> to vector<8x128xf32>
    %305 = arith.addf %303, %304 : vector<8x128xf32>
    %306 = arith.negf %305 : vector<8x128xf32>
    %307 = math.exp %306 : vector<8x128xf32>
    %cst_116 = arith.constant 1.000000e+00 : f32
    %308 = vector.broadcast %cst_116 : f32 to vector<8x128xf32>
    %309 = arith.addf %308, %307 : vector<8x128xf32>
    %310 = arith.divf %308, %309 : vector<8x128xf32>
    %311 = vector.extract_strided_slice %291 {offsets = [0, 256], sizes = [8, 128], strides = [1, 1]} : vector<8x384xf32> to vector<8x128xf32>
    %312 = vector.extract_strided_slice %294 {offsets = [0, 256], sizes = [8, 128], strides = [1, 1]} : vector<8x384xf32> to vector<8x128xf32>
    %313 = vector.broadcast %4 : vector<1x128xf32> to vector<8x128xf32>
    %314 = arith.addf %312, %313 : vector<8x128xf32>
    %315 = arith.mulf %302, %314 : vector<8x128xf32>
    %316 = arith.addf %311, %315 : vector<8x128xf32>
    %317 = math.tanh %316 : vector<8x128xf32>
    %cst_117 = arith.constant 1.000000e+00 : f32
    %318 = vector.broadcast %cst_117 : f32 to vector<8x128xf32>
    %319 = arith.subf %318, %310 : vector<8x128xf32>
    %320 = arith.mulf %319, %317 : vector<8x128xf32>
    %321 = arith.mulf %310, %286 : vector<8x128xf32>
    %322 = arith.addf %320, %321 : vector<8x128xf32>
    %c1_118 = arith.constant 1 : index
    %c0_119 = arith.constant 0 : index
    %c0_120 = arith.constant 0 : index
    %323 = vector.load %arg9[%c1_118, %c0_119, %c0_120] : memref<2x8x128xf32, #tpu.memory_space<vmem>>, vector<1x8x128xf32>
    %324 = vector.shape_cast %323 : vector<1x8x128xf32> to vector<8x128xf32>
    %325 = vector.shape_cast %322 : vector<8x128xf32> to vector<1x8x128xf32>
    tpu.vector_store %arg9[%c1_118, %c0_119, %c0_120], %325 {strides = array<i32>} : memref<2x8x128xf32, #tpu.memory_space<vmem>>, vector<1x8x128xf32>,
    %c4_i32 = arith.constant 4 : i32
    %326 = arith.index_cast %c4_i32 : i32 to index
    %c0_121 = arith.constant 0 : index
    %c0_122 = arith.constant 0 : index
    %327 = vector.load %arg1[%326, %c0_121, %c0_122] : memref<8x8x384xf32, #tpu.memory_space<vmem>>, vector<1x8x384xf32>
    %328 = vector.shape_cast %327 : vector<1x8x384xf32> to vector<8x384xf32>
    %c0_123 = arith.constant 0 : index
    %c0_124 = arith.constant 0 : index
    %c0_125 = arith.constant 0 : index
    %329 = vector.load %arg9[%c0_123, %c0_124, %c0_125] : memref<2x8x128xf32, #tpu.memory_space<vmem>>, vector<1x8x128xf32>
    %330 = vector.shape_cast %329 : vector<1x8x128xf32> to vector<8x128xf32>
    %331 = arith.truncf %330 : vector<8x128xf32> to vector<8x128xbf16>
    %c0_126 = arith.constant 0 : index
    %c0_127 = arith.constant 0 : index
    %332 = vector.load %arg2[%c0_126, %c0_127] : memref<128x384xbf16, #tpu.memory_space<vmem>>, vector<128x384xbf16>
    %cst_128 = arith.constant dense<0.000000e+00> : vector<8x384xf32>
    %333 = tpu.matmul %331, %332, %cst_128 {dimension_numbers = #tpu.dot_dimension_numbers<[1], [0], [0], [1], [0, 0, 1, 1], [], []>} : vector<8x128xbf16>, vector<128x384xbf16>, vector<8x384xf32> -> vector<8x384xf32>
    %334 = vector.extract_strided_slice %328 {offsets = [0, 0], sizes = [8, 128], strides = [1, 1]} : vector<8x384xf32> to vector<8x128xf32>
    %335 = vector.extract_strided_slice %333 {offsets = [0, 0], sizes = [8, 128], strides = [1, 1]} : vector<8x384xf32> to vector<8x128xf32>
    %336 = arith.addf %334, %335 : vector<8x128xf32>
    %337 = arith.negf %336 : vector<8x128xf32>
    %338 = math.exp %337 : vector<8x128xf32>
    %cst_129 = arith.constant 1.000000e+00 : f32
    %339 = vector.broadcast %cst_129 : f32 to vector<8x128xf32>
    %340 = arith.addf %339, %338 : vector<8x128xf32>
    %341 = arith.divf %339, %340 : vector<8x128xf32>
    %342 = vector.extract_strided_slice %328 {offsets = [0, 128], sizes = [8, 128], strides = [1, 1]} : vector<8x384xf32> to vector<8x128xf32>
    %343 = vector.extract_strided_slice %333 {offsets = [0, 128], sizes = [8, 128], strides = [1, 1]} : vector<8x384xf32> to vector<8x128xf32>
    %344 = arith.addf %342, %343 : vector<8x128xf32>
    %345 = arith.negf %344 : vector<8x128xf32>
    %346 = math.exp %345 : vector<8x128xf32>
    %cst_130 = arith.constant 1.000000e+00 : f32
    %347 = vector.broadcast %cst_130 : f32 to vector<8x128xf32>
    %348 = arith.addf %347, %346 : vector<8x128xf32>
    %349 = arith.divf %347, %348 : vector<8x128xf32>
    %350 = vector.extract_strided_slice %328 {offsets = [0, 256], sizes = [8, 128], strides = [1, 1]} : vector<8x384xf32> to vector<8x128xf32>
    %351 = vector.extract_strided_slice %333 {offsets = [0, 256], sizes = [8, 128], strides = [1, 1]} : vector<8x384xf32> to vector<8x128xf32>
    %352 = vector.broadcast %3 : vector<1x128xf32> to vector<8x128xf32>
    %353 = arith.addf %351, %352 : vector<8x128xf32>
    %354 = arith.mulf %341, %353 : vector<8x128xf32>
    %355 = arith.addf %350, %354 : vector<8x128xf32>
    %356 = math.tanh %355 : vector<8x128xf32>
    %cst_131 = arith.constant 1.000000e+00 : f32
    %357 = vector.broadcast %cst_131 : f32 to vector<8x128xf32>
    %358 = arith.subf %357, %349 : vector<8x128xf32>
    %359 = arith.mulf %358, %356 : vector<8x128xf32>
    %360 = arith.mulf %349, %330 : vector<8x128xf32>
    %361 = arith.addf %359, %360 : vector<8x128xf32>
    %c0_132 = arith.constant 0 : index
    %c0_133 = arith.constant 0 : index
    %c0_134 = arith.constant 0 : index
    %362 = vector.load %arg9[%c0_132, %c0_133, %c0_134] : memref<2x8x128xf32, #tpu.memory_space<vmem>>, vector<1x8x128xf32>
    %363 = vector.shape_cast %362 : vector<1x8x128xf32> to vector<8x128xf32>
    %364 = vector.shape_cast %361 : vector<8x128xf32> to vector<1x8x128xf32>
    tpu.vector_store %arg9[%c0_132, %c0_133, %c0_134], %364 {strides = array<i32>} : memref<2x8x128xf32, #tpu.memory_space<vmem>>, vector<1x8x128xf32>,
    %c1_135 = arith.constant 1 : index
    %c0_136 = arith.constant 0 : index
    %c0_137 = arith.constant 0 : index
    %365 = vector.load %arg9[%c1_135, %c0_136, %c0_137] : memref<2x8x128xf32, #tpu.memory_space<vmem>>, vector<1x8x128xf32>
    %366 = vector.shape_cast %365 : vector<1x8x128xf32> to vector<8x128xf32>
    %367 = arith.truncf %361 : vector<8x128xf32> to vector<8x128xbf16>
    %c0_138 = arith.constant 0 : index
    %c0_139 = arith.constant 0 : index
    %368 = vector.load %arg6[%c0_138, %c0_139] : memref<128x384xbf16, #tpu.memory_space<vmem>>, vector<128x384xbf16>
    %cst_140 = arith.constant dense<0.000000e+00> : vector<8x384xf32>
    %369 = tpu.matmul %367, %368, %cst_140 {dimension_numbers = #tpu.dot_dimension_numbers<[1], [0], [0], [1], [0, 0, 1, 1], [], []>} : vector<8x128xbf16>, vector<128x384xbf16>, vector<8x384xf32> -> vector<8x384xf32>
    %370 = vector.broadcast %5 : vector<1x384xf32> to vector<8x384xf32>
    %371 = arith.addf %369, %370 : vector<8x384xf32>
    %372 = arith.truncf %366 : vector<8x128xf32> to vector<8x128xbf16>
    %c0_141 = arith.constant 0 : index
    %c0_142 = arith.constant 0 : index
    %373 = vector.load %arg3[%c0_141, %c0_142] : memref<128x384xbf16, #tpu.memory_space<vmem>>, vector<128x384xbf16>
    %cst_143 = arith.constant dense<0.000000e+00> : vector<8x384xf32>
    %374 = tpu.matmul %372, %373, %cst_143 {dimension_numbers = #tpu.dot_dimension_numbers<[1], [0], [0], [1], [0, 0, 1, 1], [], []>} : vector<8x128xbf16>, vector<128x384xbf16>, vector<8x384xf32> -> vector<8x384xf32>
    %375 = vector.extract_strided_slice %371 {offsets = [0, 0], sizes = [8, 128], strides = [1, 1]} : vector<8x384xf32> to vector<8x128xf32>
    %376 = vector.extract_strided_slice %374 {offsets = [0, 0], sizes = [8, 128], strides = [1, 1]} : vector<8x384xf32> to vector<8x128xf32>
    %377 = arith.addf %375, %376 : vector<8x128xf32>
    %378 = arith.negf %377 : vector<8x128xf32>
    %379 = math.exp %378 : vector<8x128xf32>
    %cst_144 = arith.constant 1.000000e+00 : f32
    %380 = vector.broadcast %cst_144 : f32 to vector<8x128xf32>
    %381 = arith.addf %380, %379 : vector<8x128xf32>
    %382 = arith.divf %380, %381 : vector<8x128xf32>
    %383 = vector.extract_strided_slice %371 {offsets = [0, 128], sizes = [8, 128], strides = [1, 1]} : vector<8x384xf32> to vector<8x128xf32>
    %384 = vector.extract_strided_slice %374 {offsets = [0, 128], sizes = [8, 128], strides = [1, 1]} : vector<8x384xf32> to vector<8x128xf32>
    %385 = arith.addf %383, %384 : vector<8x128xf32>
    %386 = arith.negf %385 : vector<8x128xf32>
    %387 = math.exp %386 : vector<8x128xf32>
    %cst_145 = arith.constant 1.000000e+00 : f32
    %388 = vector.broadcast %cst_145 : f32 to vector<8x128xf32>
    %389 = arith.addf %388, %387 : vector<8x128xf32>
    %390 = arith.divf %388, %389 : vector<8x128xf32>
    %391 = vector.extract_strided_slice %371 {offsets = [0, 256], sizes = [8, 128], strides = [1, 1]} : vector<8x384xf32> to vector<8x128xf32>
    %392 = vector.extract_strided_slice %374 {offsets = [0, 256], sizes = [8, 128], strides = [1, 1]} : vector<8x384xf32> to vector<8x128xf32>
    %393 = vector.broadcast %4 : vector<1x128xf32> to vector<8x128xf32>
    %394 = arith.addf %392, %393 : vector<8x128xf32>
    %395 = arith.mulf %382, %394 : vector<8x128xf32>
    %396 = arith.addf %391, %395 : vector<8x128xf32>
    %397 = math.tanh %396 : vector<8x128xf32>
    %cst_146 = arith.constant 1.000000e+00 : f32
    %398 = vector.broadcast %cst_146 : f32 to vector<8x128xf32>
    %399 = arith.subf %398, %390 : vector<8x128xf32>
    %400 = arith.mulf %399, %397 : vector<8x128xf32>
    %401 = arith.mulf %390, %366 : vector<8x128xf32>
    %402 = arith.addf %400, %401 : vector<8x128xf32>
    %c1_147 = arith.constant 1 : index
    %c0_148 = arith.constant 0 : index
    %c0_149 = arith.constant 0 : index
    %403 = vector.load %arg9[%c1_147, %c0_148, %c0_149] : memref<2x8x128xf32, #tpu.memory_space<vmem>>, vector<1x8x128xf32>
    %404 = vector.shape_cast %403 : vector<1x8x128xf32> to vector<8x128xf32>
    %405 = vector.shape_cast %402 : vector<8x128xf32> to vector<1x8x128xf32>
    tpu.vector_store %arg9[%c1_147, %c0_148, %c0_149], %405 {strides = array<i32>} : memref<2x8x128xf32, #tpu.memory_space<vmem>>, vector<1x8x128xf32>,
    %c5_i32 = arith.constant 5 : i32
    %406 = arith.index_cast %c5_i32 : i32 to index
    %c0_150 = arith.constant 0 : index
    %c0_151 = arith.constant 0 : index
    %407 = vector.load %arg1[%406, %c0_150, %c0_151] : memref<8x8x384xf32, #tpu.memory_space<vmem>>, vector<1x8x384xf32>
    %408 = vector.shape_cast %407 : vector<1x8x384xf32> to vector<8x384xf32>
    %c0_152 = arith.constant 0 : index
    %c0_153 = arith.constant 0 : index
    %c0_154 = arith.constant 0 : index
    %409 = vector.load %arg9[%c0_152, %c0_153, %c0_154] : memref<2x8x128xf32, #tpu.memory_space<vmem>>, vector<1x8x128xf32>
    %410 = vector.shape_cast %409 : vector<1x8x128xf32> to vector<8x128xf32>
    %411 = arith.truncf %410 : vector<8x128xf32> to vector<8x128xbf16>
    %c0_155 = arith.constant 0 : index
    %c0_156 = arith.constant 0 : index
    %412 = vector.load %arg2[%c0_155, %c0_156] : memref<128x384xbf16, #tpu.memory_space<vmem>>, vector<128x384xbf16>
    %cst_157 = arith.constant dense<0.000000e+00> : vector<8x384xf32>
    %413 = tpu.matmul %411, %412, %cst_157 {dimension_numbers = #tpu.dot_dimension_numbers<[1], [0], [0], [1], [0, 0, 1, 1], [], []>} : vector<8x128xbf16>, vector<128x384xbf16>, vector<8x384xf32> -> vector<8x384xf32>
    %414 = vector.extract_strided_slice %408 {offsets = [0, 0], sizes = [8, 128], strides = [1, 1]} : vector<8x384xf32> to vector<8x128xf32>
    %415 = vector.extract_strided_slice %413 {offsets = [0, 0], sizes = [8, 128], strides = [1, 1]} : vector<8x384xf32> to vector<8x128xf32>
    %416 = arith.addf %414, %415 : vector<8x128xf32>
    %417 = arith.negf %416 : vector<8x128xf32>
    %418 = math.exp %417 : vector<8x128xf32>
    %cst_158 = arith.constant 1.000000e+00 : f32
    %419 = vector.broadcast %cst_158 : f32 to vector<8x128xf32>
    %420 = arith.addf %419, %418 : vector<8x128xf32>
    %421 = arith.divf %419, %420 : vector<8x128xf32>
    %422 = vector.extract_strided_slice %408 {offsets = [0, 128], sizes = [8, 128], strides = [1, 1]} : vector<8x384xf32> to vector<8x128xf32>
    %423 = vector.extract_strided_slice %413 {offsets = [0, 128], sizes = [8, 128], strides = [1, 1]} : vector<8x384xf32> to vector<8x128xf32>
    %424 = arith.addf %422, %423 : vector<8x128xf32>
    %425 = arith.negf %424 : vector<8x128xf32>
    %426 = math.exp %425 : vector<8x128xf32>
    %cst_159 = arith.constant 1.000000e+00 : f32
    %427 = vector.broadcast %cst_159 : f32 to vector<8x128xf32>
    %428 = arith.addf %427, %426 : vector<8x128xf32>
    %429 = arith.divf %427, %428 : vector<8x128xf32>
    %430 = vector.extract_strided_slice %408 {offsets = [0, 256], sizes = [8, 128], strides = [1, 1]} : vector<8x384xf32> to vector<8x128xf32>
    %431 = vector.extract_strided_slice %413 {offsets = [0, 256], sizes = [8, 128], strides = [1, 1]} : vector<8x384xf32> to vector<8x128xf32>
    %432 = vector.broadcast %3 : vector<1x128xf32> to vector<8x128xf32>
    %433 = arith.addf %431, %432 : vector<8x128xf32>
    %434 = arith.mulf %421, %433 : vector<8x128xf32>
    %435 = arith.addf %430, %434 : vector<8x128xf32>
    %436 = math.tanh %435 : vector<8x128xf32>
    %cst_160 = arith.constant 1.000000e+00 : f32
    %437 = vector.broadcast %cst_160 : f32 to vector<8x128xf32>
    %438 = arith.subf %437, %429 : vector<8x128xf32>
    %439 = arith.mulf %438, %436 : vector<8x128xf32>
    %440 = arith.mulf %429, %410 : vector<8x128xf32>
    %441 = arith.addf %439, %440 : vector<8x128xf32>
    %c0_161 = arith.constant 0 : index
    %c0_162 = arith.constant 0 : index
    %c0_163 = arith.constant 0 : index
    %442 = vector.load %arg9[%c0_161, %c0_162, %c0_163] : memref<2x8x128xf32, #tpu.memory_space<vmem>>, vector<1x8x128xf32>
    %443 = vector.shape_cast %442 : vector<1x8x128xf32> to vector<8x128xf32>
    %444 = vector.shape_cast %441 : vector<8x128xf32> to vector<1x8x128xf32>
    tpu.vector_store %arg9[%c0_161, %c0_162, %c0_163], %444 {strides = array<i32>} : memref<2x8x128xf32, #tpu.memory_space<vmem>>, vector<1x8x128xf32>,
    %c1_164 = arith.constant 1 : index
    %c0_165 = arith.constant 0 : index
    %c0_166 = arith.constant 0 : index
    %445 = vector.load %arg9[%c1_164, %c0_165, %c0_166] : memref<2x8x128xf32, #tpu.memory_space<vmem>>, vector<1x8x128xf32>
    %446 = vector.shape_cast %445 : vector<1x8x128xf32> to vector<8x128xf32>
    %447 = arith.truncf %441 : vector<8x128xf32> to vector<8x128xbf16>
    %c0_167 = arith.constant 0 : index
    %c0_168 = arith.constant 0 : index
    %448 = vector.load %arg6[%c0_167, %c0_168] : memref<128x384xbf16, #tpu.memory_space<vmem>>, vector<128x384xbf16>
    %cst_169 = arith.constant dense<0.000000e+00> : vector<8x384xf32>
    %449 = tpu.matmul %447, %448, %cst_169 {dimension_numbers = #tpu.dot_dimension_numbers<[1], [0], [0], [1], [0, 0, 1, 1], [], []>} : vector<8x128xbf16>, vector<128x384xbf16>, vector<8x384xf32> -> vector<8x384xf32>
    %450 = vector.broadcast %5 : vector<1x384xf32> to vector<8x384xf32>
    %451 = arith.addf %449, %450 : vector<8x384xf32>
    %452 = arith.truncf %446 : vector<8x128xf32> to vector<8x128xbf16>
    %c0_170 = arith.constant 0 : index
    %c0_171 = arith.constant 0 : index
    %453 = vector.load %arg3[%c0_170, %c0_171] : memref<128x384xbf16, #tpu.memory_space<vmem>>, vector<128x384xbf16>
    %cst_172 = arith.constant dense<0.000000e+00> : vector<8x384xf32>
    %454 = tpu.matmul %452, %453, %cst_172 {dimension_numbers = #tpu.dot_dimension_numbers<[1], [0], [0], [1], [0, 0, 1, 1], [], []>} : vector<8x128xbf16>, vector<128x384xbf16>, vector<8x384xf32> -> vector<8x384xf32>
    %455 = vector.extract_strided_slice %451 {offsets = [0, 0], sizes = [8, 128], strides = [1, 1]} : vector<8x384xf32> to vector<8x128xf32>
    %456 = vector.extract_strided_slice %454 {offsets = [0, 0], sizes = [8, 128], strides = [1, 1]} : vector<8x384xf32> to vector<8x128xf32>
    %457 = arith.addf %455, %456 : vector<8x128xf32>
    %458 = arith.negf %457 : vector<8x128xf32>
    %459 = math.exp %458 : vector<8x128xf32>
    %cst_173 = arith.constant 1.000000e+00 : f32
    %460 = vector.broadcast %cst_173 : f32 to vector<8x128xf32>
    %461 = arith.addf %460, %459 : vector<8x128xf32>
    %462 = arith.divf %460, %461 : vector<8x128xf32>
    %463 = vector.extract_strided_slice %451 {offsets = [0, 128], sizes = [8, 128], strides = [1, 1]} : vector<8x384xf32> to vector<8x128xf32>
    %464 = vector.extract_strided_slice %454 {offsets = [0, 128], sizes = [8, 128], strides = [1, 1]} : vector<8x384xf32> to vector<8x128xf32>
    %465 = arith.addf %463, %464 : vector<8x128xf32>
    %466 = arith.negf %465 : vector<8x128xf32>
    %467 = math.exp %466 : vector<8x128xf32>
    %cst_174 = arith.constant 1.000000e+00 : f32
    %468 = vector.broadcast %cst_174 : f32 to vector<8x128xf32>
    %469 = arith.addf %468, %467 : vector<8x128xf32>
    %470 = arith.divf %468, %469 : vector<8x128xf32>
    %471 = vector.extract_strided_slice %451 {offsets = [0, 256], sizes = [8, 128], strides = [1, 1]} : vector<8x384xf32> to vector<8x128xf32>
    %472 = vector.extract_strided_slice %454 {offsets = [0, 256], sizes = [8, 128], strides = [1, 1]} : vector<8x384xf32> to vector<8x128xf32>
    %473 = vector.broadcast %4 : vector<1x128xf32> to vector<8x128xf32>
    %474 = arith.addf %472, %473 : vector<8x128xf32>
    %475 = arith.mulf %462, %474 : vector<8x128xf32>
    %476 = arith.addf %471, %475 : vector<8x128xf32>
    %477 = math.tanh %476 : vector<8x128xf32>
    %cst_175 = arith.constant 1.000000e+00 : f32
    %478 = vector.broadcast %cst_175 : f32 to vector<8x128xf32>
    %479 = arith.subf %478, %470 : vector<8x128xf32>
    %480 = arith.mulf %479, %477 : vector<8x128xf32>
    %481 = arith.mulf %470, %446 : vector<8x128xf32>
    %482 = arith.addf %480, %481 : vector<8x128xf32>
    %c1_176 = arith.constant 1 : index
    %c0_177 = arith.constant 0 : index
    %c0_178 = arith.constant 0 : index
    %483 = vector.load %arg9[%c1_176, %c0_177, %c0_178] : memref<2x8x128xf32, #tpu.memory_space<vmem>>, vector<1x8x128xf32>
    %484 = vector.shape_cast %483 : vector<1x8x128xf32> to vector<8x128xf32>
    %485 = vector.shape_cast %482 : vector<8x128xf32> to vector<1x8x128xf32>
    tpu.vector_store %arg9[%c1_176, %c0_177, %c0_178], %485 {strides = array<i32>} : memref<2x8x128xf32, #tpu.memory_space<vmem>>, vector<1x8x128xf32>,
    %c6_i32 = arith.constant 6 : i32
    %486 = arith.index_cast %c6_i32 : i32 to index
    %c0_179 = arith.constant 0 : index
    %c0_180 = arith.constant 0 : index
    %487 = vector.load %arg1[%486, %c0_179, %c0_180] : memref<8x8x384xf32, #tpu.memory_space<vmem>>, vector<1x8x384xf32>
    %488 = vector.shape_cast %487 : vector<1x8x384xf32> to vector<8x384xf32>
    %c0_181 = arith.constant 0 : index
    %c0_182 = arith.constant 0 : index
    %c0_183 = arith.constant 0 : index
    %489 = vector.load %arg9[%c0_181, %c0_182, %c0_183] : memref<2x8x128xf32, #tpu.memory_space<vmem>>, vector<1x8x128xf32>
    %490 = vector.shape_cast %489 : vector<1x8x128xf32> to vector<8x128xf32>
    %491 = arith.truncf %490 : vector<8x128xf32> to vector<8x128xbf16>
    %c0_184 = arith.constant 0 : index
    %c0_185 = arith.constant 0 : index
    %492 = vector.load %arg2[%c0_184, %c0_185] : memref<128x384xbf16, #tpu.memory_space<vmem>>, vector<128x384xbf16>
    %cst_186 = arith.constant dense<0.000000e+00> : vector<8x384xf32>
    %493 = tpu.matmul %491, %492, %cst_186 {dimension_numbers = #tpu.dot_dimension_numbers<[1], [0], [0], [1], [0, 0, 1, 1], [], []>} : vector<8x128xbf16>, vector<128x384xbf16>, vector<8x384xf32> -> vector<8x384xf32>
    %494 = vector.extract_strided_slice %488 {offsets = [0, 0], sizes = [8, 128], strides = [1, 1]} : vector<8x384xf32> to vector<8x128xf32>
    %495 = vector.extract_strided_slice %493 {offsets = [0, 0], sizes = [8, 128], strides = [1, 1]} : vector<8x384xf32> to vector<8x128xf32>
    %496 = arith.addf %494, %495 : vector<8x128xf32>
    %497 = arith.negf %496 : vector<8x128xf32>
    %498 = math.exp %497 : vector<8x128xf32>
    %cst_187 = arith.constant 1.000000e+00 : f32
    %499 = vector.broadcast %cst_187 : f32 to vector<8x128xf32>
    %500 = arith.addf %499, %498 : vector<8x128xf32>
    %501 = arith.divf %499, %500 : vector<8x128xf32>
    %502 = vector.extract_strided_slice %488 {offsets = [0, 128], sizes = [8, 128], strides = [1, 1]} : vector<8x384xf32> to vector<8x128xf32>
    %503 = vector.extract_strided_slice %493 {offsets = [0, 128], sizes = [8, 128], strides = [1, 1]} : vector<8x384xf32> to vector<8x128xf32>
    %504 = arith.addf %502, %503 : vector<8x128xf32>
    %505 = arith.negf %504 : vector<8x128xf32>
    %506 = math.exp %505 : vector<8x128xf32>
    %cst_188 = arith.constant 1.000000e+00 : f32
    %507 = vector.broadcast %cst_188 : f32 to vector<8x128xf32>
    %508 = arith.addf %507, %506 : vector<8x128xf32>
    %509 = arith.divf %507, %508 : vector<8x128xf32>
    %510 = vector.extract_strided_slice %488 {offsets = [0, 256], sizes = [8, 128], strides = [1, 1]} : vector<8x384xf32> to vector<8x128xf32>
    %511 = vector.extract_strided_slice %493 {offsets = [0, 256], sizes = [8, 128], strides = [1, 1]} : vector<8x384xf32> to vector<8x128xf32>
    %512 = vector.broadcast %3 : vector<1x128xf32> to vector<8x128xf32>
    %513 = arith.addf %511, %512 : vector<8x128xf32>
    %514 = arith.mulf %501, %513 : vector<8x128xf32>
    %515 = arith.addf %510, %514 : vector<8x128xf32>
    %516 = math.tanh %515 : vector<8x128xf32>
    %cst_189 = arith.constant 1.000000e+00 : f32
    %517 = vector.broadcast %cst_189 : f32 to vector<8x128xf32>
    %518 = arith.subf %517, %509 : vector<8x128xf32>
    %519 = arith.mulf %518, %516 : vector<8x128xf32>
    %520 = arith.mulf %509, %490 : vector<8x128xf32>
    %521 = arith.addf %519, %520 : vector<8x128xf32>
    %c0_190 = arith.constant 0 : index
    %c0_191 = arith.constant 0 : index
    %c0_192 = arith.constant 0 : index
    %522 = vector.load %arg9[%c0_190, %c0_191, %c0_192] : memref<2x8x128xf32, #tpu.memory_space<vmem>>, vector<1x8x128xf32>
    %523 = vector.shape_cast %522 : vector<1x8x128xf32> to vector<8x128xf32>
    %524 = vector.shape_cast %521 : vector<8x128xf32> to vector<1x8x128xf32>
    tpu.vector_store %arg9[%c0_190, %c0_191, %c0_192], %524 {strides = array<i32>} : memref<2x8x128xf32, #tpu.memory_space<vmem>>, vector<1x8x128xf32>,
    %c1_193 = arith.constant 1 : index
    %c0_194 = arith.constant 0 : index
    %c0_195 = arith.constant 0 : index
    %525 = vector.load %arg9[%c1_193, %c0_194, %c0_195] : memref<2x8x128xf32, #tpu.memory_space<vmem>>, vector<1x8x128xf32>
    %526 = vector.shape_cast %525 : vector<1x8x128xf32> to vector<8x128xf32>
    %527 = arith.truncf %521 : vector<8x128xf32> to vector<8x128xbf16>
    %c0_196 = arith.constant 0 : index
    %c0_197 = arith.constant 0 : index
    %528 = vector.load %arg6[%c0_196, %c0_197] : memref<128x384xbf16, #tpu.memory_space<vmem>>, vector<128x384xbf16>
    %cst_198 = arith.constant dense<0.000000e+00> : vector<8x384xf32>
    %529 = tpu.matmul %527, %528, %cst_198 {dimension_numbers = #tpu.dot_dimension_numbers<[1], [0], [0], [1], [0, 0, 1, 1], [], []>} : vector<8x128xbf16>, vector<128x384xbf16>, vector<8x384xf32> -> vector<8x384xf32>
    %530 = vector.broadcast %5 : vector<1x384xf32> to vector<8x384xf32>
    %531 = arith.addf %529, %530 : vector<8x384xf32>
    %532 = arith.truncf %526 : vector<8x128xf32> to vector<8x128xbf16>
    %c0_199 = arith.constant 0 : index
    %c0_200 = arith.constant 0 : index
    %533 = vector.load %arg3[%c0_199, %c0_200] : memref<128x384xbf16, #tpu.memory_space<vmem>>, vector<128x384xbf16>
    %cst_201 = arith.constant dense<0.000000e+00> : vector<8x384xf32>
    %534 = tpu.matmul %532, %533, %cst_201 {dimension_numbers = #tpu.dot_dimension_numbers<[1], [0], [0], [1], [0, 0, 1, 1], [], []>} : vector<8x128xbf16>, vector<128x384xbf16>, vector<8x384xf32> -> vector<8x384xf32>
    %535 = vector.extract_strided_slice %531 {offsets = [0, 0], sizes = [8, 128], strides = [1, 1]} : vector<8x384xf32> to vector<8x128xf32>
    %536 = vector.extract_strided_slice %534 {offsets = [0, 0], sizes = [8, 128], strides = [1, 1]} : vector<8x384xf32> to vector<8x128xf32>
    %537 = arith.addf %535, %536 : vector<8x128xf32>
    %538 = arith.negf %537 : vector<8x128xf32>
    %539 = math.exp %538 : vector<8x128xf32>
    %cst_202 = arith.constant 1.000000e+00 : f32
    %540 = vector.broadcast %cst_202 : f32 to vector<8x128xf32>
    %541 = arith.addf %540, %539 : vector<8x128xf32>
    %542 = arith.divf %540, %541 : vector<8x128xf32>
    %543 = vector.extract_strided_slice %531 {offsets = [0, 128], sizes = [8, 128], strides = [1, 1]} : vector<8x384xf32> to vector<8x128xf32>
    %544 = vector.extract_strided_slice %534 {offsets = [0, 128], sizes = [8, 128], strides = [1, 1]} : vector<8x384xf32> to vector<8x128xf32>
    %545 = arith.addf %543, %544 : vector<8x128xf32>
    %546 = arith.negf %545 : vector<8x128xf32>
    %547 = math.exp %546 : vector<8x128xf32>
    %cst_203 = arith.constant 1.000000e+00 : f32
    %548 = vector.broadcast %cst_203 : f32 to vector<8x128xf32>
    %549 = arith.addf %548, %547 : vector<8x128xf32>
    %550 = arith.divf %548, %549 : vector<8x128xf32>
    %551 = vector.extract_strided_slice %531 {offsets = [0, 256], sizes = [8, 128], strides = [1, 1]} : vector<8x384xf32> to vector<8x128xf32>
    %552 = vector.extract_strided_slice %534 {offsets = [0, 256], sizes = [8, 128], strides = [1, 1]} : vector<8x384xf32> to vector<8x128xf32>
    %553 = vector.broadcast %4 : vector<1x128xf32> to vector<8x128xf32>
    %554 = arith.addf %552, %553 : vector<8x128xf32>
    %555 = arith.mulf %542, %554 : vector<8x128xf32>
    %556 = arith.addf %551, %555 : vector<8x128xf32>
    %557 = math.tanh %556 : vector<8x128xf32>
    %cst_204 = arith.constant 1.000000e+00 : f32
    %558 = vector.broadcast %cst_204 : f32 to vector<8x128xf32>
    %559 = arith.subf %558, %550 : vector<8x128xf32>
    %560 = arith.mulf %559, %557 : vector<8x128xf32>
    %561 = arith.mulf %550, %526 : vector<8x128xf32>
    %562 = arith.addf %560, %561 : vector<8x128xf32>
    %c1_205 = arith.constant 1 : index
    %c0_206 = arith.constant 0 : index
    %c0_207 = arith.constant 0 : index
    %563 = vector.load %arg9[%c1_205, %c0_206, %c0_207] : memref<2x8x128xf32, #tpu.memory_space<vmem>>, vector<1x8x128xf32>
    %564 = vector.shape_cast %563 : vector<1x8x128xf32> to vector<8x128xf32>
    %565 = vector.shape_cast %562 : vector<8x128xf32> to vector<1x8x128xf32>
    tpu.vector_store %arg9[%c1_205, %c0_206, %c0_207], %565 {strides = array<i32>} : memref<2x8x128xf32, #tpu.memory_space<vmem>>, vector<1x8x128xf32>,
    %c7_i32 = arith.constant 7 : i32
    %566 = arith.index_cast %c7_i32 : i32 to index
    %c0_208 = arith.constant 0 : index
    %c0_209 = arith.constant 0 : index
    %567 = vector.load %arg1[%566, %c0_208, %c0_209] : memref<8x8x384xf32, #tpu.memory_space<vmem>>, vector<1x8x384xf32>
    %568 = vector.shape_cast %567 : vector<1x8x384xf32> to vector<8x384xf32>
    %c0_210 = arith.constant 0 : index
    %c0_211 = arith.constant 0 : index
    %c0_212 = arith.constant 0 : index
    %569 = vector.load %arg9[%c0_210, %c0_211, %c0_212] : memref<2x8x128xf32, #tpu.memory_space<vmem>>, vector<1x8x128xf32>
    %570 = vector.shape_cast %569 : vector<1x8x128xf32> to vector<8x128xf32>
    %571 = arith.truncf %570 : vector<8x128xf32> to vector<8x128xbf16>
    %c0_213 = arith.constant 0 : index
    %c0_214 = arith.constant 0 : index
    %572 = vector.load %arg2[%c0_213, %c0_214] : memref<128x384xbf16, #tpu.memory_space<vmem>>, vector<128x384xbf16>
    %cst_215 = arith.constant dense<0.000000e+00> : vector<8x384xf32>
    %573 = tpu.matmul %571, %572, %cst_215 {dimension_numbers = #tpu.dot_dimension_numbers<[1], [0], [0], [1], [0, 0, 1, 1], [], []>} : vector<8x128xbf16>, vector<128x384xbf16>, vector<8x384xf32> -> vector<8x384xf32>
    %574 = vector.extract_strided_slice %568 {offsets = [0, 0], sizes = [8, 128], strides = [1, 1]} : vector<8x384xf32> to vector<8x128xf32>
    %575 = vector.extract_strided_slice %573 {offsets = [0, 0], sizes = [8, 128], strides = [1, 1]} : vector<8x384xf32> to vector<8x128xf32>
    %576 = arith.addf %574, %575 : vector<8x128xf32>
    %577 = arith.negf %576 : vector<8x128xf32>
    %578 = math.exp %577 : vector<8x128xf32>
    %cst_216 = arith.constant 1.000000e+00 : f32
    %579 = vector.broadcast %cst_216 : f32 to vector<8x128xf32>
    %580 = arith.addf %579, %578 : vector<8x128xf32>
    %581 = arith.divf %579, %580 : vector<8x128xf32>
    %582 = vector.extract_strided_slice %568 {offsets = [0, 128], sizes = [8, 128], strides = [1, 1]} : vector<8x384xf32> to vector<8x128xf32>
    %583 = vector.extract_strided_slice %573 {offsets = [0, 128], sizes = [8, 128], strides = [1, 1]} : vector<8x384xf32> to vector<8x128xf32>
    %584 = arith.addf %582, %583 : vector<8x128xf32>
    %585 = arith.negf %584 : vector<8x128xf32>
    %586 = math.exp %585 : vector<8x128xf32>
    %cst_217 = arith.constant 1.000000e+00 : f32
    %587 = vector.broadcast %cst_217 : f32 to vector<8x128xf32>
    %588 = arith.addf %587, %586 : vector<8x128xf32>
    %589 = arith.divf %587, %588 : vector<8x128xf32>
    %590 = vector.extract_strided_slice %568 {offsets = [0, 256], sizes = [8, 128], strides = [1, 1]} : vector<8x384xf32> to vector<8x128xf32>
    %591 = vector.extract_strided_slice %573 {offsets = [0, 256], sizes = [8, 128], strides = [1, 1]} : vector<8x384xf32> to vector<8x128xf32>
    %592 = vector.broadcast %3 : vector<1x128xf32> to vector<8x128xf32>
    %593 = arith.addf %591, %592 : vector<8x128xf32>
    %594 = arith.mulf %581, %593 : vector<8x128xf32>
    %595 = arith.addf %590, %594 : vector<8x128xf32>
    %596 = math.tanh %595 : vector<8x128xf32>
    %cst_218 = arith.constant 1.000000e+00 : f32
    %597 = vector.broadcast %cst_218 : f32 to vector<8x128xf32>
    %598 = arith.subf %597, %589 : vector<8x128xf32>
    %599 = arith.mulf %598, %596 : vector<8x128xf32>
    %600 = arith.mulf %589, %570 : vector<8x128xf32>
    %601 = arith.addf %599, %600 : vector<8x128xf32>
    %c0_219 = arith.constant 0 : index
    %c0_220 = arith.constant 0 : index
    %c0_221 = arith.constant 0 : index
    %602 = vector.load %arg9[%c0_219, %c0_220, %c0_221] : memref<2x8x128xf32, #tpu.memory_space<vmem>>, vector<1x8x128xf32>
    %603 = vector.shape_cast %602 : vector<1x8x128xf32> to vector<8x128xf32>
    %604 = vector.shape_cast %601 : vector<8x128xf32> to vector<1x8x128xf32>
    tpu.vector_store %arg9[%c0_219, %c0_220, %c0_221], %604 {strides = array<i32>} : memref<2x8x128xf32, #tpu.memory_space<vmem>>, vector<1x8x128xf32>,
    %c1_222 = arith.constant 1 : index
    %c0_223 = arith.constant 0 : index
    %c0_224 = arith.constant 0 : index
    %605 = vector.load %arg9[%c1_222, %c0_223, %c0_224] : memref<2x8x128xf32, #tpu.memory_space<vmem>>, vector<1x8x128xf32>
    %606 = vector.shape_cast %605 : vector<1x8x128xf32> to vector<8x128xf32>
    %607 = arith.truncf %601 : vector<8x128xf32> to vector<8x128xbf16>
    %c0_225 = arith.constant 0 : index
    %c0_226 = arith.constant 0 : index
    %608 = vector.load %arg6[%c0_225, %c0_226] : memref<128x384xbf16, #tpu.memory_space<vmem>>, vector<128x384xbf16>
    %cst_227 = arith.constant dense<0.000000e+00> : vector<8x384xf32>
    %609 = tpu.matmul %607, %608, %cst_227 {dimension_numbers = #tpu.dot_dimension_numbers<[1], [0], [0], [1], [0, 0, 1, 1], [], []>} : vector<8x128xbf16>, vector<128x384xbf16>, vector<8x384xf32> -> vector<8x384xf32>
    %610 = vector.broadcast %5 : vector<1x384xf32> to vector<8x384xf32>
    %611 = arith.addf %609, %610 : vector<8x384xf32>
    %612 = arith.truncf %606 : vector<8x128xf32> to vector<8x128xbf16>
    %c0_228 = arith.constant 0 : index
    %c0_229 = arith.constant 0 : index
    %613 = vector.load %arg3[%c0_228, %c0_229] : memref<128x384xbf16, #tpu.memory_space<vmem>>, vector<128x384xbf16>
    %cst_230 = arith.constant dense<0.000000e+00> : vector<8x384xf32>
    %614 = tpu.matmul %612, %613, %cst_230 {dimension_numbers = #tpu.dot_dimension_numbers<[1], [0], [0], [1], [0, 0, 1, 1], [], []>} : vector<8x128xbf16>, vector<128x384xbf16>, vector<8x384xf32> -> vector<8x384xf32>
    %615 = vector.extract_strided_slice %611 {offsets = [0, 0], sizes = [8, 128], strides = [1, 1]} : vector<8x384xf32> to vector<8x128xf32>
    %616 = vector.extract_strided_slice %614 {offsets = [0, 0], sizes = [8, 128], strides = [1, 1]} : vector<8x384xf32> to vector<8x128xf32>
    %617 = arith.addf %615, %616 : vector<8x128xf32>
    %618 = arith.negf %617 : vector<8x128xf32>
    %619 = math.exp %618 : vector<8x128xf32>
    %cst_231 = arith.constant 1.000000e+00 : f32
    %620 = vector.broadcast %cst_231 : f32 to vector<8x128xf32>
    %621 = arith.addf %620, %619 : vector<8x128xf32>
    %622 = arith.divf %620, %621 : vector<8x128xf32>
    %623 = vector.extract_strided_slice %611 {offsets = [0, 128], sizes = [8, 128], strides = [1, 1]} : vector<8x384xf32> to vector<8x128xf32>
    %624 = vector.extract_strided_slice %614 {offsets = [0, 128], sizes = [8, 128], strides = [1, 1]} : vector<8x384xf32> to vector<8x128xf32>
    %625 = arith.addf %623, %624 : vector<8x128xf32>
    %626 = arith.negf %625 : vector<8x128xf32>
    %627 = math.exp %626 : vector<8x128xf32>
    %cst_232 = arith.constant 1.000000e+00 : f32
    %628 = vector.broadcast %cst_232 : f32 to vector<8x128xf32>
    %629 = arith.addf %628, %627 : vector<8x128xf32>
    %630 = arith.divf %628, %629 : vector<8x128xf32>
    %631 = vector.extract_strided_slice %611 {offsets = [0, 256], sizes = [8, 128], strides = [1, 1]} : vector<8x384xf32> to vector<8x128xf32>
    %632 = vector.extract_strided_slice %614 {offsets = [0, 256], sizes = [8, 128], strides = [1, 1]} : vector<8x384xf32> to vector<8x128xf32>
    %633 = vector.broadcast %4 : vector<1x128xf32> to vector<8x128xf32>
    %634 = arith.addf %632, %633 : vector<8x128xf32>
    %635 = arith.mulf %622, %634 : vector<8x128xf32>
    %636 = arith.addf %631, %635 : vector<8x128xf32>
    %637 = math.tanh %636 : vector<8x128xf32>
    %cst_233 = arith.constant 1.000000e+00 : f32
    %638 = vector.broadcast %cst_233 : f32 to vector<8x128xf32>
    %639 = arith.subf %638, %630 : vector<8x128xf32>
    %640 = arith.mulf %639, %637 : vector<8x128xf32>
    %641 = arith.mulf %630, %606 : vector<8x128xf32>
    %642 = arith.addf %640, %641 : vector<8x128xf32>
    %c1_234 = arith.constant 1 : index
    %c0_235 = arith.constant 0 : index
    %c0_236 = arith.constant 0 : index
    %643 = vector.load %arg9[%c1_234, %c0_235, %c0_236] : memref<2x8x128xf32, #tpu.memory_space<vmem>>, vector<1x8x128xf32>
    %644 = vector.shape_cast %643 : vector<1x8x128xf32> to vector<8x128xf32>
    %645 = vector.shape_cast %642 : vector<8x128xf32> to vector<1x8x128xf32>
    tpu.vector_store %arg9[%c1_234, %c0_235, %c0_236], %645 {strides = array<i32>} : memref<2x8x128xf32, #tpu.memory_space<vmem>>, vector<1x8x128xf32>,
    %c8_i32 = arith.constant 8 : i32
    %c0_i32_237 = arith.constant 0 : i32
    %646 = arith.cmpi eq, %arg0, %c0_i32_237 : i32
    %647 = arith.extui %646 : i1 to i32
    %c0_i32_238 = arith.constant 0 : i32
    %648 = arith.cmpi ne, %647, %c0_i32_238 : i32
    scf.if %648 {
      %c0_239 = arith.constant 0 : index
      %c0_240 = arith.constant 0 : index
      %c0_241 = arith.constant 0 : index
      %649 = vector.load %arg9[%c0_239, %c0_240, %c0_241] : memref<2x8x128xf32, #tpu.memory_space<vmem>>, vector<2x8x128xf32>
      %c0_242 = arith.constant 0 : index
      %c0_243 = arith.constant 0 : index
      %c0_244 = arith.constant 0 : index
      %650 = vector.load %arg8[%c0_242, %c0_243, %c0_244] : memref<2x8x128xf32, #tpu.memory_space<vmem>>, vector<2x8x128xf32>
      tpu.vector_store %arg8[%c0_242, %c0_243, %c0_244], %649 {strides = array<i32>} : memref<2x8x128xf32, #tpu.memory_space<vmem>>, vector<2x8x128xf32>,
    } else {
    }
    return
  }
  func.func @transform_0(%arg0: i32) -> (i32, i32, i32) {
    %c0_i32 = arith.constant 0 : i32
    %c0_i32_0 = arith.constant 0 : i32
    %c0_i32_1 = arith.constant 0 : i32
    return %arg0, %c0_i32, %c0_i32_0 : i32, i32, i32
  }
  func.func @transform_1(%arg0: i32) -> (i32, i32) {
    %c0_i32 = arith.constant 0 : i32
    %c0_i32_0 = arith.constant 0 : i32
    %c0_i32_1 = arith.constant 0 : i32
    return %c0_i32, %c0_i32_0 : i32, i32
  }
  func.func @transform_2(%arg0: i32) -> (i32, i32) {
    %c0_i32 = arith.constant 0 : i32
    %c0_i32_0 = arith.constant 0 : i32
    %c0_i32_1 = arith.constant 0 : i32
    return %c0_i32, %c0_i32_0 : i32, i32
  }
  func.func @transform_3(%arg0: i32) -> (i32, i32) {
    %c0_i32 = arith.constant 0 : i32
    %c0_i32_0 = arith.constant 0 : i32
    %c0_i32_1 = arith.constant 0 : i32
    return %c0_i32, %c0_i32_0 : i32, i32
  }
  func.func @transform_4(%arg0: i32) -> (i32, i32) {
    %c0_i32 = arith.constant 0 : i32
    %c0_i32_0 = arith.constant 0 : i32
    %c0_i32_1 = arith.constant 0 : i32
    return %c0_i32, %c0_i32_0 : i32, i32
  }
  func.func @transform_5(%arg0: i32) -> (i32, i32) {
    %c0_i32 = arith.constant 0 : i32
    %c0_i32_0 = arith.constant 0 : i32
    %c0_i32_1 = arith.constant 0 : i32
    return %c0_i32, %c0_i32_0 : i32, i32
  }
  func.func @transform_6(%arg0: i32) -> (i32, i32) {
    %c0_i32 = arith.constant 0 : i32
    %c0_i32_0 = arith.constant 0 : i32
    %c0_i32_1 = arith.constant 0 : i32
    return %c0_i32, %c0_i32_0 : i32, i32
  }
  func.func @transform_7(%arg0: i32) -> (i32, i32, i32) {
    %c0_i32 = arith.constant 0 : i32
    %c0_i32_0 = arith.constant 0 : i32
    %c0_i32_1 = arith.constant 0 : i32
    %c0_i32_2 = arith.constant 0 : i32
    return %c0_i32, %c0_i32_0, %c0_i32_1 : i32, i32, i32
  }
}

</mosaic_0001>

<llo_original>
// kernel: _encoder_gru_forward_jit.1
$region0: #{_encoder_gru_forward_jit.1}
  #allocation0 [shape = 'u32[]', space=smem, size = 0x4, offset = 0x4, fixed_abs, tag = 'smem constant byte address 0x4 - core index']
  #allocation1 [shape = 'u32[144,128]{1,0:T(1,128)}', space=vmem, size = 0x12000, scoped, tag = 'internal scratch']
  #allocation2 [shape = 'f32[2,8,128]{2,1,0:T(8,128)}', space=vmem, size = 0x2000, scoped, tag = 'scratch operand']
  %s0 = inlined_call_operand.vmem [shape: f32[8,8,384], index: 0, kind: input, shape index: {}]
  %s1 = inlined_call_operand.vmem [shape: bf16[128,384], index: 1, kind: input, shape index: {}]
  %s2 = inlined_call_operand.vmem [shape: bf16[128,384], index: 2, kind: input, shape index: {}]
  %s3 = inlined_call_operand.vmem [shape: f32[1,128], index: 3, kind: input, shape index: {}]
  %s4 = inlined_call_operand.vmem [shape: f32[1,128], index: 4, kind: input, shape index: {}]
  %s5 = inlined_call_operand.vmem [shape: bf16[128,384], index: 5, kind: input, shape index: {}]
  %s6 = inlined_call_operand.vmem [shape: f32[1,384], index: 6, kind: input, shape index: {}]
  %s7 = inlined_call_operand.vmem [shape: f32[2,8,128], index: 7, kind: output, shape index: {}]
  %s8 = sld [smem:[#allocation0]]
  $region46: #{_encoder_gru_forward_jit.1} parent=0
    _
  %s10 = ssub.s32 1, %s8
  %s11 = scalar_select 0, %s10, %s8
  // Predicated region
  $region2: #{_encoder_gru_forward_jit.1} parent=0 // pred_check
    _
  $region3: #{_encoder_gru_forward_jit.1} parent=0 // pred_check_branch
    %13 = sbr.rel (0) target = $region5
  $region4: #{_encoder_gru_forward_jit.1} parent=0 // pred_region
    _
  $region5: #{_encoder_gru_forward_jit.1} parent=0 // pred_fallthru
    _
  // Predicated region
  $region6: #{_encoder_gru_forward_jit.1} parent=0 // pred_check
    _
  $region7: #{_encoder_gru_forward_jit.1} parent=0 // pred_check_branch
    %15 = sbr.rel (0) target = $region9
  $region8: #{_encoder_gru_forward_jit.1} parent=0 // pred_region
    _
  $region9: #{_encoder_gru_forward_jit.1} parent=0 // pred_fallthru
    _
  // Predicated region
  $region10: #{_encoder_gru_forward_jit.1} parent=0 // pred_check
    _
  $region11: #{_encoder_gru_forward_jit.1} parent=0 // pred_check_branch
    %17 = sbr.rel (0) target = $region13
  $region12: #{_encoder_gru_forward_jit.1} parent=0 // pred_region
    _
  $region13: #{_encoder_gru_forward_jit.1} parent=0 // pred_fallthru
    _
  // Predicated region
  $region14: #{_encoder_gru_forward_jit.1} parent=0 // pred_check
    _
  $region15: #{_encoder_gru_forward_jit.1} parent=0 // pred_check_branch
    %19 = sbr.rel (0) target = $region17
  $region16: #{_encoder_gru_forward_jit.1} parent=0 // pred_region
    _
  $region17: #{_encoder_gru_forward_jit.1} parent=0 // pred_fallthru
    _
  // Predicated region
  $region18: #{_encoder_gru_forward_jit.1} parent=0 // pred_check
    _
  $region19: #{_encoder_gru_forward_jit.1} parent=0 // pred_check_branch
    %21 = sbr.rel (0) target = $region21
  $region20: #{_encoder_gru_forward_jit.1} parent=0 // pred_region
    _
  $region21: #{_encoder_gru_forward_jit.1} parent=0 // pred_fallthru
    _
  // Predicated region
  $region22: #{_encoder_gru_forward_jit.1} parent=0 // pred_check
    _
  $region23: #{_encoder_gru_forward_jit.1} parent=0 // pred_check_branch
    %23 = sbr.rel (0) target = $region25
  $region24: #{_encoder_gru_forward_jit.1} parent=0 // pred_region
    _
  $region25: #{_encoder_gru_forward_jit.1} parent=0 // pred_fallthru
    _
  // Predicated region
  $region26: #{_encoder_gru_forward_jit.1} parent=0 // pred_check
    _
  $region27: #{_encoder_gru_forward_jit.1} parent=0 // pred_check_branch
    %25 = sbr.rel (0) target = $region29
  $region28: #{_encoder_gru_forward_jit.1} parent=0 // pred_region
    _
  $region29: #{_encoder_gru_forward_jit.1} parent=0 // pred_fallthru
    _
  %p27 = scmp.eq.s32.totalorder 0, 0
  // Predicated region
  $region30: #{_encoder_gru_forward_jit.1} parent=0 // pred_check
    %p28 = pneg %p27
  $region31: #{_encoder_gru_forward_jit.1} parent=0 // pred_check_branch
    %30 = sbr.rel (%p28) target = $region33
  $region32: #{_encoder_gru_forward_jit.1} parent=0 // pred_region
    %31 = vst [vmem:[#allocation2] sm:$0xff] 0.0
    %32 = vst [vmem:[#allocation2 + $0x8] sm:$0xff] 0.0
  $region33: #{_encoder_gru_forward_jit.1} parent=0 // pred_fallthru
    _
  %v33 = vld [vmem:[%s3] sm:$0x1]
  %v34 = vld [vmem:[%s4] sm:$0x1]
  %v35 = vld [vmem:[%s6] sm:$0x7]
  %v36 = vld [vmem:[%s0] sm:$0xff]
  %v37 = vld [vmem:[%s0 + $0x8] sm:$0xff]
  %v38 = vld [vmem:[%s0 + $0x10] sm:$0xff]
  %v39 = vld [vmem:[#allocation2] sm:$0xff]
  %v40 = vpack.c.bf16 %v39, %v39
  %v41 = vld [vmem:[%s1] sm:$0xff]
  %v42 = vld [vmem:[%s1 + $0x8] sm:$0xf]
  %v43 = vld [vmem:[%s1 + $0xc] sm:$0xff]
  %v44 = vld [vmem:[%s1 + $0x14] sm:$0xf]
  %v45 = vld [vmem:[%s1 + $0x18] sm:$0xff]
  %v46 = vld [vmem:[%s1 + $0x20] sm:$0xf]
  %v47 = vld [vmem:[%s1 + $0x24] sm:$0xff]
  %v48 = vld [vmem:[%s1 + $0x2c] sm:$0xf]
  %v49 = vld [vmem:[%s1 + $0x30] sm:$0xff]
  %v50 = vld [vmem:[%s1 + $0x38] sm:$0xf]
  %v51 = vld [vmem:[%s1 + $0x3c] sm:$0xff]
  %v52 = vld [vmem:[%s1 + $0x44] sm:$0xf]
  %v53 = vld [vmem:[%s1 + $0x48] sm:$0xff]
  %v54 = vld [vmem:[%s1 + $0x50] sm:$0xf]
  %v55 = vld [vmem:[%s1 + $0x54] sm:$0xff]
  %v56 = vld [vmem:[%s1 + $0x5c] sm:$0xf]
  %v57 = vld [vmem:[%s1 + $0x60] sm:$0xff]
  %v58 = vld [vmem:[%s1 + $0x68] sm:$0xf]
  %v59 = vld [vmem:[%s1 + $0x6c] sm:$0xff]
  %v60 = vld [vmem:[%s1 + $0x74] sm:$0xf]
  %v61 = vld [vmem:[%s1 + $0x78] sm:$0xff]
  %v62 = vld [vmem:[%s1 + $0x80] sm:$0xf]
  %v63 = vld [vmem:[%s1 + $0x84] sm:$0xff]
  %v64 = vld [vmem:[%s1 + $0x8c] sm:$0xf]
  %v65 = vld [vmem:[%s1 + $0x90] sm:$0xff]
  %v66 = vld [vmem:[%s1 + $0x98] sm:$0xf]
  %v67 = vld [vmem:[%s1 + $0x9c] sm:$0xff]
  %v68 = vld [vmem:[%s1 + $0xa4] sm:$0xf]
  %v69 = vld [vmem:[%s1 + $0xa8] sm:$0xff]
  %v70 = vld [vmem:[%s1 + $0xb0] sm:$0xf]
  %v71 = vld [vmem:[%s1 + $0xb4] sm:$0xff]
  %v72 = vld [vmem:[%s1 + $0xbc] sm:$0xf]
  %v105 = vunpack.c.l.b16 %v41
  %v106 = vunpack.c.h.b16 %v41
  %v107 = vunpack.c.l.b16 %v42
  %v108 = vunpack.c.l.b16 %v43
  %v109 = vunpack.c.h.b16 %v43
  %v110 = vunpack.c.l.b16 %v44
  %v111 = vunpack.c.l.b16 %v45
  %v112 = vunpack.c.h.b16 %v45
  %v113 = vunpack.c.l.b16 %v46
  %v114 = vunpack.c.l.b16 %v47
  %v115 = vunpack.c.h.b16 %v47
  %v116 = vunpack.c.l.b16 %v48
  %v117 = vunpack.c.l.b16 %v49
  %v118 = vunpack.c.h.b16 %v49
  %v119 = vunpack.c.l.b16 %v50
  %v120 = vunpack.c.l.b16 %v51
  %v121 = vunpack.c.h.b16 %v51
  %v122 = vunpack.c.l.b16 %v52
  %v123 = vunpack.c.l.b16 %v53
  %v124 = vunpack.c.h.b16 %v53
  %v125 = vunpack.c.l.b16 %v54
  %v126 = vunpack.c.l.b16 %v55
  %v127 = vunpack.c.h.b16 %v55
  %v128 = vunpack.c.l.b16 %v56
  %v129 = vunpack.c.l.b16 %v57
  %v130 = vunpack.c.h.b16 %v57
  %v131 = vunpack.c.l.b16 %v58
  %v132 = vunpack.c.l.b16 %v59
  %v133 = vunpack.c.h.b16 %v59
  %v134 = vunpack.c.l.b16 %v60
  %v135 = vunpack.c.l.b16 %v61
  %v136 = vunpack.c.h.b16 %v61
  %v137 = vunpack.c.l.b16 %v62
  %v138 = vunpack.c.l.b16 %v63
  %v139 = vunpack.c.h.b16 %v63
  %v140 = vunpack.c.l.b16 %v64
  %v141 = vunpack.c.l.b16 %v65
  %v142 = vunpack.c.h.b16 %v65
  %v143 = vunpack.c.l.b16 %v66
  %v144 = vunpack.c.l.b16 %v67
  %v145 = vunpack.c.h.b16 %v67
  %v146 = vunpack.c.l.b16 %v68
  %v147 = vunpack.c.l.b16 %v69
  %v148 = vunpack.c.h.b16 %v69
  %v149 = vunpack.c.l.b16 %v70
  %v150 = vunpack.c.l.b16 %v71
  %v151 = vunpack.c.h.b16 %v71
  %v152 = vunpack.c.l.b16 %v72
  %v153 = vpack.c.b16 %v108, %v105
  %v154 = vpack.c.b16 %v109, %v106
  %v155 = vpack.c.b16 %v110, %v107
  %v156 = vpack.c.b16 %v114, %v111
  %v157 = vpack.c.b16 %v115, %v112
  %v158 = vpack.c.b16 %v116, %v113
  %v159 = vpack.c.b16 %v120, %v117
  %v160 = vpack.c.b16 %v121, %v118
  %v161 = vpack.c.b16 %v122, %v119
  %v162 = vpack.c.b16 %v126, %v123
  %v163 = vpack.c.b16 %v127, %v124
  %v164 = vpack.c.b16 %v128, %v125
  %v165 = vpack.c.b16 %v132, %v129
  %v166 = vpack.c.b16 %v133, %v130
  %v167 = vpack.c.b16 %v134, %v131
  %v168 = vpack.c.b16 %v138, %v135
  %v169 = vpack.c.b16 %v139, %v136
  %v170 = vpack.c.b16 %v140, %v137
  %v171 = vpack.c.b16 %v144, %v141
  %v172 = vpack.c.b16 %v145, %v142
  %v173 = vpack.c.b16 %v146, %v143
  %v174 = vpack.c.b16 %v150, %v147
  %v175 = vpack.c.b16 %v151, %v148
  %v176 = vpack.c.b16 %v152, %v149
  %201 = vmatprep.subr.bf16.mxu0 %v154
  %202 = vmatpush1.bf16.msra.mxu0 %v153
  %203 = vmatprep.subr.bf16.mxu0 %v157
  %204 = vmatpush1.bf16.msra.mxu0 %v156
  %205 = vmatprep.subr.bf16.mxu0 %v160
  %206 = vmatpush1.bf16.msra.mxu0 %v159
  %207 = vmatprep.subr.bf16.mxu0 %v163
  %208 = vmatpush1.bf16.msra.mxu0 %v162
  %209 = vmatprep.subr.bf16.mxu0 %v166
  %210 = vmatpush1.bf16.msra.mxu0 %v165
  %211 = vmatprep.subr.bf16.mxu0 %v169
  %212 = vmatpush1.bf16.msra.mxu0 %v168
  %213 = vmatprep.subr.bf16.mxu0 %v172
  %214 = vmatpush1.bf16.msra.mxu0 %v171
  %215 = vmatprep.subr.bf16.mxu0 %v175
  %216 = vmatpush1.bf16.msra.mxu0 %v174
  %217 = vmatprep.subr.bf16.mxu0 0
  %218 = vmatpush1.bf16.msra.mxu0 0
  %219 = vmatprep.subr.bf16.mxu0 0
  %220 = vmatpush1.bf16.msra.mxu0 0
  %221 = vmatprep.subr.bf16.mxu0 0
  %222 = vmatpush1.bf16.msra.mxu0 0
  %223 = vmatprep.subr.bf16.mxu0 0
  %224 = vmatpush1.bf16.msra.mxu0 0
  %225 = vmatprep.subr.bf16.mxu0 0
  %226 = vmatpush1.bf16.msra.mxu0 0
  %227 = vmatprep.subr.bf16.mxu0 0
  %228 = vmatpush1.bf16.msra.mxu0 0
  %229 = vmatprep.subr.bf16.mxu0 0
  %230 = vmatpush1.bf16.msra.mxu0 0
  %231 = vmatprep.subr.bf16.mxu0 0
  %232 = vmatpush1.bf16.msra.mxu0 0
  %233 = vmatprep.mubr.bf16.mxu0 0
  %234 = vmatmul.mubr.bf16.gmra.mrb[0].mxu0 %v40
  %v235 = vpop.f32.mrb[0].mxu0
  %v236 = vadd.f32 0.0, %v235
  %v237 = vpop.f32.mrb[0].mxu0
  %v238 = vadd.f32 0.0, %v237
  %v239 = vpop.f32.mrb[0].mxu0
  %v240 = vpop.f32.mrb[0].mxu0
  %241 = vdwg.mxu0
  %242 = vmatprep.subr.bf16.mxu0 0
  %243 = vmatpush1.bf16.msra.mxu0 %v155
  %244 = vmatprep.subr.bf16.mxu0 0
  %245 = vmatpush1.bf16.msra.mxu0 %v158
  %246 = vmatprep.subr.bf16.mxu0 0
  %247 = vmatpush1.bf16.msra.mxu0 %v161
  %248 = vmatprep.subr.bf16.mxu0 0
  %249 = vmatpush1.bf16.msra.mxu0 %v164
  %250 = vmatprep.subr.bf16.mxu0 0
  %251 = vmatpush1.bf16.msra.mxu0 %v167
  %252 = vmatprep.subr.bf16.mxu0 0
  %253 = vmatpush1.bf16.msra.mxu0 %v170
  %254 = vmatprep.subr.bf16.mxu0 0
  %255 = vmatpush1.bf16.msra.mxu0 %v173
  %256 = vmatprep.subr.bf16.mxu0 0
  %257 = vmatpush1.bf16.msra.mxu0 %v176
  %258 = vmatprep.subr.bf16.mxu0 0
  %259 = vmatpush1.bf16.msra.mxu0 0
  %260 = vmatprep.subr.bf16.mxu0 0
  %261 = vmatpush1.bf16.msra.mxu0 0
  %262 = vmatprep.subr.bf16.mxu0 0
  %263 = vmatpush1.bf16.msra.mxu0 0
  %264 = vmatprep.subr.bf16.mxu0 0
  %265 = vmatpush1.bf16.msra.mxu0 0
  %266 = vmatprep.subr.bf16.mxu0 0
  %267 = vmatpush1.bf16.msra.mxu0 0
  %268 = vmatprep.subr.bf16.mxu0 0
  %269 = vmatpush1.bf16.msra.mxu0 0
  %270 = vmatprep.subr.bf16.mxu0 0
  %271 = vmatpush1.bf16.msra.mxu0 0
  %272 = vmatprep.subr.bf16.mxu0 0
  %273 = vmatpush1.bf16.msra.mxu0 0
  %274 = vmatprep.mubr.bf16.mxu0 0
  %275 = vmatmul.mubr.bf16.gmra.mrb[0].mxu0 %v40
  %v276 = vpop.f32.mrb[0].mxu0
  %v277 = vadd.f32 0.0, %v276
  %v278 = vpop.f32.mrb[0].mxu0
  %v279 = vpop.f32.mrb[0].mxu0
  %v280 = vpop.f32.mrb[0].mxu0
  %281 = vdwg.mxu0
  %v282 = vadd.f32 %v36, %v236
  %v283 = vxor.u32 %v282, 2147483648
  %v284 = vmul.f32 %v283, 1.442695
  %v285 = vpow.pop %v284
  %v286 = vadd.f32 %v285, 1.0
  %v287 = vrcp.pop %v286
  %v288 = vmul.f32 1.0, %v287
  %v289 = vadd.f32 %v37, %v238
  %v290 = vxor.u32 %v289, 2147483648
  %v291 = vmul.f32 %v290, 1.442695
  %v292 = vpow.pop %v291
  %v293 = vadd.f32 %v292, 1.0
  %v294 = vrcp.pop %v293
  %v295 = vmul.f32 1.0, %v294
  %v297 = vlaneseq
  %v298 = vshrl.u32 %v297, 7
  %v299 = vsub.s32 0, %v298
  %v300 = vrot.slane %v33, %v299
  %v302 = vadd.f32 %v277, %v300
  %v303 = vmul.f32 %v288, %v302
  %v304 = vadd.f32 %v38, %v303
  %v305 = vtanh.pop %v304
  %v306 = vsub.f32 1.0, %v295
  %v307 = vmul.f32 %v306, %v305
  %v308 = vmul.f32 %v295, %v39
  %v309 = vadd.f32 %v307, %v308
  %310 = vst [vmem:[#allocation2] sm:$0xff] %v309
  %s311 = scalar_lea.vmem [#allocation2], 8
  %v312 = vld [vmem:[%s311] sm:$0xff]
  %v313 = vpack.c.bf16 %v309, %v309
  %v314 = vld [vmem:[%s5] sm:$0xff]
  %v315 = vld [vmem:[%s5 + $0x8] sm:$0xf]
  %v316 = vld [vmem:[%s5 + $0xc] sm:$0xff]
  %v317 = vld [vmem:[%s5 + $0x14] sm:$0xf]
  %v318 = vld [vmem:[%s5 + $0x18] sm:$0xff]
  %v319 = vld [vmem:[%s5 + $0x20] sm:$0xf]
  %v320 = vld [vmem:[%s5 + $0x24] sm:$0xff]
  %v321 = vld [vmem:[%s5 + $0x2c] sm:$0xf]
  %v322 = vld [vmem:[%s5 + $0x30] sm:$0xff]
  %v323 = vld [vmem:[%s5 + $0x38] sm:$0xf]
  %v324 = vld [vmem:[%s5 + $0x3c] sm:$0xff]
  %v325 = vld [vmem:[%s5 + $0x44] sm:$0xf]
  %v326 = vld [vmem:[%s5 + $0x48] sm:$0xff]
  %v327 = vld [vmem:[%s5 + $0x50] sm:$0xf]
  %v328 = vld [vmem:[%s5 + $0x54] sm:$0xff]
  %v329 = vld [vmem:[%s5 + $0x5c] sm:$0xf]
  %v330 = vld [vmem:[%s5 + $0x60] sm:$0xff]
  %v331 = vld [vmem:[%s5 + $0x68] sm:$0xf]
  %v332 = vld [vmem:[%s5 + $0x6c] sm:$0xff]
  %v333 = vld [vmem:[%s5 + $0x74] sm:$0xf]
  %v334 = vld [vmem:[%s5 + $0x78] sm:$0xff]
  %v335 = vld [vmem:[%s5 + $0x80] sm:$0xf]
  %v336 = vld [vmem:[%s5 + $0x84] sm:$0xff]
  %v337 = vld [vmem:[%s5 + $0x8c] sm:$0xf]
  %v338 = vld [vmem:[%s5 + $0x90] sm:$0xff]
  %v339 = vld [vmem:[%s5 + $0x98] sm:$0xf]
  %v340 = vld [vmem:[%s5 + $0x9c] sm:$0xff]
  %v341 = vld [vmem:[%s5 + $0xa4] sm:$0xf]
  %v342 = vld [vmem:[%s5 + $0xa8] sm:$0xff]
  %v343 = vld [vmem:[%s5 + $0xb0] sm:$0xf]
  %v344 = vld [vmem:[%s5 + $0xb4] sm:$0xff]
  %v345 = vld [vmem:[%s5 + $0xbc] sm:$0xf]
  %v347 = vlaneseq
  %v348 = vshrl.u32 %v347, 7
  %v349 = vsub.s32 0, %v348
  %v350 = vrot.slane %v35, %v349
  %v351 = vlaneseq
  %v352 = vshrl.u32 %v351, 7
  %v353 = vsub.s32 1, %v352
  %v354 = vrot.slane %v35, %v353
  %v355 = vlaneseq
  %v356 = vshrl.u32 %v355, 7
  %v357 = vsub.s32 2, %v356
  %v358 = vrot.slane %v35, %v357
  %v394 = vunpack.c.l.b16 %v314
  %v395 = vunpack.c.h.b16 %v314
  %v396 = vunpack.c.l.b16 %v315
  %v397 = vunpack.c.l.b16 %v316
  %v398 = vunpack.c.h.b16 %v316
  %v399 = vunpack.c.l.b16 %v317
  %v400 = vunpack.c.l.b16 %v318
  %v401 = vunpack.c.h.b16 %v318
  %v402 = vunpack.c.l.b16 %v319
  %v403 = vunpack.c.l.b16 %v320
  %v404 = vunpack.c.h.b16 %v320
  %v405 = vunpack.c.l.b16 %v321
  %v406 = vunpack.c.l.b16 %v322
  %v407 = vunpack.c.h.b16 %v322
  %v408 = vunpack.c.l.b16 %v323
  %v409 = vunpack.c.l.b16 %v324
  %v410 = vunpack.c.h.b16 %v324
  %v411 = vunpack.c.l.b16 %v325
  %v412 = vunpack.c.l.b16 %v326
  %v413 = vunpack.c.h.b16 %v326
  %v414 = vunpack.c.l.b16 %v327
  %v415 = vunpack.c.l.b16 %v328
  %v416 = vunpack.c.h.b16 %v328
  %v417 = vunpack.c.l.b16 %v329
  %v418 = vunpack.c.l.b16 %v330
  %v419 = vunpack.c.h.b16 %v330
  %v420 = vunpack.c.l.b16 %v331
  %v421 = vunpack.c.l.b16 %v332
  %v422 = vunpack.c.h.b16 %v332
  %v423 = vunpack.c.l.b16 %v333
  %v424 = vunpack.c.l.b16 %v334
  %v425 = vunpack.c.h.b16 %v334
  %v426 = vunpack.c.l.b16 %v335
  %v427 = vunpack.c.l.b16 %v336
  %v428 = vunpack.c.h.b16 %v336
  %v429 = vunpack.c.l.b16 %v337
  %v430 = vunpack.c.l.b16 %v338
  %v431 = vunpack.c.h.b16 %v338
  %v432 = vunpack.c.l.b16 %v339
  %v433 = vunpack.c.l.b16 %v340
  %v434 = vunpack.c.h.b16 %v340
  %v435 = vunpack.c.l.b16 %v341
  %v436 = vunpack.c.l.b16 %v342
  %v437 = vunpack.c.h.b16 %v342
  %v438 = vunpack.c.l.b16 %v343
  %v439 = vunpack.c.l.b16 %v344
  %v440 = vunpack.c.h.b16 %v344
  %v441 = vunpack.c.l.b16 %v345
  %v442 = vpack.c.b16 %v397, %v394
  %v443 = vpack.c.b16 %v398, %v395
  %v444 = vpack.c.b16 %v399, %v396
  %v445 = vpack.c.b16 %v403, %v400
  %v446 = vpack.c.b16 %v404, %v401
  %v447 = vpack.c.b16 %v405, %v402
  %v448 = vpack.c.b16 %v409, %v406
  %v449 = vpack.c.b16 %v410, %v407
  %v450 = vpack.c.b16 %v411, %v408
  %v451 = vpack.c.b16 %v415, %v412
  %v452 = vpack.c.b16 %v416, %v413
  %v453 = vpack.c.b16 %v417, %v414
  %v454 = vpack.c.b16 %v421, %v418
  %v455 = vpack.c.b16 %v422, %v419
  %v456 = vpack.c.b16 %v423, %v420
  %v457 = vpack.c.b16 %v427, %v424
  %v458 = vpack.c.b16 %v428, %v425
  %v459 = vpack.c.b16 %v429, %v426
  %v460 = vpack.c.b16 %v433, %v430
  %v461 = vpack.c.b16 %v434, %v431
  %v462 = vpack.c.b16 %v435, %v432
  %v463 = vpack.c.b16 %v439, %v436
  %v464 = vpack.c.b16 %v440, %v437
  %v465 = vpack.c.b16 %v441, %v438
  %490 = vmatprep.subr.bf16.mxu0 %v443
  %491 = vmatpush1.bf16.msra.mxu0 %v442
  %492 = vmatprep.subr.bf16.mxu0 %v446
  %493 = vmatpush1.bf16.msra.mxu0 %v445
  %494 = vmatprep.subr.bf16.mxu0 %v449
  %495 = vmatpush1.bf16.msra.mxu0 %v448
  %496 = vmatprep.subr.bf16.mxu0 %v452
  %497 = vmatpush1.bf16.msra.mxu0 %v451
  %498 = vmatprep.subr.bf16.mxu0 %v455
  %499 = vmatpush1.bf16.msra.mxu0 %v454
  %500 = vmatprep.subr.bf16.mxu0 %v458
  %501 = vmatpush1.bf16.msra.mxu0 %v457
  %502 = vmatprep.subr.bf16.mxu0 %v461
  %503 = vmatpush1.bf16.msra.mxu0 %v460
  %504 = vmatprep.subr.bf16.mxu0 %v464
  %505 = vmatpush1.bf16.msra.mxu0 %v463
  %506 = vmatprep.subr.bf16.mxu0 0
  %507 = vmatpush1.bf16.msra.mxu0 0
  %508 = vmatprep.subr.bf16.mxu0 0
  %509 = vmatpush1.bf16.msra.mxu0 0
  %510 = vmatprep.subr.bf16.mxu0 0
  %511 = vmatpush1.bf16.msra.mxu0 0
  %512 = vmatprep.subr.bf16.mxu0 0
  %513 = vmatpush1.bf16.msra.mxu0 0
  %514 = vmatprep.subr.bf16.mxu0 0
  %515 = vmatpush1.bf16.msra.mxu0 0
  %516 = vmatprep.subr.bf16.mxu0 0
  %517 = vmatpush1.bf16.msra.mxu0 0
  %518 = vmatprep.subr.bf16.mxu0 0
  %519 = vmatpush1.bf16.msra.mxu0 0
  %520 = vmatprep.subr.bf16.mxu0 0
  %521 = vmatpush1.bf16.msra.mxu0 0
  %522 = vmatprep.mubr.bf16.mxu0 0
  %523 = vmatmul.mubr.bf16.gmra.mrb[0].mxu0 %v313
  %v524 = vpop.f32.mrb[0].mxu0
  %v525 = vadd.f32 %v350, %v524
  %v526 = vpop.f32.mrb[0].mxu0
  %v527 = vadd.f32 %v354, %v526
  %v528 = vpop.f32.mrb[0].mxu0
  %v529 = vpop.f32.mrb[0].mxu0
  %530 = vdwg.mxu0
  %531 = vmatprep.subr.bf16.mxu0 0
  %532 = vmatpush1.bf16.msra.mxu0 %v444
  %533 = vmatprep.subr.bf16.mxu0 0
  %534 = vmatpush1.bf16.msra.mxu0 %v447
  %535 = vmatprep.subr.bf16.mxu0 0
  %536 = vmatpush1.bf16.msra.mxu0 %v450
  %537 = vmatprep.subr.bf16.mxu0 0
  %538 = vmatpush1.bf16.msra.mxu0 %v453
  %539 = vmatprep.subr.bf16.mxu0 0
  %540 = vmatpush1.bf16.msra.mxu0 %v456
  %541 = vmatprep.subr.bf16.mxu0 0
  %542 = vmatpush1.bf16.msra.mxu0 %v459
  %543 = vmatprep.subr.bf16.mxu0 0
  %544 = vmatpush1.bf16.msra.mxu0 %v462
  %545 = vmatprep.subr.bf16.mxu0 0
  %546 = vmatpush1.bf16.msra.mxu0 %v465
  %547 = vmatprep.subr.bf16.mxu0 0
  %548 = vmatpush1.bf16.msra.mxu0 0
  %549 = vmatprep.subr.bf16.mxu0 0
  %550 = vmatpush1.bf16.msra.mxu0 0
  %551 = vmatprep.subr.bf16.mxu0 0
  %552 = vmatpush1.bf16.msra.mxu0 0
  %553 = vmatprep.subr.bf16.mxu0 0
  %554 = vmatpush1.bf16.msra.mxu0 0
  %555 = vmatprep.subr.bf16.mxu0 0
  %556 = vmatpush1.bf16.msra.mxu0 0
  %557 = vmatprep.subr.bf16.mxu0 0
  %558 = vmatpush1.bf16.msra.mxu0 0
  %559 = vmatprep.subr.bf16.mxu0 0
  %560 = vmatpush1.bf16.msra.mxu0 0
  %561 = vmatprep.subr.bf16.mxu0 0
  %562 = vmatpush1.bf16.msra.mxu0 0
  %563 = vmatprep.mubr.bf16.mxu0 0
  %564 = vmatmul.mubr.bf16.gmra.mrb[0].mxu0 %v313
  %v565 = vpop.f32.mrb[0].mxu0
  %v566 = vadd.f32 %v358, %v565
  %v567 = vpop.f32.mrb[0].mxu0
  %v568 = vpop.f32.mrb[0].mxu0
  %v569 = vpop.f32.mrb[0].mxu0
  %570 = vdwg.mxu0
  %v571 = vpack.c.bf16 %v312, %v312
  %v572 = vld [vmem:[%s2] sm:$0xff]
  %v573 = vld [vmem:[%s2 + $0x8] sm:$0xf]
  %v574 = vld [vmem:[%s2 + $0xc] sm:$0xff]
  %v575 = vld [vmem:[%s2 + $0x14] sm:$0xf]
  %v576 = vld [vmem:[%s2 + $0x18] sm:$0xff]
  %v577 = vld [vmem:[%s2 + $0x20] sm:$0xf]
  %v578 = vld [vmem:[%s2 + $0x24] sm:$0xff]
  %v579 = vld [vmem:[%s2 + $0x2c] sm:$0xf]
  %v580 = vld [vmem:[%s2 + $0x30] sm:$0xff]
  %v581 = vld [vmem:[%s2 + $0x38] sm:$0xf]
  %v582 = vld [vmem:[%s2 + $0x3c] sm:$0xff]
  %v583 = vld [vmem:[%s2 + $0x44] sm:$0xf]
  %v584 = vld [vmem:[%s2 + $0x48] sm:$0xff]
  %v585 = vld [vmem:[%s2 + $0x50] sm:$0xf]
  %v586 = vld [vmem:[%s2 + $0x54] sm:$0xff]
  %v587 = vld [vmem:[%s2 + $0x5c] sm:$0xf]
  %v588 = vld [vmem:[%s2 + $0x60] sm:$0xff]
  %v589 = vld [vmem:[%s2 + $0x68] sm:$0xf]
  %v590 = vld [vmem:[%s2 + $0x6c] sm:$0xff]
  %v591 = vld [vmem:[%s2 + $0x74] sm:$0xf]
  %v592 = vld [vmem:[%s2 + $0x78] sm:$0xff]
  %v593 = vld [vmem:[%s2 + $0x80] sm:$0xf]
  %v594 = vld [vmem:[%s2 + $0x84] sm:$0xff]
  %v595 = vld [vmem:[%s2 + $0x8c] sm:$0xf]
  %v596 = vld [vmem:[%s2 + $0x90] sm:$0xff]
  %v597 = vld [vmem:[%s2 + $0x98] sm:$0xf]
  %v598 = vld [vmem:[%s2 + $0x9c] sm:$0xff]
  %v599 = vld [vmem:[%s2 + $0xa4] sm:$0xf]
  %v600 = vld [vmem:[%s2 + $0xa8] sm:$0xff]
  %v601 = vld [vmem:[%s2 + $0xb0] sm:$0xf]
  %v602 = vld [vmem:[%s2 + $0xb4] sm:$0xff]
  %v603 = vld [vmem:[%s2 + $0xbc] sm:$0xf]
  %v636 = vunpack.c.l.b16 %v572
  %v637 = vunpack.c.h.b16 %v572
  %v638 = vunpack.c.l.b16 %v573
  %v639 = vunpack.c.l.b16 %v574
  %v640 = vunpack.c.h.b16 %v574
  %v641 = vunpack.c.l.b16 %v575
  %v642 = vunpack.c.l.b16 %v576
  %v643 = vunpack.c.h.b16 %v576
  %v644 = vunpack.c.l.b16 %v577
  %v645 = vunpack.c.l.b16 %v578
  %v646 = vunpack.c.h.b16 %v578
  %v647 = vunpack.c.l.b16 %v579
  %v648 = vunpack.c.l.b16 %v580
  %v649 = vunpack.c.h.b16 %v580
  %v650 = vunpack.c.l.b16 %v581
  %v651 = vunpack.c.l.b16 %v582
  %v652 = vunpack.c.h.b16 %v582
  %v653 = vunpack.c.l.b16 %v583
  %v654 = vunpack.c.l.b16 %v584
  %v655 = vunpack.c.h.b16 %v584
  %v656 = vunpack.c.l.b16 %v585
  %v657 = vunpack.c.l.b16 %v586
  %v658 = vunpack.c.h.b16 %v586
  %v659 = vunpack.c.l.b16 %v587
  %v660 = vunpack.c.l.b16 %v588
  %v661 = vunpack.c.h.b16 %v588
  %v662 = vunpack.c.l.b16 %v589
  %v663 = vunpack.c.l.b16 %v590
  %v664 = vunpack.c.h.b16 %v590
  %v665 = vunpack.c.l.b16 %v591
  %v666 = vunpack.c.l.b16 %v592
  %v667 = vunpack.c.h.b16 %v592
  %v668 = vunpack.c.l.b16 %v593
  %v669 = vunpack.c.l.b16 %v594
  %v670 = vunpack.c.h.b16 %v594
  %v671 = vunpack.c.l.b16 %v595
  %v672 = vunpack.c.l.b16 %v596
  %v673 = vunpack.c.h.b16 %v596
  %v674 = vunpack.c.l.b16 %v597
  %v675 = vunpack.c.l.b16 %v598
  %v676 = vunpack.c.h.b16 %v598
  %v677 = vunpack.c.l.b16 %v599
  %v678 = vunpack.c.l.b16 %v600
  %v679 = vunpack.c.h.b16 %v600
  %v680 = vunpack.c.l.b16 %v601
  %v681 = vunpack.c.l.b16 %v602
  %v682 = vunpack.c.h.b16 %v602
  %v683 = vunpack.c.l.b16 %v603
  %v684 = vpack.c.b16 %v639, %v636
  %v685 = vpack.c.b16 %v640, %v637
  %v686 = vpack.c.b16 %v641, %v638
  %v687 = vpack.c.b16 %v645, %v642
  %v688 = vpack.c.b16 %v646, %v643
  %v689 = vpack.c.b16 %v647, %v644
  %v690 = vpack.c.b16 %v651, %v648
  %v691 = vpack.c.b16 %v652, %v649
  %v692 = vpack.c.b16 %v653, %v650
  %v693 = vpack.c.b16 %v657, %v654
  %v694 = vpack.c.b16 %v658, %v655
  %v695 = vpack.c.b16 %v659, %v656
  %v696 = vpack.c.b16 %v663, %v660
  %v697 = vpack.c.b16 %v664, %v661
  %v698 = vpack.c.b16 %v665, %v662
  %v699 = vpack.c.b16 %v669, %v666
  %v700 = vpack.c.b16 %v670, %v667
  %v701 = vpack.c.b16 %v671, %v668
  %v702 = vpack.c.b16 %v675, %v672
  %v703 = vpack.c.b16 %v676, %v673
  %v704 = vpack.c.b16 %v677, %v674
  %v705 = vpack.c.b16 %v681, %v678
  %v706 = vpack.c.b16 %v682, %v679
  %v707 = vpack.c.b16 %v683, %v680
  %732 = vmatprep.subr.bf16.mxu0 %v685
  %733 = vmatpush1.bf16.msra.mxu0 %v684
  %734 = vmatprep.subr.bf16.mxu0 %v688
  %735 = vmatpush1.bf16.msra.mxu0 %v687
  %736 = vmatprep.subr.bf16.mxu0 %v691
  %737 = vmatpush1.bf16.msra.mxu0 %v690
  %738 = vmatprep.subr.bf16.mxu0 %v694
  %739 = vmatpush1.bf16.msra.mxu0 %v693
  %740 = vmatprep.subr.bf16.mxu0 %v697
  %741 = vmatpush1.bf16.msra.mxu0 %v696
  %742 = vmatprep.subr.bf16.mxu0 %v700
  %743 = vmatpush1.bf16.msra.mxu0 %v699
  %744 = vmatprep.subr.bf16.mxu0 %v703
  %745 = vmatpush1.bf16.msra.mxu0 %v702
  %746 = vmatprep.subr.bf16.mxu0 %v706
  %747 = vmatpush1.bf16.msra.mxu0 %v705
  %748 = vmatprep.subr.bf16.mxu0 0
  %749 = vmatpush1.bf16.msra.mxu0 0
  %750 = vmatprep.subr.bf16.mxu0 0
  %751 = vmatpush1.bf16.msra.mxu0 0
  %752 = vmatprep.subr.bf16.mxu0 0
  %753 = vmatpush1.bf16.msra.mxu0 0
  %754 = vmatprep.subr.bf16.mxu0 0
  %755 = vmatpush1.bf16.msra.mxu0 0
  %756 = vmatprep.subr.bf16.mxu0 0
  %757 = vmatpush1.bf16.msra.mxu0 0
  %758 = vmatprep.subr.bf16.mxu0 0
  %759 = vmatpush1.bf16.msra.mxu0 0
  %760 = vmatprep.subr.bf16.mxu0 0
  %761 = vmatpush1.bf16.msra.mxu0 0
  %762 = vmatprep.subr.bf16.mxu0 0
  %763 = vmatpush1.bf16.msra.mxu0 0
  %764 = vmatprep.mubr.bf16.mxu0 0
  %765 = vmatmul.mubr.bf16.gmra.mrb[0].mxu0 %v571
  %v766 = vpop.f32.mrb[0].mxu0
  %v767 = vadd.f32 0.0, %v766
  %v768 = vpop.f32.mrb[0].mxu0
  %v769 = vadd.f32 0.0, %v768
  %v770 = vpop.f32.mrb[0].mxu0
  %v771 = vpop.f32.mrb[0].mxu0
  %772 = vdwg.mxu0
  %773 = vmatprep.subr.bf16.mxu0 0
  %774 = vmatpush1.bf16.msra.mxu0 %v686
  %775 = vmatprep.subr.bf16.mxu0 0
  %776 = vmatpush1.bf16.msra.mxu0 %v689
  %777 = vmatprep.subr.bf16.mxu0 0
  %778 = vmatpush1.bf16.msra.mxu0 %v692
  %779 = vmatprep.subr.bf16.mxu0 0
  %780 = vmatpush1.bf16.msra.mxu0 %v695
  %781 = vmatprep.subr.bf16.mxu0 0
  %782 = vmatpush1.bf16.msra.mxu0 %v698
  %783 = vmatprep.subr.bf16.mxu0 0
  %784 = vmatpush1.bf16.msra.mxu0 %v701
  %785 = vmatprep.subr.bf16.mxu0 0
  %786 = vmatpush1.bf16.msra.mxu0 %v704
  %787 = vmatprep.subr.bf16.mxu0 0
  %788 = vmatpush1.bf16.msra.mxu0 %v707
  %789 = vmatprep.subr.bf16.mxu0 0
  %790 = vmatpush1.bf16.msra.mxu0 0
  %791 = vmatprep.subr.bf16.mxu0 0
  %792 = vmatpush1.bf16.msra.mxu0 0
  %793 = vmatprep.subr.bf16.mxu0 0
  %794 = vmatpush1.bf16.msra.mxu0 0
  %795 = vmatprep.subr.bf16.mxu0 0
  %796 = vmatpush1.bf16.msra.mxu0 0
  %797 = vmatprep.subr.bf16.mxu0 0
  %798 = vmatpush1.bf16.msra.mxu0 0
  %799 = vmatprep.subr.bf16.mxu0 0
  %800 = vmatpush1.bf16.msra.mxu0 0
  %801 = vmatprep.subr.bf16.mxu0 0
  %802 = vmatpush1.bf16.msra.mxu0 0
  %803 = vmatprep.subr.bf16.mxu0 0
  %804 = vmatpush1.bf16.msra.mxu0 0
  %805 = vmatprep.mubr.bf16.mxu0 0
  %806 = vmatmul.mubr.bf16.gmra.mrb[0].mxu0 %v571
  %v807 = vpop.f32.mrb[0].mxu0
  %v808 = vadd.f32 0.0, %v807
  %v809 = vpop.f32.mrb[0].mxu0
  %v810 = vpop.f32.mrb[0].mxu0
  %v811 = vpop.f32.mrb[0].mxu0
  %812 = vdwg.mxu0
  %v813 = vadd.f32 %v525, %v767
  %v814 = vxor.u32 %v813, 2147483648
  %v815 = vmul.f32 %v814, 1.442695
  %v816 = vpow.pop %v815
  %v817 = vadd.f32 %v816, 1.0
  %v818 = vrcp.pop %v817
  %v819 = vmul.f32 1.0, %v818
  %v820 = vadd.f32 %v527, %v769
  %v821 = vxor.u32 %v820, 2147483648
  %v822 = vmul.f32 %v821, 1.442695
  %v823 = vpow.pop %v822
  %v824 = vadd.f32 %v823, 1.0
  %v825 = vrcp.pop %v824
  %v826 = vmul.f32 1.0, %v825
  %v828 = vlaneseq
  %v829 = vshrl.u32 %v828, 7
  %v830 = vsub.s32 0, %v829
  %v831 = vrot.slane %v34, %v830
  %v833 = vadd.f32 %v808, %v831
  %v834 = vmul.f32 %v819, %v833
  %v835 = vadd.f32 %v566, %v834
  %v836 = vtanh.pop %v835
  %v837 = vsub.f32 1.0, %v826
  %v838 = vmul.f32 %v837, %v836
  %v839 = vmul.f32 %v826, %v312
  %v840 = vadd.f32 %v838, %v839
  %841 = vst [vmem:[%s311] sm:$0xff] %v840
  %s842 = scalar_lea.vmem %s0, 24
  %v843 = vld [vmem:[%s842] sm:$0xff]
  %v844 = vld [vmem:[%s842 + $0x8] sm:$0xff]
  %v845 = vld [vmem:[%s842 + $0x10] sm:$0xff]
  %v846 = vld [vmem:[#allocation2] sm:$0xff]
  %v847 = vpack.c.bf16 %v846, %v846
  %v848 = vld [vmem:[%s1] sm:$0xff]
  %v849 = vld [vmem:[%s1 + $0x8] sm:$0xf]
  %v850 = vld [vmem:[%s1 + $0xc] sm:$0xff]
  %v851 = vld [vmem:[%s1 + $0x14] sm:$0xf]
  %v852 = vld [vmem:[%s1 + $0x18] sm:$0xff]
  %v853 = vld [vmem:[%s1 + $0x20] sm:$0xf]
  %v854 = vld [vmem:[%s1 + $0x24] sm:$0xff]
  %v855 = vld [vmem:[%s1 + $0x2c] sm:$0xf]
  %v856 = vld [vmem:[%s1 + $0x30] sm:$0xff]
  %v857 = vld [vmem:[%s1 + $0x38] sm:$0xf]
  %v858 = vld [vmem:[%s1 + $0x3c] sm:$0xff]
  %v859 = vld [vmem:[%s1 + $0x44] sm:$0xf]
  %v860 = vld [vmem:[%s1 + $0x48] sm:$0xff]
  %v861 = vld [vmem:[%s1 + $0x50] sm:$0xf]
  %v862 = vld [vmem:[%s1 + $0x54] sm:$0xff]
  %v863 = vld [vmem:[%s1 + $0x5c] sm:$0xf]
  %v864 = vld [vmem:[%s1 + $0x60] sm:$0xff]
  %v865 = vld [vmem:[%s1 + $0x68] sm:$0xf]
  %v866 = vld [vmem:[%s1 + $0x6c] sm:$0xff]
  %v867 = vld [vmem:[%s1 + $0x74] sm:$0xf]
  %v868 = vld [vmem:[%s1 + $0x78] sm:$0xff]
  %v869 = vld [vmem:[%s1 + $0x80] sm:$0xf]
  %v870 = vld [vmem:[%s1 + $0x84] sm:$0xff]
  %v871 = vld [vmem:[%s1 + $0x8c] sm:$0xf]
  %v872 = vld [vmem:[%s1 + $0x90] sm:$0xff]
  %v873 = vld [vmem:[%s1 + $0x98] sm:$0xf]
  %v874 = vld [vmem:[%s1 + $0x9c] sm:$0xff]
  %v875 = vld [vmem:[%s1 + $0xa4] sm:$0xf]
  %v876 = vld [vmem:[%s1 + $0xa8] sm:$0xff]
  %v877 = vld [vmem:[%s1 + $0xb0] sm:$0xf]
  %v878 = vld [vmem:[%s1 + $0xb4] sm:$0xff]
  %v879 = vld [vmem:[%s1 + $0xbc] sm:$0xf]
  %v912 = vunpack.c.l.b16 %v848
  %v913 = vunpack.c.h.b16 %v848
  %v914 = vunpack.c.l.b16 %v849
  %v915 = vunpack.c.l.b16 %v850
  %v916 = vunpack.c.h.b16 %v850
  %v917 = vunpack.c.l.b16 %v851
  %v918 = vunpack.c.l.b16 %v852
  %v919 = vunpack.c.h.b16 %v852
  %v920 = vunpack.c.l.b16 %v853
  %v921 = vunpack.c.l.b16 %v854
  %v922 = vunpack.c.h.b16 %v854
  %v923 = vunpack.c.l.b16 %v855
  %v924 = vunpack.c.l.b16 %v856
  %v925 = vunpack.c.h.b16 %v856
  %v926 = vunpack.c.l.b16 %v857
  %v927 = vunpack.c.l.b16 %v858
  %v928 = vunpack.c.h.b16 %v858
  %v929 = vunpack.c.l.b16 %v859
  %v930 = vunpack.c.l.b16 %v860
  %v931 = vunpack.c.h.b16 %v860
  %v932 = vunpack.c.l.b16 %v861
  %v933 = vunpack.c.l.b16 %v862
  %v934 = vunpack.c.h.b16 %v862
  %v935 = vunpack.c.l.b16 %v863
  %v936 = vunpack.c.l.b16 %v864
  %v937 = vunpack.c.h.b16 %v864
  %v938 = vunpack.c.l.b16 %v865
  %v939 = vunpack.c.l.b16 %v866
  %v940 = vunpack.c.h.b16 %v866
  %v941 = vunpack.c.l.b16 %v867
  %v942 = vunpack.c.l.b16 %v868
  %v943 = vunpack.c.h.b16 %v868
  %v944 = vunpack.c.l.b16 %v869
  %v945 = vunpack.c.l.b16 %v870
  %v946 = vunpack.c.h.b16 %v870
  %v947 = vunpack.c.l.b16 %v871
  %v948 = vunpack.c.l.b16 %v872
  %v949 = vunpack.c.h.b16 %v872
  %v950 = vunpack.c.l.b16 %v873
  %v951 = vunpack.c.l.b16 %v874
  %v952 = vunpack.c.h.b16 %v874
  %v953 = vunpack.c.l.b16 %v875
  %v954 = vunpack.c.l.b16 %v876
  %v955 = vunpack.c.h.b16 %v876
  %v956 = vunpack.c.l.b16 %v877
  %v957 = vunpack.c.l.b16 %v878
  %v958 = vunpack.c.h.b16 %v878
  %v959 = vunpack.c.l.b16 %v879
  %v960 = vpack.c.b16 %v915, %v912
  %v961 = vpack.c.b16 %v916, %v913
  %v962 = vpack.c.b16 %v917, %v914
  %v963 = vpack.c.b16 %v921, %v918
  %v964 = vpack.c.b16 %v922, %v919
  %v965 = vpack.c.b16 %v923, %v920
  %v966 = vpack.c.b16 %v927, %v924
  %v967 = vpack.c.b16 %v928, %v925
  %v968 = vpack.c.b16 %v929, %v926
  %v969 = vpack.c.b16 %v933, %v930
  %v970 = vpack.c.b16 %v934, %v931
  %v971 = vpack.c.b16 %v935, %v932
  %v972 = vpack.c.b16 %v939, %v936
  %v973 = vpack.c.b16 %v940, %v937
  %v974 = vpack.c.b16 %v941, %v938
  %v975 = vpack.c.b16 %v945, %v942
  %v976 = vpack.c.b16 %v946, %v943
  %v977 = vpack.c.b16 %v947, %v944
  %v978 = vpack.c.b16 %v951, %v948
  %v979 = vpack.c.b16 %v952, %v949
  %v980 = vpack.c.b16 %v953, %v950
  %v981 = vpack.c.b16 %v957, %v954
  %v982 = vpack.c.b16 %v958, %v955
  %v983 = vpack.c.b16 %v959, %v956
  %1008 = vmatprep.subr.bf16.mxu0 %v961
  %1009 = vmatpush1.bf16.msra.mxu0 %v960
  %1010 = vmatprep.subr.bf16.mxu0 %v964
  %1011 = vmatpush1.bf16.msra.mxu0 %v963
  %1012 = vmatprep.subr.bf16.mxu0 %v967
  %1013 = vmatpush1.bf16.msra.mxu0 %v966
  %1014 = vmatprep.subr.bf16.mxu0 %v970
  %1015 = vmatpush1.bf16.msra.mxu0 %v969
  %1016 = vmatprep.subr.bf16.mxu0 %v973
  %1017 = vmatpush1.bf16.msra.mxu0 %v972
  %1018 = vmatprep.subr.bf16.mxu0 %v976
  %1019 = vmatpush1.bf16.msra.mxu0 %v975
  %1020 = vmatprep.subr.bf16.mxu0 %v979
  %1021 = vmatpush1.bf16.msra.mxu0 %v978
  %1022 = vmatprep.subr.bf16.mxu0 %v982
  %1023 = vmatpush1.bf16.msra.mxu0 %v981
  %1024 = vmatprep.subr.bf16.mxu0 0
  %1025 = vmatpush1.bf16.msra.mxu0 0
  %1026 = vmatprep.subr.bf16.mxu0 0
  %1027 = vmatpush1.bf16.msra.mxu0 0
  %1028 = vmatprep.subr.bf16.mxu0 0
  %1029 = vmatpush1.bf16.msra.mxu0 0
  %1030 = vmatprep.subr.bf16.mxu0 0
  %1031 = vmatpush1.bf16.msra.mxu0 0
  %1032 = vmatprep.subr.bf16.mxu0 0
  %1033 = vmatpush1.bf16.msra.mxu0 0
  %1034 = vmatprep.subr.bf16.mxu0 0
  %1035 = vmatpush1.bf16.msra.mxu0 0
  %1036 = vmatprep.subr.bf16.mxu0 0
  %1037 = vmatpush1.bf16.msra.mxu0 0
  %1038 = vmatprep.subr.bf16.mxu0 0
  %1039 = vmatpush1.bf16.msra.mxu0 0
  %1040 = vmatprep.mubr.bf16.mxu0 0
  %1041 = vmatmul.mubr.bf16.gmra.mrb[0].mxu0 %v847
  %v1042 = vpop.f32.mrb[0].mxu0
  %v1043 = vadd.f32 0.0, %v1042
  %v1044 = vpop.f32.mrb[0].mxu0
  %v1045 = vadd.f32 0.0, %v1044
  %v1046 = vpop.f32.mrb[0].mxu0
  %v1047 = vpop.f32.mrb[0].mxu0
  %1048 = vdwg.mxu0
  %1049 = vmatprep.subr.bf16.mxu0 0
  %1050 = vmatpush1.bf16.msra.mxu0 %v962
  %1051 = vmatprep.subr.bf16.mxu0 0
  %1052 = vmatpush1.bf16.msra.mxu0 %v965
  %1053 = vmatprep.subr.bf16.mxu0 0
  %1054 = vmatpush1.bf16.msra.mxu0 %v968
  %1055 = vmatprep.subr.bf16.mxu0 0
  %1056 = vmatpush1.bf16.msra.mxu0 %v971
  %1057 = vmatprep.subr.bf16.mxu0 0
  %1058 = vmatpush1.bf16.msra.mxu0 %v974
  %1059 = vmatprep.subr.bf16.mxu0 0
  %1060 = vmatpush1.bf16.msra.mxu0 %v977
  %1061 = vmatprep.subr.bf16.mxu0 0
  %1062 = vmatpush1.bf16.msra.mxu0 %v980
  %1063 = vmatprep.subr.bf16.mxu0 0
  %1064 = vmatpush1.bf16.msra.mxu0 %v983
  %1065 = vmatprep.subr.bf16.mxu0 0
  %1066 = vmatpush1.bf16.msra.mxu0 0
  %1067 = vmatprep.subr.bf16.mxu0 0
  %1068 = vmatpush1.bf16.msra.mxu0 0
  %1069 = vmatprep.subr.bf16.mxu0 0
  %1070 = vmatpush1.bf16.msra.mxu0 0
  %1071 = vmatprep.subr.bf16.mxu0 0
  %1072 = vmatpush1.bf16.msra.mxu0 0
  %1073 = vmatprep.subr.bf16.mxu0 0
  %1074 = vmatpush1.bf16.msra.mxu0 0
  %1075 = vmatprep.subr.bf16.mxu0 0
  %1076 = vmatpush1.bf16.msra.mxu0 0
  %1077 = vmatprep.subr.bf16.mxu0 0
  %1078 = vmatpush1.bf16.msra.mxu0 0
  %1079 = vmatprep.subr.bf16.mxu0 0
  %1080 = vmatpush1.bf16.msra.mxu0 0
  %1081 = vmatprep.mubr.bf16.mxu0 0
  %1082 = vmatmul.mubr.bf16.gmra.mrb[0].mxu0 %v847
  %v1083 = vpop.f32.mrb[0].mxu0
  %v1084 = vadd.f32 0.0, %v1083
  %v1085 = vpop.f32.mrb[0].mxu0
  %v1086 = vpop.f32.mrb[0].mxu0
  %v1087 = vpop.f32.mrb[0].mxu0
  %1088 = vdwg.mxu0
  %v1089 = vadd.f32 %v843, %v1043
  %v1090 = vxor.u32 %v1089, 2147483648
  %v1091 = vmul.f32 %v1090, 1.442695
  %v1092 = vpow.pop %v1091
  %v1093 = vadd.f32 %v1092, 1.0
  %v1094 = vrcp.pop %v1093
  %v1095 = vmul.f32 1.0, %v1094
  %v1096 = vadd.f32 %v844, %v1045
  %v1097 = vxor.u32 %v1096, 2147483648
  %v1098 = vmul.f32 %v1097, 1.442695
  %v1099 = vpow.pop %v1098
  %v1100 = vadd.f32 %v1099, 1.0
  %v1101 = vrcp.pop %v1100
  %v1102 = vmul.f32 1.0, %v1101
  %v1103 = vadd.f32 %v1084, %v300
  %v1104 = vmul.f32 %v1095, %v1103
  %v1105 = vadd.f32 %v845, %v1104
  %v1106 = vtanh.pop %v1105
  %v1107 = vsub.f32 1.0, %v1102
  %v1108 = vmul.f32 %v1107, %v1106
  %v1109 = vmul.f32 %v1102, %v846
  %v1110 = vadd.f32 %v1108, %v1109
  %1111 = vst [vmem:[#allocation2] sm:$0xff] %v1110
  %v1112 = vld [vmem:[%s311] sm:$0xff]
  %v1113 = vpack.c.bf16 %v1110, %v1110
  %v1114 = vld [vmem:[%s5] sm:$0xff]
  %v1115 = vld [vmem:[%s5 + $0x8] sm:$0xf]
  %v1116 = vld [vmem:[%s5 + $0xc] sm:$0xff]
  %v1117 = vld [vmem:[%s5 + $0x14] sm:$0xf]
  %v1118 = vld [vmem:[%s5 + $0x18] sm:$0xff]
  %v1119 = vld [vmem:[%s5 + $0x20] sm:$0xf]
  %v1120 = vld [vmem:[%s5 + $0x24] sm:$0xff]
  %v1121 = vld [vmem:[%s5 + $0x2c] sm:$0xf]
  %v1122 = vld [vmem:[%s5 + $0x30] sm:$0xff]
  %v1123 = vld [vmem:[%s5 + $0x38] sm:$0xf]
  %v1124 = vld [vmem:[%s5 + $0x3c] sm:$0xff]
  %v1125 = vld [vmem:[%s5 + $0x44] sm:$0xf]
  %v1126 = vld [vmem:[%s5 + $0x48] sm:$0xff]
  %v1127 = vld [vmem:[%s5 + $0x50] sm:$0xf]
  %v1128 = vld [vmem:[%s5 + $0x54] sm:$0xff]
  %v1129 = vld [vmem:[%s5 + $0x5c] sm:$0xf]
  %v1130 = vld [vmem:[%s5 + $0x60] sm:$0xff]
  %v1131 = vld [vmem:[%s5 + $0x68] sm:$0xf]
  %v1132 = vld [vmem:[%s5 + $0x6c] sm:$0xff]
  %v1133 = vld [vmem:[%s5 + $0x74] sm:$0xf]
  %v1134 = vld [vmem:[%s5 + $0x78] sm:$0xff]
  %v1135 = vld [vmem:[%s5 + $0x80] sm:$0xf]
  %v1136 = vld [vmem:[%s5 + $0x84] sm:$0xff]
  %v1137 = vld [vmem:[%s5 + $0x8c] sm:$0xf]
  %v1138 = vld [vmem:[%s5 + $0x90] sm:$0xff]
  %v1139 = vld [vmem:[%s5 + $0x98] sm:$0xf]
  %v1140 = vld [vmem:[%s5 + $0x9c] sm:$0xff]
  %v1141 = vld [vmem:[%s5 + $0xa4] sm:$0xf]
  %v1142 = vld [vmem:[%s5 + $0xa8] sm:$0xff]
  %v1143 = vld [vmem:[%s5 + $0xb0] sm:$0xf]
  %v1144 = vld [vmem:[%s5 + $0xb4] sm:$0xff]
  %v1145 = vld [vmem:[%s5 + $0xbc] sm:$0xf]
  %v1178 = vunpack.c.l.b16 %v1114
  %v1179 = vunpack.c.h.b16 %v1114
  %v1180 = vunpack.c.l.b16 %v1115
  %v1181 = vunpack.c.l.b16 %v1116
  %v1182 = vunpack.c.h.b16 %v1116
  %v1183 = vunpack.c.l.b16 %v1117
  %v1184 = vunpack.c.l.b16 %v1118
  %v1185 = vunpack.c.h.b16 %v1118
  %v1186 = vunpack.c.l.b16 %v1119
  %v1187 = vunpack.c.l.b16 %v1120
  %v1188 = vunpack.c.h.b16 %v1120
  %v1189 = vunpack.c.l.b16 %v1121
  %v1190 = vunpack.c.l.b16 %v1122
  %v1191 = vunpack.c.h.b16 %v1122
  %v1192 = vunpack.c.l.b16 %v1123
  %v1193 = vunpack.c.l.b16 %v1124
  %v1194 = vunpack.c.h.b16 %v1124
  %v1195 = vunpack.c.l.b16 %v1125
  %v1196 = vunpack.c.l.b16 %v1126
  %v1197 = vunpack.c.h.b16 %v1126
  %v1198 = vunpack.c.l.b16 %v1127
  %v1199 = vunpack.c.l.b16 %v1128
  %v1200 = vunpack.c.h.b16 %v1128
  %v1201 = vunpack.c.l.b16 %v1129
  %v1202 = vunpack.c.l.b16 %v1130
  %v1203 = vunpack.c.h.b16 %v1130
  %v1204 = vunpack.c.l.b16 %v1131
  %v1205 = vunpack.c.l.b16 %v1132
  %v1206 = vunpack.c.h.b16 %v1132
  %v1207 = vunpack.c.l.b16 %v1133
  %v1208 = vunpack.c.l.b16 %v1134
  %v1209 = vunpack.c.h.b16 %v1134
  %v1210 = vunpack.c.l.b16 %v1135
  %v1211 = vunpack.c.l.b16 %v1136
  %v1212 = vunpack.c.h.b16 %v1136
  %v1213 = vunpack.c.l.b16 %v1137
  %v1214 = vunpack.c.l.b16 %v1138
  %v1215 = vunpack.c.h.b16 %v1138
  %v1216 = vunpack.c.l.b16 %v1139
  %v1217 = vunpack.c.l.b16 %v1140
  %v1218 = vunpack.c.h.b16 %v1140
  %v1219 = vunpack.c.l.b16 %v1141
  %v1220 = vunpack.c.l.b16 %v1142
  %v1221 = vunpack.c.h.b16 %v1142
  %v1222 = vunpack.c.l.b16 %v1143
  %v1223 = vunpack.c.l.b16 %v1144
  %v1224 = vunpack.c.h.b16 %v1144
  %v1225 = vunpack.c.l.b16 %v1145
  %v1226 = vpack.c.b16 %v1181, %v1178
  %v1227 = vpack.c.b16 %v1182, %v1179
  %v1228 = vpack.c.b16 %v1183, %v1180
  %v1229 = vpack.c.b16 %v1187, %v1184
  %v1230 = vpack.c.b16 %v1188, %v1185
  %v1231 = vpack.c.b16 %v1189, %v1186
  %v1232 = vpack.c.b16 %v1193, %v1190
  %v1233 = vpack.c.b16 %v1194, %v1191
  %v1234 = vpack.c.b16 %v1195, %v1192
  %v1235 = vpack.c.b16 %v1199, %v1196
  %v1236 = vpack.c.b16 %v1200, %v1197
  %v1237 = vpack.c.b16 %v1201, %v1198
  %v1238 = vpack.c.b16 %v1205, %v1202
  %v1239 = vpack.c.b16 %v1206, %v1203
  %v1240 = vpack.c.b16 %v1207, %v1204
  %v1241 = vpack.c.b16 %v1211, %v1208
  %v1242 = vpack.c.b16 %v1212, %v1209
  %v1243 = vpack.c.b16 %v1213, %v1210
  %v1244 = vpack.c.b16 %v1217, %v1214
  %v1245 = vpack.c.b16 %v1218, %v1215
  %v1246 = vpack.c.b16 %v1219, %v1216
  %v1247 = vpack.c.b16 %v1223, %v1220
  %v1248 = vpack.c.b16 %v1224, %v1221
  %v1249 = vpack.c.b16 %v1225, %v1222
  %1274 = vmatprep.subr.bf16.mxu0 %v1227
  %1275 = vmatpush1.bf16.msra.mxu0 %v1226
  %1276 = vmatprep.subr.bf16.mxu0 %v1230
  %1277 = vmatpush1.bf16.msra.mxu0 %v1229
  %1278 = vmatprep.subr.bf16.mxu0 %v1233
  %1279 = vmatpush1.bf16.msra.mxu0 %v1232
  %1280 = vmatprep.subr.bf16.mxu0 %v1236
  %1281 = vmatpush1.bf16.msra.mxu0 %v1235
  %1282 = vmatprep.subr.bf16.mxu0 %v1239
  %1283 = vmatpush1.bf16.msra.mxu0 %v1238
  %1284 = vmatprep.subr.bf16.mxu0 %v1242
  %1285 = vmatpush1.bf16.msra.mxu0 %v1241
  %1286 = vmatprep.subr.bf16.mxu0 %v1245
  %1287 = vmatpush1.bf16.msra.mxu0 %v1244
  %1288 = vmatprep.subr.bf16.mxu0 %v1248
  %1289 = vmatpush1.bf16.msra.mxu0 %v1247
  %1290 = vmatprep.subr.bf16.mxu0 0
  %1291 = vmatpush1.bf16.msra.mxu0 0
  %1292 = vmatprep.subr.bf16.mxu0 0
  %1293 = vmatpush1.bf16.msra.mxu0 0
  %1294 = vmatprep.subr.bf16.mxu0 0
  %1295 = vmatpush1.bf16.msra.mxu0 0
  %1296 = vmatprep.subr.bf16.mxu0 0
  %1297 = vmatpush1.bf16.msra.mxu0 0
  %1298 = vmatprep.subr.bf16.mxu0 0
  %1299 = vmatpush1.bf16.msra.mxu0 0
  %1300 = vmatprep.subr.bf16.mxu0 0
  %1301 = vmatpush1.bf16.msra.mxu0 0
  %1302 = vmatprep.subr.bf16.mxu0 0
  %1303 = vmatpush1.bf16.msra.mxu0 0
  %1304 = vmatprep.subr.bf16.mxu0 0
  %1305 = vmatpush1.bf16.msra.mxu0 0
  %1306 = vmatprep.mubr.bf16.mxu0 0
  %1307 = vmatmul.mubr.bf16.gmra.mrb[0].mxu0 %v1113
  %v1308 = vpop.f32.mrb[0].mxu0
  %v1309 = vadd.f32 %v350, %v1308
  %v1310 = vpop.f32.mrb[0].mxu0
  %v1311 = vadd.f32 %v354, %v1310
  %v1312 = vpop.f32.mrb[0].mxu0
  %v1313 = vpop.f32.mrb[0].mxu0
  %1314 = vdwg.mxu0
  %1315 = vmatprep.subr.bf16.mxu0 0
  %1316 = vmatpush1.bf16.msra.mxu0 %v1228
  %1317 = vmatprep.subr.bf16.mxu0 0
  %1318 = vmatpush1.bf16.msra.mxu0 %v1231
  %1319 = vmatprep.subr.bf16.mxu0 0
  %1320 = vmatpush1.bf16.msra.mxu0 %v1234
  %1321 = vmatprep.subr.bf16.mxu0 0
  %1322 = vmatpush1.bf16.msra.mxu0 %v1237
  %1323 = vmatprep.subr.bf16.mxu0 0
  %1324 = vmatpush1.bf16.msra.mxu0 %v1240
  %1325 = vmatprep.subr.bf16.mxu0 0
  %1326 = vmatpush1.bf16.msra.mxu0 %v1243
  %1327 = vmatprep.subr.bf16.mxu0 0
  %1328 = vmatpush1.bf16.msra.mxu0 %v1246
  %1329 = vmatprep.subr.bf16.mxu0 0
  %1330 = vmatpush1.bf16.msra.mxu0 %v1249
  %1331 = vmatprep.subr.bf16.mxu0 0
  %1332 = vmatpush1.bf16.msra.mxu0 0
  %1333 = vmatprep.subr.bf16.mxu0 0
  %1334 = vmatpush1.bf16.msra.mxu0 0
  %1335 = vmatprep.subr.bf16.mxu0 0
  %1336 = vmatpush1.bf16.msra.mxu0 0
  %1337 = vmatprep.subr.bf16.mxu0 0
  %1338 = vmatpush1.bf16.msra.mxu0 0
  %1339 = vmatprep.subr.bf16.mxu0 0
  %1340 = vmatpush1.bf16.msra.mxu0 0
  %1341 = vmatprep.subr.bf16.mxu0 0
  %1342 = vmatpush1.bf16.msra.mxu0 0
  %1343 = vmatprep.subr.bf16.mxu0 0
  %1344 = vmatpush1.bf16.msra.mxu0 0
  %1345 = vmatprep.subr.bf16.mxu0 0
  %1346 = vmatpush1.bf16.msra.mxu0 0
  %1347 = vmatprep.mubr.bf16.mxu0 0
  %1348 = vmatmul.mubr.bf16.gmra.mrb[0].mxu0 %v1113
  %v1349 = vpop.f32.mrb[0].mxu0
  %v1350 = vadd.f32 %v358, %v1349
  %v1351 = vpop.f32.mrb[0].mxu0
  %v1352 = vpop.f32.mrb[0].mxu0
  %v1353 = vpop.f32.mrb[0].mxu0
  %1354 = vdwg.mxu0
  %v1355 = vpack.c.bf16 %v1112, %v1112
  %v1356 = vld [vmem:[%s2] sm:$0xff]
  %v1357 = vld [vmem:[%s2 + $0x8] sm:$0xf]
  %v1358 = vld [vmem:[%s2 + $0xc] sm:$0xff]
  %v1359 = vld [vmem:[%s2 + $0x14] sm:$0xf]
  %v1360 = vld [vmem:[%s2 + $0x18] sm:$0xff]
  %v1361 = vld [vmem:[%s2 + $0x20] sm:$0xf]
  %v1362 = vld [vmem:[%s2 + $0x24] sm:$0xff]
  %v1363 = vld [vmem:[%s2 + $0x2c] sm:$0xf]
  %v1364 = vld [vmem:[%s2 + $0x30] sm:$0xff]
  %v1365 = vld [vmem:[%s2 + $0x38] sm:$0xf]
  %v1366 = vld [vmem:[%s2 + $0x3c] sm:$0xff]
  %v1367 = vld [vmem:[%s2 + $0x44] sm:$0xf]
  %v1368 = vld [vmem:[%s2 + $0x48] sm:$0xff]
  %v1369 = vld [vmem:[%s2 + $0x50] sm:$0xf]
  %v1370 = vld [vmem:[%s2 + $0x54] sm:$0xff]
  %v1371 = vld [vmem:[%s2 + $0x5c] sm:$0xf]
  %v1372 = vld [vmem:[%s2 + $0x60] sm:$0xff]
  %v1373 = vld [vmem:[%s2 + $0x68] sm:$0xf]
  %v1374 = vld [vmem:[%s2 + $0x6c] sm:$0xff]
  %v1375 = vld [vmem:[%s2 + $0x74] sm:$0xf]
  %v1376 = vld [vmem:[%s2 + $0x78] sm:$0xff]
  %v1377 = vld [vmem:[%s2 + $0x80] sm:$0xf]
  %v1378 = vld [vmem:[%s2 + $0x84] sm:$0xff]
  %v1379 = vld [vmem:[%s2 + $0x8c] sm:$0xf]
  %v1380 = vld [vmem:[%s2 + $0x90] sm:$0xff]
  %v1381 = vld [vmem:[%s2 + $0x98] sm:$0xf]
  %v1382 = vld [vmem:[%s2 + $0x9c] sm:$0xff]
  %v1383 = vld [vmem:[%s2 + $0xa4] sm:$0xf]
  %v1384 = vld [vmem:[%s2 + $0xa8] sm:$0xff]
  %v1385 = vld [vmem:[%s2 + $0xb0] sm:$0xf]
  %v1386 = vld [vmem:[%s2 + $0xb4] sm:$0xff]
  %v1387 = vld [vmem:[%s2 + $0xbc] sm:$0xf]
  %v1420 = vunpack.c.l.b16 %v1356
  %v1421 = vunpack.c.h.b16 %v1356
  %v1422 = vunpack.c.l.b16 %v1357
  %v1423 = vunpack.c.l.b16 %v1358
  %v1424 = vunpack.c.h.b16 %v1358
  %v1425 = vunpack.c.l.b16 %v1359
  %v1426 = vunpack.c.l.b16 %v1360
  %v1427 = vunpack.c.h.b16 %v1360
  %v1428 = vunpack.c.l.b16 %v1361
  %v1429 = vunpack.c.l.b16 %v1362
  %v1430 = vunpack.c.h.b16 %v1362
  %v1431 = vunpack.c.l.b16 %v1363
  %v1432 = vunpack.c.l.b16 %v1364
  %v1433 = vunpack.c.h.b16 %v1364
  %v1434 = vunpack.c.l.b16 %v1365
  %v1435 = vunpack.c.l.b16 %v1366
  %v1436 = vunpack.c.h.b16 %v1366
  %v1437 = vunpack.c.l.b16 %v1367
  %v1438 = vunpack.c.l.b16 %v1368
  %v1439 = vunpack.c.h.b16 %v1368
  %v1440 = vunpack.c.l.b16 %v1369
  %v1441 = vunpack.c.l.b16 %v1370
  %v1442 = vunpack.c.h.b16 %v1370
  %v1443 = vunpack.c.l.b16 %v1371
  %v1444 = vunpack.c.l.b16 %v1372
  %v1445 = vunpack.c.h.b16 %v1372
  %v1446 = vunpack.c.l.b16 %v1373
  %v1447 = vunpack.c.l.b16 %v1374
  %v1448 = vunpack.c.h.b16 %v1374
  %v1449 = vunpack.c.l.b16 %v1375
  %v1450 = vunpack.c.l.b16 %v1376
  %v1451 = vunpack.c.h.b16 %v1376
  %v1452 = vunpack.c.l.b16 %v1377
  %v1453 = vunpack.c.l.b16 %v1378
  %v1454 = vunpack.c.h.b16 %v1378
  %v1455 = vunpack.c.l.b16 %v1379
  %v1456 = vunpack.c.l.b16 %v1380
  %v1457 = vunpack.c.h.b16 %v1380
  %v1458 = vunpack.c.l.b16 %v1381
  %v1459 = vunpack.c.l.b16 %v1382
  %v1460 = vunpack.c.h.b16 %v1382
  %v1461 = vunpack.c.l.b16 %v1383
  %v1462 = vunpack.c.l.b16 %v1384
  %v1463 = vunpack.c.h.b16 %v1384
  %v1464 = vunpack.c.l.b16 %v1385
  %v1465 = vunpack.c.l.b16 %v1386
  %v1466 = vunpack.c.h.b16 %v1386
  %v1467 = vunpack.c.l.b16 %v1387
  %v1468 = vpack.c.b16 %v1423, %v1420
  %v1469 = vpack.c.b16 %v1424, %v1421
  %v1470 = vpack.c.b16 %v1425, %v1422
  %v1471 = vpack.c.b16 %v1429, %v1426
  %v1472 = vpack.c.b16 %v1430, %v1427
  %v1473 = vpack.c.b16 %v1431, %v1428
  %v1474 = vpack.c.b16 %v1435, %v1432
  %v1475 = vpack.c.b16 %v1436, %v1433
  %v1476 = vpack.c.b16 %v1437, %v1434
  %v1477 = vpack.c.b16 %v1441, %v1438
  %v1478 = vpack.c.b16 %v1442, %v1439
  %v1479 = vpack.c.b16 %v1443, %v1440
  %v1480 = vpack.c.b16 %v1447, %v1444
  %v1481 = vpack.c.b16 %v1448, %v1445
  %v1482 = vpack.c.b16 %v1449, %v1446
  %v1483 = vpack.c.b16 %v1453, %v1450
  %v1484 = vpack.c.b16 %v1454, %v1451
  %v1485 = vpack.c.b16 %v1455, %v1452
  %v1486 = vpack.c.b16 %v1459, %v1456
  %v1487 = vpack.c.b16 %v1460, %v1457
  %v1488 = vpack.c.b16 %v1461, %v1458
  %v1489 = vpack.c.b16 %v1465, %v1462
  %v1490 = vpack.c.b16 %v1466, %v1463
  %v1491 = vpack.c.b16 %v1467, %v1464
  %1516 = vmatprep.subr.bf16.mxu0 %v1469
  %1517 = vmatpush1.bf16.msra.mxu0 %v1468
  %1518 = vmatprep.subr.bf16.mxu0 %v1472
  %1519 = vmatpush1.bf16.msra.mxu0 %v1471
  %1520 = vmatprep.subr.bf16.mxu0 %v1475
  %1521 = vmatpush1.bf16.msra.mxu0 %v1474
  %1522 = vmatprep.subr.bf16.mxu0 %v1478
  %1523 = vmatpush1.bf16.msra.mxu0 %v1477
  %1524 = vmatprep.subr.bf16.mxu0 %v1481
  %1525 = vmatpush1.bf16.msra.mxu0 %v1480
  %1526 = vmatprep.subr.bf16.mxu0 %v1484
  %1527 = vmatpush1.bf16.msra.mxu0 %v1483
  %1528 = vmatprep.subr.bf16.mxu0 %v1487
  %1529 = vmatpush1.bf16.msra.mxu0 %v1486
  %1530 = vmatprep.subr.bf16.mxu0 %v1490
  %1531 = vmatpush1.bf16.msra.mxu0 %v1489
  %1532 = vmatprep.subr.bf16.mxu0 0
  %1533 = vmatpush1.bf16.msra.mxu0 0
  %1534 = vmatprep.subr.bf16.mxu0 0
  %1535 = vmatpush1.bf16.msra.mxu0 0
  %1536 = vmatprep.subr.bf16.mxu0 0
  %1537 = vmatpush1.bf16.msra.mxu0 0
  %1538 = vmatprep.subr.bf16.mxu0 0
  %1539 = vmatpush1.bf16.msra.mxu0 0
  %1540 = vmatprep.subr.bf16.mxu0 0
  %1541 = vmatpush1.bf16.msra.mxu0 0
  %1542 = vmatprep.subr.bf16.mxu0 0
  %1543 = vmatpush1.bf16.msra.mxu0 0
  %1544 = vmatprep.subr.bf16.mxu0 0
  %1545 = vmatpush1.bf16.msra.mxu0 0
  %1546 = vmatprep.subr.bf16.mxu0 0
  %1547 = vmatpush1.bf16.msra.mxu0 0
  %1548 = vmatprep.mubr.bf16.mxu0 0
  %1549 = vmatmul.mubr.bf16.gmra.mrb[0].mxu0 %v1355
  %v1550 = vpop.f32.mrb[0].mxu0
  %v1551 = vadd.f32 0.0, %v1550
  %v1552 = vpop.f32.mrb[0].mxu0
  %v1553 = vadd.f32 0.0, %v1552
  %v1554 = vpop.f32.mrb[0].mxu0
  %v1555 = vpop.f32.mrb[0].mxu0
  %1556 = vdwg.mxu0
  %1557 = vmatprep.subr.bf16.mxu0 0
  %1558 = vmatpush1.bf16.msra.mxu0 %v1470
  %1559 = vmatprep.subr.bf16.mxu0 0
  %1560 = vmatpush1.bf16.msra.mxu0 %v1473
  %1561 = vmatprep.subr.bf16.mxu0 0
  %1562 = vmatpush1.bf16.msra.mxu0 %v1476
  %1563 = vmatprep.subr.bf16.mxu0 0
  %1564 = vmatpush1.bf16.msra.mxu0 %v1479
  %1565 = vmatprep.subr.bf16.mxu0 0
  %1566 = vmatpush1.bf16.msra.mxu0 %v1482
  %1567 = vmatprep.subr.bf16.mxu0 0
  %1568 = vmatpush1.bf16.msra.mxu0 %v1485
  %1569 = vmatprep.subr.bf16.mxu0 0
  %1570 = vmatpush1.bf16.msra.mxu0 %v1488
  %1571 = vmatprep.subr.bf16.mxu0 0
  %1572 = vmatpush1.bf16.msra.mxu0 %v1491
  %1573 = vmatprep.subr.bf16.mxu0 0
  %1574 = vmatpush1.bf16.msra.mxu0 0
  %1575 = vmatprep.subr.bf16.mxu0 0
  %1576 = vmatpush1.bf16.msra.mxu0 0
  %1577 = vmatprep.subr.bf16.mxu0 0
  %1578 = vmatpush1.bf16.msra.mxu0 0
  %1579 = vmatprep.subr.bf16.mxu0 0
  %1580 = vmatpush1.bf16.msra.mxu0 0
  %1581 = vmatprep.subr.bf16.mxu0 0
  %1582 = vmatpush1.bf16.msra.mxu0 0
  %1583 = vmatprep.subr.bf16.mxu0 0
  %1584 = vmatpush1.bf16.msra.mxu0 0
  %1585 = vmatprep.subr.bf16.mxu0 0
  %1586 = vmatpush1.bf16.msra.mxu0 0
  %1587 = vmatprep.subr.bf16.mxu0 0
  %1588 = vmatpush1.bf16.msra.mxu0 0
  %1589 = vmatprep.mubr.bf16.mxu0 0
  %1590 = vmatmul.mubr.bf16.gmra.mrb[0].mxu0 %v1355
  %v1591 = vpop.f32.mrb[0].mxu0
  %v1592 = vadd.f32 0.0, %v1591
  %v1593 = vpop.f32.mrb[0].mxu0
  %v1594 = vpop.f32.mrb[0].mxu0
  %v1595 = vpop.f32.mrb[0].mxu0
  %1596 = vdwg.mxu0
  %v1597 = vadd.f32 %v1309, %v1551
  %v1598 = vxor.u32 %v1597, 2147483648
  %v1599 = vmul.f32 %v1598, 1.442695
  %v1600 = vpow.pop %v1599
  %v1601 = vadd.f32 %v1600, 1.0
  %v1602 = vrcp.pop %v1601
  %v1603 = vmul.f32 1.0, %v1602
  %v1604 = vadd.f32 %v1311, %v1553
  %v1605 = vxor.u32 %v1604, 2147483648
  %v1606 = vmul.f32 %v1605, 1.442695
  %v1607 = vpow.pop %v1606
  %v1608 = vadd.f32 %v1607, 1.0
  %v1609 = vrcp.pop %v1608
  %v1610 = vmul.f32 1.0, %v1609
  %v1611 = vadd.f32 %v1592, %v831
  %v1612 = vmul.f32 %v1603, %v1611
  %v1613 = vadd.f32 %v1350, %v1612
  %v1614 = vtanh.pop %v1613
  %v1615 = vsub.f32 1.0, %v1610
  %v1616 = vmul.f32 %v1615, %v1614
  %v1617 = vmul.f32 %v1610, %v1112
  %v1618 = vadd.f32 %v1616, %v1617
  %1619 = vst [vmem:[%s311] sm:$0xff] %v1618
  %s1620 = scalar_lea.vmem %s0, 48
  %v1621 = vld [vmem:[%s1620] sm:$0xff]
  %v1622 = vld [vmem:[%s1620 + $0x8] sm:$0xff]
  %v1623 = vld [vmem:[%s1620 + $0x10] sm:$0xff]
  %v1624 = vld [vmem:[#allocation2] sm:$0xff]
  %v1625 = vpack.c.bf16 %v1624, %v1624
  %v1626 = vld [vmem:[%s1] sm:$0xff]
  %v1627 = vld [vmem:[%s1 + $0x8] sm:$0xf]
  %v1628 = vld [vmem:[%s1 + $0xc] sm:$0xff]
  %v1629 = vld [vmem:[%s1 + $0x14] sm:$0xf]
  %v1630 = vld [vmem:[%s1 + $0x18] sm:$0xff]
  %v1631 = vld [vmem:[%s1 + $0x20] sm:$0xf]
  %v1632 = vld [vmem:[%s1 + $0x24] sm:$0xff]
  %v1633 = vld [vmem:[%s1 + $0x2c] sm:$0xf]
  %v1634 = vld [vmem:[%s1 + $0x30] sm:$0xff]
  %v1635 = vld [vmem:[%s1 + $0x38] sm:$0xf]
  %v1636 = vld [vmem:[%s1 + $0x3c] sm:$0xff]
  %v1637 = vld [vmem:[%s1 + $0x44] sm:$0xf]
  %v1638 = vld [vmem:[%s1 + $0x48] sm:$0xff]
  %v1639 = vld [vmem:[%s1 + $0x50] sm:$0xf]
  %v1640 = vld [vmem:[%s1 + $0x54] sm:$0xff]
  %v1641 = vld [vmem:[%s1 + $0x5c] sm:$0xf]
  %v1642 = vld [vmem:[%s1 + $0x60] sm:$0xff]
  %v1643 = vld [vmem:[%s1 + $0x68] sm:$0xf]
  %v1644 = vld [vmem:[%s1 + $0x6c] sm:$0xff]
  %v1645 = vld [vmem:[%s1 + $0x74] sm:$0xf]
  %v1646 = vld [vmem:[%s1 + $0x78] sm:$0xff]
  %v1647 = vld [vmem:[%s1 + $0x80] sm:$0xf]
  %v1648 = vld [vmem:[%s1 + $0x84] sm:$0xff]
  %v1649 = vld [vmem:[%s1 + $0x8c] sm:$0xf]
  %v1650 = vld [vmem:[%s1 + $0x90] sm:$0xff]
  %v1651 = vld [vmem:[%s1 + $0x98] sm:$0xf]
  %v1652 = vld [vmem:[%s1 + $0x9c] sm:$0xff]
  %v1653 = vld [vmem:[%s1 + $0xa4] sm:$0xf]
  %v1654 = vld [vmem:[%s1 + $0xa8] sm:$0xff]
  %v1655 = vld [vmem:[%s1 + $0xb0] sm:$0xf]
  %v1656 = vld [vmem:[%s1 + $0xb4] sm:$0xff]
  %v1657 = vld [vmem:[%s1 + $0xbc] sm:$0xf]
  %v1690 = vunpack.c.l.b16 %v1626
  %v1691 = vunpack.c.h.b16 %v1626
  %v1692 = vunpack.c.l.b16 %v1627
  %v1693 = vunpack.c.l.b16 %v1628
  %v1694 = vunpack.c.h.b16 %v1628
  %v1695 = vunpack.c.l.b16 %v1629
  %v1696 = vunpack.c.l.b16 %v1630
  %v1697 = vunpack.c.h.b16 %v1630
  %v1698 = vunpack.c.l.b16 %v1631
  %v1699 = vunpack.c.l.b16 %v1632
  %v1700 = vunpack.c.h.b16 %v1632
  %v1701 = vunpack.c.l.b16 %v1633
  %v1702 = vunpack.c.l.b16 %v1634
  %v1703 = vunpack.c.h.b16 %v1634
  %v1704 = vunpack.c.l.b16 %v1635
  %v1705 = vunpack.c.l.b16 %v1636
  %v1706 = vunpack.c.h.b16 %v1636
  %v1707 = vunpack.c.l.b16 %v1637
  %v1708 = vunpack.c.l.b16 %v1638
  %v1709 = vunpack.c.h.b16 %v1638
  %v1710 = vunpack.c.l.b16 %v1639
  %v1711 = vunpack.c.l.b16 %v1640
  %v1712 = vunpack.c.h.b16 %v1640
  %v1713 = vunpack.c.l.b16 %v1641
  %v1714 = vunpack.c.l.b16 %v1642
  %v1715 = vunpack.c.h.b16 %v1642
  %v1716 = vunpack.c.l.b16 %v1643
  %v1717 = vunpack.c.l.b16 %v1644
  %v1718 = vunpack.c.h.b16 %v1644
  %v1719 = vunpack.c.l.b16 %v1645
  %v1720 = vunpack.c.l.b16 %v1646
  %v1721 = vunpack.c.h.b16 %v1646
  %v1722 = vunpack.c.l.b16 %v1647
  %v1723 = vunpack.c.l.b16 %v1648
  %v1724 = vunpack.c.h.b16 %v1648
  %v1725 = vunpack.c.l.b16 %v1649
  %v1726 = vunpack.c.l.b16 %v1650
  %v1727 = vunpack.c.h.b16 %v1650
  %v1728 = vunpack.c.l.b16 %v1651
  %v1729 = vunpack.c.l.b16 %v1652
  %v1730 = vunpack.c.h.b16 %v1652
  %v1731 = vunpack.c.l.b16 %v1653
  %v1732 = vunpack.c.l.b16 %v1654
  %v1733 = vunpack.c.h.b16 %v1654
  %v1734 = vunpack.c.l.b16 %v1655
  %v1735 = vunpack.c.l.b16 %v1656
  %v1736 = vunpack.c.h.b16 %v1656
  %v1737 = vunpack.c.l.b16 %v1657
  %v1738 = vpack.c.b16 %v1693, %v1690
  %v1739 = vpack.c.b16 %v1694, %v1691
  %v1740 = vpack.c.b16 %v1695, %v1692
  %v1741 = vpack.c.b16 %v1699, %v1696
  %v1742 = vpack.c.b16 %v1700, %v1697
  %v1743 = vpack.c.b16 %v1701, %v1698
  %v1744 = vpack.c.b16 %v1705, %v1702
  %v1745 = vpack.c.b16 %v1706, %v1703
  %v1746 = vpack.c.b16 %v1707, %v1704
  %v1747 = vpack.c.b16 %v1711, %v1708
  %v1748 = vpack.c.b16 %v1712, %v1709
  %v1749 = vpack.c.b16 %v1713, %v1710
  %v1750 = vpack.c.b16 %v1717, %v1714
  %v1751 = vpack.c.b16 %v1718, %v1715
  %v1752 = vpack.c.b16 %v1719, %v1716
  %v1753 = vpack.c.b16 %v1723, %v1720
  %v1754 = vpack.c.b16 %v1724, %v1721
  %v1755 = vpack.c.b16 %v1725, %v1722
  %v1756 = vpack.c.b16 %v1729, %v1726
  %v1757 = vpack.c.b16 %v1730, %v1727
  %v1758 = vpack.c.b16 %v1731, %v1728
  %v1759 = vpack.c.b16 %v1735, %v1732
  %v1760 = vpack.c.b16 %v1736, %v1733
  %v1761 = vpack.c.b16 %v1737, %v1734
  %1786 = vmatprep.subr.bf16.mxu0 %v1739
  %1787 = vmatpush1.bf16.msra.mxu0 %v1738
  %1788 = vmatprep.subr.bf16.mxu0 %v1742
  %1789 = vmatpush1.bf16.msra.mxu0 %v1741
  %1790 = vmatprep.subr.bf16.mxu0 %v1745
  %1791 = vmatpush1.bf16.msra.mxu0 %v1744
  %1792 = vmatprep.subr.bf16.mxu0 %v1748
  %1793 = vmatpush1.bf16.msra.mxu0 %v1747
  %1794 = vmatprep.subr.bf16.mxu0 %v1751
  %1795 = vmatpush1.bf16.msra.mxu0 %v1750
  %1796 = vmatprep.subr.bf16.mxu0 %v1754
  %1797 = vmatpush1.bf16.msra.mxu0 %v1753
  %1798 = vmatprep.subr.bf16.mxu0 %v1757
  %1799 = vmatpush1.bf16.msra.mxu0 %v1756
  %1800 = vmatprep.subr.bf16.mxu0 %v1760
  %1801 = vmatpush1.bf16.msra.mxu0 %v1759
  %1802 = vmatprep.subr.bf16.mxu0 0
  %1803 = vmatpush1.bf16.msra.mxu0 0
  %1804 = vmatprep.subr.bf16.mxu0 0
  %1805 = vmatpush1.bf16.msra.mxu0 0
  %1806 = vmatprep.subr.bf16.mxu0 0
  %1807 = vmatpush1.bf16.msra.mxu0 0
  %1808 = vmatprep.subr.bf16.mxu0 0
  %1809 = vmatpush1.bf16.msra.mxu0 0
  %1810 = vmatprep.subr.bf16.mxu0 0
  %1811 = vmatpush1.bf16.msra.mxu0 0
  %1812 = vmatprep.subr.bf16.mxu0 0
  %1813 = vmatpush1.bf16.msra.mxu0 0
  %1814 = vmatprep.subr.bf16.mxu0 0
  %1815 = vmatpush1.bf16.msra.mxu0 0
  %1816 = vmatprep.subr.bf16.mxu0 0
  %1817 = vmatpush1.bf16.msra.mxu0 0
  %1818 = vmatprep.mubr.bf16.mxu0 0
  %1819 = vmatmul.mubr.bf16.gmra.mrb[0].mxu0 %v1625
  %v1820 = vpop.f32.mrb[0].mxu0
  %v1821 = vadd.f32 0.0, %v1820
  %v1822 = vpop.f32.mrb[0].mxu0
  %v1823 = vadd.f32 0.0, %v1822
  %v1824 = vpop.f32.mrb[0].mxu0
  %v1825 = vpop.f32.mrb[0].mxu0
  %1826 = vdwg.mxu0
  %1827 = vmatprep.subr.bf16.mxu0 0
  %1828 = vmatpush1.bf16.msra.mxu0 %v1740
  %1829 = vmatprep.subr.bf16.mxu0 0
  %1830 = vmatpush1.bf16.msra.mxu0 %v1743
  %1831 = vmatprep.subr.bf16.mxu0 0
  %1832 = vmatpush1.bf16.msra.mxu0 %v1746
  %1833 = vmatprep.subr.bf16.mxu0 0
  %1834 = vmatpush1.bf16.msra.mxu0 %v1749
  %1835 = vmatprep.subr.bf16.mxu0 0
  %1836 = vmatpush1.bf16.msra.mxu0 %v1752
  %1837 = vmatprep.subr.bf16.mxu0 0
  %1838 = vmatpush1.bf16.msra.mxu0 %v1755
  %1839 = vmatprep.subr.bf16.mxu0 0
  %1840 = vmatpush1.bf16.msra.mxu0 %v1758
  %1841 = vmatprep.subr.bf16.mxu0 0
  %1842 = vmatpush1.bf16.msra.mxu0 %v1761
  %1843 = vmatprep.subr.bf16.mxu0 0
  %1844 = vmatpush1.bf16.msra.mxu0 0
  %1845 = vmatprep.subr.bf16.mxu0 0
  %1846 = vmatpush1.bf16.msra.mxu0 0
  %1847 = vmatprep.subr.bf16.mxu0 0
  %1848 = vmatpush1.bf16.msra.mxu0 0
  %1849 = vmatprep.subr.bf16.mxu0 0
  %1850 = vmatpush1.bf16.msra.mxu0 0
  %1851 = vmatprep.subr.bf16.mxu0 0
  %1852 = vmatpush1.bf16.msra.mxu0 0
  %1853 = vmatprep.subr.bf16.mxu0 0
  %1854 = vmatpush1.bf16.msra.mxu0 0
  %1855 = vmatprep.subr.bf16.mxu0 0
  %1856 = vmatpush1.bf16.msra.mxu0 0
  %1857 = vmatprep.subr.bf16.mxu0 0
  %1858 = vmatpush1.bf16.msra.mxu0 0
  %1859 = vmatprep.mubr.bf16.mxu0 0
  %1860 = vmatmul.mubr.bf16.gmra.mrb[0].mxu0 %v1625
  %v1861 = vpop.f32.mrb[0].mxu0
  %v1862 = vadd.f32 0.0, %v1861
  %v1863 = vpop.f32.mrb[0].mxu0
  %v1864 = vpop.f32.mrb[0].mxu0
  %v1865 = vpop.f32.mrb[0].mxu0
  %1866 = vdwg.mxu0
  %v1867 = vadd.f32 %v1621, %v1821
  %v1868 = vxor.u32 %v1867, 2147483648
  %v1869 = vmul.f32 %v1868, 1.442695
  %v1870 = vpow.pop %v1869
  %v1871 = vadd.f32 %v1870, 1.0
  %v1872 = vrcp.pop %v1871
  %v1873 = vmul.f32 1.0, %v1872
  %v1874 = vadd.f32 %v1622, %v1823
  %v1875 = vxor.u32 %v1874, 2147483648
  %v1876 = vmul.f32 %v1875, 1.442695
  %v1877 = vpow.pop %v1876
  %v1878 = vadd.f32 %v1877, 1.0
  %v1879 = vrcp.pop %v1878
  %v1880 = vmul.f32 1.0, %v1879
  %v1881 = vadd.f32 %v1862, %v300
  %v1882 = vmul.f32 %v1873, %v1881
  %v1883 = vadd.f32 %v1623, %v1882
  %v1884 = vtanh.pop %v1883
  %v1885 = vsub.f32 1.0, %v1880
  %v1886 = vmul.f32 %v1885, %v1884
  %v1887 = vmul.f32 %v1880, %v1624
  %v1888 = vadd.f32 %v1886, %v1887
  %1889 = vst [vmem:[#allocation2] sm:$0xff] %v1888
  %v1890 = vld [vmem:[%s311] sm:$0xff]
  %v1891 = vpack.c.bf16 %v1888, %v1888
  %v1892 = vld [vmem:[%s5] sm:$0xff]
  %v1893 = vld [vmem:[%s5 + $0x8] sm:$0xf]
  %v1894 = vld [vmem:[%s5 + $0xc] sm:$0xff]
  %v1895 = vld [vmem:[%s5 + $0x14] sm:$0xf]
  %v1896 = vld [vmem:[%s5 + $0x18] sm:$0xff]
  %v1897 = vld [vmem:[%s5 + $0x20] sm:$0xf]
  %v1898 = vld [vmem:[%s5 + $0x24] sm:$0xff]
  %v1899 = vld [vmem:[%s5 + $0x2c] sm:$0xf]
  %v1900 = vld [vmem:[%s5 + $0x30] sm:$0xff]
  %v1901 = vld [vmem:[%s5 + $0x38] sm:$0xf]
  %v1902 = vld [vmem:[%s5 + $0x3c] sm:$0xff]
  %v1903 = vld [vmem:[%s5 + $0x44] sm:$0xf]
  %v1904 = vld [vmem:[%s5 + $0x48] sm:$0xff]
  %v1905 = vld [vmem:[%s5 + $0x50] sm:$0xf]
  %v1906 = vld [vmem:[%s5 + $0x54] sm:$0xff]
  %v1907 = vld [vmem:[%s5 + $0x5c] sm:$0xf]
  %v1908 = vld [vmem:[%s5 + $0x60] sm:$0xff]
  %v1909 = vld [vmem:[%s5 + $0x68] sm:$0xf]
  %v1910 = vld [vmem:[%s5 + $0x6c] sm:$0xff]
  %v1911 = vld [vmem:[%s5 + $0x74] sm:$0xf]
  %v1912 = vld [vmem:[%s5 + $0x78] sm:$0xff]
  %v1913 = vld [vmem:[%s5 + $0x80] sm:$0xf]
  %v1914 = vld [vmem:[%s5 + $0x84] sm:$0xff]
  %v1915 = vld [vmem:[%s5 + $0x8c] sm:$0xf]
  %v1916 = vld [vmem:[%s5 + $0x90] sm:$0xff]
  %v1917 = vld [vmem:[%s5 + $0x98] sm:$0xf]
  %v1918 = vld [vmem:[%s5 + $0x9c] sm:$0xff]
  %v1919 = vld [vmem:[%s5 + $0xa4] sm:$0xf]
  %v1920 = vld [vmem:[%s5 + $0xa8] sm:$0xff]
  %v1921 = vld [vmem:[%s5 + $0xb0] sm:$0xf]
  %v1922 = vld [vmem:[%s5 + $0xb4] sm:$0xff]
  %v1923 = vld [vmem:[%s5 + $0xbc] sm:$0xf]
  %v1956 = vunpack.c.l.b16 %v1892
  %v1957 = vunpack.c.h.b16 %v1892
  %v1958 = vunpack.c.l.b16 %v1893
  %v1959 = vunpack.c.l.b16 %v1894
  %v1960 = vunpack.c.h.b16 %v1894
  %v1961 = vunpack.c.l.b16 %v1895
  %v1962 = vunpack.c.l.b16 %v1896
  %v1963 = vunpack.c.h.b16 %v1896
  %v1964 = vunpack.c.l.b16 %v1897
  %v1965 = vunpack.c.l.b16 %v1898
  %v1966 = vunpack.c.h.b16 %v1898
  %v1967 = vunpack.c.l.b16 %v1899
  %v1968 = vunpack.c.l.b16 %v1900
  %v1969 = vunpack.c.h.b16 %v1900
  %v1970 = vunpack.c.l.b16 %v1901
  %v1971 = vunpack.c.l.b16 %v1902
  %v1972 = vunpack.c.h.b16 %v1902
  %v1973 = vunpack.c.l.b16 %v1903
  %v1974 = vunpack.c.l.b16 %v1904
  %v1975 = vunpack.c.h.b16 %v1904
  %v1976 = vunpack.c.l.b16 %v1905
  %v1977 = vunpack.c.l.b16 %v1906
  %v1978 = vunpack.c.h.b16 %v1906
  %v1979 = vunpack.c.l.b16 %v1907
  %v1980 = vunpack.c.l.b16 %v1908
  %v1981 = vunpack.c.h.b16 %v1908
  %v1982 = vunpack.c.l.b16 %v1909
  %v1983 = vunpack.c.l.b16 %v1910
  %v1984 = vunpack.c.h.b16 %v1910
  %v1985 = vunpack.c.l.b16 %v1911
  %v1986 = vunpack.c.l.b16 %v1912
  %v1987 = vunpack.c.h.b16 %v1912
  %v1988 = vunpack.c.l.b16 %v1913
  %v1989 = vunpack.c.l.b16 %v1914
  %v1990 = vunpack.c.h.b16 %v1914
  %v1991 = vunpack.c.l.b16 %v1915
  %v1992 = vunpack.c.l.b16 %v1916
  %v1993 = vunpack.c.h.b16 %v1916
  %v1994 = vunpack.c.l.b16 %v1917
  %v1995 = vunpack.c.l.b16 %v1918
  %v1996 = vunpack.c.h.b16 %v1918
  %v1997 = vunpack.c.l.b16 %v1919
  %v1998 = vunpack.c.l.b16 %v1920
  %v1999 = vunpack.c.h.b16 %v1920
  %v2000 = vunpack.c.l.b16 %v1921
  %v2001 = vunpack.c.l.b16 %v1922
  %v2002 = vunpack.c.h.b16 %v1922
  %v2003 = vunpack.c.l.b16 %v1923
  %v2004 = vpack.c.b16 %v1959, %v1956
  %v2005 = vpack.c.b16 %v1960, %v1957
  %v2006 = vpack.c.b16 %v1961, %v1958
  %v2007 = vpack.c.b16 %v1965, %v1962
  %v2008 = vpack.c.b16 %v1966, %v1963
  %v2009 = vpack.c.b16 %v1967, %v1964
  %v2010 = vpack.c.b16 %v1971, %v1968
  %v2011 = vpack.c.b16 %v1972, %v1969
  %v2012 = vpack.c.b16 %v1973, %v1970
  %v2013 = vpack.c.b16 %v1977, %v1974
  %v2014 = vpack.c.b16 %v1978, %v1975
  %v2015 = vpack.c.b16 %v1979, %v1976
  %v2016 = vpack.c.b16 %v1983, %v1980
  %v2017 = vpack.c.b16 %v1984, %v1981
  %v2018 = vpack.c.b16 %v1985, %v1982
  %v2019 = vpack.c.b16 %v1989, %v1986
  %v2020 = vpack.c.b16 %v1990, %v1987
  %v2021 = vpack.c.b16 %v1991, %v1988
  %v2022 = vpack.c.b16 %v1995, %v1992
  %v2023 = vpack.c.b16 %v1996, %v1993
  %v2024 = vpack.c.b16 %v1997, %v1994
  %v2025 = vpack.c.b16 %v2001, %v1998
  %v2026 = vpack.c.b16 %v2002, %v1999
  %v2027 = vpack.c.b16 %v2003, %v2000
  %2052 = vmatprep.subr.bf16.mxu0 %v2005
  %2053 = vmatpush1.bf16.msra.mxu0 %v2004
  %2054 = vmatprep.subr.bf16.mxu0 %v2008
  %2055 = vmatpush1.bf16.msra.mxu0 %v2007
  %2056 = vmatprep.subr.bf16.mxu0 %v2011
  %2057 = vmatpush1.bf16.msra.mxu0 %v2010
  %2058 = vmatprep.subr.bf16.mxu0 %v2014
  %2059 = vmatpush1.bf16.msra.mxu0 %v2013
  %2060 = vmatprep.subr.bf16.mxu0 %v2017
  %2061 = vmatpush1.bf16.msra.mxu0 %v2016
  %2062 = vmatprep.subr.bf16.mxu0 %v2020
  %2063 = vmatpush1.bf16.msra.mxu0 %v2019
  %2064 = vmatprep.subr.bf16.mxu0 %v2023
  %2065 = vmatpush1.bf16.msra.mxu0 %v2022
  %2066 = vmatprep.subr.bf16.mxu0 %v2026
  %2067 = vmatpush1.bf16.msra.mxu0 %v2025
  %2068 = vmatprep.subr.bf16.mxu0 0
  %2069 = vmatpush1.bf16.msra.mxu0 0
  %2070 = vmatprep.subr.bf16.mxu0 0
  %2071 = vmatpush1.bf16.msra.mxu0 0
  %2072 = vmatprep.subr.bf16.mxu0 0
  %2073 = vmatpush1.bf16.msra.mxu0 0
  %2074 = vmatprep.subr.bf16.mxu0 0
  %2075 = vmatpush1.bf16.msra.mxu0 0
  %2076 = vmatprep.subr.bf16.mxu0 0
  %2077 = vmatpush1.bf16.msra.mxu0 0
  %2078 = vmatprep.subr.bf16.mxu0 0
  %2079 = vmatpush1.bf16.msra.mxu0 0
  %2080 = vmatprep.subr.bf16.mxu0 0
  %2081 = vmatpush1.bf16.msra.mxu0 0
  %2082 = vmatprep.subr.bf16.mxu0 0
  %2083 = vmatpush1.bf16.msra.mxu0 0
  %2084 = vmatprep.mubr.bf16.mxu0 0
  %2085 = vmatmul.mubr.bf16.gmra.mrb[0].mxu0 %v1891
  %v2086 = vpop.f32.mrb[0].mxu0
  %v2087 = vadd.f32 %v350, %v2086
  %v2088 = vpop.f32.mrb[0].mxu0
  %v2089 = vadd.f32 %v354, %v2088
  %v2090 = vpop.f32.mrb[0].mxu0
  %v2091 = vpop.f32.mrb[0].mxu0
  %2092 = vdwg.mxu0
  %2093 = vmatprep.subr.bf16.mxu0 0
  %2094 = vmatpush1.bf16.msra.mxu0 %v2006
  %2095 = vmatprep.subr.bf16.mxu0 0
  %2096 = vmatpush1.bf16.msra.mxu0 %v2009
  %2097 = vmatprep.subr.bf16.mxu0 0
  %2098 = vmatpush1.bf16.msra.mxu0 %v2012
  %2099 = vmatprep.subr.bf16.mxu0 0
  %2100 = vmatpush1.bf16.msra.mxu0 %v2015
  %2101 = vmatprep.subr.bf16.mxu0 0
  %2102 = vmatpush1.bf16.msra.mxu0 %v2018
  %2103 = vmatprep.subr.bf16.mxu0 0
  %2104 = vmatpush1.bf16.msra.mxu0 %v2021
  %2105 = vmatprep.subr.bf16.mxu0 0
  %2106 = vmatpush1.bf16.msra.mxu0 %v2024
  %2107 = vmatprep.subr.bf16.mxu0 0
  %2108 = vmatpush1.bf16.msra.mxu0 %v2027
  %2109 = vmatprep.subr.bf16.mxu0 0
  %2110 = vmatpush1.bf16.msra.mxu0 0
  %2111 = vmatprep.subr.bf16.mxu0 0
  %2112 = vmatpush1.bf16.msra.mxu0 0
  %2113 = vmatprep.subr.bf16.mxu0 0
  %2114 = vmatpush1.bf16.msra.mxu0 0
  %2115 = vmatprep.subr.bf16.mxu0 0
  %2116 = vmatpush1.bf16.msra.mxu0 0
  %2117 = vmatprep.subr.bf16.mxu0 0
  %2118 = vmatpush1.bf16.msra.mxu0 0
  %2119 = vmatprep.subr.bf16.mxu0 0
  %2120 = vmatpush1.bf16.msra.mxu0 0
  %2121 = vmatprep.subr.bf16.mxu0 0
  %2122 = vmatpush1.bf16.msra.mxu0 0
  %2123 = vmatprep.subr.bf16.mxu0 0
  %2124 = vmatpush1.bf16.msra.mxu0 0
  %2125 = vmatprep.mubr.bf16.mxu0 0
  %2126 = vmatmul.mubr.bf16.gmra.mrb[0].mxu0 %v1891
  %v2127 = vpop.f32.mrb[0].mxu0
  %v2128 = vadd.f32 %v358, %v2127
  %v2129 = vpop.f32.mrb[0].mxu0
  %v2130 = vpop.f32.mrb[0].mxu0
  %v2131 = vpop.f32.mrb[0].mxu0
  %2132 = vdwg.mxu0
  %v2133 = vpack.c.bf16 %v1890, %v1890
  %v2134 = vld [vmem:[%s2] sm:$0xff]
  %v2135 = vld [vmem:[%s2 + $0x8] sm:$0xf]
  %v2136 = vld [vmem:[%s2 + $0xc] sm:$0xff]
  %v2137 = vld [vmem:[%s2 + $0x14] sm:$0xf]
  %v2138 = vld [vmem:[%s2 + $0x18] sm:$0xff]
  %v2139 = vld [vmem:[%s2 + $0x20] sm:$0xf]
  %v2140 = vld [vmem:[%s2 + $0x24] sm:$0xff]
  %v2141 = vld [vmem:[%s2 + $0x2c] sm:$0xf]
  %v2142 = vld [vmem:[%s2 + $0x30] sm:$0xff]
  %v2143 = vld [vmem:[%s2 + $0x38] sm:$0xf]
  %v2144 = vld [vmem:[%s2 + $0x3c] sm:$0xff]
  %v2145 = vld [vmem:[%s2 + $0x44] sm:$0xf]
  %v2146 = vld [vmem:[%s2 + $0x48] sm:$0xff]
  %v2147 = vld [vmem:[%s2 + $0x50] sm:$0xf]
  %v2148 = vld [vmem:[%s2 + $0x54] sm:$0xff]
  %v2149 = vld [vmem:[%s2 + $0x5c] sm:$0xf]
  %v2150 = vld [vmem:[%s2 + $0x60] sm:$0xff]
  %v2151 = vld [vmem:[%s2 + $0x68] sm:$0xf]
  %v2152 = vld [vmem:[%s2 + $0x6c] sm:$0xff]
  %v2153 = vld [vmem:[%s2 + $0x74] sm:$0xf]
  %v2154 = vld [vmem:[%s2 + $0x78] sm:$0xff]
  %v2155 = vld [vmem:[%s2 + $0x80] sm:$0xf]
  %v2156 = vld [vmem:[%s2 + $0x84] sm:$0xff]
  %v2157 = vld [vmem:[%s2 + $0x8c] sm:$0xf]
  %v2158 = vld [vmem:[%s2 + $0x90] sm:$0xff]
  %v2159 = vld [vmem:[%s2 + $0x98] sm:$0xf]
  %v2160 = vld [vmem:[%s2 + $0x9c] sm:$0xff]
  %v2161 = vld [vmem:[%s2 + $0xa4] sm:$0xf]
  %v2162 = vld [vmem:[%s2 + $0xa8] sm:$0xff]
  %v2163 = vld [vmem:[%s2 + $0xb0] sm:$0xf]
  %v2164 = vld [vmem:[%s2 + $0xb4] sm:$0xff]
  %v2165 = vld [vmem:[%s2 + $0xbc] sm:$0xf]
  %v2198 = vunpack.c.l.b16 %v2134
  %v2199 = vunpack.c.h.b16 %v2134
  %v2200 = vunpack.c.l.b16 %v2135
  %v2201 = vunpack.c.l.b16 %v2136
  %v2202 = vunpack.c.h.b16 %v2136
  %v2203 = vunpack.c.l.b16 %v2137
  %v2204 = vunpack.c.l.b16 %v2138
  %v2205 = vunpack.c.h.b16 %v2138
  %v2206 = vunpack.c.l.b16 %v2139
  %v2207 = vunpack.c.l.b16 %v2140
  %v2208 = vunpack.c.h.b16 %v2140
  %v2209 = vunpack.c.l.b16 %v2141
  %v2210 = vunpack.c.l.b16 %v2142
  %v2211 = vunpack.c.h.b16 %v2142
  %v2212 = vunpack.c.l.b16 %v2143
  %v2213 = vunpack.c.l.b16 %v2144
  %v2214 = vunpack.c.h.b16 %v2144
  %v2215 = vunpack.c.l.b16 %v2145
  %v2216 = vunpack.c.l.b16 %v2146
  %v2217 = vunpack.c.h.b16 %v2146
  %v2218 = vunpack.c.l.b16 %v2147
  %v2219 = vunpack.c.l.b16 %v2148
  %v2220 = vunpack.c.h.b16 %v2148
  %v2221 = vunpack.c.l.b16 %v2149
  %v2222 = vunpack.c.l.b16 %v2150
  %v2223 = vunpack.c.h.b16 %v2150
  %v2224 = vunpack.c.l.b16 %v2151
  %v2225 = vunpack.c.l.b16 %v2152
  %v2226 = vunpack.c.h.b16 %v2152
  %v2227 = vunpack.c.l.b16 %v2153
  %v2228 = vunpack.c.l.b16 %v2154
  %v2229 = vunpack.c.h.b16 %v2154
  %v2230 = vunpack.c.l.b16 %v2155
  %v2231 = vunpack.c.l.b16 %v2156
  %v2232 = vunpack.c.h.b16 %v2156
  %v2233 = vunpack.c.l.b16 %v2157
  %v2234 = vunpack.c.l.b16 %v2158
  %v2235 = vunpack.c.h.b16 %v2158
  %v2236 = vunpack.c.l.b16 %v2159
  %v2237 = vunpack.c.l.b16 %v2160
  %v2238 = vunpack.c.h.b16 %v2160
  %v2239 = vunpack.c.l.b16 %v2161
  %v2240 = vunpack.c.l.b16 %v2162
  %v2241 = vunpack.c.h.b16 %v2162
  %v2242 = vunpack.c.l.b16 %v2163
  %v2243 = vunpack.c.l.b16 %v2164
  %v2244 = vunpack.c.h.b16 %v2164
  %v2245 = vunpack.c.l.b16 %v2165
  %v2246 = vpack.c.b16 %v2201, %v2198
  %v2247 = vpack.c.b16 %v2202, %v2199
  %v2248 = vpack.c.b16 %v2203, %v2200
  %v2249 = vpack.c.b16 %v2207, %v2204
  %v2250 = vpack.c.b16 %v2208, %v2205
  %v2251 = vpack.c.b16 %v2209, %v2206
  %v2252 = vpack.c.b16 %v2213, %v2210
  %v2253 = vpack.c.b16 %v2214, %v2211
  %v2254 = vpack.c.b16 %v2215, %v2212
  %v2255 = vpack.c.b16 %v2219, %v2216
  %v2256 = vpack.c.b16 %v2220, %v2217
  %v2257 = vpack.c.b16 %v2221, %v2218
  %v2258 = vpack.c.b16 %v2225, %v2222
  %v2259 = vpack.c.b16 %v2226, %v2223
  %v2260 = vpack.c.b16 %v2227, %v2224
  %v2261 = vpack.c.b16 %v2231, %v2228
  %v2262 = vpack.c.b16 %v2232, %v2229
  %v2263 = vpack.c.b16 %v2233, %v2230
  %v2264 = vpack.c.b16 %v2237, %v2234
  %v2265 = vpack.c.b16 %v2238, %v2235
  %v2266 = vpack.c.b16 %v2239, %v2236
  %v2267 = vpack.c.b16 %v2243, %v2240
  %v2268 = vpack.c.b16 %v2244, %v2241
  %v2269 = vpack.c.b16 %v2245, %v2242
  %2294 = vmatprep.subr.bf16.mxu0 %v2247
  %2295 = vmatpush1.bf16.msra.mxu0 %v2246
  %2296 = vmatprep.subr.bf16.mxu0 %v2250
  %2297 = vmatpush1.bf16.msra.mxu0 %v2249
  %2298 = vmatprep.subr.bf16.mxu0 %v2253
  %2299 = vmatpush1.bf16.msra.mxu0 %v2252
  %2300 = vmatprep.subr.bf16.mxu0 %v2256
  %2301 = vmatpush1.bf16.msra.mxu0 %v2255
  %2302 = vmatprep.subr.bf16.mxu0 %v2259
  %2303 = vmatpush1.bf16.msra.mxu0 %v2258
  %2304 = vmatprep.subr.bf16.mxu0 %v2262
  %2305 = vmatpush1.bf16.msra.mxu0 %v2261
  %2306 = vmatprep.subr.bf16.mxu0 %v2265
  %2307 = vmatpush1.bf16.msra.mxu0 %v2264
  %2308 = vmatprep.subr.bf16.mxu0 %v2268
  %2309 = vmatpush1.bf16.msra.mxu0 %v2267
  %2310 = vmatprep.subr.bf16.mxu0 0
  %2311 = vmatpush1.bf16.msra.mxu0 0
  %2312 = vmatprep.subr.bf16.mxu0 0
  %2313 = vmatpush1.bf16.msra.mxu0 0
  %2314 = vmatprep.subr.bf16.mxu0 0
  %2315 = vmatpush1.bf16.msra.mxu0 0
  %2316 = vmatprep.subr.bf16.mxu0 0
  %2317 = vmatpush1.bf16.msra.mxu0 0
  %2318 = vmatprep.subr.bf16.mxu0 0
  %2319 = vmatpush1.bf16.msra.mxu0 0
  %2320 = vmatprep.subr.bf16.mxu0 0
  %2321 = vmatpush1.bf16.msra.mxu0 0
  %2322 = vmatprep.subr.bf16.mxu0 0
  %2323 = vmatpush1.bf16.msra.mxu0 0
  %2324 = vmatprep.subr.bf16.mxu0 0
  %2325 = vmatpush1.bf16.msra.mxu0 0
  %2326 = vmatprep.mubr.bf16.mxu0 0
  %2327 = vmatmul.mubr.bf16.gmra.mrb[0].mxu0 %v2133
  %v2328 = vpop.f32.mrb[0].mxu0
  %v2329 = vadd.f32 0.0, %v2328
  %v2330 = vpop.f32.mrb[0].mxu0
  %v2331 = vadd.f32 0.0, %v2330
  %v2332 = vpop.f32.mrb[0].mxu0
  %v2333 = vpop.f32.mrb[0].mxu0
  %2334 = vdwg.mxu0
  %2335 = vmatprep.subr.bf16.mxu0 0
  %2336 = vmatpush1.bf16.msra.mxu0 %v2248
  %2337 = vmatprep.subr.bf16.mxu0 0
  %2338 = vmatpush1.bf16.msra.mxu0 %v2251
  %2339 = vmatprep.subr.bf16.mxu0 0
  %2340 = vmatpush1.bf16.msra.mxu0 %v2254
  %2341 = vmatprep.subr.bf16.mxu0 0
  %2342 = vmatpush1.bf16.msra.mxu0 %v2257
  %2343 = vmatprep.subr.bf16.mxu0 0
  %2344 = vmatpush1.bf16.msra.mxu0 %v2260
  %2345 = vmatprep.subr.bf16.mxu0 0
  %2346 = vmatpush1.bf16.msra.mxu0 %v2263
  %2347 = vmatprep.subr.bf16.mxu0 0
  %2348 = vmatpush1.bf16.msra.mxu0 %v2266
  %2349 = vmatprep.subr.bf16.mxu0 0
  %2350 = vmatpush1.bf16.msra.mxu0 %v2269
  %2351 = vmatprep.subr.bf16.mxu0 0
  %2352 = vmatpush1.bf16.msra.mxu0 0
  %2353 = vmatprep.subr.bf16.mxu0 0
  %2354 = vmatpush1.bf16.msra.mxu0 0
  %2355 = vmatprep.subr.bf16.mxu0 0
  %2356 = vmatpush1.bf16.msra.mxu0 0
  %2357 = vmatprep.subr.bf16.mxu0 0
  %2358 = vmatpush1.bf16.msra.mxu0 0
  %2359 = vmatprep.subr.bf16.mxu0 0
  %2360 = vmatpush1.bf16.msra.mxu0 0
  %2361 = vmatprep.subr.bf16.mxu0 0
  %2362 = vmatpush1.bf16.msra.mxu0 0
  %2363 = vmatprep.subr.bf16.mxu0 0
  %2364 = vmatpush1.bf16.msra.mxu0 0
  %2365 = vmatprep.subr.bf16.mxu0 0
  %2366 = vmatpush1.bf16.msra.mxu0 0
  %2367 = vmatprep.mubr.bf16.mxu0 0
  %2368 = vmatmul.mubr.bf16.gmra.mrb[0].mxu0 %v2133
  %v2369 = vpop.f32.mrb[0].mxu0
  %v2370 = vadd.f32 0.0, %v2369
  %v2371 = vpop.f32.mrb[0].mxu0
  %v2372 = vpop.f32.mrb[0].mxu0
  %v2373 = vpop.f32.mrb[0].mxu0
  %2374 = vdwg.mxu0
  %v2375 = vadd.f32 %v2087, %v2329
  %v2376 = vxor.u32 %v2375, 2147483648
  %v2377 = vmul.f32 %v2376, 1.442695
  %v2378 = vpow.pop %v2377
  %v2379 = vadd.f32 %v2378, 1.0
  %v2380 = vrcp.pop %v2379
  %v2381 = vmul.f32 1.0, %v2380
  %v2382 = vadd.f32 %v2089, %v2331
  %v2383 = vxor.u32 %v2382, 2147483648
  %v2384 = vmul.f32 %v2383, 1.442695
  %v2385 = vpow.pop %v2384
  %v2386 = vadd.f32 %v2385, 1.0
  %v2387 = vrcp.pop %v2386
  %v2388 = vmul.f32 1.0, %v2387
  %v2389 = vadd.f32 %v2370, %v831
  %v2390 = vmul.f32 %v2381, %v2389
  %v2391 = vadd.f32 %v2128, %v2390
  %v2392 = vtanh.pop %v2391
  %v2393 = vsub.f32 1.0, %v2388
  %v2394 = vmul.f32 %v2393, %v2392
  %v2395 = vmul.f32 %v2388, %v1890
  %v2396 = vadd.f32 %v2394, %v2395
  %2397 = vst [vmem:[%s311] sm:$0xff] %v2396
  %s2398 = scalar_lea.vmem %s0, 72
  %v2399 = vld [vmem:[%s2398] sm:$0xff]
  %v2400 = vld [vmem:[%s2398 + $0x8] sm:$0xff]
  %v2401 = vld [vmem:[%s2398 + $0x10] sm:$0xff]
  %v2402 = vld [vmem:[#allocation2] sm:$0xff]
  %v2403 = vpack.c.bf16 %v2402, %v2402
  %v2404 = vld [vmem:[%s1] sm:$0xff]
  %v2405 = vld [vmem:[%s1 + $0x8] sm:$0xf]
  %v2406 = vld [vmem:[%s1 + $0xc] sm:$0xff]
  %v2407 = vld [vmem:[%s1 + $0x14] sm:$0xf]
  %v2408 = vld [vmem:[%s1 + $0x18] sm:$0xff]
  %v2409 = vld [vmem:[%s1 + $0x20] sm:$0xf]
  %v2410 = vld [vmem:[%s1 + $0x24] sm:$0xff]
  %v2411 = vld [vmem:[%s1 + $0x2c] sm:$0xf]
  %v2412 = vld [vmem:[%s1 + $0x30] sm:$0xff]
  %v2413 = vld [vmem:[%s1 + $0x38] sm:$0xf]
  %v2414 = vld [vmem:[%s1 + $0x3c] sm:$0xff]
  %v2415 = vld [vmem:[%s1 + $0x44] sm:$0xf]
  %v2416 = vld [vmem:[%s1 + $0x48] sm:$0xff]
  %v2417 = vld [vmem:[%s1 + $0x50] sm:$0xf]
  %v2418 = vld [vmem:[%s1 + $0x54] sm:$0xff]
  %v2419 = vld [vmem:[%s1 + $0x5c] sm:$0xf]
  %v2420 = vld [vmem:[%s1 + $0x60] sm:$0xff]
  %v2421 = vld [vmem:[%s1 + $0x68] sm:$0xf]
  %v2422 = vld [vmem:[%s1 + $0x6c] sm:$0xff]
  %v2423 = vld [vmem:[%s1 + $0x74] sm:$0xf]
  %v2424 = vld [vmem:[%s1 + $0x78] sm:$0xff]
  %v2425 = vld [vmem:[%s1 + $0x80] sm:$0xf]
  %v2426 = vld [vmem:[%s1 + $0x84] sm:$0xff]
  %v2427 = vld [vmem:[%s1 + $0x8c] sm:$0xf]
  %v2428 = vld [vmem:[%s1 + $0x90] sm:$0xff]
  %v2429 = vld [vmem:[%s1 + $0x98] sm:$0xf]
  %v2430 = vld [vmem:[%s1 + $0x9c] sm:$0xff]
  %v2431 = vld [vmem:[%s1 + $0xa4] sm:$0xf]
  %v2432 = vld [vmem:[%s1 + $0xa8] sm:$0xff]
  %v2433 = vld [vmem:[%s1 + $0xb0] sm:$0xf]
  %v2434 = vld [vmem:[%s1 + $0xb4] sm:$0xff]
  %v2435 = vld [vmem:[%s1 + $0xbc] sm:$0xf]
  %v2468 = vunpack.c.l.b16 %v2404
  %v2469 = vunpack.c.h.b16 %v2404
  %v2470 = vunpack.c.l.b16 %v2405
  %v2471 = vunpack.c.l.b16 %v2406
  %v2472 = vunpack.c.h.b16 %v2406
  %v2473 = vunpack.c.l.b16 %v2407
  %v2474 = vunpack.c.l.b16 %v2408
  %v2475 = vunpack.c.h.b16 %v2408
  %v2476 = vunpack.c.l.b16 %v2409
  %v2477 = vunpack.c.l.b16 %v2410
  %v2478 = vunpack.c.h.b16 %v2410
  %v2479 = vunpack.c.l.b16 %v2411
  %v2480 = vunpack.c.l.b16 %v2412
  %v2481 = vunpack.c.h.b16 %v2412
  %v2482 = vunpack.c.l.b16 %v2413
  %v2483 = vunpack.c.l.b16 %v2414
  %v2484 = vunpack.c.h.b16 %v2414
  %v2485 = vunpack.c.l.b16 %v2415
  %v2486 = vunpack.c.l.b16 %v2416
  %v2487 = vunpack.c.h.b16 %v2416
  %v2488 = vunpack.c.l.b16 %v2417
  %v2489 = vunpack.c.l.b16 %v2418
  %v2490 = vunpack.c.h.b16 %v2418
  %v2491 = vunpack.c.l.b16 %v2419
  %v2492 = vunpack.c.l.b16 %v2420
  %v2493 = vunpack.c.h.b16 %v2420
  %v2494 = vunpack.c.l.b16 %v2421
  %v2495 = vunpack.c.l.b16 %v2422
  %v2496 = vunpack.c.h.b16 %v2422
  %v2497 = vunpack.c.l.b16 %v2423
  %v2498 = vunpack.c.l.b16 %v2424
  %v2499 = vunpack.c.h.b16 %v2424
  %v2500 = vunpack.c.l.b16 %v2425
  %v2501 = vunpack.c.l.b16 %v2426
  %v2502 = vunpack.c.h.b16 %v2426
  %v2503 = vunpack.c.l.b16 %v2427
  %v2504 = vunpack.c.l.b16 %v2428
  %v2505 = vunpack.c.h.b16 %v2428
  %v2506 = vunpack.c.l.b16 %v2429
  %v2507 = vunpack.c.l.b16 %v2430
  %v2508 = vunpack.c.h.b16 %v2430
  %v2509 = vunpack.c.l.b16 %v2431
  %v2510 = vunpack.c.l.b16 %v2432
  %v2511 = vunpack.c.h.b16 %v2432
  %v2512 = vunpack.c.l.b16 %v2433
  %v2513 = vunpack.c.l.b16 %v2434
  %v2514 = vunpack.c.h.b16 %v2434
  %v2515 = vunpack.c.l.b16 %v2435
  %v2516 = vpack.c.b16 %v2471, %v2468
  %v2517 = vpack.c.b16 %v2472, %v2469
  %v2518 = vpack.c.b16 %v2473, %v2470
  %v2519 = vpack.c.b16 %v2477, %v2474
  %v2520 = vpack.c.b16 %v2478, %v2475
  %v2521 = vpack.c.b16 %v2479, %v2476
  %v2522 = vpack.c.b16 %v2483, %v2480
  %v2523 = vpack.c.b16 %v2484, %v2481
  %v2524 = vpack.c.b16 %v2485, %v2482
  %v2525 = vpack.c.b16 %v2489, %v2486
  %v2526 = vpack.c.b16 %v2490, %v2487
  %v2527 = vpack.c.b16 %v2491, %v2488
  %v2528 = vpack.c.b16 %v2495, %v2492
  %v2529 = vpack.c.b16 %v2496, %v2493
  %v2530 = vpack.c.b16 %v2497, %v2494
  %v2531 = vpack.c.b16 %v2501, %v2498
  %v2532 = vpack.c.b16 %v2502, %v2499
  %v2533 = vpack.c.b16 %v2503, %v2500
  %v2534 = vpack.c.b16 %v2507, %v2504
  %v2535 = vpack.c.b16 %v2508, %v2505
  %v2536 = vpack.c.b16 %v2509, %v2506
  %v2537 = vpack.c.b16 %v2513, %v2510
  %v2538 = vpack.c.b16 %v2514, %v2511
  %v2539 = vpack.c.b16 %v2515, %v2512
  %2564 = vmatprep.subr.bf16.mxu0 %v2517
  %2565 = vmatpush1.bf16.msra.mxu0 %v2516
  %2566 = vmatprep.subr.bf16.mxu0 %v2520
  %2567 = vmatpush1.bf16.msra.mxu0 %v2519
  %2568 = vmatprep.subr.bf16.mxu0 %v2523
  %2569 = vmatpush1.bf16.msra.mxu0 %v2522
  %2570 = vmatprep.subr.bf16.mxu0 %v2526
  %2571 = vmatpush1.bf16.msra.mxu0 %v2525
  %2572 = vmatprep.subr.bf16.mxu0 %v2529
  %2573 = vmatpush1.bf16.msra.mxu0 %v2528
  %2574 = vmatprep.subr.bf16.mxu0 %v2532
  %2575 = vmatpush1.bf16.msra.mxu0 %v2531
  %2576 = vmatprep.subr.bf16.mxu0 %v2535
  %2577 = vmatpush1.bf16.msra.mxu0 %v2534
  %2578 = vmatprep.subr.bf16.mxu0 %v2538
  %2579 = vmatpush1.bf16.msra.mxu0 %v2537
  %2580 = vmatprep.subr.bf16.mxu0 0
  %2581 = vmatpush1.bf16.msra.mxu0 0
  %2582 = vmatprep.subr.bf16.mxu0 0
  %2583 = vmatpush1.bf16.msra.mxu0 0
  %2584 = vmatprep.subr.bf16.mxu0 0
  %2585 = vmatpush1.bf16.msra.mxu0 0
  %2586 = vmatprep.subr.bf16.mxu0 0
  %2587 = vmatpush1.bf16.msra.mxu0 0
  %2588 = vmatprep.subr.bf16.mxu0 0
  %2589 = vmatpush1.bf16.msra.mxu0 0
  %2590 = vmatprep.subr.bf16.mxu0 0
  %2591 = vmatpush1.bf16.msra.mxu0 0
  %2592 = vmatprep.subr.bf16.mxu0 0
  %2593 = vmatpush1.bf16.msra.mxu0 0
  %2594 = vmatprep.subr.bf16.mxu0 0
  %2595 = vmatpush1.bf16.msra.mxu0 0
  %2596 = vmatprep.mubr.bf16.mxu0 0
  %2597 = vmatmul.mubr.bf16.gmra.mrb[0].mxu0 %v2403
  %v2598 = vpop.f32.mrb[0].mxu0
  %v2599 = vadd.f32 0.0, %v2598
  %v2600 = vpop.f32.mrb[0].mxu0
  %v2601 = vadd.f32 0.0, %v2600
  %v2602 = vpop.f32.mrb[0].mxu0
  %v2603 = vpop.f32.mrb[0].mxu0
  %2604 = vdwg.mxu0
  %2605 = vmatprep.subr.bf16.mxu0 0
  %2606 = vmatpush1.bf16.msra.mxu0 %v2518
  %2607 = vmatprep.subr.bf16.mxu0 0
  %2608 = vmatpush1.bf16.msra.mxu0 %v2521
  %2609 = vmatprep.subr.bf16.mxu0 0
  %2610 = vmatpush1.bf16.msra.mxu0 %v2524
  %2611 = vmatprep.subr.bf16.mxu0 0
  %2612 = vmatpush1.bf16.msra.mxu0 %v2527
  %2613 = vmatprep.subr.bf16.mxu0 0
  %2614 = vmatpush1.bf16.msra.mxu0 %v2530
  %2615 = vmatprep.subr.bf16.mxu0 0
  %2616 = vmatpush1.bf16.msra.mxu0 %v2533
  %2617 = vmatprep.subr.bf16.mxu0 0
  %2618 = vmatpush1.bf16.msra.mxu0 %v2536
  %2619 = vmatprep.subr.bf16.mxu0 0
  %2620 = vmatpush1.bf16.msra.mxu0 %v2539
  %2621 = vmatprep.subr.bf16.mxu0 0
  %2622 = vmatpush1.bf16.msra.mxu0 0
  %2623 = vmatprep.subr.bf16.mxu0 0
  %2624 = vmatpush1.bf16.msra.mxu0 0
  %2625 = vmatprep.subr.bf16.mxu0 0
  %2626 = vmatpush1.bf16.msra.mxu0 0
  %2627 = vmatprep.subr.bf16.mxu0 0
  %2628 = vmatpush1.bf16.msra.mxu0 0
  %2629 = vmatprep.subr.bf16.mxu0 0
  %2630 = vmatpush1.bf16.msra.mxu0 0
  %2631 = vmatprep.subr.bf16.mxu0 0
  %2632 = vmatpush1.bf16.msra.mxu0 0
  %2633 = vmatprep.subr.bf16.mxu0 0
  %2634 = vmatpush1.bf16.msra.mxu0 0
  %2635 = vmatprep.subr.bf16.mxu0 0
  %2636 = vmatpush1.bf16.msra.mxu0 0
  %2637 = vmatprep.mubr.bf16.mxu0 0
  %2638 = vmatmul.mubr.bf16.gmra.mrb[0].mxu0 %v2403
  %v2639 = vpop.f32.mrb[0].mxu0
  %v2640 = vadd.f32 0.0, %v2639
  %v2641 = vpop.f32.mrb[0].mxu0
  %v2642 = vpop.f32.mrb[0].mxu0
  %v2643 = vpop.f32.mrb[0].mxu0
  %2644 = vdwg.mxu0
  %v2645 = vadd.f32 %v2399, %v2599
  %v2646 = vxor.u32 %v2645, 2147483648
  %v2647 = vmul.f32 %v2646, 1.442695
  %v2648 = vpow.pop %v2647
  %v2649 = vadd.f32 %v2648, 1.0
  %v2650 = vrcp.pop %v2649
  %v2651 = vmul.f32 1.0, %v2650
  %v2652 = vadd.f32 %v2400, %v2601
  %v2653 = vxor.u32 %v2652, 2147483648
  %v2654 = vmul.f32 %v2653, 1.442695
  %v2655 = vpow.pop %v2654
  %v2656 = vadd.f32 %v2655, 1.0
  %v2657 = vrcp.pop %v2656
  %v2658 = vmul.f32 1.0, %v2657
  %v2659 = vadd.f32 %v2640, %v300
  %v2660 = vmul.f32 %v2651, %v2659
  %v2661 = vadd.f32 %v2401, %v2660
  %v2662 = vtanh.pop %v2661
  %v2663 = vsub.f32 1.0, %v2658
  %v2664 = vmul.f32 %v2663, %v2662
  %v2665 = vmul.f32 %v2658, %v2402
  %v2666 = vadd.f32 %v2664, %v2665
  %2667 = vst [vmem:[#allocation2] sm:$0xff] %v2666
  %v2668 = vld [vmem:[%s311] sm:$0xff]
  %v2669 = vpack.c.bf16 %v2666, %v2666
  %v2670 = vld [vmem:[%s5] sm:$0xff]
  %v2671 = vld [vmem:[%s5 + $0x8] sm:$0xf]
  %v2672 = vld [vmem:[%s5 + $0xc] sm:$0xff]
  %v2673 = vld [vmem:[%s5 + $0x14] sm:$0xf]
  %v2674 = vld [vmem:[%s5 + $0x18] sm:$0xff]
  %v2675 = vld [vmem:[%s5 + $0x20] sm:$0xf]
  %v2676 = vld [vmem:[%s5 + $0x24] sm:$0xff]
  %v2677 = vld [vmem:[%s5 + $0x2c] sm:$0xf]
  %v2678 = vld [vmem:[%s5 + $0x30] sm:$0xff]
  %v2679 = vld [vmem:[%s5 + $0x38] sm:$0xf]
  %v2680 = vld [vmem:[%s5 + $0x3c] sm:$0xff]
  %v2681 = vld [vmem:[%s5 + $0x44] sm:$0xf]
  %v2682 = vld [vmem:[%s5 + $0x48] sm:$0xff]
  %v2683 = vld [vmem:[%s5 + $0x50] sm:$0xf]
  %v2684 = vld [vmem:[%s5 + $0x54] sm:$0xff]
  %v2685 = vld [vmem:[%s5 + $0x5c] sm:$0xf]
  %v2686 = vld [vmem:[%s5 + $0x60] sm:$0xff]
  %v2687 = vld [vmem:[%s5 + $0x68] sm:$0xf]
  %v2688 = vld [vmem:[%s5 + $0x6c] sm:$0xff]
  %v2689 = vld [vmem:[%s5 + $0x74] sm:$0xf]
  %v2690 = vld [vmem:[%s5 + $0x78] sm:$0xff]
  %v2691 = vld [vmem:[%s5 + $0x80] sm:$0xf]
  %v2692 = vld [vmem:[%s5 + $0x84] sm:$0xff]
  %v2693 = vld [vmem:[%s5 + $0x8c] sm:$0xf]
  %v2694 = vld [vmem:[%s5 + $0x90] sm:$0xff]
  %v2695 = vld [vmem:[%s5 + $0x98] sm:$0xf]
  %v2696 = vld [vmem:[%s5 + $0x9c] sm:$0xff]
  %v2697 = vld [vmem:[%s5 + $0xa4] sm:$0xf]
  %v2698 = vld [vmem:[%s5 + $0xa8] sm:$0xff]
  %v2699 = vld [vmem:[%s5 + $0xb0] sm:$0xf]
  %v2700 = vld [vmem:[%s5 + $0xb4] sm:$0xff]
  %v2701 = vld [vmem:[%s5 + $0xbc] sm:$0xf]
  %v2734 = vunpack.c.l.b16 %v2670
  %v2735 = vunpack.c.h.b16 %v2670
  %v2736 = vunpack.c.l.b16 %v2671
  %v2737 = vunpack.c.l.b16 %v2672
  %v2738 = vunpack.c.h.b16 %v2672
  %v2739 = vunpack.c.l.b16 %v2673
  %v2740 = vunpack.c.l.b16 %v2674
  %v2741 = vunpack.c.h.b16 %v2674
  %v2742 = vunpack.c.l.b16 %v2675
  %v2743 = vunpack.c.l.b16 %v2676
  %v2744 = vunpack.c.h.b16 %v2676
  %v2745 = vunpack.c.l.b16 %v2677
  %v2746 = vunpack.c.l.b16 %v2678
  %v2747 = vunpack.c.h.b16 %v2678
  %v2748 = vunpack.c.l.b16 %v2679
  %v2749 = vunpack.c.l.b16 %v2680
  %v2750 = vunpack.c.h.b16 %v2680
  %v2751 = vunpack.c.l.b16 %v2681
  %v2752 = vunpack.c.l.b16 %v2682
  %v2753 = vunpack.c.h.b16 %v2682
  %v2754 = vunpack.c.l.b16 %v2683
  %v2755 = vunpack.c.l.b16 %v2684
  %v2756 = vunpack.c.h.b16 %v2684
  %v2757 = vunpack.c.l.b16 %v2685
  %v2758 = vunpack.c.l.b16 %v2686
  %v2759 = vunpack.c.h.b16 %v2686
  %v2760 = vunpack.c.l.b16 %v2687
  %v2761 = vunpack.c.l.b16 %v2688
  %v2762 = vunpack.c.h.b16 %v2688
  %v2763 = vunpack.c.l.b16 %v2689
  %v2764 = vunpack.c.l.b16 %v2690
  %v2765 = vunpack.c.h.b16 %v2690
  %v2766 = vunpack.c.l.b16 %v2691
  %v2767 = vunpack.c.l.b16 %v2692
  %v2768 = vunpack.c.h.b16 %v2692
  %v2769 = vunpack.c.l.b16 %v2693
  %v2770 = vunpack.c.l.b16 %v2694
  %v2771 = vunpack.c.h.b16 %v2694
  %v2772 = vunpack.c.l.b16 %v2695
  %v2773 = vunpack.c.l.b16 %v2696
  %v2774 = vunpack.c.h.b16 %v2696
  %v2775 = vunpack.c.l.b16 %v2697
  %v2776 = vunpack.c.l.b16 %v2698
  %v2777 = vunpack.c.h.b16 %v2698
  %v2778 = vunpack.c.l.b16 %v2699
  %v2779 = vunpack.c.l.b16 %v2700
  %v2780 = vunpack.c.h.b16 %v2700
  %v2781 = vunpack.c.l.b16 %v2701
  %v2782 = vpack.c.b16 %v2737, %v2734
  %v2783 = vpack.c.b16 %v2738, %v2735
  %v2784 = vpack.c.b16 %v2739, %v2736
  %v2785 = vpack.c.b16 %v2743, %v2740
  %v2786 = vpack.c.b16 %v2744, %v2741
  %v2787 = vpack.c.b16 %v2745, %v2742
  %v2788 = vpack.c.b16 %v2749, %v2746
  %v2789 = vpack.c.b16 %v2750, %v2747
  %v2790 = vpack.c.b16 %v2751, %v2748
  %v2791 = vpack.c.b16 %v2755, %v2752
  %v2792 = vpack.c.b16 %v2756, %v2753
  %v2793 = vpack.c.b16 %v2757, %v2754
  %v2794 = vpack.c.b16 %v2761, %v2758
  %v2795 = vpack.c.b16 %v2762, %v2759
  %v2796 = vpack.c.b16 %v2763, %v2760
  %v2797 = vpack.c.b16 %v2767, %v2764
  %v2798 = vpack.c.b16 %v2768, %v2765
  %v2799 = vpack.c.b16 %v2769, %v2766
  %v2800 = vpack.c.b16 %v2773, %v2770
  %v2801 = vpack.c.b16 %v2774, %v2771
  %v2802 = vpack.c.b16 %v2775, %v2772
  %v2803 = vpack.c.b16 %v2779, %v2776
  %v2804 = vpack.c.b16 %v2780, %v2777
  %v2805 = vpack.c.b16 %v2781, %v2778
  %2830 = vmatprep.subr.bf16.mxu0 %v2783
  %2831 = vmatpush1.bf16.msra.mxu0 %v2782
  %2832 = vmatprep.subr.bf16.mxu0 %v2786
  %2833 = vmatpush1.bf16.msra.mxu0 %v2785
  %2834 = vmatprep.subr.bf16.mxu0 %v2789
  %2835 = vmatpush1.bf16.msra.mxu0 %v2788
  %2836 = vmatprep.subr.bf16.mxu0 %v2792
  %2837 = vmatpush1.bf16.msra.mxu0 %v2791
  %2838 = vmatprep.subr.bf16.mxu0 %v2795
  %2839 = vmatpush1.bf16.msra.mxu0 %v2794
  %2840 = vmatprep.subr.bf16.mxu0 %v2798
  %2841 = vmatpush1.bf16.msra.mxu0 %v2797
  %2842 = vmatprep.subr.bf16.mxu0 %v2801
  %2843 = vmatpush1.bf16.msra.mxu0 %v2800
  %2844 = vmatprep.subr.bf16.mxu0 %v2804
  %2845 = vmatpush1.bf16.msra.mxu0 %v2803
  %2846 = vmatprep.subr.bf16.mxu0 0
  %2847 = vmatpush1.bf16.msra.mxu0 0
  %2848 = vmatprep.subr.bf16.mxu0 0
  %2849 = vmatpush1.bf16.msra.mxu0 0
  %2850 = vmatprep.subr.bf16.mxu0 0
  %2851 = vmatpush1.bf16.msra.mxu0 0
  %2852 = vmatprep.subr.bf16.mxu0 0
  %2853 = vmatpush1.bf16.msra.mxu0 0
  %2854 = vmatprep.subr.bf16.mxu0 0
  %2855 = vmatpush1.bf16.msra.mxu0 0
  %2856 = vmatprep.subr.bf16.mxu0 0
  %2857 = vmatpush1.bf16.msra.mxu0 0
  %2858 = vmatprep.subr.bf16.mxu0 0
  %2859 = vmatpush1.bf16.msra.mxu0 0
  %2860 = vmatprep.subr.bf16.mxu0 0
  %2861 = vmatpush1.bf16.msra.mxu0 0
  %2862 = vmatprep.mubr.bf16.mxu0 0
  %2863 = vmatmul.mubr.bf16.gmra.mrb[0].mxu0 %v2669
  %v2864 = vpop.f32.mrb[0].mxu0
  %v2865 = vadd.f32 %v350, %v2864
  %v2866 = vpop.f32.mrb[0].mxu0
  %v2867 = vadd.f32 %v354, %v2866
  %v2868 = vpop.f32.mrb[0].mxu0
  %v2869 = vpop.f32.mrb[0].mxu0
  %2870 = vdwg.mxu0
  %2871 = vmatprep.subr.bf16.mxu0 0
  %2872 = vmatpush1.bf16.msra.mxu0 %v2784
  %2873 = vmatprep.subr.bf16.mxu0 0
  %2874 = vmatpush1.bf16.msra.mxu0 %v2787
  %2875 = vmatprep.subr.bf16.mxu0 0
  %2876 = vmatpush1.bf16.msra.mxu0 %v2790
  %2877 = vmatprep.subr.bf16.mxu0 0
  %2878 = vmatpush1.bf16.msra.mxu0 %v2793
  %2879 = vmatprep.subr.bf16.mxu0 0
  %2880 = vmatpush1.bf16.msra.mxu0 %v2796
  %2881 = vmatprep.subr.bf16.mxu0 0
  %2882 = vmatpush1.bf16.msra.mxu0 %v2799
  %2883 = vmatprep.subr.bf16.mxu0 0
  %2884 = vmatpush1.bf16.msra.mxu0 %v2802
  %2885 = vmatprep.subr.bf16.mxu0 0
  %2886 = vmatpush1.bf16.msra.mxu0 %v2805
  %2887 = vmatprep.subr.bf16.mxu0 0
  %2888 = vmatpush1.bf16.msra.mxu0 0
  %2889 = vmatprep.subr.bf16.mxu0 0
  %2890 = vmatpush1.bf16.msra.mxu0 0
  %2891 = vmatprep.subr.bf16.mxu0 0
  %2892 = vmatpush1.bf16.msra.mxu0 0
  %2893 = vmatprep.subr.bf16.mxu0 0
  %2894 = vmatpush1.bf16.msra.mxu0 0
  %2895 = vmatprep.subr.bf16.mxu0 0
  %2896 = vmatpush1.bf16.msra.mxu0 0
  %2897 = vmatprep.subr.bf16.mxu0 0
  %2898 = vmatpush1.bf16.msra.mxu0 0
  %2899 = vmatprep.subr.bf16.mxu0 0
  %2900 = vmatpush1.bf16.msra.mxu0 0
  %2901 = vmatprep.subr.bf16.mxu0 0
  %2902 = vmatpush1.bf16.msra.mxu0 0
  %2903 = vmatprep.mubr.bf16.mxu0 0
  %2904 = vmatmul.mubr.bf16.gmra.mrb[0].mxu0 %v2669
  %v2905 = vpop.f32.mrb[0].mxu0
  %v2906 = vadd.f32 %v358, %v2905
  %v2907 = vpop.f32.mrb[0].mxu0
  %v2908 = vpop.f32.mrb[0].mxu0
  %v2909 = vpop.f32.mrb[0].mxu0
  %2910 = vdwg.mxu0
  %v2911 = vpack.c.bf16 %v2668, %v2668
  %v2912 = vld [vmem:[%s2] sm:$0xff]
  %v2913 = vld [vmem:[%s2 + $0x8] sm:$0xf]
  %v2914 = vld [vmem:[%s2 + $0xc] sm:$0xff]
  %v2915 = vld [vmem:[%s2 + $0x14] sm:$0xf]
  %v2916 = vld [vmem:[%s2 + $0x18] sm:$0xff]
  %v2917 = vld [vmem:[%s2 + $0x20] sm:$0xf]
  %v2918 = vld [vmem:[%s2 + $0x24] sm:$0xff]
  %v2919 = vld [vmem:[%s2 + $0x2c] sm:$0xf]
  %v2920 = vld [vmem:[%s2 + $0x30] sm:$0xff]
  %v2921 = vld [vmem:[%s2 + $0x38] sm:$0xf]
  %v2922 = vld [vmem:[%s2 + $0x3c] sm:$0xff]
  %v2923 = vld [vmem:[%s2 + $0x44] sm:$0xf]
  %v2924 = vld [vmem:[%s2 + $0x48] sm:$0xff]
  %v2925 = vld [vmem:[%s2 + $0x50] sm:$0xf]
  %v2926 = vld [vmem:[%s2 + $0x54] sm:$0xff]
  %v2927 = vld [vmem:[%s2 + $0x5c] sm:$0xf]
  %v2928 = vld [vmem:[%s2 + $0x60] sm:$0xff]
  %v2929 = vld [vmem:[%s2 + $0x68] sm:$0xf]
  %v2930 = vld [vmem:[%s2 + $0x6c] sm:$0xff]
  %v2931 = vld [vmem:[%s2 + $0x74] sm:$0xf]
  %v2932 = vld [vmem:[%s2 + $0x78] sm:$0xff]
  %v2933 = vld [vmem:[%s2 + $0x80] sm:$0xf]
  %v2934 = vld [vmem:[%s2 + $0x84] sm:$0xff]
  %v2935 = vld [vmem:[%s2 + $0x8c] sm:$0xf]
  %v2936 = vld [vmem:[%s2 + $0x90] sm:$0xff]
  %v2937 = vld [vmem:[%s2 + $0x98] sm:$0xf]
  %v2938 = vld [vmem:[%s2 + $0x9c] sm:$0xff]
  %v2939 = vld [vmem:[%s2 + $0xa4] sm:$0xf]
  %v2940 = vld [vmem:[%s2 + $0xa8] sm:$0xff]
  %v2941 = vld [vmem:[%s2 + $0xb0] sm:$0xf]
  %v2942 = vld [vmem:[%s2 + $0xb4] sm:$0xff]
  %v2943 = vld [vmem:[%s2 + $0xbc] sm:$0xf]
  %v2976 = vunpack.c.l.b16 %v2912
  %v2977 = vunpack.c.h.b16 %v2912
  %v2978 = vunpack.c.l.b16 %v2913
  %v2979 = vunpack.c.l.b16 %v2914
  %v2980 = vunpack.c.h.b16 %v2914
  %v2981 = vunpack.c.l.b16 %v2915
  %v2982 = vunpack.c.l.b16 %v2916
  %v2983 = vunpack.c.h.b16 %v2916
  %v2984 = vunpack.c.l.b16 %v2917
  %v2985 = vunpack.c.l.b16 %v2918
  %v2986 = vunpack.c.h.b16 %v2918
  %v2987 = vunpack.c.l.b16 %v2919
  %v2988 = vunpack.c.l.b16 %v2920
  %v2989 = vunpack.c.h.b16 %v2920
  %v2990 = vunpack.c.l.b16 %v2921
  %v2991 = vunpack.c.l.b16 %v2922
  %v2992 = vunpack.c.h.b16 %v2922
  %v2993 = vunpack.c.l.b16 %v2923
  %v2994 = vunpack.c.l.b16 %v2924
  %v2995 = vunpack.c.h.b16 %v2924
  %v2996 = vunpack.c.l.b16 %v2925
  %v2997 = vunpack.c.l.b16 %v2926
  %v2998 = vunpack.c.h.b16 %v2926
  %v2999 = vunpack.c.l.b16 %v2927
  %v3000 = vunpack.c.l.b16 %v2928
  %v3001 = vunpack.c.h.b16 %v2928
  %v3002 = vunpack.c.l.b16 %v2929
  %v3003 = vunpack.c.l.b16 %v2930
  %v3004 = vunpack.c.h.b16 %v2930
  %v3005 = vunpack.c.l.b16 %v2931
  %v3006 = vunpack.c.l.b16 %v2932
  %v3007 = vunpack.c.h.b16 %v2932
  %v3008 = vunpack.c.l.b16 %v2933
  %v3009 = vunpack.c.l.b16 %v2934
  %v3010 = vunpack.c.h.b16 %v2934
  %v3011 = vunpack.c.l.b16 %v2935
  %v3012 = vunpack.c.l.b16 %v2936
  %v3013 = vunpack.c.h.b16 %v2936
  %v3014 = vunpack.c.l.b16 %v2937
  %v3015 = vunpack.c.l.b16 %v2938
  %v3016 = vunpack.c.h.b16 %v2938
  %v3017 = vunpack.c.l.b16 %v2939
  %v3018 = vunpack.c.l.b16 %v2940
  %v3019 = vunpack.c.h.b16 %v2940
  %v3020 = vunpack.c.l.b16 %v2941
  %v3021 = vunpack.c.l.b16 %v2942
  %v3022 = vunpack.c.h.b16 %v2942
  %v3023 = vunpack.c.l.b16 %v2943
  %v3024 = vpack.c.b16 %v2979, %v2976
  %v3025 = vpack.c.b16 %v2980, %v2977
  %v3026 = vpack.c.b16 %v2981, %v2978
  %v3027 = vpack.c.b16 %v2985, %v2982
  %v3028 = vpack.c.b16 %v2986, %v2983
  %v3029 = vpack.c.b16 %v2987, %v2984
  %v3030 = vpack.c.b16 %v2991, %v2988
  %v3031 = vpack.c.b16 %v2992, %v2989
  %v3032 = vpack.c.b16 %v2993, %v2990
  %v3033 = vpack.c.b16 %v2997, %v2994
  %v3034 = vpack.c.b16 %v2998, %v2995
  %v3035 = vpack.c.b16 %v2999, %v2996
  %v3036 = vpack.c.b16 %v3003, %v3000
  %v3037 = vpack.c.b16 %v3004, %v3001
  %v3038 = vpack.c.b16 %v3005, %v3002
  %v3039 = vpack.c.b16 %v3009, %v3006
  %v3040 = vpack.c.b16 %v3010, %v3007
  %v3041 = vpack.c.b16 %v3011, %v3008
  %v3042 = vpack.c.b16 %v3015, %v3012
  %v3043 = vpack.c.b16 %v3016, %v3013
  %v3044 = vpack.c.b16 %v3017, %v3014
  %v3045 = vpack.c.b16 %v3021, %v3018
  %v3046 = vpack.c.b16 %v3022, %v3019
  %v3047 = vpack.c.b16 %v3023, %v3020
  %3072 = vmatprep.subr.bf16.mxu0 %v3025
  %3073 = vmatpush1.bf16.msra.mxu0 %v3024
  %3074 = vmatprep.subr.bf16.mxu0 %v3028
  %3075 = vmatpush1.bf16.msra.mxu0 %v3027
  %3076 = vmatprep.subr.bf16.mxu0 %v3031
  %3077 = vmatpush1.bf16.msra.mxu0 %v3030
  %3078 = vmatprep.subr.bf16.mxu0 %v3034
  %3079 = vmatpush1.bf16.msra.mxu0 %v3033
  %3080 = vmatprep.subr.bf16.mxu0 %v3037
  %3081 = vmatpush1.bf16.msra.mxu0 %v3036
  %3082 = vmatprep.subr.bf16.mxu0 %v3040
  %3083 = vmatpush1.bf16.msra.mxu0 %v3039
  %3084 = vmatprep.subr.bf16.mxu0 %v3043
  %3085 = vmatpush1.bf16.msra.mxu0 %v3042
  %3086 = vmatprep.subr.bf16.mxu0 %v3046
  %3087 = vmatpush1.bf16.msra.mxu0 %v3045
  %3088 = vmatprep.subr.bf16.mxu0 0
  %3089 = vmatpush1.bf16.msra.mxu0 0
  %3090 = vmatprep.subr.bf16.mxu0 0
  %3091 = vmatpush1.bf16.msra.mxu0 0
  %3092 = vmatprep.subr.bf16.mxu0 0
  %3093 = vmatpush1.bf16.msra.mxu0 0
  %3094 = vmatprep.subr.bf16.mxu0 0
  %3095 = vmatpush1.bf16.msra.mxu0 0
  %3096 = vmatprep.subr.bf16.mxu0 0
  %3097 = vmatpush1.bf16.msra.mxu0 0
  %3098 = vmatprep.subr.bf16.mxu0 0
  %3099 = vmatpush1.bf16.msra.mxu0 0
  %3100 = vmatprep.subr.bf16.mxu0 0
  %3101 = vmatpush1.bf16.msra.mxu0 0
  %3102 = vmatprep.subr.bf16.mxu0 0
  %3103 = vmatpush1.bf16.msra.mxu0 0
  %3104 = vmatprep.mubr.bf16.mxu0 0
  %3105 = vmatmul.mubr.bf16.gmra.mrb[0].mxu0 %v2911
  %v3106 = vpop.f32.mrb[0].mxu0
  %v3107 = vadd.f32 0.0, %v3106
  %v3108 = vpop.f32.mrb[0].mxu0
  %v3109 = vadd.f32 0.0, %v3108
  %v3110 = vpop.f32.mrb[0].mxu0
  %v3111 = vpop.f32.mrb[0].mxu0
  %3112 = vdwg.mxu0
  %3113 = vmatprep.subr.bf16.mxu0 0
  %3114 = vmatpush1.bf16.msra.mxu0 %v3026
  %3115 = vmatprep.subr.bf16.mxu0 0
  %3116 = vmatpush1.bf16.msra.mxu0 %v3029
  %3117 = vmatprep.subr.bf16.mxu0 0
  %3118 = vmatpush1.bf16.msra.mxu0 %v3032
  %3119 = vmatprep.subr.bf16.mxu0 0
  %3120 = vmatpush1.bf16.msra.mxu0 %v3035
  %3121 = vmatprep.subr.bf16.mxu0 0
  %3122 = vmatpush1.bf16.msra.mxu0 %v3038
  %3123 = vmatprep.subr.bf16.mxu0 0
  %3124 = vmatpush1.bf16.msra.mxu0 %v3041
  %3125 = vmatprep.subr.bf16.mxu0 0
  %3126 = vmatpush1.bf16.msra.mxu0 %v3044
  %3127 = vmatprep.subr.bf16.mxu0 0
  %3128 = vmatpush1.bf16.msra.mxu0 %v3047
  %3129 = vmatprep.subr.bf16.mxu0 0
  %3130 = vmatpush1.bf16.msra.mxu0 0
  %3131 = vmatprep.subr.bf16.mxu0 0
  %3132 = vmatpush1.bf16.msra.mxu0 0
  %3133 = vmatprep.subr.bf16.mxu0 0
  %3134 = vmatpush1.bf16.msra.mxu0 0
  %3135 = vmatprep.subr.bf16.mxu0 0
  %3136 = vmatpush1.bf16.msra.mxu0 0
  %3137 = vmatprep.subr.bf16.mxu0 0
  %3138 = vmatpush1.bf16.msra.mxu0 0
  %3139 = vmatprep.subr.bf16.mxu0 0
  %3140 = vmatpush1.bf16.msra.mxu0 0
  %3141 = vmatprep.subr.bf16.mxu0 0
  %3142 = vmatpush1.bf16.msra.mxu0 0
  %3143 = vmatprep.subr.bf16.mxu0 0
  %3144 = vmatpush1.bf16.msra.mxu0 0
  %3145 = vmatprep.mubr.bf16.mxu0 0
  %3146 = vmatmul.mubr.bf16.gmra.mrb[0].mxu0 %v2911
  %v3147 = vpop.f32.mrb[0].mxu0
  %v3148 = vadd.f32 0.0, %v3147
  %v3149 = vpop.f32.mrb[0].mxu0
  %v3150 = vpop.f32.mrb[0].mxu0
  %v3151 = vpop.f32.mrb[0].mxu0
  %3152 = vdwg.mxu0
  %v3153 = vadd.f32 %v2865, %v3107
  %v3154 = vxor.u32 %v3153, 2147483648
  %v3155 = vmul.f32 %v3154, 1.442695
  %v3156 = vpow.pop %v3155
  %v3157 = vadd.f32 %v3156, 1.0
  %v3158 = vrcp.pop %v3157
  %v3159 = vmul.f32 1.0, %v3158
  %v3160 = vadd.f32 %v2867, %v3109
  %v3161 = vxor.u32 %v3160, 2147483648
  %v3162 = vmul.f32 %v3161, 1.442695
  %v3163 = vpow.pop %v3162
  %v3164 = vadd.f32 %v3163, 1.0
  %v3165 = vrcp.pop %v3164
  %v3166 = vmul.f32 1.0, %v3165
  %v3167 = vadd.f32 %v3148, %v831
  %v3168 = vmul.f32 %v3159, %v3167
  %v3169 = vadd.f32 %v2906, %v3168
  %v3170 = vtanh.pop %v3169
  %v3171 = vsub.f32 1.0, %v3166
  %v3172 = vmul.f32 %v3171, %v3170
  %v3173 = vmul.f32 %v3166, %v2668
  %v3174 = vadd.f32 %v3172, %v3173
  %3175 = vst [vmem:[%s311] sm:$0xff] %v3174
  %s3176 = scalar_lea.vmem %s0, 96
  %v3177 = vld [vmem:[%s3176] sm:$0xff]
  %v3178 = vld [vmem:[%s3176 + $0x8] sm:$0xff]
  %v3179 = vld [vmem:[%s3176 + $0x10] sm:$0xff]
  %v3180 = vld [vmem:[#allocation2] sm:$0xff]
  %v3181 = vpack.c.bf16 %v3180, %v3180
  %v3182 = vld [vmem:[%s1] sm:$0xff]
  %v3183 = vld [vmem:[%s1 + $0x8] sm:$0xf]
  %v3184 = vld [vmem:[%s1 + $0xc] sm:$0xff]
  %v3185 = vld [vmem:[%s1 + $0x14] sm:$0xf]
  %v3186 = vld [vmem:[%s1 + $0x18] sm:$0xff]
  %v3187 = vld [vmem:[%s1 + $0x20] sm:$0xf]
  %v3188 = vld [vmem:[%s1 + $0x24] sm:$0xff]
  %v3189 = vld [vmem:[%s1 + $0x2c] sm:$0xf]
  %v3190 = vld [vmem:[%s1 + $0x30] sm:$0xff]
  %v3191 = vld [vmem:[%s1 + $0x38] sm:$0xf]
  %v3192 = vld [vmem:[%s1 + $0x3c] sm:$0xff]
  %v3193 = vld [vmem:[%s1 + $0x44] sm:$0xf]
  %v3194 = vld [vmem:[%s1 + $0x48] sm:$0xff]
  %v3195 = vld [vmem:[%s1 + $0x50] sm:$0xf]
  %v3196 = vld [vmem:[%s1 + $0x54] sm:$0xff]
  %v3197 = vld [vmem:[%s1 + $0x5c] sm:$0xf]
  %v3198 = vld [vmem:[%s1 + $0x60] sm:$0xff]
  %v3199 = vld [vmem:[%s1 + $0x68] sm:$0xf]
  %v3200 = vld [vmem:[%s1 + $0x6c] sm:$0xff]
  %v3201 = vld [vmem:[%s1 + $0x74] sm:$0xf]
  %v3202 = vld [vmem:[%s1 + $0x78] sm:$0xff]
  %v3203 = vld [vmem:[%s1 + $0x80] sm:$0xf]
  %v3204 = vld [vmem:[%s1 + $0x84] sm:$0xff]
  %v3205 = vld [vmem:[%s1 + $0x8c] sm:$0xf]
  %v3206 = vld [vmem:[%s1 + $0x90] sm:$0xff]
  %v3207 = vld [vmem:[%s1 + $0x98] sm:$0xf]
  %v3208 = vld [vmem:[%s1 + $0x9c] sm:$0xff]
  %v3209 = vld [vmem:[%s1 + $0xa4] sm:$0xf]
  %v3210 = vld [vmem:[%s1 + $0xa8] sm:$0xff]
  %v3211 = vld [vmem:[%s1 + $0xb0] sm:$0xf]
  %v3212 = vld [vmem:[%s1 + $0xb4] sm:$0xff]
  %v3213 = vld [vmem:[%s1 + $0xbc] sm:$0xf]
  %v3246 = vunpack.c.l.b16 %v3182
  %v3247 = vunpack.c.h.b16 %v3182
  %v3248 = vunpack.c.l.b16 %v3183
  %v3249 = vunpack.c.l.b16 %v3184
  %v3250 = vunpack.c.h.b16 %v3184
  %v3251 = vunpack.c.l.b16 %v3185
  %v3252 = vunpack.c.l.b16 %v3186
  %v3253 = vunpack.c.h.b16 %v3186
  %v3254 = vunpack.c.l.b16 %v3187
  %v3255 = vunpack.c.l.b16 %v3188
  %v3256 = vunpack.c.h.b16 %v3188
  %v3257 = vunpack.c.l.b16 %v3189
  %v3258 = vunpack.c.l.b16 %v3190
  %v3259 = vunpack.c.h.b16 %v3190
  %v3260 = vunpack.c.l.b16 %v3191
  %v3261 = vunpack.c.l.b16 %v3192
  %v3262 = vunpack.c.h.b16 %v3192
  %v3263 = vunpack.c.l.b16 %v3193
  %v3264 = vunpack.c.l.b16 %v3194
  %v3265 = vunpack.c.h.b16 %v3194
  %v3266 = vunpack.c.l.b16 %v3195
  %v3267 = vunpack.c.l.b16 %v3196
  %v3268 = vunpack.c.h.b16 %v3196
  %v3269 = vunpack.c.l.b16 %v3197
  %v3270 = vunpack.c.l.b16 %v3198
  %v3271 = vunpack.c.h.b16 %v3198
  %v3272 = vunpack.c.l.b16 %v3199
  %v3273 = vunpack.c.l.b16 %v3200
  %v3274 = vunpack.c.h.b16 %v3200
  %v3275 = vunpack.c.l.b16 %v3201
  %v3276 = vunpack.c.l.b16 %v3202
  %v3277 = vunpack.c.h.b16 %v3202
  %v3278 = vunpack.c.l.b16 %v3203
  %v3279 = vunpack.c.l.b16 %v3204
  %v3280 = vunpack.c.h.b16 %v3204
  %v3281 = vunpack.c.l.b16 %v3205
  %v3282 = vunpack.c.l.b16 %v3206
  %v3283 = vunpack.c.h.b16 %v3206
  %v3284 = vunpack.c.l.b16 %v3207
  %v3285 = vunpack.c.l.b16 %v3208
  %v3286 = vunpack.c.h.b16 %v3208
  %v3287 = vunpack.c.l.b16 %v3209
  %v3288 = vunpack.c.l.b16 %v3210
  %v3289 = vunpack.c.h.b16 %v3210
  %v3290 = vunpack.c.l.b16 %v3211
  %v3291 = vunpack.c.l.b16 %v3212
  %v3292 = vunpack.c.h.b16 %v3212
  %v3293 = vunpack.c.l.b16 %v3213
  %v3294 = vpack.c.b16 %v3249, %v3246
  %v3295 = vpack.c.b16 %v3250, %v3247
  %v3296 = vpack.c.b16 %v3251, %v3248
  %v3297 = vpack.c.b16 %v3255, %v3252
  %v3298 = vpack.c.b16 %v3256, %v3253
  %v3299 = vpack.c.b16 %v3257, %v3254
  %v3300 = vpack.c.b16 %v3261, %v3258
  %v3301 = vpack.c.b16 %v3262, %v3259
  %v3302 = vpack.c.b16 %v3263, %v3260
  %v3303 = vpack.c.b16 %v3267, %v3264
  %v3304 = vpack.c.b16 %v3268, %v3265
  %v3305 = vpack.c.b16 %v3269, %v3266
  %v3306 = vpack.c.b16 %v3273, %v3270
  %v3307 = vpack.c.b16 %v3274, %v3271
  %v3308 = vpack.c.b16 %v3275, %v3272
  %v3309 = vpack.c.b16 %v3279, %v3276
  %v3310 = vpack.c.b16 %v3280, %v3277
  %v3311 = vpack.c.b16 %v3281, %v3278
  %v3312 = vpack.c.b16 %v3285, %v3282
  %v3313 = vpack.c.b16 %v3286, %v3283
  %v3314 = vpack.c.b16 %v3287, %v3284
  %v3315 = vpack.c.b16 %v3291, %v3288
  %v3316 = vpack.c.b16 %v3292, %v3289
  %v3317 = vpack.c.b16 %v3293, %v3290
  %3342 = vmatprep.subr.bf16.mxu0 %v3295
  %3343 = vmatpush1.bf16.msra.mxu0 %v3294
  %3344 = vmatprep.subr.bf16.mxu0 %v3298
  %3345 = vmatpush1.bf16.msra.mxu0 %v3297
  %3346 = vmatprep.subr.bf16.mxu0 %v3301
  %3347 = vmatpush1.bf16.msra.mxu0 %v3300
  %3348 = vmatprep.subr.bf16.mxu0 %v3304
  %3349 = vmatpush1.bf16.msra.mxu0 %v3303
  %3350 = vmatprep.subr.bf16.mxu0 %v3307
  %3351 = vmatpush1.bf16.msra.mxu0 %v3306
  %3352 = vmatprep.subr.bf16.mxu0 %v3310
  %3353 = vmatpush1.bf16.msra.mxu0 %v3309
  %3354 = vmatprep.subr.bf16.mxu0 %v3313
  %3355 = vmatpush1.bf16.msra.mxu0 %v3312
  %3356 = vmatprep.subr.bf16.mxu0 %v3316
  %3357 = vmatpush1.bf16.msra.mxu0 %v3315
  %3358 = vmatprep.subr.bf16.mxu0 0
  %3359 = vmatpush1.bf16.msra.mxu0 0
  %3360 = vmatprep.subr.bf16.mxu0 0
  %3361 = vmatpush1.bf16.msra.mxu0 0
  %3362 = vmatprep.subr.bf16.mxu0 0
  %3363 = vmatpush1.bf16.msra.mxu0 0
  %3364 = vmatprep.subr.bf16.mxu0 0
  %3365 = vmatpush1.bf16.msra.mxu0 0
  %3366 = vmatprep.subr.bf16.mxu0 0
  %3367 = vmatpush1.bf16.msra.mxu0 0
  %3368 = vmatprep.subr.bf16.mxu0 0
  %3369 = vmatpush1.bf16.msra.mxu0 0
  %3370 = vmatprep.subr.bf16.mxu0 0
  %3371 = vmatpush1.bf16.msra.mxu0 0
  %3372 = vmatprep.subr.bf16.mxu0 0
  %3373 = vmatpush1.bf16.msra.mxu0 0
  %3374 = vmatprep.mubr.bf16.mxu0 0
  %3375 = vmatmul.mubr.bf16.gmra.mrb[0].mxu0 %v3181
  %v3376 = vpop.f32.mrb[0].mxu0
  %v3377 = vadd.f32 0.0, %v3376
  %v3378 = vpop.f32.mrb[0].mxu0
  %v3379 = vadd.f32 0.0, %v3378
  %v3380 = vpop.f32.mrb[0].mxu0
  %v3381 = vpop.f32.mrb[0].mxu0
  %3382 = vdwg.mxu0
  %3383 = vmatprep.subr.bf16.mxu0 0
  %3384 = vmatpush1.bf16.msra.mxu0 %v3296
  %3385 = vmatprep.subr.bf16.mxu0 0
  %3386 = vmatpush1.bf16.msra.mxu0 %v3299
  %3387 = vmatprep.subr.bf16.mxu0 0
  %3388 = vmatpush1.bf16.msra.mxu0 %v3302
  %3389 = vmatprep.subr.bf16.mxu0 0
  %3390 = vmatpush1.bf16.msra.mxu0 %v3305
  %3391 = vmatprep.subr.bf16.mxu0 0
  %3392 = vmatpush1.bf16.msra.mxu0 %v3308
  %3393 = vmatprep.subr.bf16.mxu0 0
  %3394 = vmatpush1.bf16.msra.mxu0 %v3311
  %3395 = vmatprep.subr.bf16.mxu0 0
  %3396 = vmatpush1.bf16.msra.mxu0 %v3314
  %3397 = vmatprep.subr.bf16.mxu0 0
  %3398 = vmatpush1.bf16.msra.mxu0 %v3317
  %3399 = vmatprep.subr.bf16.mxu0 0
  %3400 = vmatpush1.bf16.msra.mxu0 0
  %3401 = vmatprep.subr.bf16.mxu0 0
  %3402 = vmatpush1.bf16.msra.mxu0 0
  %3403 = vmatprep.subr.bf16.mxu0 0
  %3404 = vmatpush1.bf16.msra.mxu0 0
  %3405 = vmatprep.subr.bf16.mxu0 0
  %3406 = vmatpush1.bf16.msra.mxu0 0
  %3407 = vmatprep.subr.bf16.mxu0 0
  %3408 = vmatpush1.bf16.msra.mxu0 0
  %3409 = vmatprep.subr.bf16.mxu0 0
  %3410 = vmatpush1.bf16.msra.mxu0 0
  %3411 = vmatprep.subr.bf16.mxu0 0
  %3412 = vmatpush1.bf16.msra.mxu0 0
  %3413 = vmatprep.subr.bf16.mxu0 0
  %3414 = vmatpush1.bf16.msra.mxu0 0
  %3415 = vmatprep.mubr.bf16.mxu0 0
  %3416 = vmatmul.mubr.bf16.gmra.mrb[0].mxu0 %v3181
  %v3417 = vpop.f32.mrb[0].mxu0
  %v3418 = vadd.f32 0.0, %v3417
  %v3419 = vpop.f32.mrb[0].mxu0
  %v3420 = vpop.f32.mrb[0].mxu0
  %v3421 = vpop.f32.mrb[0].mxu0
  %3422 = vdwg.mxu0
  %v3423 = vadd.f32 %v3177, %v3377
  %v3424 = vxor.u32 %v3423, 2147483648
  %v3425 = vmul.f32 %v3424, 1.442695
  %v3426 = vpow.pop %v3425
  %v3427 = vadd.f32 %v3426, 1.0
  %v3428 = vrcp.pop %v3427
  %v3429 = vmul.f32 1.0, %v3428
  %v3430 = vadd.f32 %v3178, %v3379
  %v3431 = vxor.u32 %v3430, 2147483648
  %v3432 = vmul.f32 %v3431, 1.442695
  %v3433 = vpow.pop %v3432
  %v3434 = vadd.f32 %v3433, 1.0
  %v3435 = vrcp.pop %v3434
  %v3436 = vmul.f32 1.0, %v3435
  %v3437 = vadd.f32 %v3418, %v300
  %v3438 = vmul.f32 %v3429, %v3437
  %v3439 = vadd.f32 %v3179, %v3438
  %v3440 = vtanh.pop %v3439
  %v3441 = vsub.f32 1.0, %v3436
  %v3442 = vmul.f32 %v3441, %v3440
  %v3443 = vmul.f32 %v3436, %v3180
  %v3444 = vadd.f32 %v3442, %v3443
  %3445 = vst [vmem:[#allocation2] sm:$0xff] %v3444
  %v3446 = vld [vmem:[%s311] sm:$0xff]
  %v3447 = vpack.c.bf16 %v3444, %v3444
  %v3448 = vld [vmem:[%s5] sm:$0xff]
  %v3449 = vld [vmem:[%s5 + $0x8] sm:$0xf]
  %v3450 = vld [vmem:[%s5 + $0xc] sm:$0xff]
  %v3451 = vld [vmem:[%s5 + $0x14] sm:$0xf]
  %v3452 = vld [vmem:[%s5 + $0x18] sm:$0xff]
  %v3453 = vld [vmem:[%s5 + $0x20] sm:$0xf]
  %v3454 = vld [vmem:[%s5 + $0x24] sm:$0xff]
  %v3455 = vld [vmem:[%s5 + $0x2c] sm:$0xf]
  %v3456 = vld [vmem:[%s5 + $0x30] sm:$0xff]
  %v3457 = vld [vmem:[%s5 + $0x38] sm:$0xf]
  %v3458 = vld [vmem:[%s5 + $0x3c] sm:$0xff]
  %v3459 = vld [vmem:[%s5 + $0x44] sm:$0xf]
  %v3460 = vld [vmem:[%s5 + $0x48] sm:$0xff]
  %v3461 = vld [vmem:[%s5 + $0x50] sm:$0xf]
  %v3462 = vld [vmem:[%s5 + $0x54] sm:$0xff]
  %v3463 = vld [vmem:[%s5 + $0x5c] sm:$0xf]
  %v3464 = vld [vmem:[%s5 + $0x60] sm:$0xff]
  %v3465 = vld [vmem:[%s5 + $0x68] sm:$0xf]
  %v3466 = vld [vmem:[%s5 + $0x6c] sm:$0xff]
  %v3467 = vld [vmem:[%s5 + $0x74] sm:$0xf]
  %v3468 = vld [vmem:[%s5 + $0x78] sm:$0xff]
  %v3469 = vld [vmem:[%s5 + $0x80] sm:$0xf]
  %v3470 = vld [vmem:[%s5 + $0x84] sm:$0xff]
  %v3471 = vld [vmem:[%s5 + $0x8c] sm:$0xf]
  %v3472 = vld [vmem:[%s5 + $0x90] sm:$0xff]
  %v3473 = vld [vmem:[%s5 + $0x98] sm:$0xf]
  %v3474 = vld [vmem:[%s5 + $0x9c] sm:$0xff]
  %v3475 = vld [vmem:[%s5 + $0xa4] sm:$0xf]
  %v3476 = vld [vmem:[%s5 + $0xa8] sm:$0xff]
  %v3477 = vld [vmem:[%s5 + $0xb0] sm:$0xf]
  %v3478 = vld [vmem:[%s5 + $0xb4] sm:$0xff]
  %v3479 = vld [vmem:[%s5 + $0xbc] sm:$0xf]
  %v3512 = vunpack.c.l.b16 %v3448
  %v3513 = vunpack.c.h.b16 %v3448
  %v3514 = vunpack.c.l.b16 %v3449
  %v3515 = vunpack.c.l.b16 %v3450
  %v3516 = vunpack.c.h.b16 %v3450
  %v3517 = vunpack.c.l.b16 %v3451
  %v3518 = vunpack.c.l.b16 %v3452
  %v3519 = vunpack.c.h.b16 %v3452
  %v3520 = vunpack.c.l.b16 %v3453
  %v3521 = vunpack.c.l.b16 %v3454
  %v3522 = vunpack.c.h.b16 %v3454
  %v3523 = vunpack.c.l.b16 %v3455
  %v3524 = vunpack.c.l.b16 %v3456
  %v3525 = vunpack.c.h.b16 %v3456
  %v3526 = vunpack.c.l.b16 %v3457
  %v3527 = vunpack.c.l.b16 %v3458
  %v3528 = vunpack.c.h.b16 %v3458
  %v3529 = vunpack.c.l.b16 %v3459
  %v3530 = vunpack.c.l.b16 %v3460
  %v3531 = vunpack.c.h.b16 %v3460
  %v3532 = vunpack.c.l.b16 %v3461
  %v3533 = vunpack.c.l.b16 %v3462
  %v3534 = vunpack.c.h.b16 %v3462
  %v3535 = vunpack.c.l.b16 %v3463
  %v3536 = vunpack.c.l.b16 %v3464
  %v3537 = vunpack.c.h.b16 %v3464
  %v3538 = vunpack.c.l.b16 %v3465
  %v3539 = vunpack.c.l.b16 %v3466
  %v3540 = vunpack.c.h.b16 %v3466
  %v3541 = vunpack.c.l.b16 %v3467
  %v3542 = vunpack.c.l.b16 %v3468
  %v3543 = vunpack.c.h.b16 %v3468
  %v3544 = vunpack.c.l.b16 %v3469
  %v3545 = vunpack.c.l.b16 %v3470
  %v3546 = vunpack.c.h.b16 %v3470
  %v3547 = vunpack.c.l.b16 %v3471
  %v3548 = vunpack.c.l.b16 %v3472
  %v3549 = vunpack.c.h.b16 %v3472
  %v3550 = vunpack.c.l.b16 %v3473
  %v3551 = vunpack.c.l.b16 %v3474
  %v3552 = vunpack.c.h.b16 %v3474
  %v3553 = vunpack.c.l.b16 %v3475
  %v3554 = vunpack.c.l.b16 %v3476
  %v3555 = vunpack.c.h.b16 %v3476
  %v3556 = vunpack.c.l.b16 %v3477
  %v3557 = vunpack.c.l.b16 %v3478
  %v3558 = vunpack.c.h.b16 %v3478
  %v3559 = vunpack.c.l.b16 %v3479
  %v3560 = vpack.c.b16 %v3515, %v3512
  %v3561 = vpack.c.b16 %v3516, %v3513
  %v3562 = vpack.c.b16 %v3517, %v3514
  %v3563 = vpack.c.b16 %v3521, %v3518
  %v3564 = vpack.c.b16 %v3522, %v3519
  %v3565 = vpack.c.b16 %v3523, %v3520
  %v3566 = vpack.c.b16 %v3527, %v3524
  %v3567 = vpack.c.b16 %v3528, %v3525
  %v3568 = vpack.c.b16 %v3529, %v3526
  %v3569 = vpack.c.b16 %v3533, %v3530
  %v3570 = vpack.c.b16 %v3534, %v3531
  %v3571 = vpack.c.b16 %v3535, %v3532
  %v3572 = vpack.c.b16 %v3539, %v3536
  %v3573 = vpack.c.b16 %v3540, %v3537
  %v3574 = vpack.c.b16 %v3541, %v3538
  %v3575 = vpack.c.b16 %v3545, %v3542
  %v3576 = vpack.c.b16 %v3546, %v3543
  %v3577 = vpack.c.b16 %v3547, %v3544
  %v3578 = vpack.c.b16 %v3551, %v3548
  %v3579 = vpack.c.b16 %v3552, %v3549
  %v3580 = vpack.c.b16 %v3553, %v3550
  %v3581 = vpack.c.b16 %v3557, %v3554
  %v3582 = vpack.c.b16 %v3558, %v3555
  %v3583 = vpack.c.b16 %v3559, %v3556
  %3608 = vmatprep.subr.bf16.mxu0 %v3561
  %3609 = vmatpush1.bf16.msra.mxu0 %v3560
  %3610 = vmatprep.subr.bf16.mxu0 %v3564
  %3611 = vmatpush1.bf16.msra.mxu0 %v3563
  %3612 = vmatprep.subr.bf16.mxu0 %v3567
  %3613 = vmatpush1.bf16.msra.mxu0 %v3566
  %3614 = vmatprep.subr.bf16.mxu0 %v3570
  %3615 = vmatpush1.bf16.msra.mxu0 %v3569
  %3616 = vmatprep.subr.bf16.mxu0 %v3573
  %3617 = vmatpush1.bf16.msra.mxu0 %v3572
  %3618 = vmatprep.subr.bf16.mxu0 %v3576
  %3619 = vmatpush1.bf16.msra.mxu0 %v3575
  %3620 = vmatprep.subr.bf16.mxu0 %v3579
  %3621 = vmatpush1.bf16.msra.mxu0 %v3578
  %3622 = vmatprep.subr.bf16.mxu0 %v3582
  %3623 = vmatpush1.bf16.msra.mxu0 %v3581
  %3624 = vmatprep.subr.bf16.mxu0 0
  %3625 = vmatpush1.bf16.msra.mxu0 0
  %3626 = vmatprep.subr.bf16.mxu0 0
  %3627 = vmatpush1.bf16.msra.mxu0 0
  %3628 = vmatprep.subr.bf16.mxu0 0
  %3629 = vmatpush1.bf16.msra.mxu0 0
  %3630 = vmatprep.subr.bf16.mxu0 0
  %3631 = vmatpush1.bf16.msra.mxu0 0
  %3632 = vmatprep.subr.bf16.mxu0 0
  %3633 = vmatpush1.bf16.msra.mxu0 0
  %3634 = vmatprep.subr.bf16.mxu0 0
  %3635 = vmatpush1.bf16.msra.mxu0 0
  %3636 = vmatprep.subr.bf16.mxu0 0
  %3637 = vmatpush1.bf16.msra.mxu0 0
  %3638 = vmatprep.subr.bf16.mxu0 0
  %3639 = vmatpush1.bf16.msra.mxu0 0
  %3640 = vmatprep.mubr.bf16.mxu0 0
  %3641 = vmatmul.mubr.bf16.gmra.mrb[0].mxu0 %v3447
  %v3642 = vpop.f32.mrb[0].mxu0
  %v3643 = vadd.f32 %v350, %v3642
  %v3644 = vpop.f32.mrb[0].mxu0
  %v3645 = vadd.f32 %v354, %v3644
  %v3646 = vpop.f32.mrb[0].mxu0
  %v3647 = vpop.f32.mrb[0].mxu0
  %3648 = vdwg.mxu0
  %3649 = vmatprep.subr.bf16.mxu0 0
  %3650 = vmatpush1.bf16.msra.mxu0 %v3562
  %3651 = vmatprep.subr.bf16.mxu0 0
  %3652 = vmatpush1.bf16.msra.mxu0 %v3565
  %3653 = vmatprep.subr.bf16.mxu0 0
  %3654 = vmatpush1.bf16.msra.mxu0 %v3568
  %3655 = vmatprep.subr.bf16.mxu0 0
  %3656 = vmatpush1.bf16.msra.mxu0 %v3571
  %3657 = vmatprep.subr.bf16.mxu0 0
  %3658 = vmatpush1.bf16.msra.mxu0 %v3574
  %3659 = vmatprep.subr.bf16.mxu0 0
  %3660 = vmatpush1.bf16.msra.mxu0 %v3577
  %3661 = vmatprep.subr.bf16.mxu0 0
  %3662 = vmatpush1.bf16.msra.mxu0 %v3580
  %3663 = vmatprep.subr.bf16.mxu0 0
  %3664 = vmatpush1.bf16.msra.mxu0 %v3583
  %3665 = vmatprep.subr.bf16.mxu0 0
  %3666 = vmatpush1.bf16.msra.mxu0 0
  %3667 = vmatprep.subr.bf16.mxu0 0
  %3668 = vmatpush1.bf16.msra.mxu0 0
  %3669 = vmatprep.subr.bf16.mxu0 0
  %3670 = vmatpush1.bf16.msra.mxu0 0
  %3671 = vmatprep.subr.bf16.mxu0 0
  %3672 = vmatpush1.bf16.msra.mxu0 0
  %3673 = vmatprep.subr.bf16.mxu0 0
  %3674 = vmatpush1.bf16.msra.mxu0 0
  %3675 = vmatprep.subr.bf16.mxu0 0
  %3676 = vmatpush1.bf16.msra.mxu0 0
  %3677 = vmatprep.subr.bf16.mxu0 0
  %3678 = vmatpush1.bf16.msra.mxu0 0
  %3679 = vmatprep.subr.bf16.mxu0 0
  %3680 = vmatpush1.bf16.msra.mxu0 0
  %3681 = vmatprep.mubr.bf16.mxu0 0
  %3682 = vmatmul.mubr.bf16.gmra.mrb[0].mxu0 %v3447
  %v3683 = vpop.f32.mrb[0].mxu0
  %v3684 = vadd.f32 %v358, %v3683
  %v3685 = vpop.f32.mrb[0].mxu0
  %v3686 = vpop.f32.mrb[0].mxu0
  %v3687 = vpop.f32.mrb[0].mxu0
  %3688 = vdwg.mxu0
  %v3689 = vpack.c.bf16 %v3446, %v3446
  %v3690 = vld [vmem:[%s2] sm:$0xff]
  %v3691 = vld [vmem:[%s2 + $0x8] sm:$0xf]
  %v3692 = vld [vmem:[%s2 + $0xc] sm:$0xff]
  %v3693 = vld [vmem:[%s2 + $0x14] sm:$0xf]
  %v3694 = vld [vmem:[%s2 + $0x18] sm:$0xff]
  %v3695 = vld [vmem:[%s2 + $0x20] sm:$0xf]
  %v3696 = vld [vmem:[%s2 + $0x24] sm:$0xff]
  %v3697 = vld [vmem:[%s2 + $0x2c] sm:$0xf]
  %v3698 = vld [vmem:[%s2 + $0x30] sm:$0xff]
  %v3699 = vld [vmem:[%s2 + $0x38] sm:$0xf]
  %v3700 = vld [vmem:[%s2 + $0x3c] sm:$0xff]
  %v3701 = vld [vmem:[%s2 + $0x44] sm:$0xf]
  %v3702 = vld [vmem:[%s2 + $0x48] sm:$0xff]
  %v3703 = vld [vmem:[%s2 + $0x50] sm:$0xf]
  %v3704 = vld [vmem:[%s2 + $0x54] sm:$0xff]
  %v3705 = vld [vmem:[%s2 + $0x5c] sm:$0xf]
  %v3706 = vld [vmem:[%s2 + $0x60] sm:$0xff]
  %v3707 = vld [vmem:[%s2 + $0x68] sm:$0xf]
  %v3708 = vld [vmem:[%s2 + $0x6c] sm:$0xff]
  %v3709 = vld [vmem:[%s2 + $0x74] sm:$0xf]
  %v3710 = vld [vmem:[%s2 + $0x78] sm:$0xff]
  %v3711 = vld [vmem:[%s2 + $0x80] sm:$0xf]
  %v3712 = vld [vmem:[%s2 + $0x84] sm:$0xff]
  %v3713 = vld [vmem:[%s2 + $0x8c] sm:$0xf]
  %v3714 = vld [vmem:[%s2 + $0x90] sm:$0xff]
  %v3715 = vld [vmem:[%s2 + $0x98] sm:$0xf]
  %v3716 = vld [vmem:[%s2 + $0x9c] sm:$0xff]
  %v3717 = vld [vmem:[%s2 + $0xa4] sm:$0xf]
  %v3718 = vld [vmem:[%s2 + $0xa8] sm:$0xff]
  %v3719 = vld [vmem:[%s2 + $0xb0] sm:$0xf]
  %v3720 = vld [vmem:[%s2 + $0xb4] sm:$0xff]
  %v3721 = vld [vmem:[%s2 + $0xbc] sm:$0xf]
  %v3754 = vunpack.c.l.b16 %v3690
  %v3755 = vunpack.c.h.b16 %v3690
  %v3756 = vunpack.c.l.b16 %v3691
  %v3757 = vunpack.c.l.b16 %v3692
  %v3758 = vunpack.c.h.b16 %v3692
  %v3759 = vunpack.c.l.b16 %v3693
  %v3760 = vunpack.c.l.b16 %v3694
  %v3761 = vunpack.c.h.b16 %v3694
  %v3762 = vunpack.c.l.b16 %v3695
  %v3763 = vunpack.c.l.b16 %v3696
  %v3764 = vunpack.c.h.b16 %v3696
  %v3765 = vunpack.c.l.b16 %v3697
  %v3766 = vunpack.c.l.b16 %v3698
  %v3767 = vunpack.c.h.b16 %v3698
  %v3768 = vunpack.c.l.b16 %v3699
  %v3769 = vunpack.c.l.b16 %v3700
  %v3770 = vunpack.c.h.b16 %v3700
  %v3771 = vunpack.c.l.b16 %v3701
  %v3772 = vunpack.c.l.b16 %v3702
  %v3773 = vunpack.c.h.b16 %v3702
  %v3774 = vunpack.c.l.b16 %v3703
  %v3775 = vunpack.c.l.b16 %v3704
  %v3776 = vunpack.c.h.b16 %v3704
  %v3777 = vunpack.c.l.b16 %v3705
  %v3778 = vunpack.c.l.b16 %v3706
  %v3779 = vunpack.c.h.b16 %v3706
  %v3780 = vunpack.c.l.b16 %v3707
  %v3781 = vunpack.c.l.b16 %v3708
  %v3782 = vunpack.c.h.b16 %v3708
  %v3783 = vunpack.c.l.b16 %v3709
  %v3784 = vunpack.c.l.b16 %v3710
  %v3785 = vunpack.c.h.b16 %v3710
  %v3786 = vunpack.c.l.b16 %v3711
  %v3787 = vunpack.c.l.b16 %v3712
  %v3788 = vunpack.c.h.b16 %v3712
  %v3789 = vunpack.c.l.b16 %v3713
  %v3790 = vunpack.c.l.b16 %v3714
  %v3791 = vunpack.c.h.b16 %v3714
  %v3792 = vunpack.c.l.b16 %v3715
  %v3793 = vunpack.c.l.b16 %v3716
  %v3794 = vunpack.c.h.b16 %v3716
  %v3795 = vunpack.c.l.b16 %v3717
  %v3796 = vunpack.c.l.b16 %v3718
  %v3797 = vunpack.c.h.b16 %v3718
  %v3798 = vunpack.c.l.b16 %v3719
  %v3799 = vunpack.c.l.b16 %v3720
  %v3800 = vunpack.c.h.b16 %v3720
  %v3801 = vunpack.c.l.b16 %v3721
  %v3802 = vpack.c.b16 %v3757, %v3754
  %v3803 = vpack.c.b16 %v3758, %v3755
  %v3804 = vpack.c.b16 %v3759, %v3756
  %v3805 = vpack.c.b16 %v3763, %v3760
  %v3806 = vpack.c.b16 %v3764, %v3761
  %v3807 = vpack.c.b16 %v3765, %v3762
  %v3808 = vpack.c.b16 %v3769, %v3766
  %v3809 = vpack.c.b16 %v3770, %v3767
  %v3810 = vpack.c.b16 %v3771, %v3768
  %v3811 = vpack.c.b16 %v3775, %v3772
  %v3812 = vpack.c.b16 %v3776, %v3773
  %v3813 = vpack.c.b16 %v3777, %v3774
  %v3814 = vpack.c.b16 %v3781, %v3778
  %v3815 = vpack.c.b16 %v3782, %v3779
  %v3816 = vpack.c.b16 %v3783, %v3780
  %v3817 = vpack.c.b16 %v3787, %v3784
  %v3818 = vpack.c.b16 %v3788, %v3785
  %v3819 = vpack.c.b16 %v3789, %v3786
  %v3820 = vpack.c.b16 %v3793, %v3790
  %v3821 = vpack.c.b16 %v3794, %v3791
  %v3822 = vpack.c.b16 %v3795, %v3792
  %v3823 = vpack.c.b16 %v3799, %v3796
  %v3824 = vpack.c.b16 %v3800, %v3797
  %v3825 = vpack.c.b16 %v3801, %v3798
  %3850 = vmatprep.subr.bf16.mxu0 %v3803
  %3851 = vmatpush1.bf16.msra.mxu0 %v3802
  %3852 = vmatprep.subr.bf16.mxu0 %v3806
  %3853 = vmatpush1.bf16.msra.mxu0 %v3805
  %3854 = vmatprep.subr.bf16.mxu0 %v3809
  %3855 = vmatpush1.bf16.msra.mxu0 %v3808
  %3856 = vmatprep.subr.bf16.mxu0 %v3812
  %3857 = vmatpush1.bf16.msra.mxu0 %v3811
  %3858 = vmatprep.subr.bf16.mxu0 %v3815
  %3859 = vmatpush1.bf16.msra.mxu0 %v3814
  %3860 = vmatprep.subr.bf16.mxu0 %v3818
  %3861 = vmatpush1.bf16.msra.mxu0 %v3817
  %3862 = vmatprep.subr.bf16.mxu0 %v3821
  %3863 = vmatpush1.bf16.msra.mxu0 %v3820
  %3864 = vmatprep.subr.bf16.mxu0 %v3824
  %3865 = vmatpush1.bf16.msra.mxu0 %v3823
  %3866 = vmatprep.subr.bf16.mxu0 0
  %3867 = vmatpush1.bf16.msra.mxu0 0
  %3868 = vmatprep.subr.bf16.mxu0 0
  %3869 = vmatpush1.bf16.msra.mxu0 0
  %3870 = vmatprep.subr.bf16.mxu0 0
  %3871 = vmatpush1.bf16.msra.mxu0 0
  %3872 = vmatprep.subr.bf16.mxu0 0
  %3873 = vmatpush1.bf16.msra.mxu0 0
  %3874 = vmatprep.subr.bf16.mxu0 0
  %3875 = vmatpush1.bf16.msra.mxu0 0
  %3876 = vmatprep.subr.bf16.mxu0 0
  %3877 = vmatpush1.bf16.msra.mxu0 0
  %3878 = vmatprep.subr.bf16.mxu0 0
  %3879 = vmatpush1.bf16.msra.mxu0 0
  %3880 = vmatprep.subr.bf16.mxu0 0
  %3881 = vmatpush1.bf16.msra.mxu0 0
  %3882 = vmatprep.mubr.bf16.mxu0 0
  %3883 = vmatmul.mubr.bf16.gmra.mrb[0].mxu0 %v3689
  %v3884 = vpop.f32.mrb[0].mxu0
  %v3885 = vadd.f32 0.0, %v3884
  %v3886 = vpop.f32.mrb[0].mxu0
  %v3887 = vadd.f32 0.0, %v3886
  %v3888 = vpop.f32.mrb[0].mxu0
  %v3889 = vpop.f32.mrb[0].mxu0
  %3890 = vdwg.mxu0
  %3891 = vmatprep.subr.bf16.mxu0 0
  %3892 = vmatpush1.bf16.msra.mxu0 %v3804
  %3893 = vmatprep.subr.bf16.mxu0 0
  %3894 = vmatpush1.bf16.msra.mxu0 %v3807
  %3895 = vmatprep.subr.bf16.mxu0 0
  %3896 = vmatpush1.bf16.msra.mxu0 %v3810
  %3897 = vmatprep.subr.bf16.mxu0 0
  %3898 = vmatpush1.bf16.msra.mxu0 %v3813
  %3899 = vmatprep.subr.bf16.mxu0 0
  %3900 = vmatpush1.bf16.msra.mxu0 %v3816
  %3901 = vmatprep.subr.bf16.mxu0 0
  %3902 = vmatpush1.bf16.msra.mxu0 %v3819
  %3903 = vmatprep.subr.bf16.mxu0 0
  %3904 = vmatpush1.bf16.msra.mxu0 %v3822
  %3905 = vmatprep.subr.bf16.mxu0 0
  %3906 = vmatpush1.bf16.msra.mxu0 %v3825
  %3907 = vmatprep.subr.bf16.mxu0 0
  %3908 = vmatpush1.bf16.msra.mxu0 0
  %3909 = vmatprep.subr.bf16.mxu0 0
  %3910 = vmatpush1.bf16.msra.mxu0 0
  %3911 = vmatprep.subr.bf16.mxu0 0
  %3912 = vmatpush1.bf16.msra.mxu0 0
  %3913 = vmatprep.subr.bf16.mxu0 0
  %3914 = vmatpush1.bf16.msra.mxu0 0
  %3915 = vmatprep.subr.bf16.mxu0 0
  %3916 = vmatpush1.bf16.msra.mxu0 0
  %3917 = vmatprep.subr.bf16.mxu0 0
  %3918 = vmatpush1.bf16.msra.mxu0 0
  %3919 = vmatprep.subr.bf16.mxu0 0
  %3920 = vmatpush1.bf16.msra.mxu0 0
  %3921 = vmatprep.subr.bf16.mxu0 0
  %3922 = vmatpush1.bf16.msra.mxu0 0
  %3923 = vmatprep.mubr.bf16.mxu0 0
  %3924 = vmatmul.mubr.bf16.gmra.mrb[0].mxu0 %v3689
  %v3925 = vpop.f32.mrb[0].mxu0
  %v3926 = vadd.f32 0.0, %v3925
  %v3927 = vpop.f32.mrb[0].mxu0
  %v3928 = vpop.f32.mrb[0].mxu0
  %v3929 = vpop.f32.mrb[0].mxu0
  %3930 = vdwg.mxu0
  %v3931 = vadd.f32 %v3643, %v3885
  %v3932 = vxor.u32 %v3931, 2147483648
  %v3933 = vmul.f32 %v3932, 1.442695
  %v3934 = vpow.pop %v3933
  %v3935 = vadd.f32 %v3934, 1.0
  %v3936 = vrcp.pop %v3935
  %v3937 = vmul.f32 1.0, %v3936
  %v3938 = vadd.f32 %v3645, %v3887
  %v3939 = vxor.u32 %v3938, 2147483648
  %v3940 = vmul.f32 %v3939, 1.442695
  %v3941 = vpow.pop %v3940
  %v3942 = vadd.f32 %v3941, 1.0
  %v3943 = vrcp.pop %v3942
  %v3944 = vmul.f32 1.0, %v3943
  %v3945 = vadd.f32 %v3926, %v831
  %v3946 = vmul.f32 %v3937, %v3945
  %v3947 = vadd.f32 %v3684, %v3946
  %v3948 = vtanh.pop %v3947
  %v3949 = vsub.f32 1.0, %v3944
  %v3950 = vmul.f32 %v3949, %v3948
  %v3951 = vmul.f32 %v3944, %v3446
  %v3952 = vadd.f32 %v3950, %v3951
  %3953 = vst [vmem:[%s311] sm:$0xff] %v3952
  %s3954 = scalar_lea.vmem %s0, 120
  %v3955 = vld [vmem:[%s3954] sm:$0xff]
  %v3956 = vld [vmem:[%s3954 + $0x8] sm:$0xff]
  %v3957 = vld [vmem:[%s3954 + $0x10] sm:$0xff]
  %v3958 = vld [vmem:[#allocation2] sm:$0xff]
  %v3959 = vpack.c.bf16 %v3958, %v3958
  %v3960 = vld [vmem:[%s1] sm:$0xff]
  %v3961 = vld [vmem:[%s1 + $0x8] sm:$0xf]
  %v3962 = vld [vmem:[%s1 + $0xc] sm:$0xff]
  %v3963 = vld [vmem:[%s1 + $0x14] sm:$0xf]
  %v3964 = vld [vmem:[%s1 + $0x18] sm:$0xff]
  %v3965 = vld [vmem:[%s1 + $0x20] sm:$0xf]
  %v3966 = vld [vmem:[%s1 + $0x24] sm:$0xff]
  %v3967 = vld [vmem:[%s1 + $0x2c] sm:$0xf]
  %v3968 = vld [vmem:[%s1 + $0x30] sm:$0xff]
  %v3969 = vld [vmem:[%s1 + $0x38] sm:$0xf]
  %v3970 = vld [vmem:[%s1 + $0x3c] sm:$0xff]
  %v3971 = vld [vmem:[%s1 + $0x44] sm:$0xf]
  %v3972 = vld [vmem:[%s1 + $0x48] sm:$0xff]
  %v3973 = vld [vmem:[%s1 + $0x50] sm:$0xf]
  %v3974 = vld [vmem:[%s1 + $0x54] sm:$0xff]
  %v3975 = vld [vmem:[%s1 + $0x5c] sm:$0xf]
  %v3976 = vld [vmem:[%s1 + $0x60] sm:$0xff]
  %v3977 = vld [vmem:[%s1 + $0x68] sm:$0xf]
  %v3978 = vld [vmem:[%s1 + $0x6c] sm:$0xff]
  %v3979 = vld [vmem:[%s1 + $0x74] sm:$0xf]
  %v3980 = vld [vmem:[%s1 + $0x78] sm:$0xff]
  %v3981 = vld [vmem:[%s1 + $0x80] sm:$0xf]
  %v3982 = vld [vmem:[%s1 + $0x84] sm:$0xff]
  %v3983 = vld [vmem:[%s1 + $0x8c] sm:$0xf]
  %v3984 = vld [vmem:[%s1 + $0x90] sm:$0xff]
  %v3985 = vld [vmem:[%s1 + $0x98] sm:$0xf]
  %v3986 = vld [vmem:[%s1 + $0x9c] sm:$0xff]
  %v3987 = vld [vmem:[%s1 + $0xa4] sm:$0xf]
  %v3988 = vld [vmem:[%s1 + $0xa8] sm:$0xff]
  %v3989 = vld [vmem:[%s1 + $0xb0] sm:$0xf]
  %v3990 = vld [vmem:[%s1 + $0xb4] sm:$0xff]
  %v3991 = vld [vmem:[%s1 + $0xbc] sm:$0xf]
  %v4024 = vunpack.c.l.b16 %v3960
  %v4025 = vunpack.c.h.b16 %v3960
  %v4026 = vunpack.c.l.b16 %v3961
  %v4027 = vunpack.c.l.b16 %v3962
  %v4028 = vunpack.c.h.b16 %v3962
  %v4029 = vunpack.c.l.b16 %v3963
  %v4030 = vunpack.c.l.b16 %v3964
  %v4031 = vunpack.c.h.b16 %v3964
  %v4032 = vunpack.c.l.b16 %v3965
  %v4033 = vunpack.c.l.b16 %v3966
  %v4034 = vunpack.c.h.b16 %v3966
  %v4035 = vunpack.c.l.b16 %v3967
  %v4036 = vunpack.c.l.b16 %v3968
  %v4037 = vunpack.c.h.b16 %v3968
  %v4038 = vunpack.c.l.b16 %v3969
  %v4039 = vunpack.c.l.b16 %v3970
  %v4040 = vunpack.c.h.b16 %v3970
  %v4041 = vunpack.c.l.b16 %v3971
  %v4042 = vunpack.c.l.b16 %v3972
  %v4043 = vunpack.c.h.b16 %v3972
  %v4044 = vunpack.c.l.b16 %v3973
  %v4045 = vunpack.c.l.b16 %v3974
  %v4046 = vunpack.c.h.b16 %v3974
  %v4047 = vunpack.c.l.b16 %v3975
  %v4048 = vunpack.c.l.b16 %v3976
  %v4049 = vunpack.c.h.b16 %v3976
  %v4050 = vunpack.c.l.b16 %v3977
  %v4051 = vunpack.c.l.b16 %v3978
  %v4052 = vunpack.c.h.b16 %v3978
  %v4053 = vunpack.c.l.b16 %v3979
  %v4054 = vunpack.c.l.b16 %v3980
  %v4055 = vunpack.c.h.b16 %v3980
  %v4056 = vunpack.c.l.b16 %v3981
  %v4057 = vunpack.c.l.b16 %v3982
  %v4058 = vunpack.c.h.b16 %v3982
  %v4059 = vunpack.c.l.b16 %v3983
  %v4060 = vunpack.c.l.b16 %v3984
  %v4061 = vunpack.c.h.b16 %v3984
  %v4062 = vunpack.c.l.b16 %v3985
  %v4063 = vunpack.c.l.b16 %v3986
  %v4064 = vunpack.c.h.b16 %v3986
  %v4065 = vunpack.c.l.b16 %v3987
  %v4066 = vunpack.c.l.b16 %v3988
  %v4067 = vunpack.c.h.b16 %v3988
  %v4068 = vunpack.c.l.b16 %v3989
  %v4069 = vunpack.c.l.b16 %v3990
  %v4070 = vunpack.c.h.b16 %v3990
  %v4071 = vunpack.c.l.b16 %v3991
  %v4072 = vpack.c.b16 %v4027, %v4024
  %v4073 = vpack.c.b16 %v4028, %v4025
  %v4074 = vpack.c.b16 %v4029, %v4026
  %v4075 = vpack.c.b16 %v4033, %v4030
  %v4076 = vpack.c.b16 %v4034, %v4031
  %v4077 = vpack.c.b16 %v4035, %v4032
  %v4078 = vpack.c.b16 %v4039, %v4036
  %v4079 = vpack.c.b16 %v4040, %v4037
  %v4080 = vpack.c.b16 %v4041, %v4038
  %v4081 = vpack.c.b16 %v4045, %v4042
  %v4082 = vpack.c.b16 %v4046, %v4043
  %v4083 = vpack.c.b16 %v4047, %v4044
  %v4084 = vpack.c.b16 %v4051, %v4048
  %v4085 = vpack.c.b16 %v4052, %v4049
  %v4086 = vpack.c.b16 %v4053, %v4050
  %v4087 = vpack.c.b16 %v4057, %v4054
  %v4088 = vpack.c.b16 %v4058, %v4055
  %v4089 = vpack.c.b16 %v4059, %v4056
  %v4090 = vpack.c.b16 %v4063, %v4060
  %v4091 = vpack.c.b16 %v4064, %v4061
  %v4092 = vpack.c.b16 %v4065, %v4062
  %v4093 = vpack.c.b16 %v4069, %v4066
  %v4094 = vpack.c.b16 %v4070, %v4067
  %v4095 = vpack.c.b16 %v4071, %v4068
  %4120 = vmatprep.subr.bf16.mxu0 %v4073
  %4121 = vmatpush1.bf16.msra.mxu0 %v4072
  %4122 = vmatprep.subr.bf16.mxu0 %v4076
  %4123 = vmatpush1.bf16.msra.mxu0 %v4075
  %4124 = vmatprep.subr.bf16.mxu0 %v4079
  %4125 = vmatpush1.bf16.msra.mxu0 %v4078
  %4126 = vmatprep.subr.bf16.mxu0 %v4082
  %4127 = vmatpush1.bf16.msra.mxu0 %v4081
  %4128 = vmatprep.subr.bf16.mxu0 %v4085
  %4129 = vmatpush1.bf16.msra.mxu0 %v4084
  %4130 = vmatprep.subr.bf16.mxu0 %v4088
  %4131 = vmatpush1.bf16.msra.mxu0 %v4087
  %4132 = vmatprep.subr.bf16.mxu0 %v4091
  %4133 = vmatpush1.bf16.msra.mxu0 %v4090
  %4134 = vmatprep.subr.bf16.mxu0 %v4094
  %4135 = vmatpush1.bf16.msra.mxu0 %v4093
  %4136 = vmatprep.subr.bf16.mxu0 0
  %4137 = vmatpush1.bf16.msra.mxu0 0
  %4138 = vmatprep.subr.bf16.mxu0 0
  %4139 = vmatpush1.bf16.msra.mxu0 0
  %4140 = vmatprep.subr.bf16.mxu0 0
  %4141 = vmatpush1.bf16.msra.mxu0 0
  %4142 = vmatprep.subr.bf16.mxu0 0
  %4143 = vmatpush1.bf16.msra.mxu0 0
  %4144 = vmatprep.subr.bf16.mxu0 0
  %4145 = vmatpush1.bf16.msra.mxu0 0
  %4146 = vmatprep.subr.bf16.mxu0 0
  %4147 = vmatpush1.bf16.msra.mxu0 0
  %4148 = vmatprep.subr.bf16.mxu0 0
  %4149 = vmatpush1.bf16.msra.mxu0 0
  %4150 = vmatprep.subr.bf16.mxu0 0
  %4151 = vmatpush1.bf16.msra.mxu0 0
  %4152 = vmatprep.mubr.bf16.mxu0 0
  %4153 = vmatmul.mubr.bf16.gmra.mrb[0].mxu0 %v3959
  %v4154 = vpop.f32.mrb[0].mxu0
  %v4155 = vadd.f32 0.0, %v4154
  %v4156 = vpop.f32.mrb[0].mxu0
  %v4157 = vadd.f32 0.0, %v4156
  %v4158 = vpop.f32.mrb[0].mxu0
  %v4159 = vpop.f32.mrb[0].mxu0
  %4160 = vdwg.mxu0
  %4161 = vmatprep.subr.bf16.mxu0 0
  %4162 = vmatpush1.bf16.msra.mxu0 %v4074
  %4163 = vmatprep.subr.bf16.mxu0 0
  %4164 = vmatpush1.bf16.msra.mxu0 %v4077
  %4165 = vmatprep.subr.bf16.mxu0 0
  %4166 = vmatpush1.bf16.msra.mxu0 %v4080
  %4167 = vmatprep.subr.bf16.mxu0 0
  %4168 = vmatpush1.bf16.msra.mxu0 %v4083
  %4169 = vmatprep.subr.bf16.mxu0 0
  %4170 = vmatpush1.bf16.msra.mxu0 %v4086
  %4171 = vmatprep.subr.bf16.mxu0 0
  %4172 = vmatpush1.bf16.msra.mxu0 %v4089
  %4173 = vmatprep.subr.bf16.mxu0 0
  %4174 = vmatpush1.bf16.msra.mxu0 %v4092
  %4175 = vmatprep.subr.bf16.mxu0 0
  %4176 = vmatpush1.bf16.msra.mxu0 %v4095
  %4177 = vmatprep.subr.bf16.mxu0 0
  %4178 = vmatpush1.bf16.msra.mxu0 0
  %4179 = vmatprep.subr.bf16.mxu0 0
  %4180 = vmatpush1.bf16.msra.mxu0 0
  %4181 = vmatprep.subr.bf16.mxu0 0
  %4182 = vmatpush1.bf16.msra.mxu0 0
  %4183 = vmatprep.subr.bf16.mxu0 0
  %4184 = vmatpush1.bf16.msra.mxu0 0
  %4185 = vmatprep.subr.bf16.mxu0 0
  %4186 = vmatpush1.bf16.msra.mxu0 0
  %4187 = vmatprep.subr.bf16.mxu0 0
  %4188 = vmatpush1.bf16.msra.mxu0 0
  %4189 = vmatprep.subr.bf16.mxu0 0
  %4190 = vmatpush1.bf16.msra.mxu0 0
  %4191 = vmatprep.subr.bf16.mxu0 0
  %4192 = vmatpush1.bf16.msra.mxu0 0
  %4193 = vmatprep.mubr.bf16.mxu0 0
  %4194 = vmatmul.mubr.bf16.gmra.mrb[0].mxu0 %v3959
  %v4195 = vpop.f32.mrb[0].mxu0
  %v4196 = vadd.f32 0.0, %v4195
  %v4197 = vpop.f32.mrb[0].mxu0
  %v4198 = vpop.f32.mrb[0].mxu0
  %v4199 = vpop.f32.mrb[0].mxu0
  %4200 = vdwg.mxu0
  %v4201 = vadd.f32 %v3955, %v4155
  %v4202 = vxor.u32 %v4201, 2147483648
  %v4203 = vmul.f32 %v4202, 1.442695
  %v4204 = vpow.pop %v4203
  %v4205 = vadd.f32 %v4204, 1.0
  %v4206 = vrcp.pop %v4205
  %v4207 = vmul.f32 1.0, %v4206
  %v4208 = vadd.f32 %v3956, %v4157
  %v4209 = vxor.u32 %v4208, 2147483648
  %v4210 = vmul.f32 %v4209, 1.442695
  %v4211 = vpow.pop %v4210
  %v4212 = vadd.f32 %v4211, 1.0
  %v4213 = vrcp.pop %v4212
  %v4214 = vmul.f32 1.0, %v4213
  %v4215 = vadd.f32 %v4196, %v300
  %v4216 = vmul.f32 %v4207, %v4215
  %v4217 = vadd.f32 %v3957, %v4216
  %v4218 = vtanh.pop %v4217
  %v4219 = vsub.f32 1.0, %v4214
  %v4220 = vmul.f32 %v4219, %v4218
  %v4221 = vmul.f32 %v4214, %v3958
  %v4222 = vadd.f32 %v4220, %v4221
  %4223 = vst [vmem:[#allocation2] sm:$0xff] %v4222
  %v4224 = vld [vmem:[%s311] sm:$0xff]
  %v4225 = vpack.c.bf16 %v4222, %v4222
  %v4226 = vld [vmem:[%s5] sm:$0xff]
  %v4227 = vld [vmem:[%s5 + $0x8] sm:$0xf]
  %v4228 = vld [vmem:[%s5 + $0xc] sm:$0xff]
  %v4229 = vld [vmem:[%s5 + $0x14] sm:$0xf]
  %v4230 = vld [vmem:[%s5 + $0x18] sm:$0xff]
  %v4231 = vld [vmem:[%s5 + $0x20] sm:$0xf]
  %v4232 = vld [vmem:[%s5 + $0x24] sm:$0xff]
  %v4233 = vld [vmem:[%s5 + $0x2c] sm:$0xf]
  %v4234 = vld [vmem:[%s5 + $0x30] sm:$0xff]
  %v4235 = vld [vmem:[%s5 + $0x38] sm:$0xf]
  %v4236 = vld [vmem:[%s5 + $0x3c] sm:$0xff]
  %v4237 = vld [vmem:[%s5 + $0x44] sm:$0xf]
  %v4238 = vld [vmem:[%s5 + $0x48] sm:$0xff]
  %v4239 = vld [vmem:[%s5 + $0x50] sm:$0xf]
  %v4240 = vld [vmem:[%s5 + $0x54] sm:$0xff]
  %v4241 = vld [vmem:[%s5 + $0x5c] sm:$0xf]
  %v4242 = vld [vmem:[%s5 + $0x60] sm:$0xff]
  %v4243 = vld [vmem:[%s5 + $0x68] sm:$0xf]
  %v4244 = vld [vmem:[%s5 + $0x6c] sm:$0xff]
  %v4245 = vld [vmem:[%s5 + $0x74] sm:$0xf]
  %v4246 = vld [vmem:[%s5 + $0x78] sm:$0xff]
  %v4247 = vld [vmem:[%s5 + $0x80] sm:$0xf]
  %v4248 = vld [vmem:[%s5 + $0x84] sm:$0xff]
  %v4249 = vld [vmem:[%s5 + $0x8c] sm:$0xf]
  %v4250 = vld [vmem:[%s5 + $0x90] sm:$0xff]
  %v4251 = vld [vmem:[%s5 + $0x98] sm:$0xf]
  %v4252 = vld [vmem:[%s5 + $0x9c] sm:$0xff]
  %v4253 = vld [vmem:[%s5 + $0xa4] sm:$0xf]
  %v4254 = vld [vmem:[%s5 + $0xa8] sm:$0xff]
  %v4255 = vld [vmem:[%s5 + $0xb0] sm:$0xf]
  %v4256 = vld [vmem:[%s5 + $0xb4] sm:$0xff]
  %v4257 = vld [vmem:[%s5 + $0xbc] sm:$0xf]
  %v4290 = vunpack.c.l.b16 %v4226
  %v4291 = vunpack.c.h.b16 %v4226
  %v4292 = vunpack.c.l.b16 %v4227
  %v4293 = vunpack.c.l.b16 %v4228
  %v4294 = vunpack.c.h.b16 %v4228
  %v4295 = vunpack.c.l.b16 %v4229
  %v4296 = vunpack.c.l.b16 %v4230
  %v4297 = vunpack.c.h.b16 %v4230
  %v4298 = vunpack.c.l.b16 %v4231
  %v4299 = vunpack.c.l.b16 %v4232
  %v4300 = vunpack.c.h.b16 %v4232
  %v4301 = vunpack.c.l.b16 %v4233
  %v4302 = vunpack.c.l.b16 %v4234
  %v4303 = vunpack.c.h.b16 %v4234
  %v4304 = vunpack.c.l.b16 %v4235
  %v4305 = vunpack.c.l.b16 %v4236
  %v4306 = vunpack.c.h.b16 %v4236
  %v4307 = vunpack.c.l.b16 %v4237
  %v4308 = vunpack.c.l.b16 %v4238
  %v4309 = vunpack.c.h.b16 %v4238
  %v4310 = vunpack.c.l.b16 %v4239
  %v4311 = vunpack.c.l.b16 %v4240
  %v4312 = vunpack.c.h.b16 %v4240
  %v4313 = vunpack.c.l.b16 %v4241
  %v4314 = vunpack.c.l.b16 %v4242
  %v4315 = vunpack.c.h.b16 %v4242
  %v4316 = vunpack.c.l.b16 %v4243
  %v4317 = vunpack.c.l.b16 %v4244
  %v4318 = vunpack.c.h.b16 %v4244
  %v4319 = vunpack.c.l.b16 %v4245
  %v4320 = vunpack.c.l.b16 %v4246
  %v4321 = vunpack.c.h.b16 %v4246
  %v4322 = vunpack.c.l.b16 %v4247
  %v4323 = vunpack.c.l.b16 %v4248
  %v4324 = vunpack.c.h.b16 %v4248
  %v4325 = vunpack.c.l.b16 %v4249
  %v4326 = vunpack.c.l.b16 %v4250
  %v4327 = vunpack.c.h.b16 %v4250
  %v4328 = vunpack.c.l.b16 %v4251
  %v4329 = vunpack.c.l.b16 %v4252
  %v4330 = vunpack.c.h.b16 %v4252
  %v4331 = vunpack.c.l.b16 %v4253
  %v4332 = vunpack.c.l.b16 %v4254
  %v4333 = vunpack.c.h.b16 %v4254
  %v4334 = vunpack.c.l.b16 %v4255
  %v4335 = vunpack.c.l.b16 %v4256
  %v4336 = vunpack.c.h.b16 %v4256
  %v4337 = vunpack.c.l.b16 %v4257
  %v4338 = vpack.c.b16 %v4293, %v4290
  %v4339 = vpack.c.b16 %v4294, %v4291
  %v4340 = vpack.c.b16 %v4295, %v4292
  %v4341 = vpack.c.b16 %v4299, %v4296
  %v4342 = vpack.c.b16 %v4300, %v4297
  %v4343 = vpack.c.b16 %v4301, %v4298
  %v4344 = vpack.c.b16 %v4305, %v4302
  %v4345 = vpack.c.b16 %v4306, %v4303
  %v4346 = vpack.c.b16 %v4307, %v4304
  %v4347 = vpack.c.b16 %v4311, %v4308
  %v4348 = vpack.c.b16 %v4312, %v4309
  %v4349 = vpack.c.b16 %v4313, %v4310
  %v4350 = vpack.c.b16 %v4317, %v4314
  %v4351 = vpack.c.b16 %v4318, %v4315
  %v4352 = vpack.c.b16 %v4319, %v4316
  %v4353 = vpack.c.b16 %v4323, %v4320
  %v4354 = vpack.c.b16 %v4324, %v4321
  %v4355 = vpack.c.b16 %v4325, %v4322
  %v4356 = vpack.c.b16 %v4329, %v4326
  %v4357 = vpack.c.b16 %v4330, %v4327
  %v4358 = vpack.c.b16 %v4331, %v4328
  %v4359 = vpack.c.b16 %v4335, %v4332
  %v4360 = vpack.c.b16 %v4336, %v4333
  %v4361 = vpack.c.b16 %v4337, %v4334
  %4386 = vmatprep.subr.bf16.mxu0 %v4339
  %4387 = vmatpush1.bf16.msra.mxu0 %v4338
  %4388 = vmatprep.subr.bf16.mxu0 %v4342
  %4389 = vmatpush1.bf16.msra.mxu0 %v4341
  %4390 = vmatprep.subr.bf16.mxu0 %v4345
  %4391 = vmatpush1.bf16.msra.mxu0 %v4344
  %4392 = vmatprep.subr.bf16.mxu0 %v4348
  %4393 = vmatpush1.bf16.msra.mxu0 %v4347
  %4394 = vmatprep.subr.bf16.mxu0 %v4351
  %4395 = vmatpush1.bf16.msra.mxu0 %v4350
  %4396 = vmatprep.subr.bf16.mxu0 %v4354
  %4397 = vmatpush1.bf16.msra.mxu0 %v4353
  %4398 = vmatprep.subr.bf16.mxu0 %v4357
  %4399 = vmatpush1.bf16.msra.mxu0 %v4356
  %4400 = vmatprep.subr.bf16.mxu0 %v4360
  %4401 = vmatpush1.bf16.msra.mxu0 %v4359
  %4402 = vmatprep.subr.bf16.mxu0 0
  %4403 = vmatpush1.bf16.msra.mxu0 0
  %4404 = vmatprep.subr.bf16.mxu0 0
  %4405 = vmatpush1.bf16.msra.mxu0 0
  %4406 = vmatprep.subr.bf16.mxu0 0
  %4407 = vmatpush1.bf16.msra.mxu0 0
  %4408 = vmatprep.subr.bf16.mxu0 0
  %4409 = vmatpush1.bf16.msra.mxu0 0
  %4410 = vmatprep.subr.bf16.mxu0 0
  %4411 = vmatpush1.bf16.msra.mxu0 0
  %4412 = vmatprep.subr.bf16.mxu0 0
  %4413 = vmatpush1.bf16.msra.mxu0 0
  %4414 = vmatprep.subr.bf16.mxu0 0
  %4415 = vmatpush1.bf16.msra.mxu0 0
  %4416 = vmatprep.subr.bf16.mxu0 0
  %4417 = vmatpush1.bf16.msra.mxu0 0
  %4418 = vmatprep.mubr.bf16.mxu0 0
  %4419 = vmatmul.mubr.bf16.gmra.mrb[0].mxu0 %v4225
  %v4420 = vpop.f32.mrb[0].mxu0
  %v4421 = vadd.f32 %v350, %v4420
  %v4422 = vpop.f32.mrb[0].mxu0
  %v4423 = vadd.f32 %v354, %v4422
  %v4424 = vpop.f32.mrb[0].mxu0
  %v4425 = vpop.f32.mrb[0].mxu0
  %4426 = vdwg.mxu0
  %4427 = vmatprep.subr.bf16.mxu0 0
  %4428 = vmatpush1.bf16.msra.mxu0 %v4340
  %4429 = vmatprep.subr.bf16.mxu0 0
  %4430 = vmatpush1.bf16.msra.mxu0 %v4343
  %4431 = vmatprep.subr.bf16.mxu0 0
  %4432 = vmatpush1.bf16.msra.mxu0 %v4346
  %4433 = vmatprep.subr.bf16.mxu0 0
  %4434 = vmatpush1.bf16.msra.mxu0 %v4349
  %4435 = vmatprep.subr.bf16.mxu0 0
  %4436 = vmatpush1.bf16.msra.mxu0 %v4352
  %4437 = vmatprep.subr.bf16.mxu0 0
  %4438 = vmatpush1.bf16.msra.mxu0 %v4355
  %4439 = vmatprep.subr.bf16.mxu0 0
  %4440 = vmatpush1.bf16.msra.mxu0 %v4358
  %4441 = vmatprep.subr.bf16.mxu0 0
  %4442 = vmatpush1.bf16.msra.mxu0 %v4361
  %4443 = vmatprep.subr.bf16.mxu0 0
  %4444 = vmatpush1.bf16.msra.mxu0 0
  %4445 = vmatprep.subr.bf16.mxu0 0
  %4446 = vmatpush1.bf16.msra.mxu0 0
  %4447 = vmatprep.subr.bf16.mxu0 0
  %4448 = vmatpush1.bf16.msra.mxu0 0
  %4449 = vmatprep.subr.bf16.mxu0 0
  %4450 = vmatpush1.bf16.msra.mxu0 0
  %4451 = vmatprep.subr.bf16.mxu0 0
  %4452 = vmatpush1.bf16.msra.mxu0 0
  %4453 = vmatprep.subr.bf16.mxu0 0
  %4454 = vmatpush1.bf16.msra.mxu0 0
  %4455 = vmatprep.subr.bf16.mxu0 0
  %4456 = vmatpush1.bf16.msra.mxu0 0
  %4457 = vmatprep.subr.bf16.mxu0 0
  %4458 = vmatpush1.bf16.msra.mxu0 0
  %4459 = vmatprep.mubr.bf16.mxu0 0
  %4460 = vmatmul.mubr.bf16.gmra.mrb[0].mxu0 %v4225
  %v4461 = vpop.f32.mrb[0].mxu0
  %v4462 = vadd.f32 %v358, %v4461
  %v4463 = vpop.f32.mrb[0].mxu0
  %v4464 = vpop.f32.mrb[0].mxu0
  %v4465 = vpop.f32.mrb[0].mxu0
  %4466 = vdwg.mxu0
  %v4467 = vpack.c.bf16 %v4224, %v4224
  %v4468 = vld [vmem:[%s2] sm:$0xff]
  %v4469 = vld [vmem:[%s2 + $0x8] sm:$0xf]
  %v4470 = vld [vmem:[%s2 + $0xc] sm:$0xff]
  %v4471 = vld [vmem:[%s2 + $0x14] sm:$0xf]
  %v4472 = vld [vmem:[%s2 + $0x18] sm:$0xff]
  %v4473 = vld [vmem:[%s2 + $0x20] sm:$0xf]
  %v4474 = vld [vmem:[%s2 + $0x24] sm:$0xff]
  %v4475 = vld [vmem:[%s2 + $0x2c] sm:$0xf]
  %v4476 = vld [vmem:[%s2 + $0x30] sm:$0xff]
  %v4477 = vld [vmem:[%s2 + $0x38] sm:$0xf]
  %v4478 = vld [vmem:[%s2 + $0x3c] sm:$0xff]
  %v4479 = vld [vmem:[%s2 + $0x44] sm:$0xf]
  %v4480 = vld [vmem:[%s2 + $0x48] sm:$0xff]
  %v4481 = vld [vmem:[%s2 + $0x50] sm:$0xf]
  %v4482 = vld [vmem:[%s2 + $0x54] sm:$0xff]
  %v4483 = vld [vmem:[%s2 + $0x5c] sm:$0xf]
  %v4484 = vld [vmem:[%s2 + $0x60] sm:$0xff]
  %v4485 = vld [vmem:[%s2 + $0x68] sm:$0xf]
  %v4486 = vld [vmem:[%s2 + $0x6c] sm:$0xff]
  %v4487 = vld [vmem:[%s2 + $0x74] sm:$0xf]
  %v4488 = vld [vmem:[%s2 + $0x78] sm:$0xff]
  %v4489 = vld [vmem:[%s2 + $0x80] sm:$0xf]
  %v4490 = vld [vmem:[%s2 + $0x84] sm:$0xff]
  %v4491 = vld [vmem:[%s2 + $0x8c] sm:$0xf]
  %v4492 = vld [vmem:[%s2 + $0x90] sm:$0xff]
  %v4493 = vld [vmem:[%s2 + $0x98] sm:$0xf]
  %v4494 = vld [vmem:[%s2 + $0x9c] sm:$0xff]
  %v4495 = vld [vmem:[%s2 + $0xa4] sm:$0xf]
  %v4496 = vld [vmem:[%s2 + $0xa8] sm:$0xff]
  %v4497 = vld [vmem:[%s2 + $0xb0] sm:$0xf]
  %v4498 = vld [vmem:[%s2 + $0xb4] sm:$0xff]
  %v4499 = vld [vmem:[%s2 + $0xbc] sm:$0xf]
  %v4532 = vunpack.c.l.b16 %v4468
  %v4533 = vunpack.c.h.b16 %v4468
  %v4534 = vunpack.c.l.b16 %v4469
  %v4535 = vunpack.c.l.b16 %v4470
  %v4536 = vunpack.c.h.b16 %v4470
  %v4537 = vunpack.c.l.b16 %v4471
  %v4538 = vunpack.c.l.b16 %v4472
  %v4539 = vunpack.c.h.b16 %v4472
  %v4540 = vunpack.c.l.b16 %v4473
  %v4541 = vunpack.c.l.b16 %v4474
  %v4542 = vunpack.c.h.b16 %v4474
  %v4543 = vunpack.c.l.b16 %v4475
  %v4544 = vunpack.c.l.b16 %v4476
  %v4545 = vunpack.c.h.b16 %v4476
  %v4546 = vunpack.c.l.b16 %v4477
  %v4547 = vunpack.c.l.b16 %v4478
  %v4548 = vunpack.c.h.b16 %v4478
  %v4549 = vunpack.c.l.b16 %v4479
  %v4550 = vunpack.c.l.b16 %v4480
  %v4551 = vunpack.c.h.b16 %v4480
  %v4552 = vunpack.c.l.b16 %v4481
  %v4553 = vunpack.c.l.b16 %v4482
  %v4554 = vunpack.c.h.b16 %v4482
  %v4555 = vunpack.c.l.b16 %v4483
  %v4556 = vunpack.c.l.b16 %v4484
  %v4557 = vunpack.c.h.b16 %v4484
  %v4558 = vunpack.c.l.b16 %v4485
  %v4559 = vunpack.c.l.b16 %v4486
  %v4560 = vunpack.c.h.b16 %v4486
  %v4561 = vunpack.c.l.b16 %v4487
  %v4562 = vunpack.c.l.b16 %v4488
  %v4563 = vunpack.c.h.b16 %v4488
  %v4564 = vunpack.c.l.b16 %v4489
  %v4565 = vunpack.c.l.b16 %v4490
  %v4566 = vunpack.c.h.b16 %v4490
  %v4567 = vunpack.c.l.b16 %v4491
  %v4568 = vunpack.c.l.b16 %v4492
  %v4569 = vunpack.c.h.b16 %v4492
  %v4570 = vunpack.c.l.b16 %v4493
  %v4571 = vunpack.c.l.b16 %v4494
  %v4572 = vunpack.c.h.b16 %v4494
  %v4573 = vunpack.c.l.b16 %v4495
  %v4574 = vunpack.c.l.b16 %v4496
  %v4575 = vunpack.c.h.b16 %v4496
  %v4576 = vunpack.c.l.b16 %v4497
  %v4577 = vunpack.c.l.b16 %v4498
  %v4578 = vunpack.c.h.b16 %v4498
  %v4579 = vunpack.c.l.b16 %v4499
  %v4580 = vpack.c.b16 %v4535, %v4532
  %v4581 = vpack.c.b16 %v4536, %v4533
  %v4582 = vpack.c.b16 %v4537, %v4534
  %v4583 = vpack.c.b16 %v4541, %v4538
  %v4584 = vpack.c.b16 %v4542, %v4539
  %v4585 = vpack.c.b16 %v4543, %v4540
  %v4586 = vpack.c.b16 %v4547, %v4544
  %v4587 = vpack.c.b16 %v4548, %v4545
  %v4588 = vpack.c.b16 %v4549, %v4546
  %v4589 = vpack.c.b16 %v4553, %v4550
  %v4590 = vpack.c.b16 %v4554, %v4551
  %v4591 = vpack.c.b16 %v4555, %v4552
  %v4592 = vpack.c.b16 %v4559, %v4556
  %v4593 = vpack.c.b16 %v4560, %v4557
  %v4594 = vpack.c.b16 %v4561, %v4558
  %v4595 = vpack.c.b16 %v4565, %v4562
  %v4596 = vpack.c.b16 %v4566, %v4563
  %v4597 = vpack.c.b16 %v4567, %v4564
  %v4598 = vpack.c.b16 %v4571, %v4568
  %v4599 = vpack.c.b16 %v4572, %v4569
  %v4600 = vpack.c.b16 %v4573, %v4570
  %v4601 = vpack.c.b16 %v4577, %v4574
  %v4602 = vpack.c.b16 %v4578, %v4575
  %v4603 = vpack.c.b16 %v4579, %v4576
  %4628 = vmatprep.subr.bf16.mxu0 %v4581
  %4629 = vmatpush1.bf16.msra.mxu0 %v4580
  %4630 = vmatprep.subr.bf16.mxu0 %v4584
  %4631 = vmatpush1.bf16.msra.mxu0 %v4583
  %4632 = vmatprep.subr.bf16.mxu0 %v4587
  %4633 = vmatpush1.bf16.msra.mxu0 %v4586
  %4634 = vmatprep.subr.bf16.mxu0 %v4590
  %4635 = vmatpush1.bf16.msra.mxu0 %v4589
  %4636 = vmatprep.subr.bf16.mxu0 %v4593
  %4637 = vmatpush1.bf16.msra.mxu0 %v4592
  %4638 = vmatprep.subr.bf16.mxu0 %v4596
  %4639 = vmatpush1.bf16.msra.mxu0 %v4595
  %4640 = vmatprep.subr.bf16.mxu0 %v4599
  %4641 = vmatpush1.bf16.msra.mxu0 %v4598
  %4642 = vmatprep.subr.bf16.mxu0 %v4602
  %4643 = vmatpush1.bf16.msra.mxu0 %v4601
  %4644 = vmatprep.subr.bf16.mxu0 0
  %4645 = vmatpush1.bf16.msra.mxu0 0
  %4646 = vmatprep.subr.bf16.mxu0 0
  %4647 = vmatpush1.bf16.msra.mxu0 0
  %4648 = vmatprep.subr.bf16.mxu0 0
  %4649 = vmatpush1.bf16.msra.mxu0 0
  %4650 = vmatprep.subr.bf16.mxu0 0
  %4651 = vmatpush1.bf16.msra.mxu0 0
  %4652 = vmatprep.subr.bf16.mxu0 0
  %4653 = vmatpush1.bf16.msra.mxu0 0
  %4654 = vmatprep.subr.bf16.mxu0 0
  %4655 = vmatpush1.bf16.msra.mxu0 0
  %4656 = vmatprep.subr.bf16.mxu0 0
  %4657 = vmatpush1.bf16.msra.mxu0 0
  %4658 = vmatprep.subr.bf16.mxu0 0
  %4659 = vmatpush1.bf16.msra.mxu0 0
  %4660 = vmatprep.mubr.bf16.mxu0 0
  %4661 = vmatmul.mubr.bf16.gmra.mrb[0].mxu0 %v4467
  %v4662 = vpop.f32.mrb[0].mxu0
  %v4663 = vadd.f32 0.0, %v4662
  %v4664 = vpop.f32.mrb[0].mxu0
  %v4665 = vadd.f32 0.0, %v4664
  %v4666 = vpop.f32.mrb[0].mxu0
  %v4667 = vpop.f32.mrb[0].mxu0
  %4668 = vdwg.mxu0
  %4669 = vmatprep.subr.bf16.mxu0 0
  %4670 = vmatpush1.bf16.msra.mxu0 %v4582
  %4671 = vmatprep.subr.bf16.mxu0 0
  %4672 = vmatpush1.bf16.msra.mxu0 %v4585
  %4673 = vmatprep.subr.bf16.mxu0 0
  %4674 = vmatpush1.bf16.msra.mxu0 %v4588
  %4675 = vmatprep.subr.bf16.mxu0 0
  %4676 = vmatpush1.bf16.msra.mxu0 %v4591
  %4677 = vmatprep.subr.bf16.mxu0 0
  %4678 = vmatpush1.bf16.msra.mxu0 %v4594
  %4679 = vmatprep.subr.bf16.mxu0 0
  %4680 = vmatpush1.bf16.msra.mxu0 %v4597
  %4681 = vmatprep.subr.bf16.mxu0 0
  %4682 = vmatpush1.bf16.msra.mxu0 %v4600
  %4683 = vmatprep.subr.bf16.mxu0 0
  %4684 = vmatpush1.bf16.msra.mxu0 %v4603
  %4685 = vmatprep.subr.bf16.mxu0 0
  %4686 = vmatpush1.bf16.msra.mxu0 0
  %4687 = vmatprep.subr.bf16.mxu0 0
  %4688 = vmatpush1.bf16.msra.mxu0 0
  %4689 = vmatprep.subr.bf16.mxu0 0
  %4690 = vmatpush1.bf16.msra.mxu0 0
  %4691 = vmatprep.subr.bf16.mxu0 0
  %4692 = vmatpush1.bf16.msra.mxu0 0
  %4693 = vmatprep.subr.bf16.mxu0 0
  %4694 = vmatpush1.bf16.msra.mxu0 0
  %4695 = vmatprep.subr.bf16.mxu0 0
  %4696 = vmatpush1.bf16.msra.mxu0 0
  %4697 = vmatprep.subr.bf16.mxu0 0
  %4698 = vmatpush1.bf16.msra.mxu0 0
  %4699 = vmatprep.subr.bf16.mxu0 0
  %4700 = vmatpush1.bf16.msra.mxu0 0
  %4701 = vmatprep.mubr.bf16.mxu0 0
  %4702 = vmatmul.mubr.bf16.gmra.mrb[0].mxu0 %v4467
  %v4703 = vpop.f32.mrb[0].mxu0
  %v4704 = vadd.f32 0.0, %v4703
  %v4705 = vpop.f32.mrb[0].mxu0
  %v4706 = vpop.f32.mrb[0].mxu0
  %v4707 = vpop.f32.mrb[0].mxu0
  %4708 = vdwg.mxu0
  %v4709 = vadd.f32 %v4421, %v4663
  %v4710 = vxor.u32 %v4709, 2147483648
  %v4711 = vmul.f32 %v4710, 1.442695
  %v4712 = vpow.pop %v4711
  %v4713 = vadd.f32 %v4712, 1.0
  %v4714 = vrcp.pop %v4713
  %v4715 = vmul.f32 1.0, %v4714
  %v4716 = vadd.f32 %v4423, %v4665
  %v4717 = vxor.u32 %v4716, 2147483648
  %v4718 = vmul.f32 %v4717, 1.442695
  %v4719 = vpow.pop %v4718
  %v4720 = vadd.f32 %v4719, 1.0
  %v4721 = vrcp.pop %v4720
  %v4722 = vmul.f32 1.0, %v4721
  %v4723 = vadd.f32 %v4704, %v831
  %v4724 = vmul.f32 %v4715, %v4723
  %v4725 = vadd.f32 %v4462, %v4724
  %v4726 = vtanh.pop %v4725
  %v4727 = vsub.f32 1.0, %v4722
  %v4728 = vmul.f32 %v4727, %v4726
  %v4729 = vmul.f32 %v4722, %v4224
  %v4730 = vadd.f32 %v4728, %v4729
  %4731 = vst [vmem:[%s311] sm:$0xff] %v4730
  %s4732 = scalar_lea.vmem %s0, 144
  %v4733 = vld [vmem:[%s4732] sm:$0xff]
  %v4734 = vld [vmem:[%s4732 + $0x8] sm:$0xff]
  %v4735 = vld [vmem:[%s4732 + $0x10] sm:$0xff]
  %v4736 = vld [vmem:[#allocation2] sm:$0xff]
  %v4737 = vpack.c.bf16 %v4736, %v4736
  %v4738 = vld [vmem:[%s1] sm:$0xff]
  %v4739 = vld [vmem:[%s1 + $0x8] sm:$0xf]
  %v4740 = vld [vmem:[%s1 + $0xc] sm:$0xff]
  %v4741 = vld [vmem:[%s1 + $0x14] sm:$0xf]
  %v4742 = vld [vmem:[%s1 + $0x18] sm:$0xff]
  %v4743 = vld [vmem:[%s1 + $0x20] sm:$0xf]
  %v4744 = vld [vmem:[%s1 + $0x24] sm:$0xff]
  %v4745 = vld [vmem:[%s1 + $0x2c] sm:$0xf]
  %v4746 = vld [vmem:[%s1 + $0x30] sm:$0xff]
  %v4747 = vld [vmem:[%s1 + $0x38] sm:$0xf]
  %v4748 = vld [vmem:[%s1 + $0x3c] sm:$0xff]
  %v4749 = vld [vmem:[%s1 + $0x44] sm:$0xf]
  %v4750 = vld [vmem:[%s1 + $0x48] sm:$0xff]
  %v4751 = vld [vmem:[%s1 + $0x50] sm:$0xf]
  %v4752 = vld [vmem:[%s1 + $0x54] sm:$0xff]
  %v4753 = vld [vmem:[%s1 + $0x5c] sm:$0xf]
  %v4754 = vld [vmem:[%s1 + $0x60] sm:$0xff]
  %v4755 = vld [vmem:[%s1 + $0x68] sm:$0xf]
  %v4756 = vld [vmem:[%s1 + $0x6c] sm:$0xff]
  %v4757 = vld [vmem:[%s1 + $0x74] sm:$0xf]
  %v4758 = vld [vmem:[%s1 + $0x78] sm:$0xff]
  %v4759 = vld [vmem:[%s1 + $0x80] sm:$0xf]
  %v4760 = vld [vmem:[%s1 + $0x84] sm:$0xff]
  %v4761 = vld [vmem:[%s1 + $0x8c] sm:$0xf]
  %v4762 = vld [vmem:[%s1 + $0x90] sm:$0xff]
  %v4763 = vld [vmem:[%s1 + $0x98] sm:$0xf]
  %v4764 = vld [vmem:[%s1 + $0x9c] sm:$0xff]
  %v4765 = vld [vmem:[%s1 + $0xa4] sm:$0xf]
  %v4766 = vld [vmem:[%s1 + $0xa8] sm:$0xff]
  %v4767 = vld [vmem:[%s1 + $0xb0] sm:$0xf]
  %v4768 = vld [vmem:[%s1 + $0xb4] sm:$0xff]
  %v4769 = vld [vmem:[%s1 + $0xbc] sm:$0xf]
  %v4802 = vunpack.c.l.b16 %v4738
  %v4803 = vunpack.c.h.b16 %v4738
  %v4804 = vunpack.c.l.b16 %v4739
  %v4805 = vunpack.c.l.b16 %v4740
  %v4806 = vunpack.c.h.b16 %v4740
  %v4807 = vunpack.c.l.b16 %v4741
  %v4808 = vunpack.c.l.b16 %v4742
  %v4809 = vunpack.c.h.b16 %v4742
  %v4810 = vunpack.c.l.b16 %v4743
  %v4811 = vunpack.c.l.b16 %v4744
  %v4812 = vunpack.c.h.b16 %v4744
  %v4813 = vunpack.c.l.b16 %v4745
  %v4814 = vunpack.c.l.b16 %v4746
  %v4815 = vunpack.c.h.b16 %v4746
  %v4816 = vunpack.c.l.b16 %v4747
  %v4817 = vunpack.c.l.b16 %v4748
  %v4818 = vunpack.c.h.b16 %v4748
  %v4819 = vunpack.c.l.b16 %v4749
  %v4820 = vunpack.c.l.b16 %v4750
  %v4821 = vunpack.c.h.b16 %v4750
  %v4822 = vunpack.c.l.b16 %v4751
  %v4823 = vunpack.c.l.b16 %v4752
  %v4824 = vunpack.c.h.b16 %v4752
  %v4825 = vunpack.c.l.b16 %v4753
  %v4826 = vunpack.c.l.b16 %v4754
  %v4827 = vunpack.c.h.b16 %v4754
  %v4828 = vunpack.c.l.b16 %v4755
  %v4829 = vunpack.c.l.b16 %v4756
  %v4830 = vunpack.c.h.b16 %v4756
  %v4831 = vunpack.c.l.b16 %v4757
  %v4832 = vunpack.c.l.b16 %v4758
  %v4833 = vunpack.c.h.b16 %v4758
  %v4834 = vunpack.c.l.b16 %v4759
  %v4835 = vunpack.c.l.b16 %v4760
  %v4836 = vunpack.c.h.b16 %v4760
  %v4837 = vunpack.c.l.b16 %v4761
  %v4838 = vunpack.c.l.b16 %v4762
  %v4839 = vunpack.c.h.b16 %v4762
  %v4840 = vunpack.c.l.b16 %v4763
  %v4841 = vunpack.c.l.b16 %v4764
  %v4842 = vunpack.c.h.b16 %v4764
  %v4843 = vunpack.c.l.b16 %v4765
  %v4844 = vunpack.c.l.b16 %v4766
  %v4845 = vunpack.c.h.b16 %v4766
  %v4846 = vunpack.c.l.b16 %v4767
  %v4847 = vunpack.c.l.b16 %v4768
  %v4848 = vunpack.c.h.b16 %v4768
  %v4849 = vunpack.c.l.b16 %v4769
  %v4850 = vpack.c.b16 %v4805, %v4802
  %v4851 = vpack.c.b16 %v4806, %v4803
  %v4852 = vpack.c.b16 %v4807, %v4804
  %v4853 = vpack.c.b16 %v4811, %v4808
  %v4854 = vpack.c.b16 %v4812, %v4809
  %v4855 = vpack.c.b16 %v4813, %v4810
  %v4856 = vpack.c.b16 %v4817, %v4814
  %v4857 = vpack.c.b16 %v4818, %v4815
  %v4858 = vpack.c.b16 %v4819, %v4816
  %v4859 = vpack.c.b16 %v4823, %v4820
  %v4860 = vpack.c.b16 %v4824, %v4821
  %v4861 = vpack.c.b16 %v4825, %v4822
  %v4862 = vpack.c.b16 %v4829, %v4826
  %v4863 = vpack.c.b16 %v4830, %v4827
  %v4864 = vpack.c.b16 %v4831, %v4828
  %v4865 = vpack.c.b16 %v4835, %v4832
  %v4866 = vpack.c.b16 %v4836, %v4833
  %v4867 = vpack.c.b16 %v4837, %v4834
  %v4868 = vpack.c.b16 %v4841, %v4838
  %v4869 = vpack.c.b16 %v4842, %v4839
  %v4870 = vpack.c.b16 %v4843, %v4840
  %v4871 = vpack.c.b16 %v4847, %v4844
  %v4872 = vpack.c.b16 %v4848, %v4845
  %v4873 = vpack.c.b16 %v4849, %v4846
  %4898 = vmatprep.subr.bf16.mxu0 %v4851
  %4899 = vmatpush1.bf16.msra.mxu0 %v4850
  %4900 = vmatprep.subr.bf16.mxu0 %v4854
  %4901 = vmatpush1.bf16.msra.mxu0 %v4853
  %4902 = vmatprep.subr.bf16.mxu0 %v4857
  %4903 = vmatpush1.bf16.msra.mxu0 %v4856
  %4904 = vmatprep.subr.bf16.mxu0 %v4860
  %4905 = vmatpush1.bf16.msra.mxu0 %v4859
  %4906 = vmatprep.subr.bf16.mxu0 %v4863
  %4907 = vmatpush1.bf16.msra.mxu0 %v4862
  %4908 = vmatprep.subr.bf16.mxu0 %v4866
  %4909 = vmatpush1.bf16.msra.mxu0 %v4865
  %4910 = vmatprep.subr.bf16.mxu0 %v4869
  %4911 = vmatpush1.bf16.msra.mxu0 %v4868
  %4912 = vmatprep.subr.bf16.mxu0 %v4872
  %4913 = vmatpush1.bf16.msra.mxu0 %v4871
  %4914 = vmatprep.subr.bf16.mxu0 0
  %4915 = vmatpush1.bf16.msra.mxu0 0
  %4916 = vmatprep.subr.bf16.mxu0 0
  %4917 = vmatpush1.bf16.msra.mxu0 0
  %4918 = vmatprep.subr.bf16.mxu0 0
  %4919 = vmatpush1.bf16.msra.mxu0 0
  %4920 = vmatprep.subr.bf16.mxu0 0
  %4921 = vmatpush1.bf16.msra.mxu0 0
  %4922 = vmatprep.subr.bf16.mxu0 0
  %4923 = vmatpush1.bf16.msra.mxu0 0
  %4924 = vmatprep.subr.bf16.mxu0 0
  %4925 = vmatpush1.bf16.msra.mxu0 0
  %4926 = vmatprep.subr.bf16.mxu0 0
  %4927 = vmatpush1.bf16.msra.mxu0 0
  %4928 = vmatprep.subr.bf16.mxu0 0
  %4929 = vmatpush1.bf16.msra.mxu0 0
  %4930 = vmatprep.mubr.bf16.mxu0 0
  %4931 = vmatmul.mubr.bf16.gmra.mrb[0].mxu0 %v4737
  %v4932 = vpop.f32.mrb[0].mxu0
  %v4933 = vadd.f32 0.0, %v4932
  %v4934 = vpop.f32.mrb[0].mxu0
  %v4935 = vadd.f32 0.0, %v4934
  %v4936 = vpop.f32.mrb[0].mxu0
  %v4937 = vpop.f32.mrb[0].mxu0
  %4938 = vdwg.mxu0
  %4939 = vmatprep.subr.bf16.mxu0 0
  %4940 = vmatpush1.bf16.msra.mxu0 %v4852
  %4941 = vmatprep.subr.bf16.mxu0 0
  %4942 = vmatpush1.bf16.msra.mxu0 %v4855
  %4943 = vmatprep.subr.bf16.mxu0 0
  %4944 = vmatpush1.bf16.msra.mxu0 %v4858
  %4945 = vmatprep.subr.bf16.mxu0 0
  %4946 = vmatpush1.bf16.msra.mxu0 %v4861
  %4947 = vmatprep.subr.bf16.mxu0 0
  %4948 = vmatpush1.bf16.msra.mxu0 %v4864
  %4949 = vmatprep.subr.bf16.mxu0 0
  %4950 = vmatpush1.bf16.msra.mxu0 %v4867
  %4951 = vmatprep.subr.bf16.mxu0 0
  %4952 = vmatpush1.bf16.msra.mxu0 %v4870
  %4953 = vmatprep.subr.bf16.mxu0 0
  %4954 = vmatpush1.bf16.msra.mxu0 %v4873
  %4955 = vmatprep.subr.bf16.mxu0 0
  %4956 = vmatpush1.bf16.msra.mxu0 0
  %4957 = vmatprep.subr.bf16.mxu0 0
  %4958 = vmatpush1.bf16.msra.mxu0 0
  %4959 = vmatprep.subr.bf16.mxu0 0
  %4960 = vmatpush1.bf16.msra.mxu0 0
  %4961 = vmatprep.subr.bf16.mxu0 0
  %4962 = vmatpush1.bf16.msra.mxu0 0
  %4963 = vmatprep.subr.bf16.mxu0 0
  %4964 = vmatpush1.bf16.msra.mxu0 0
  %4965 = vmatprep.subr.bf16.mxu0 0
  %4966 = vmatpush1.bf16.msra.mxu0 0
  %4967 = vmatprep.subr.bf16.mxu0 0
  %4968 = vmatpush1.bf16.msra.mxu0 0
  %4969 = vmatprep.subr.bf16.mxu0 0
  %4970 = vmatpush1.bf16.msra.mxu0 0
  %4971 = vmatprep.mubr.bf16.mxu0 0
  %4972 = vmatmul.mubr.bf16.gmra.mrb[0].mxu0 %v4737
  %v4973 = vpop.f32.mrb[0].mxu0
  %v4974 = vadd.f32 0.0, %v4973
  %v4975 = vpop.f32.mrb[0].mxu0
  %v4976 = vpop.f32.mrb[0].mxu0
  %v4977 = vpop.f32.mrb[0].mxu0
  %4978 = vdwg.mxu0
  %v4979 = vadd.f32 %v4733, %v4933
  %v4980 = vxor.u32 %v4979, 2147483648
  %v4981 = vmul.f32 %v4980, 1.442695
  %v4982 = vpow.pop %v4981
  %v4983 = vadd.f32 %v4982, 1.0
  %v4984 = vrcp.pop %v4983
  %v4985 = vmul.f32 1.0, %v4984
  %v4986 = vadd.f32 %v4734, %v4935
  %v4987 = vxor.u32 %v4986, 2147483648
  %v4988 = vmul.f32 %v4987, 1.442695
  %v4989 = vpow.pop %v4988
  %v4990 = vadd.f32 %v4989, 1.0
  %v4991 = vrcp.pop %v4990
  %v4992 = vmul.f32 1.0, %v4991
  %v4993 = vadd.f32 %v4974, %v300
  %v4994 = vmul.f32 %v4985, %v4993
  %v4995 = vadd.f32 %v4735, %v4994
  %v4996 = vtanh.pop %v4995
  %v4997 = vsub.f32 1.0, %v4992
  %v4998 = vmul.f32 %v4997, %v4996
  %v4999 = vmul.f32 %v4992, %v4736
  %v5000 = vadd.f32 %v4998, %v4999
  %5001 = vst [vmem:[#allocation2] sm:$0xff] %v5000
  %v5002 = vld [vmem:[%s311] sm:$0xff]
  %v5003 = vpack.c.bf16 %v5000, %v5000
  %v5004 = vld [vmem:[%s5] sm:$0xff]
  %v5005 = vld [vmem:[%s5 + $0x8] sm:$0xf]
  %v5006 = vld [vmem:[%s5 + $0xc] sm:$0xff]
  %v5007 = vld [vmem:[%s5 + $0x14] sm:$0xf]
  %v5008 = vld [vmem:[%s5 + $0x18] sm:$0xff]
  %v5009 = vld [vmem:[%s5 + $0x20] sm:$0xf]
  %v5010 = vld [vmem:[%s5 + $0x24] sm:$0xff]
  %v5011 = vld [vmem:[%s5 + $0x2c] sm:$0xf]
  %v5012 = vld [vmem:[%s5 + $0x30] sm:$0xff]
  %v5013 = vld [vmem:[%s5 + $0x38] sm:$0xf]
  %v5014 = vld [vmem:[%s5 + $0x3c] sm:$0xff]
  %v5015 = vld [vmem:[%s5 + $0x44] sm:$0xf]
  %v5016 = vld [vmem:[%s5 + $0x48] sm:$0xff]
  %v5017 = vld [vmem:[%s5 + $0x50] sm:$0xf]
  %v5018 = vld [vmem:[%s5 + $0x54] sm:$0xff]
  %v5019 = vld [vmem:[%s5 + $0x5c] sm:$0xf]
  %v5020 = vld [vmem:[%s5 + $0x60] sm:$0xff]
  %v5021 = vld [vmem:[%s5 + $0x68] sm:$0xf]
  %v5022 = vld [vmem:[%s5 + $0x6c] sm:$0xff]
  %v5023 = vld [vmem:[%s5 + $0x74] sm:$0xf]
  %v5024 = vld [vmem:[%s5 + $0x78] sm:$0xff]
  %v5025 = vld [vmem:[%s5 + $0x80] sm:$0xf]
  %v5026 = vld [vmem:[%s5 + $0x84] sm:$0xff]
  %v5027 = vld [vmem:[%s5 + $0x8c] sm:$0xf]
  %v5028 = vld [vmem:[%s5 + $0x90] sm:$0xff]
  %v5029 = vld [vmem:[%s5 + $0x98] sm:$0xf]
  %v5030 = vld [vmem:[%s5 + $0x9c] sm:$0xff]
  %v5031 = vld [vmem:[%s5 + $0xa4] sm:$0xf]
  %v5032 = vld [vmem:[%s5 + $0xa8] sm:$0xff]
  %v5033 = vld [vmem:[%s5 + $0xb0] sm:$0xf]
  %v5034 = vld [vmem:[%s5 + $0xb4] sm:$0xff]
  %v5035 = vld [vmem:[%s5 + $0xbc] sm:$0xf]
  %v5068 = vunpack.c.l.b16 %v5004
  %v5069 = vunpack.c.h.b16 %v5004
  %v5070 = vunpack.c.l.b16 %v5005
  %v5071 = vunpack.c.l.b16 %v5006
  %v5072 = vunpack.c.h.b16 %v5006
  %v5073 = vunpack.c.l.b16 %v5007
  %v5074 = vunpack.c.l.b16 %v5008
  %v5075 = vunpack.c.h.b16 %v5008
  %v5076 = vunpack.c.l.b16 %v5009
  %v5077 = vunpack.c.l.b16 %v5010
  %v5078 = vunpack.c.h.b16 %v5010
  %v5079 = vunpack.c.l.b16 %v5011
  %v5080 = vunpack.c.l.b16 %v5012
  %v5081 = vunpack.c.h.b16 %v5012
  %v5082 = vunpack.c.l.b16 %v5013
  %v5083 = vunpack.c.l.b16 %v5014
  %v5084 = vunpack.c.h.b16 %v5014
  %v5085 = vunpack.c.l.b16 %v5015
  %v5086 = vunpack.c.l.b16 %v5016
  %v5087 = vunpack.c.h.b16 %v5016
  %v5088 = vunpack.c.l.b16 %v5017
  %v5089 = vunpack.c.l.b16 %v5018
  %v5090 = vunpack.c.h.b16 %v5018
  %v5091 = vunpack.c.l.b16 %v5019
  %v5092 = vunpack.c.l.b16 %v5020
  %v5093 = vunpack.c.h.b16 %v5020
  %v5094 = vunpack.c.l.b16 %v5021
  %v5095 = vunpack.c.l.b16 %v5022
  %v5096 = vunpack.c.h.b16 %v5022
  %v5097 = vunpack.c.l.b16 %v5023
  %v5098 = vunpack.c.l.b16 %v5024
  %v5099 = vunpack.c.h.b16 %v5024
  %v5100 = vunpack.c.l.b16 %v5025
  %v5101 = vunpack.c.l.b16 %v5026
  %v5102 = vunpack.c.h.b16 %v5026
  %v5103 = vunpack.c.l.b16 %v5027
  %v5104 = vunpack.c.l.b16 %v5028
  %v5105 = vunpack.c.h.b16 %v5028
  %v5106 = vunpack.c.l.b16 %v5029
  %v5107 = vunpack.c.l.b16 %v5030
  %v5108 = vunpack.c.h.b16 %v5030
  %v5109 = vunpack.c.l.b16 %v5031
  %v5110 = vunpack.c.l.b16 %v5032
  %v5111 = vunpack.c.h.b16 %v5032
  %v5112 = vunpack.c.l.b16 %v5033
  %v5113 = vunpack.c.l.b16 %v5034
  %v5114 = vunpack.c.h.b16 %v5034
  %v5115 = vunpack.c.l.b16 %v5035
  %v5116 = vpack.c.b16 %v5071, %v5068
  %v5117 = vpack.c.b16 %v5072, %v5069
  %v5118 = vpack.c.b16 %v5073, %v5070
  %v5119 = vpack.c.b16 %v5077, %v5074
  %v5120 = vpack.c.b16 %v5078, %v5075
  %v5121 = vpack.c.b16 %v5079, %v5076
  %v5122 = vpack.c.b16 %v5083, %v5080
  %v5123 = vpack.c.b16 %v5084, %v5081
  %v5124 = vpack.c.b16 %v5085, %v5082
  %v5125 = vpack.c.b16 %v5089, %v5086
  %v5126 = vpack.c.b16 %v5090, %v5087
  %v5127 = vpack.c.b16 %v5091, %v5088
  %v5128 = vpack.c.b16 %v5095, %v5092
  %v5129 = vpack.c.b16 %v5096, %v5093
  %v5130 = vpack.c.b16 %v5097, %v5094
  %v5131 = vpack.c.b16 %v5101, %v5098
  %v5132 = vpack.c.b16 %v5102, %v5099
  %v5133 = vpack.c.b16 %v5103, %v5100
  %v5134 = vpack.c.b16 %v5107, %v5104
  %v5135 = vpack.c.b16 %v5108, %v5105
  %v5136 = vpack.c.b16 %v5109, %v5106
  %v5137 = vpack.c.b16 %v5113, %v5110
  %v5138 = vpack.c.b16 %v5114, %v5111
  %v5139 = vpack.c.b16 %v5115, %v5112
  %5164 = vmatprep.subr.bf16.mxu0 %v5117
  %5165 = vmatpush1.bf16.msra.mxu0 %v5116
  %5166 = vmatprep.subr.bf16.mxu0 %v5120
  %5167 = vmatpush1.bf16.msra.mxu0 %v5119
  %5168 = vmatprep.subr.bf16.mxu0 %v5123
  %5169 = vmatpush1.bf16.msra.mxu0 %v5122
  %5170 = vmatprep.subr.bf16.mxu0 %v5126
  %5171 = vmatpush1.bf16.msra.mxu0 %v5125
  %5172 = vmatprep.subr.bf16.mxu0 %v5129
  %5173 = vmatpush1.bf16.msra.mxu0 %v5128
  %5174 = vmatprep.subr.bf16.mxu0 %v5132
  %5175 = vmatpush1.bf16.msra.mxu0 %v5131
  %5176 = vmatprep.subr.bf16.mxu0 %v5135
  %5177 = vmatpush1.bf16.msra.mxu0 %v5134
  %5178 = vmatprep.subr.bf16.mxu0 %v5138
  %5179 = vmatpush1.bf16.msra.mxu0 %v5137
  %5180 = vmatprep.subr.bf16.mxu0 0
  %5181 = vmatpush1.bf16.msra.mxu0 0
  %5182 = vmatprep.subr.bf16.mxu0 0
  %5183 = vmatpush1.bf16.msra.mxu0 0
  %5184 = vmatprep.subr.bf16.mxu0 0
  %5185 = vmatpush1.bf16.msra.mxu0 0
  %5186 = vmatprep.subr.bf16.mxu0 0
  %5187 = vmatpush1.bf16.msra.mxu0 0
  %5188 = vmatprep.subr.bf16.mxu0 0
  %5189 = vmatpush1.bf16.msra.mxu0 0
  %5190 = vmatprep.subr.bf16.mxu0 0
  %5191 = vmatpush1.bf16.msra.mxu0 0
  %5192 = vmatprep.subr.bf16.mxu0 0
  %5193 = vmatpush1.bf16.msra.mxu0 0
  %5194 = vmatprep.subr.bf16.mxu0 0
  %5195 = vmatpush1.bf16.msra.mxu0 0
  %5196 = vmatprep.mubr.bf16.mxu0 0
  %5197 = vmatmul.mubr.bf16.gmra.mrb[0].mxu0 %v5003
  %v5198 = vpop.f32.mrb[0].mxu0
  %v5199 = vadd.f32 %v350, %v5198
  %v5200 = vpop.f32.mrb[0].mxu0
  %v5201 = vadd.f32 %v354, %v5200
  %v5202 = vpop.f32.mrb[0].mxu0
  %v5203 = vpop.f32.mrb[0].mxu0
  %5204 = vdwg.mxu0
  %5205 = vmatprep.subr.bf16.mxu0 0
  %5206 = vmatpush1.bf16.msra.mxu0 %v5118
  %5207 = vmatprep.subr.bf16.mxu0 0
  %5208 = vmatpush1.bf16.msra.mxu0 %v5121
  %5209 = vmatprep.subr.bf16.mxu0 0
  %5210 = vmatpush1.bf16.msra.mxu0 %v5124
  %5211 = vmatprep.subr.bf16.mxu0 0
  %5212 = vmatpush1.bf16.msra.mxu0 %v5127
  %5213 = vmatprep.subr.bf16.mxu0 0
  %5214 = vmatpush1.bf16.msra.mxu0 %v5130
  %5215 = vmatprep.subr.bf16.mxu0 0
  %5216 = vmatpush1.bf16.msra.mxu0 %v5133
  %5217 = vmatprep.subr.bf16.mxu0 0
  %5218 = vmatpush1.bf16.msra.mxu0 %v5136
  %5219 = vmatprep.subr.bf16.mxu0 0
  %5220 = vmatpush1.bf16.msra.mxu0 %v5139
  %5221 = vmatprep.subr.bf16.mxu0 0
  %5222 = vmatpush1.bf16.msra.mxu0 0
  %5223 = vmatprep.subr.bf16.mxu0 0
  %5224 = vmatpush1.bf16.msra.mxu0 0
  %5225 = vmatprep.subr.bf16.mxu0 0
  %5226 = vmatpush1.bf16.msra.mxu0 0
  %5227 = vmatprep.subr.bf16.mxu0 0
  %5228 = vmatpush1.bf16.msra.mxu0 0
  %5229 = vmatprep.subr.bf16.mxu0 0
  %5230 = vmatpush1.bf16.msra.mxu0 0
  %5231 = vmatprep.subr.bf16.mxu0 0
  %5232 = vmatpush1.bf16.msra.mxu0 0
  %5233 = vmatprep.subr.bf16.mxu0 0
  %5234 = vmatpush1.bf16.msra.mxu0 0
  %5235 = vmatprep.subr.bf16.mxu0 0
  %5236 = vmatpush1.bf16.msra.mxu0 0
  %5237 = vmatprep.mubr.bf16.mxu0 0
  %5238 = vmatmul.mubr.bf16.gmra.mrb[0].mxu0 %v5003
  %v5239 = vpop.f32.mrb[0].mxu0
  %v5240 = vadd.f32 %v358, %v5239
  %v5241 = vpop.f32.mrb[0].mxu0
  %v5242 = vpop.f32.mrb[0].mxu0
  %v5243 = vpop.f32.mrb[0].mxu0
  %5244 = vdwg.mxu0
  %v5245 = vpack.c.bf16 %v5002, %v5002
  %v5246 = vld [vmem:[%s2] sm:$0xff]
  %v5247 = vld [vmem:[%s2 + $0x8] sm:$0xf]
  %v5248 = vld [vmem:[%s2 + $0xc] sm:$0xff]
  %v5249 = vld [vmem:[%s2 + $0x14] sm:$0xf]
  %v5250 = vld [vmem:[%s2 + $0x18] sm:$0xff]
  %v5251 = vld [vmem:[%s2 + $0x20] sm:$0xf]
  %v5252 = vld [vmem:[%s2 + $0x24] sm:$0xff]
  %v5253 = vld [vmem:[%s2 + $0x2c] sm:$0xf]
  %v5254 = vld [vmem:[%s2 + $0x30] sm:$0xff]
  %v5255 = vld [vmem:[%s2 + $0x38] sm:$0xf]
  %v5256 = vld [vmem:[%s2 + $0x3c] sm:$0xff]
  %v5257 = vld [vmem:[%s2 + $0x44] sm:$0xf]
  %v5258 = vld [vmem:[%s2 + $0x48] sm:$0xff]
  %v5259 = vld [vmem:[%s2 + $0x50] sm:$0xf]
  %v5260 = vld [vmem:[%s2 + $0x54] sm:$0xff]
  %v5261 = vld [vmem:[%s2 + $0x5c] sm:$0xf]
  %v5262 = vld [vmem:[%s2 + $0x60] sm:$0xff]
  %v5263 = vld [vmem:[%s2 + $0x68] sm:$0xf]
  %v5264 = vld [vmem:[%s2 + $0x6c] sm:$0xff]
  %v5265 = vld [vmem:[%s2 + $0x74] sm:$0xf]
  %v5266 = vld [vmem:[%s2 + $0x78] sm:$0xff]
  %v5267 = vld [vmem:[%s2 + $0x80] sm:$0xf]
  %v5268 = vld [vmem:[%s2 + $0x84] sm:$0xff]
  %v5269 = vld [vmem:[%s2 + $0x8c] sm:$0xf]
  %v5270 = vld [vmem:[%s2 + $0x90] sm:$0xff]
  %v5271 = vld [vmem:[%s2 + $0x98] sm:$0xf]
  %v5272 = vld [vmem:[%s2 + $0x9c] sm:$0xff]
  %v5273 = vld [vmem:[%s2 + $0xa4] sm:$0xf]
  %v5274 = vld [vmem:[%s2 + $0xa8] sm:$0xff]
  %v5275 = vld [vmem:[%s2 + $0xb0] sm:$0xf]
  %v5276 = vld [vmem:[%s2 + $0xb4] sm:$0xff]
  %v5277 = vld [vmem:[%s2 + $0xbc] sm:$0xf]
  %v5310 = vunpack.c.l.b16 %v5246
  %v5311 = vunpack.c.h.b16 %v5246
  %v5312 = vunpack.c.l.b16 %v5247
  %v5313 = vunpack.c.l.b16 %v5248
  %v5314 = vunpack.c.h.b16 %v5248
  %v5315 = vunpack.c.l.b16 %v5249
  %v5316 = vunpack.c.l.b16 %v5250
  %v5317 = vunpack.c.h.b16 %v5250
  %v5318 = vunpack.c.l.b16 %v5251
  %v5319 = vunpack.c.l.b16 %v5252
  %v5320 = vunpack.c.h.b16 %v5252
  %v5321 = vunpack.c.l.b16 %v5253
  %v5322 = vunpack.c.l.b16 %v5254
  %v5323 = vunpack.c.h.b16 %v5254
  %v5324 = vunpack.c.l.b16 %v5255
  %v5325 = vunpack.c.l.b16 %v5256
  %v5326 = vunpack.c.h.b16 %v5256
  %v5327 = vunpack.c.l.b16 %v5257
  %v5328 = vunpack.c.l.b16 %v5258
  %v5329 = vunpack.c.h.b16 %v5258
  %v5330 = vunpack.c.l.b16 %v5259
  %v5331 = vunpack.c.l.b16 %v5260
  %v5332 = vunpack.c.h.b16 %v5260
  %v5333 = vunpack.c.l.b16 %v5261
  %v5334 = vunpack.c.l.b16 %v5262
  %v5335 = vunpack.c.h.b16 %v5262
  %v5336 = vunpack.c.l.b16 %v5263
  %v5337 = vunpack.c.l.b16 %v5264
  %v5338 = vunpack.c.h.b16 %v5264
  %v5339 = vunpack.c.l.b16 %v5265
  %v5340 = vunpack.c.l.b16 %v5266
  %v5341 = vunpack.c.h.b16 %v5266
  %v5342 = vunpack.c.l.b16 %v5267
  %v5343 = vunpack.c.l.b16 %v5268
  %v5344 = vunpack.c.h.b16 %v5268
  %v5345 = vunpack.c.l.b16 %v5269
  %v5346 = vunpack.c.l.b16 %v5270
  %v5347 = vunpack.c.h.b16 %v5270
  %v5348 = vunpack.c.l.b16 %v5271
  %v5349 = vunpack.c.l.b16 %v5272
  %v5350 = vunpack.c.h.b16 %v5272
  %v5351 = vunpack.c.l.b16 %v5273
  %v5352 = vunpack.c.l.b16 %v5274
  %v5353 = vunpack.c.h.b16 %v5274
  %v5354 = vunpack.c.l.b16 %v5275
  %v5355 = vunpack.c.l.b16 %v5276
  %v5356 = vunpack.c.h.b16 %v5276
  %v5357 = vunpack.c.l.b16 %v5277
  %v5358 = vpack.c.b16 %v5313, %v5310
  %v5359 = vpack.c.b16 %v5314, %v5311
  %v5360 = vpack.c.b16 %v5315, %v5312
  %v5361 = vpack.c.b16 %v5319, %v5316
  %v5362 = vpack.c.b16 %v5320, %v5317
  %v5363 = vpack.c.b16 %v5321, %v5318
  %v5364 = vpack.c.b16 %v5325, %v5322
  %v5365 = vpack.c.b16 %v5326, %v5323
  %v5366 = vpack.c.b16 %v5327, %v5324
  %v5367 = vpack.c.b16 %v5331, %v5328
  %v5368 = vpack.c.b16 %v5332, %v5329
  %v5369 = vpack.c.b16 %v5333, %v5330
  %v5370 = vpack.c.b16 %v5337, %v5334
  %v5371 = vpack.c.b16 %v5338, %v5335
  %v5372 = vpack.c.b16 %v5339, %v5336
  %v5373 = vpack.c.b16 %v5343, %v5340
  %v5374 = vpack.c.b16 %v5344, %v5341
  %v5375 = vpack.c.b16 %v5345, %v5342
  %v5376 = vpack.c.b16 %v5349, %v5346
  %v5377 = vpack.c.b16 %v5350, %v5347
  %v5378 = vpack.c.b16 %v5351, %v5348
  %v5379 = vpack.c.b16 %v5355, %v5352
  %v5380 = vpack.c.b16 %v5356, %v5353
  %v5381 = vpack.c.b16 %v5357, %v5354
  %5406 = vmatprep.subr.bf16.mxu0 %v5359
  %5407 = vmatpush1.bf16.msra.mxu0 %v5358
  %5408 = vmatprep.subr.bf16.mxu0 %v5362
  %5409 = vmatpush1.bf16.msra.mxu0 %v5361
  %5410 = vmatprep.subr.bf16.mxu0 %v5365
  %5411 = vmatpush1.bf16.msra.mxu0 %v5364
  %5412 = vmatprep.subr.bf16.mxu0 %v5368
  %5413 = vmatpush1.bf16.msra.mxu0 %v5367
  %5414 = vmatprep.subr.bf16.mxu0 %v5371
  %5415 = vmatpush1.bf16.msra.mxu0 %v5370
  %5416 = vmatprep.subr.bf16.mxu0 %v5374
  %5417 = vmatpush1.bf16.msra.mxu0 %v5373
  %5418 = vmatprep.subr.bf16.mxu0 %v5377
  %5419 = vmatpush1.bf16.msra.mxu0 %v5376
  %5420 = vmatprep.subr.bf16.mxu0 %v5380
  %5421 = vmatpush1.bf16.msra.mxu0 %v5379
  %5422 = vmatprep.subr.bf16.mxu0 0
  %5423 = vmatpush1.bf16.msra.mxu0 0
  %5424 = vmatprep.subr.bf16.mxu0 0
  %5425 = vmatpush1.bf16.msra.mxu0 0
  %5426 = vmatprep.subr.bf16.mxu0 0
  %5427 = vmatpush1.bf16.msra.mxu0 0
  %5428 = vmatprep.subr.bf16.mxu0 0
  %5429 = vmatpush1.bf16.msra.mxu0 0
  %5430 = vmatprep.subr.bf16.mxu0 0
  %5431 = vmatpush1.bf16.msra.mxu0 0
  %5432 = vmatprep.subr.bf16.mxu0 0
  %5433 = vmatpush1.bf16.msra.mxu0 0
  %5434 = vmatprep.subr.bf16.mxu0 0
  %5435 = vmatpush1.bf16.msra.mxu0 0
  %5436 = vmatprep.subr.bf16.mxu0 0
  %5437 = vmatpush1.bf16.msra.mxu0 0
  %5438 = vmatprep.mubr.bf16.mxu0 0
  %5439 = vmatmul.mubr.bf16.gmra.mrb[0].mxu0 %v5245
  %v5440 = vpop.f32.mrb[0].mxu0
  %v5441 = vadd.f32 0.0, %v5440
  %v5442 = vpop.f32.mrb[0].mxu0
  %v5443 = vadd.f32 0.0, %v5442
  %v5444 = vpop.f32.mrb[0].mxu0
  %v5445 = vpop.f32.mrb[0].mxu0
  %5446 = vdwg.mxu0
  %5447 = vmatprep.subr.bf16.mxu0 0
  %5448 = vmatpush1.bf16.msra.mxu0 %v5360
  %5449 = vmatprep.subr.bf16.mxu0 0
  %5450 = vmatpush1.bf16.msra.mxu0 %v5363
  %5451 = vmatprep.subr.bf16.mxu0 0
  %5452 = vmatpush1.bf16.msra.mxu0 %v5366
  %5453 = vmatprep.subr.bf16.mxu0 0
  %5454 = vmatpush1.bf16.msra.mxu0 %v5369
  %5455 = vmatprep.subr.bf16.mxu0 0
  %5456 = vmatpush1.bf16.msra.mxu0 %v5372
  %5457 = vmatprep.subr.bf16.mxu0 0
  %5458 = vmatpush1.bf16.msra.mxu0 %v5375
  %5459 = vmatprep.subr.bf16.mxu0 0
  %5460 = vmatpush1.bf16.msra.mxu0 %v5378
  %5461 = vmatprep.subr.bf16.mxu0 0
  %5462 = vmatpush1.bf16.msra.mxu0 %v5381
  %5463 = vmatprep.subr.bf16.mxu0 0
  %5464 = vmatpush1.bf16.msra.mxu0 0
  %5465 = vmatprep.subr.bf16.mxu0 0
  %5466 = vmatpush1.bf16.msra.mxu0 0
  %5467 = vmatprep.subr.bf16.mxu0 0
  %5468 = vmatpush1.bf16.msra.mxu0 0
  %5469 = vmatprep.subr.bf16.mxu0 0
  %5470 = vmatpush1.bf16.msra.mxu0 0
  %5471 = vmatprep.subr.bf16.mxu0 0
  %5472 = vmatpush1.bf16.msra.mxu0 0
  %5473 = vmatprep.subr.bf16.mxu0 0
  %5474 = vmatpush1.bf16.msra.mxu0 0
  %5475 = vmatprep.subr.bf16.mxu0 0
  %5476 = vmatpush1.bf16.msra.mxu0 0
  %5477 = vmatprep.subr.bf16.mxu0 0
  %5478 = vmatpush1.bf16.msra.mxu0 0
  %5479 = vmatprep.mubr.bf16.mxu0 0
  %5480 = vmatmul.mubr.bf16.gmra.mrb[0].mxu0 %v5245
  %v5481 = vpop.f32.mrb[0].mxu0
  %v5482 = vadd.f32 0.0, %v5481
  %v5483 = vpop.f32.mrb[0].mxu0
  %v5484 = vpop.f32.mrb[0].mxu0
  %v5485 = vpop.f32.mrb[0].mxu0
  %5486 = vdwg.mxu0
  %v5487 = vadd.f32 %v5199, %v5441
  %v5488 = vxor.u32 %v5487, 2147483648
  %v5489 = vmul.f32 %v5488, 1.442695
  %v5490 = vpow.pop %v5489
  %v5491 = vadd.f32 %v5490, 1.0
  %v5492 = vrcp.pop %v5491
  %v5493 = vmul.f32 1.0, %v5492
  %v5494 = vadd.f32 %v5201, %v5443
  %v5495 = vxor.u32 %v5494, 2147483648
  %v5496 = vmul.f32 %v5495, 1.442695
  %v5497 = vpow.pop %v5496
  %v5498 = vadd.f32 %v5497, 1.0
  %v5499 = vrcp.pop %v5498
  %v5500 = vmul.f32 1.0, %v5499
  %v5501 = vadd.f32 %v5482, %v831
  %v5502 = vmul.f32 %v5493, %v5501
  %v5503 = vadd.f32 %v5240, %v5502
  %v5504 = vtanh.pop %v5503
  %v5505 = vsub.f32 1.0, %v5500
  %v5506 = vmul.f32 %v5505, %v5504
  %v5507 = vmul.f32 %v5500, %v5002
  %v5508 = vadd.f32 %v5506, %v5507
  %5509 = vst [vmem:[%s311] sm:$0xff] %v5508
  %s5510 = scalar_lea.vmem %s0, 168
  %v5511 = vld [vmem:[%s5510] sm:$0xff]
  %v5512 = vld [vmem:[%s5510 + $0x8] sm:$0xff]
  %v5513 = vld [vmem:[%s5510 + $0x10] sm:$0xff]
  %v5514 = vld [vmem:[#allocation2] sm:$0xff]
  %v5515 = vpack.c.bf16 %v5514, %v5514
  %v5516 = vld [vmem:[%s1] sm:$0xff]
  %v5517 = vld [vmem:[%s1 + $0x8] sm:$0xf]
  %v5518 = vld [vmem:[%s1 + $0xc] sm:$0xff]
  %v5519 = vld [vmem:[%s1 + $0x14] sm:$0xf]
  %v5520 = vld [vmem:[%s1 + $0x18] sm:$0xff]
  %v5521 = vld [vmem:[%s1 + $0x20] sm:$0xf]
  %v5522 = vld [vmem:[%s1 + $0x24] sm:$0xff]
  %v5523 = vld [vmem:[%s1 + $0x2c] sm:$0xf]
  %v5524 = vld [vmem:[%s1 + $0x30] sm:$0xff]
  %v5525 = vld [vmem:[%s1 + $0x38] sm:$0xf]
  %v5526 = vld [vmem:[%s1 + $0x3c] sm:$0xff]
  %v5527 = vld [vmem:[%s1 + $0x44] sm:$0xf]
  %v5528 = vld [vmem:[%s1 + $0x48] sm:$0xff]
  %v5529 = vld [vmem:[%s1 + $0x50] sm:$0xf]
  %v5530 = vld [vmem:[%s1 + $0x54] sm:$0xff]
  %v5531 = vld [vmem:[%s1 + $0x5c] sm:$0xf]
  %v5532 = vld [vmem:[%s1 + $0x60] sm:$0xff]
  %v5533 = vld [vmem:[%s1 + $0x68] sm:$0xf]
  %v5534 = vld [vmem:[%s1 + $0x6c] sm:$0xff]
  %v5535 = vld [vmem:[%s1 + $0x74] sm:$0xf]
  %v5536 = vld [vmem:[%s1 + $0x78] sm:$0xff]
  %v5537 = vld [vmem:[%s1 + $0x80] sm:$0xf]
  %v5538 = vld [vmem:[%s1 + $0x84] sm:$0xff]
  %v5539 = vld [vmem:[%s1 + $0x8c] sm:$0xf]
  %v5540 = vld [vmem:[%s1 + $0x90] sm:$0xff]
  %v5541 = vld [vmem:[%s1 + $0x98] sm:$0xf]
  %v5542 = vld [vmem:[%s1 + $0x9c] sm:$0xff]
  %v5543 = vld [vmem:[%s1 + $0xa4] sm:$0xf]
  %v5544 = vld [vmem:[%s1 + $0xa8] sm:$0xff]
  %v5545 = vld [vmem:[%s1 + $0xb0] sm:$0xf]
  %v5546 = vld [vmem:[%s1 + $0xb4] sm:$0xff]
  %v5547 = vld [vmem:[%s1 + $0xbc] sm:$0xf]
  %v5580 = vunpack.c.l.b16 %v5516
  %v5581 = vunpack.c.h.b16 %v5516
  %v5582 = vunpack.c.l.b16 %v5517
  %v5583 = vunpack.c.l.b16 %v5518
  %v5584 = vunpack.c.h.b16 %v5518
  %v5585 = vunpack.c.l.b16 %v5519
  %v5586 = vunpack.c.l.b16 %v5520
  %v5587 = vunpack.c.h.b16 %v5520
  %v5588 = vunpack.c.l.b16 %v5521
  %v5589 = vunpack.c.l.b16 %v5522
  %v5590 = vunpack.c.h.b16 %v5522
  %v5591 = vunpack.c.l.b16 %v5523
  %v5592 = vunpack.c.l.b16 %v5524
  %v5593 = vunpack.c.h.b16 %v5524
  %v5594 = vunpack.c.l.b16 %v5525
  %v5595 = vunpack.c.l.b16 %v5526
  %v5596 = vunpack.c.h.b16 %v5526
  %v5597 = vunpack.c.l.b16 %v5527
  %v5598 = vunpack.c.l.b16 %v5528
  %v5599 = vunpack.c.h.b16 %v5528
  %v5600 = vunpack.c.l.b16 %v5529
  %v5601 = vunpack.c.l.b16 %v5530
  %v5602 = vunpack.c.h.b16 %v5530
  %v5603 = vunpack.c.l.b16 %v5531
  %v5604 = vunpack.c.l.b16 %v5532
  %v5605 = vunpack.c.h.b16 %v5532
  %v5606 = vunpack.c.l.b16 %v5533
  %v5607 = vunpack.c.l.b16 %v5534
  %v5608 = vunpack.c.h.b16 %v5534
  %v5609 = vunpack.c.l.b16 %v5535
  %v5610 = vunpack.c.l.b16 %v5536
  %v5611 = vunpack.c.h.b16 %v5536
  %v5612 = vunpack.c.l.b16 %v5537
  %v5613 = vunpack.c.l.b16 %v5538
  %v5614 = vunpack.c.h.b16 %v5538
  %v5615 = vunpack.c.l.b16 %v5539
  %v5616 = vunpack.c.l.b16 %v5540
  %v5617 = vunpack.c.h.b16 %v5540
  %v5618 = vunpack.c.l.b16 %v5541
  %v5619 = vunpack.c.l.b16 %v5542
  %v5620 = vunpack.c.h.b16 %v5542
  %v5621 = vunpack.c.l.b16 %v5543
  %v5622 = vunpack.c.l.b16 %v5544
  %v5623 = vunpack.c.h.b16 %v5544
  %v5624 = vunpack.c.l.b16 %v5545
  %v5625 = vunpack.c.l.b16 %v5546
  %v5626 = vunpack.c.h.b16 %v5546
  %v5627 = vunpack.c.l.b16 %v5547
  %v5628 = vpack.c.b16 %v5583, %v5580
  %v5629 = vpack.c.b16 %v5584, %v5581
  %v5630 = vpack.c.b16 %v5585, %v5582
  %v5631 = vpack.c.b16 %v5589, %v5586
  %v5632 = vpack.c.b16 %v5590, %v5587
  %v5633 = vpack.c.b16 %v5591, %v5588
  %v5634 = vpack.c.b16 %v5595, %v5592
  %v5635 = vpack.c.b16 %v5596, %v5593
  %v5636 = vpack.c.b16 %v5597, %v5594
  %v5637 = vpack.c.b16 %v5601, %v5598
  %v5638 = vpack.c.b16 %v5602, %v5599
  %v5639 = vpack.c.b16 %v5603, %v5600
  %v5640 = vpack.c.b16 %v5607, %v5604
  %v5641 = vpack.c.b16 %v5608, %v5605
  %v5642 = vpack.c.b16 %v5609, %v5606
  %v5643 = vpack.c.b16 %v5613, %v5610
  %v5644 = vpack.c.b16 %v5614, %v5611
  %v5645 = vpack.c.b16 %v5615, %v5612
  %v5646 = vpack.c.b16 %v5619, %v5616
  %v5647 = vpack.c.b16 %v5620, %v5617
  %v5648 = vpack.c.b16 %v5621, %v5618
  %v5649 = vpack.c.b16 %v5625, %v5622
  %v5650 = vpack.c.b16 %v5626, %v5623
  %v5651 = vpack.c.b16 %v5627, %v5624
  %5676 = vmatprep.subr.bf16.mxu0 %v5629
  %5677 = vmatpush1.bf16.msra.mxu0 %v5628
  %5678 = vmatprep.subr.bf16.mxu0 %v5632
  %5679 = vmatpush1.bf16.msra.mxu0 %v5631
  %5680 = vmatprep.subr.bf16.mxu0 %v5635
  %5681 = vmatpush1.bf16.msra.mxu0 %v5634
  %5682 = vmatprep.subr.bf16.mxu0 %v5638
  %5683 = vmatpush1.bf16.msra.mxu0 %v5637
  %5684 = vmatprep.subr.bf16.mxu0 %v5641
  %5685 = vmatpush1.bf16.msra.mxu0 %v5640
  %5686 = vmatprep.subr.bf16.mxu0 %v5644
  %5687 = vmatpush1.bf16.msra.mxu0 %v5643
  %5688 = vmatprep.subr.bf16.mxu0 %v5647
  %5689 = vmatpush1.bf16.msra.mxu0 %v5646
  %5690 = vmatprep.subr.bf16.mxu0 %v5650
  %5691 = vmatpush1.bf16.msra.mxu0 %v5649
  %5692 = vmatprep.subr.bf16.mxu0 0
  %5693 = vmatpush1.bf16.msra.mxu0 0
  %5694 = vmatprep.subr.bf16.mxu0 0
  %5695 = vmatpush1.bf16.msra.mxu0 0
  %5696 = vmatprep.subr.bf16.mxu0 0
  %5697 = vmatpush1.bf16.msra.mxu0 0
  %5698 = vmatprep.subr.bf16.mxu0 0
  %5699 = vmatpush1.bf16.msra.mxu0 0
  %5700 = vmatprep.subr.bf16.mxu0 0
  %5701 = vmatpush1.bf16.msra.mxu0 0
  %5702 = vmatprep.subr.bf16.mxu0 0
  %5703 = vmatpush1.bf16.msra.mxu0 0
  %5704 = vmatprep.subr.bf16.mxu0 0
  %5705 = vmatpush1.bf16.msra.mxu0 0
  %5706 = vmatprep.subr.bf16.mxu0 0
  %5707 = vmatpush1.bf16.msra.mxu0 0
  %5708 = vmatprep.mubr.bf16.mxu0 0
  %5709 = vmatmul.mubr.bf16.gmra.mrb[0].mxu0 %v5515
  %v5710 = vpop.f32.mrb[0].mxu0
  %v5711 = vadd.f32 0.0, %v5710
  %v5712 = vpop.f32.mrb[0].mxu0
  %v5713 = vadd.f32 0.0, %v5712
  %v5714 = vpop.f32.mrb[0].mxu0
  %v5715 = vpop.f32.mrb[0].mxu0
  %5716 = vdwg.mxu0
  %5717 = vmatprep.subr.bf16.mxu0 0
  %5718 = vmatpush1.bf16.msra.mxu0 %v5630
  %5719 = vmatprep.subr.bf16.mxu0 0
  %5720 = vmatpush1.bf16.msra.mxu0 %v5633
  %5721 = vmatprep.subr.bf16.mxu0 0
  %5722 = vmatpush1.bf16.msra.mxu0 %v5636
  %5723 = vmatprep.subr.bf16.mxu0 0
  %5724 = vmatpush1.bf16.msra.mxu0 %v5639
  %5725 = vmatprep.subr.bf16.mxu0 0
  %5726 = vmatpush1.bf16.msra.mxu0 %v5642
  %5727 = vmatprep.subr.bf16.mxu0 0
  %5728 = vmatpush1.bf16.msra.mxu0 %v5645
  %5729 = vmatprep.subr.bf16.mxu0 0
  %5730 = vmatpush1.bf16.msra.mxu0 %v5648
  %5731 = vmatprep.subr.bf16.mxu0 0
  %5732 = vmatpush1.bf16.msra.mxu0 %v5651
  %5733 = vmatprep.subr.bf16.mxu0 0
  %5734 = vmatpush1.bf16.msra.mxu0 0
  %5735 = vmatprep.subr.bf16.mxu0 0
  %5736 = vmatpush1.bf16.msra.mxu0 0
  %5737 = vmatprep.subr.bf16.mxu0 0
  %5738 = vmatpush1.bf16.msra.mxu0 0
  %5739 = vmatprep.subr.bf16.mxu0 0
  %5740 = vmatpush1.bf16.msra.mxu0 0
  %5741 = vmatprep.subr.bf16.mxu0 0
  %5742 = vmatpush1.bf16.msra.mxu0 0
  %5743 = vmatprep.subr.bf16.mxu0 0
  %5744 = vmatpush1.bf16.msra.mxu0 0
  %5745 = vmatprep.subr.bf16.mxu0 0
  %5746 = vmatpush1.bf16.msra.mxu0 0
  %5747 = vmatprep.subr.bf16.mxu0 0
  %5748 = vmatpush1.bf16.msra.mxu0 0
  %5749 = vmatprep.mubr.bf16.mxu0 0
  %5750 = vmatmul.mubr.bf16.gmra.mrb[0].mxu0 %v5515
  %v5751 = vpop.f32.mrb[0].mxu0
  %v5752 = vadd.f32 0.0, %v5751
  %v5753 = vpop.f32.mrb[0].mxu0
  %v5754 = vpop.f32.mrb[0].mxu0
  %v5755 = vpop.f32.mrb[0].mxu0
  %5756 = vdwg.mxu0
  %v5757 = vadd.f32 %v5511, %v5711
  %v5758 = vxor.u32 %v5757, 2147483648
  %v5759 = vmul.f32 %v5758, 1.442695
  %v5760 = vpow.pop %v5759
  %v5761 = vadd.f32 %v5760, 1.0
  %v5762 = vrcp.pop %v5761
  %v5763 = vmul.f32 1.0, %v5762
  %v5764 = vadd.f32 %v5512, %v5713
  %v5765 = vxor.u32 %v5764, 2147483648
  %v5766 = vmul.f32 %v5765, 1.442695
  %v5767 = vpow.pop %v5766
  %v5768 = vadd.f32 %v5767, 1.0
  %v5769 = vrcp.pop %v5768
  %v5770 = vmul.f32 1.0, %v5769
  %v5771 = vadd.f32 %v5752, %v300
  %v5772 = vmul.f32 %v5763, %v5771
  %v5773 = vadd.f32 %v5513, %v5772
  %v5774 = vtanh.pop %v5773
  %v5775 = vsub.f32 1.0, %v5770
  %v5776 = vmul.f32 %v5775, %v5774
  %v5777 = vmul.f32 %v5770, %v5514
  %v5778 = vadd.f32 %v5776, %v5777
  %5779 = vst [vmem:[#allocation2] sm:$0xff] %v5778
  %v5780 = vld [vmem:[%s311] sm:$0xff]
  %v5781 = vpack.c.bf16 %v5778, %v5778
  %v5782 = vld [vmem:[%s5] sm:$0xff]
  %v5783 = vld [vmem:[%s5 + $0x8] sm:$0xf]
  %v5784 = vld [vmem:[%s5 + $0xc] sm:$0xff]
  %v5785 = vld [vmem:[%s5 + $0x14] sm:$0xf]
  %v5786 = vld [vmem:[%s5 + $0x18] sm:$0xff]
  %v5787 = vld [vmem:[%s5 + $0x20] sm:$0xf]
  %v5788 = vld [vmem:[%s5 + $0x24] sm:$0xff]
  %v5789 = vld [vmem:[%s5 + $0x2c] sm:$0xf]
  %v5790 = vld [vmem:[%s5 + $0x30] sm:$0xff]
  %v5791 = vld [vmem:[%s5 + $0x38] sm:$0xf]
  %v5792 = vld [vmem:[%s5 + $0x3c] sm:$0xff]
  %v5793 = vld [vmem:[%s5 + $0x44] sm:$0xf]
  %v5794 = vld [vmem:[%s5 + $0x48] sm:$0xff]
  %v5795 = vld [vmem:[%s5 + $0x50] sm:$0xf]
  %v5796 = vld [vmem:[%s5 + $0x54] sm:$0xff]
  %v5797 = vld [vmem:[%s5 + $0x5c] sm:$0xf]
  %v5798 = vld [vmem:[%s5 + $0x60] sm:$0xff]
  %v5799 = vld [vmem:[%s5 + $0x68] sm:$0xf]
  %v5800 = vld [vmem:[%s5 + $0x6c] sm:$0xff]
  %v5801 = vld [vmem:[%s5 + $0x74] sm:$0xf]
  %v5802 = vld [vmem:[%s5 + $0x78] sm:$0xff]
  %v5803 = vld [vmem:[%s5 + $0x80] sm:$0xf]
  %v5804 = vld [vmem:[%s5 + $0x84] sm:$0xff]
  %v5805 = vld [vmem:[%s5 + $0x8c] sm:$0xf]
  %v5806 = vld [vmem:[%s5 + $0x90] sm:$0xff]
  %v5807 = vld [vmem:[%s5 + $0x98] sm:$0xf]
  %v5808 = vld [vmem:[%s5 + $0x9c] sm:$0xff]
  %v5809 = vld [vmem:[%s5 + $0xa4] sm:$0xf]
  %v5810 = vld [vmem:[%s5 + $0xa8] sm:$0xff]
  %v5811 = vld [vmem:[%s5 + $0xb0] sm:$0xf]
  %v5812 = vld [vmem:[%s5 + $0xb4] sm:$0xff]
  %v5813 = vld [vmem:[%s5 + $0xbc] sm:$0xf]
  %v5846 = vunpack.c.l.b16 %v5782
  %v5847 = vunpack.c.h.b16 %v5782
  %v5848 = vunpack.c.l.b16 %v5783
  %v5849 = vunpack.c.l.b16 %v5784
  %v5850 = vunpack.c.h.b16 %v5784
  %v5851 = vunpack.c.l.b16 %v5785
  %v5852 = vunpack.c.l.b16 %v5786
  %v5853 = vunpack.c.h.b16 %v5786
  %v5854 = vunpack.c.l.b16 %v5787
  %v5855 = vunpack.c.l.b16 %v5788
  %v5856 = vunpack.c.h.b16 %v5788
  %v5857 = vunpack.c.l.b16 %v5789
  %v5858 = vunpack.c.l.b16 %v5790
  %v5859 = vunpack.c.h.b16 %v5790
  %v5860 = vunpack.c.l.b16 %v5791
  %v5861 = vunpack.c.l.b16 %v5792
  %v5862 = vunpack.c.h.b16 %v5792
  %v5863 = vunpack.c.l.b16 %v5793
  %v5864 = vunpack.c.l.b16 %v5794
  %v5865 = vunpack.c.h.b16 %v5794
  %v5866 = vunpack.c.l.b16 %v5795
  %v5867 = vunpack.c.l.b16 %v5796
  %v5868 = vunpack.c.h.b16 %v5796
  %v5869 = vunpack.c.l.b16 %v5797
  %v5870 = vunpack.c.l.b16 %v5798
  %v5871 = vunpack.c.h.b16 %v5798
  %v5872 = vunpack.c.l.b16 %v5799
  %v5873 = vunpack.c.l.b16 %v5800
  %v5874 = vunpack.c.h.b16 %v5800
  %v5875 = vunpack.c.l.b16 %v5801
  %v5876 = vunpack.c.l.b16 %v5802
  %v5877 = vunpack.c.h.b16 %v5802
  %v5878 = vunpack.c.l.b16 %v5803
  %v5879 = vunpack.c.l.b16 %v5804
  %v5880 = vunpack.c.h.b16 %v5804
  %v5881 = vunpack.c.l.b16 %v5805
  %v5882 = vunpack.c.l.b16 %v5806
  %v5883 = vunpack.c.h.b16 %v5806
  %v5884 = vunpack.c.l.b16 %v5807
  %v5885 = vunpack.c.l.b16 %v5808
  %v5886 = vunpack.c.h.b16 %v5808
  %v5887 = vunpack.c.l.b16 %v5809
  %v5888 = vunpack.c.l.b16 %v5810
  %v5889 = vunpack.c.h.b16 %v5810
  %v5890 = vunpack.c.l.b16 %v5811
  %v5891 = vunpack.c.l.b16 %v5812
  %v5892 = vunpack.c.h.b16 %v5812
  %v5893 = vunpack.c.l.b16 %v5813
  %v5894 = vpack.c.b16 %v5849, %v5846
  %v5895 = vpack.c.b16 %v5850, %v5847
  %v5896 = vpack.c.b16 %v5851, %v5848
  %v5897 = vpack.c.b16 %v5855, %v5852
  %v5898 = vpack.c.b16 %v5856, %v5853
  %v5899 = vpack.c.b16 %v5857, %v5854
  %v5900 = vpack.c.b16 %v5861, %v5858
  %v5901 = vpack.c.b16 %v5862, %v5859
  %v5902 = vpack.c.b16 %v5863, %v5860
  %v5903 = vpack.c.b16 %v5867, %v5864
  %v5904 = vpack.c.b16 %v5868, %v5865
  %v5905 = vpack.c.b16 %v5869, %v5866
  %v5906 = vpack.c.b16 %v5873, %v5870
  %v5907 = vpack.c.b16 %v5874, %v5871
  %v5908 = vpack.c.b16 %v5875, %v5872
  %v5909 = vpack.c.b16 %v5879, %v5876
  %v5910 = vpack.c.b16 %v5880, %v5877
  %v5911 = vpack.c.b16 %v5881, %v5878
  %v5912 = vpack.c.b16 %v5885, %v5882
  %v5913 = vpack.c.b16 %v5886, %v5883
  %v5914 = vpack.c.b16 %v5887, %v5884
  %v5915 = vpack.c.b16 %v5891, %v5888
  %v5916 = vpack.c.b16 %v5892, %v5889
  %v5917 = vpack.c.b16 %v5893, %v5890
  %5942 = vmatprep.subr.bf16.mxu0 %v5895
  %5943 = vmatpush1.bf16.msra.mxu0 %v5894
  %5944 = vmatprep.subr.bf16.mxu0 %v5898
  %5945 = vmatpush1.bf16.msra.mxu0 %v5897
  %5946 = vmatprep.subr.bf16.mxu0 %v5901
  %5947 = vmatpush1.bf16.msra.mxu0 %v5900
  %5948 = vmatprep.subr.bf16.mxu0 %v5904
  %5949 = vmatpush1.bf16.msra.mxu0 %v5903
  %5950 = vmatprep.subr.bf16.mxu0 %v5907
  %5951 = vmatpush1.bf16.msra.mxu0 %v5906
  %5952 = vmatprep.subr.bf16.mxu0 %v5910
  %5953 = vmatpush1.bf16.msra.mxu0 %v5909
  %5954 = vmatprep.subr.bf16.mxu0 %v5913
  %5955 = vmatpush1.bf16.msra.mxu0 %v5912
  %5956 = vmatprep.subr.bf16.mxu0 %v5916
  %5957 = vmatpush1.bf16.msra.mxu0 %v5915
  %5958 = vmatprep.subr.bf16.mxu0 0
  %5959 = vmatpush1.bf16.msra.mxu0 0
  %5960 = vmatprep.subr.bf16.mxu0 0
  %5961 = vmatpush1.bf16.msra.mxu0 0
  %5962 = vmatprep.subr.bf16.mxu0 0
  %5963 = vmatpush1.bf16.msra.mxu0 0
  %5964 = vmatprep.subr.bf16.mxu0 0
  %5965 = vmatpush1.bf16.msra.mxu0 0
  %5966 = vmatprep.subr.bf16.mxu0 0
  %5967 = vmatpush1.bf16.msra.mxu0 0
  %5968 = vmatprep.subr.bf16.mxu0 0
  %5969 = vmatpush1.bf16.msra.mxu0 0
  %5970 = vmatprep.subr.bf16.mxu0 0
  %5971 = vmatpush1.bf16.msra.mxu0 0
  %5972 = vmatprep.subr.bf16.mxu0 0
  %5973 = vmatpush1.bf16.msra.mxu0 0
  %5974 = vmatprep.mubr.bf16.mxu0 0
  %5975 = vmatmul.mubr.bf16.gmra.mrb[0].mxu0 %v5781
  %v5976 = vpop.f32.mrb[0].mxu0
  %v5977 = vadd.f32 %v350, %v5976
  %v5978 = vpop.f32.mrb[0].mxu0
  %v5979 = vadd.f32 %v354, %v5978
  %v5980 = vpop.f32.mrb[0].mxu0
  %v5981 = vpop.f32.mrb[0].mxu0
  %5982 = vdwg.mxu0
  %5983 = vmatprep.subr.bf16.mxu0 0
  %5984 = vmatpush1.bf16.msra.mxu0 %v5896
  %5985 = vmatprep.subr.bf16.mxu0 0
  %5986 = vmatpush1.bf16.msra.mxu0 %v5899
  %5987 = vmatprep.subr.bf16.mxu0 0
  %5988 = vmatpush1.bf16.msra.mxu0 %v5902
  %5989 = vmatprep.subr.bf16.mxu0 0
  %5990 = vmatpush1.bf16.msra.mxu0 %v5905
  %5991 = vmatprep.subr.bf16.mxu0 0
  %5992 = vmatpush1.bf16.msra.mxu0 %v5908
  %5993 = vmatprep.subr.bf16.mxu0 0
  %5994 = vmatpush1.bf16.msra.mxu0 %v5911
  %5995 = vmatprep.subr.bf16.mxu0 0
  %5996 = vmatpush1.bf16.msra.mxu0 %v5914
  %5997 = vmatprep.subr.bf16.mxu0 0
  %5998 = vmatpush1.bf16.msra.mxu0 %v5917
  %5999 = vmatprep.subr.bf16.mxu0 0
  %6000 = vmatpush1.bf16.msra.mxu0 0
  %6001 = vmatprep.subr.bf16.mxu0 0
  %6002 = vmatpush1.bf16.msra.mxu0 0
  %6003 = vmatprep.subr.bf16.mxu0 0
  %6004 = vmatpush1.bf16.msra.mxu0 0
  %6005 = vmatprep.subr.bf16.mxu0 0
  %6006 = vmatpush1.bf16.msra.mxu0 0
  %6007 = vmatprep.subr.bf16.mxu0 0
  %6008 = vmatpush1.bf16.msra.mxu0 0
  %6009 = vmatprep.subr.bf16.mxu0 0
  %6010 = vmatpush1.bf16.msra.mxu0 0
  %6011 = vmatprep.subr.bf16.mxu0 0
  %6012 = vmatpush1.bf16.msra.mxu0 0
  %6013 = vmatprep.subr.bf16.mxu0 0
  %6014 = vmatpush1.bf16.msra.mxu0 0
  %6015 = vmatprep.mubr.bf16.mxu0 0
  %6016 = vmatmul.mubr.bf16.gmra.mrb[0].mxu0 %v5781
  %v6017 = vpop.f32.mrb[0].mxu0
  %v6018 = vadd.f32 %v358, %v6017
  %v6019 = vpop.f32.mrb[0].mxu0
  %v6020 = vpop.f32.mrb[0].mxu0
  %v6021 = vpop.f32.mrb[0].mxu0
  %6022 = vdwg.mxu0
  %v6023 = vpack.c.bf16 %v5780, %v5780
  %v6024 = vld [vmem:[%s2] sm:$0xff]
  %v6025 = vld [vmem:[%s2 + $0x8] sm:$0xf]
  %v6026 = vld [vmem:[%s2 + $0xc] sm:$0xff]
  %v6027 = vld [vmem:[%s2 + $0x14] sm:$0xf]
  %v6028 = vld [vmem:[%s2 + $0x18] sm:$0xff]
  %v6029 = vld [vmem:[%s2 + $0x20] sm:$0xf]
  %v6030 = vld [vmem:[%s2 + $0x24] sm:$0xff]
  %v6031 = vld [vmem:[%s2 + $0x2c] sm:$0xf]
  %v6032 = vld [vmem:[%s2 + $0x30] sm:$0xff]
  %v6033 = vld [vmem:[%s2 + $0x38] sm:$0xf]
  %v6034 = vld [vmem:[%s2 + $0x3c] sm:$0xff]
  %v6035 = vld [vmem:[%s2 + $0x44] sm:$0xf]
  %v6036 = vld [vmem:[%s2 + $0x48] sm:$0xff]
  %v6037 = vld [vmem:[%s2 + $0x50] sm:$0xf]
  %v6038 = vld [vmem:[%s2 + $0x54] sm:$0xff]
  %v6039 = vld [vmem:[%s2 + $0x5c] sm:$0xf]
  %v6040 = vld [vmem:[%s2 + $0x60] sm:$0xff]
  %v6041 = vld [vmem:[%s2 + $0x68] sm:$0xf]
  %v6042 = vld [vmem:[%s2 + $0x6c] sm:$0xff]
  %v6043 = vld [vmem:[%s2 + $0x74] sm:$0xf]
  %v6044 = vld [vmem:[%s2 + $0x78] sm:$0xff]
  %v6045 = vld [vmem:[%s2 + $0x80] sm:$0xf]
  %v6046 = vld [vmem:[%s2 + $0x84] sm:$0xff]
  %v6047 = vld [vmem:[%s2 + $0x8c] sm:$0xf]
  %v6048 = vld [vmem:[%s2 + $0x90] sm:$0xff]
  %v6049 = vld [vmem:[%s2 + $0x98] sm:$0xf]
  %v6050 = vld [vmem:[%s2 + $0x9c] sm:$0xff]
  %v6051 = vld [vmem:[%s2 + $0xa4] sm:$0xf]
  %v6052 = vld [vmem:[%s2 + $0xa8] sm:$0xff]
  %v6053 = vld [vmem:[%s2 + $0xb0] sm:$0xf]
  %v6054 = vld [vmem:[%s2 + $0xb4] sm:$0xff]
  %v6055 = vld [vmem:[%s2 + $0xbc] sm:$0xf]
  %v6088 = vunpack.c.l.b16 %v6024
  %v6089 = vunpack.c.h.b16 %v6024
  %v6090 = vunpack.c.l.b16 %v6025
  %v6091 = vunpack.c.l.b16 %v6026
  %v6092 = vunpack.c.h.b16 %v6026
  %v6093 = vunpack.c.l.b16 %v6027
  %v6094 = vunpack.c.l.b16 %v6028
  %v6095 = vunpack.c.h.b16 %v6028
  %v6096 = vunpack.c.l.b16 %v6029
  %v6097 = vunpack.c.l.b16 %v6030
  %v6098 = vunpack.c.h.b16 %v6030
  %v6099 = vunpack.c.l.b16 %v6031
  %v6100 = vunpack.c.l.b16 %v6032
  %v6101 = vunpack.c.h.b16 %v6032
  %v6102 = vunpack.c.l.b16 %v6033
  %v6103 = vunpack.c.l.b16 %v6034
  %v6104 = vunpack.c.h.b16 %v6034
  %v6105 = vunpack.c.l.b16 %v6035
  %v6106 = vunpack.c.l.b16 %v6036
  %v6107 = vunpack.c.h.b16 %v6036
  %v6108 = vunpack.c.l.b16 %v6037
  %v6109 = vunpack.c.l.b16 %v6038
  %v6110 = vunpack.c.h.b16 %v6038
  %v6111 = vunpack.c.l.b16 %v6039
  %v6112 = vunpack.c.l.b16 %v6040
  %v6113 = vunpack.c.h.b16 %v6040
  %v6114 = vunpack.c.l.b16 %v6041
  %v6115 = vunpack.c.l.b16 %v6042
  %v6116 = vunpack.c.h.b16 %v6042
  %v6117 = vunpack.c.l.b16 %v6043
  %v6118 = vunpack.c.l.b16 %v6044
  %v6119 = vunpack.c.h.b16 %v6044
  %v6120 = vunpack.c.l.b16 %v6045
  %v6121 = vunpack.c.l.b16 %v6046
  %v6122 = vunpack.c.h.b16 %v6046
  %v6123 = vunpack.c.l.b16 %v6047
  %v6124 = vunpack.c.l.b16 %v6048
  %v6125 = vunpack.c.h.b16 %v6048
  %v6126 = vunpack.c.l.b16 %v6049
  %v6127 = vunpack.c.l.b16 %v6050
  %v6128 = vunpack.c.h.b16 %v6050
  %v6129 = vunpack.c.l.b16 %v6051
  %v6130 = vunpack.c.l.b16 %v6052
  %v6131 = vunpack.c.h.b16 %v6052
  %v6132 = vunpack.c.l.b16 %v6053
  %v6133 = vunpack.c.l.b16 %v6054
  %v6134 = vunpack.c.h.b16 %v6054
  %v6135 = vunpack.c.l.b16 %v6055
  %v6136 = vpack.c.b16 %v6091, %v6088
  %v6137 = vpack.c.b16 %v6092, %v6089
  %v6138 = vpack.c.b16 %v6093, %v6090
  %v6139 = vpack.c.b16 %v6097, %v6094
  %v6140 = vpack.c.b16 %v6098, %v6095
  %v6141 = vpack.c.b16 %v6099, %v6096
  %v6142 = vpack.c.b16 %v6103, %v6100
  %v6143 = vpack.c.b16 %v6104, %v6101
  %v6144 = vpack.c.b16 %v6105, %v6102
  %v6145 = vpack.c.b16 %v6109, %v6106
  %v6146 = vpack.c.b16 %v6110, %v6107
  %v6147 = vpack.c.b16 %v6111, %v6108
  %v6148 = vpack.c.b16 %v6115, %v6112
  %v6149 = vpack.c.b16 %v6116, %v6113
  %v6150 = vpack.c.b16 %v6117, %v6114
  %v6151 = vpack.c.b16 %v6121, %v6118
  %v6152 = vpack.c.b16 %v6122, %v6119
  %v6153 = vpack.c.b16 %v6123, %v6120
  %v6154 = vpack.c.b16 %v6127, %v6124
  %v6155 = vpack.c.b16 %v6128, %v6125
  %v6156 = vpack.c.b16 %v6129, %v6126
  %v6157 = vpack.c.b16 %v6133, %v6130
  %v6158 = vpack.c.b16 %v6134, %v6131
  %v6159 = vpack.c.b16 %v6135, %v6132
  %6184 = vmatprep.subr.bf16.mxu0 %v6137
  %6185 = vmatpush1.bf16.msra.mxu0 %v6136
  %6186 = vmatprep.subr.bf16.mxu0 %v6140
  %6187 = vmatpush1.bf16.msra.mxu0 %v6139
  %6188 = vmatprep.subr.bf16.mxu0 %v6143
  %6189 = vmatpush1.bf16.msra.mxu0 %v6142
  %6190 = vmatprep.subr.bf16.mxu0 %v6146
  %6191 = vmatpush1.bf16.msra.mxu0 %v6145
  %6192 = vmatprep.subr.bf16.mxu0 %v6149
  %6193 = vmatpush1.bf16.msra.mxu0 %v6148
  %6194 = vmatprep.subr.bf16.mxu0 %v6152
  %6195 = vmatpush1.bf16.msra.mxu0 %v6151
  %6196 = vmatprep.subr.bf16.mxu0 %v6155
  %6197 = vmatpush1.bf16.msra.mxu0 %v6154
  %6198 = vmatprep.subr.bf16.mxu0 %v6158
  %6199 = vmatpush1.bf16.msra.mxu0 %v6157
  %6200 = vmatprep.subr.bf16.mxu0 0
  %6201 = vmatpush1.bf16.msra.mxu0 0
  %6202 = vmatprep.subr.bf16.mxu0 0
  %6203 = vmatpush1.bf16.msra.mxu0 0
  %6204 = vmatprep.subr.bf16.mxu0 0
  %6205 = vmatpush1.bf16.msra.mxu0 0
  %6206 = vmatprep.subr.bf16.mxu0 0
  %6207 = vmatpush1.bf16.msra.mxu0 0
  %6208 = vmatprep.subr.bf16.mxu0 0
  %6209 = vmatpush1.bf16.msra.mxu0 0
  %6210 = vmatprep.subr.bf16.mxu0 0
  %6211 = vmatpush1.bf16.msra.mxu0 0
  %6212 = vmatprep.subr.bf16.mxu0 0
  %6213 = vmatpush1.bf16.msra.mxu0 0
  %6214 = vmatprep.subr.bf16.mxu0 0
  %6215 = vmatpush1.bf16.msra.mxu0 0
  %6216 = vmatprep.mubr.bf16.mxu0 0
  %6217 = vmatmul.mubr.bf16.gmra.mrb[0].mxu0 %v6023
  %v6218 = vpop.f32.mrb[0].mxu0
  %v6219 = vadd.f32 0.0, %v6218
  %v6220 = vpop.f32.mrb[0].mxu0
  %v6221 = vadd.f32 0.0, %v6220
  %v6222 = vpop.f32.mrb[0].mxu0
  %v6223 = vpop.f32.mrb[0].mxu0
  %6224 = vdwg.mxu0
  %6225 = vmatprep.subr.bf16.mxu0 0
  %6226 = vmatpush1.bf16.msra.mxu0 %v6138
  %6227 = vmatprep.subr.bf16.mxu0 0
  %6228 = vmatpush1.bf16.msra.mxu0 %v6141
  %6229 = vmatprep.subr.bf16.mxu0 0
  %6230 = vmatpush1.bf16.msra.mxu0 %v6144
  %6231 = vmatprep.subr.bf16.mxu0 0
  %6232 = vmatpush1.bf16.msra.mxu0 %v6147
  %6233 = vmatprep.subr.bf16.mxu0 0
  %6234 = vmatpush1.bf16.msra.mxu0 %v6150
  %6235 = vmatprep.subr.bf16.mxu0 0
  %6236 = vmatpush1.bf16.msra.mxu0 %v6153
  %6237 = vmatprep.subr.bf16.mxu0 0
  %6238 = vmatpush1.bf16.msra.mxu0 %v6156
  %6239 = vmatprep.subr.bf16.mxu0 0
  %6240 = vmatpush1.bf16.msra.mxu0 %v6159
  %6241 = vmatprep.subr.bf16.mxu0 0
  %6242 = vmatpush1.bf16.msra.mxu0 0
  %6243 = vmatprep.subr.bf16.mxu0 0
  %6244 = vmatpush1.bf16.msra.mxu0 0
  %6245 = vmatprep.subr.bf16.mxu0 0
  %6246 = vmatpush1.bf16.msra.mxu0 0
  %6247 = vmatprep.subr.bf16.mxu0 0
  %6248 = vmatpush1.bf16.msra.mxu0 0
  %6249 = vmatprep.subr.bf16.mxu0 0
  %6250 = vmatpush1.bf16.msra.mxu0 0
  %6251 = vmatprep.subr.bf16.mxu0 0
  %6252 = vmatpush1.bf16.msra.mxu0 0
  %6253 = vmatprep.subr.bf16.mxu0 0
  %6254 = vmatpush1.bf16.msra.mxu0 0
  %6255 = vmatprep.subr.bf16.mxu0 0
  %6256 = vmatpush1.bf16.msra.mxu0 0
  %6257 = vmatprep.mubr.bf16.mxu0 0
  %6258 = vmatmul.mubr.bf16.gmra.mrb[0].mxu0 %v6023
  %v6259 = vpop.f32.mrb[0].mxu0
  %v6260 = vadd.f32 0.0, %v6259
  %v6261 = vpop.f32.mrb[0].mxu0
  %v6262 = vpop.f32.mrb[0].mxu0
  %v6263 = vpop.f32.mrb[0].mxu0
  %6264 = vdwg.mxu0
  %v6265 = vadd.f32 %v5977, %v6219
  %v6266 = vxor.u32 %v6265, 2147483648
  %v6267 = vmul.f32 %v6266, 1.442695
  %v6268 = vpow.pop %v6267
  %v6269 = vadd.f32 %v6268, 1.0
  %v6270 = vrcp.pop %v6269
  %v6271 = vmul.f32 1.0, %v6270
  %v6272 = vadd.f32 %v5979, %v6221
  %v6273 = vxor.u32 %v6272, 2147483648
  %v6274 = vmul.f32 %v6273, 1.442695
  %v6275 = vpow.pop %v6274
  %v6276 = vadd.f32 %v6275, 1.0
  %v6277 = vrcp.pop %v6276
  %v6278 = vmul.f32 1.0, %v6277
  %v6279 = vadd.f32 %v6260, %v831
  %v6280 = vmul.f32 %v6271, %v6279
  %v6281 = vadd.f32 %v6018, %v6280
  %v6282 = vtanh.pop %v6281
  %v6283 = vsub.f32 1.0, %v6278
  %v6284 = vmul.f32 %v6283, %v6282
  %v6285 = vmul.f32 %v6278, %v5780
  %v6286 = vadd.f32 %v6284, %v6285
  %6287 = vst [vmem:[%s311] sm:$0xff] %v6286
  // Predicated region
  $region34: #{_encoder_gru_forward_jit.1} parent=0 // pred_check
    %p6288 = pneg %p27
  $region35: #{_encoder_gru_forward_jit.1} parent=0 // pred_check_branch
    %6290 = sbr.rel (%p6288) target = $region37
  $region36: #{_encoder_gru_forward_jit.1} parent=0 // pred_region
    %v6291 = vld [vmem:[#allocation2] sm:$0xff]
    %v6292 = vld [vmem:[#allocation2 + $0x8] sm:$0xff]
    %6293 = vst [vmem:[%s7] sm:$0xff] %v6291
    %6294 = vst [vmem:[%s7 + $0x8] sm:$0xff] %v6292
  $region37: #{_encoder_gru_forward_jit.1} parent=0 // pred_fallthru
    _
  // Predicated region
  $region38: #{_encoder_gru_forward_jit.1} parent=0 // pred_check
    _
  $region39: #{_encoder_gru_forward_jit.1} parent=0 // pred_check_branch
    %6296 = sbr.rel (0) target = $region41
  $region40: #{_encoder_gru_forward_jit.1} parent=0 // pred_region
    _
  $region41: #{_encoder_gru_forward_jit.1} parent=0 // pred_fallthru
    _
  // Predicated region
  $region42: #{_encoder_gru_forward_jit.1} parent=0 // pred_check
    _
  $region43: #{_encoder_gru_forward_jit.1} parent=0 // pred_check_branch
    %6298 = sbr.rel (0) target = $region45
  $region44: #{_encoder_gru_forward_jit.1} parent=0 // pred_region
    _
  $region45: #{_encoder_gru_forward_jit.1} parent=0 // pred_fallthru
    _

</llo_original>
